<compile_context>
chip_gen: v7x
topology: tpu7x:2x2x1
jax: 0.10.0
libtpu: 0.0.40
codegen_flags: <defaults>
</compile_context>

<pallas_src>
import numpy as np
import jax
import jax.numpy as jnp
from jax.experimental import pallas as pl
from jax.experimental.pallas import tpu as pltpu


def _round_up(v, m):
    return ((v + m - 1) // m) * m


def _block_dft_consts(h, w, rows, cols, scale, nr_pad, nc_pad):
    """Real/imag parts of the forward / inverse DFT matrices restricted to the
    zeroed frequency block (rows R, cols C).

      Yb   = Fh[R, :] @ x_den @ Fw[:, C]                     (forward, block only)
      corr = real( conj(Fh)[:, R]/h @ Yb @ conj(Fw)[C, :]/w ) (inverse, block only)

    `scale` (255 or 1) is folded into the forward row matrices; the 1/h and
    1/w iFFT normalizations into the inverse ones.  Matrices are zero-padded
    along the block dimension to a sublane multiple (padding contributes
    exactly zero) and pre-cast to bf16 for single-pass MXU dots.
    """
    p = np.arange(h, dtype=np.float64)
    q = np.arange(w, dtype=np.float64)
    r = np.asarray(rows, dtype=np.float64)
    c = np.asarray(cols, dtype=np.float64)

    ang_a = -2.0 * np.pi * np.outer(r, p) / h      # (nR, h)  forward rows
    ang_b = -2.0 * np.pi * np.outer(q, c) / w      # (w, nC)  forward cols
    ang_g = +2.0 * np.pi * np.outer(p, r) / h      # (h, nR)  inverse rows
    ang_h = +2.0 * np.pi * np.outer(c, q) / w      # (nC, w)  inverse cols

    ar, ai = scale * np.cos(ang_a), scale * np.sin(ang_a)
    br, bi = np.cos(ang_b), np.sin(ang_b)
    gr, gi = np.cos(ang_g) / h, np.sin(ang_g) / h
    hr, hi = np.cos(ang_h) / w, np.sin(ang_h) / w

    def pad_to(m, axis, n):
        widths = [(0, 0), (0, 0)]
        widths[axis] = (0, n - m.shape[axis])
        return np.pad(m, widths)

    mats = (pad_to(ar, 0, nr_pad), pad_to(ai, 0, nr_pad),
            pad_to(br, 1, nc_pad), pad_to(bi, 1, nc_pad),
            pad_to(gr, 1, nr_pad), pad_to(gi, 1, nr_pad),
            pad_to(hr, 0, nc_pad), pad_to(hi, 0, nc_pad))
    return [jnp.asarray(m.astype(np.float32), dtype=jnp.bfloat16) for m in mats]


def _make_masked_kernel(tb, scale):
    bf16 = jnp.bfloat16
    f32 = jnp.float32

    def dot(a, b):
        return jnp.dot(a, b, preferred_element_type=f32)   # bf16 single MXU pass

    def kernel(x_ref, ar, ai, br, bi, gr, gi, hr, hi, o_ref):
        # Hoist the (tiny) constant loads out of the unrolled image loop.
        a_r, a_i = ar[...], ai[...]          # (nRp, h)
        b_r, b_i = br[...], bi[...]          # (w, nCp)
        g_r, g_i = gr[...], gi[...]          # (h, nRp)
        h_r, h_i = hr[...], hi[...]          # (nCp, w)

        for t in range(tb):                  # tb <= 8; intermediates are tiny
            x = x_ref[t]                     # (h, w) f32
            xb = x.astype(bf16)
            # ---- forward-FFT coefficients of the zeroed block -------------
            tr = dot(a_r, xb)                # (nRp, w)
            ti = dot(a_i, xb)
            trb, tib = tr.astype(bf16), ti.astype(bf16)
            ybr = dot(trb, b_r) - dot(tib, b_i)     # (nRp, nCp)
            ybi = dot(trb, b_i) + dot(tib, b_r)
            ybrb, ybib = ybr.astype(bf16), ybi.astype(bf16)
            # ---- real part of the inverse FFT of that block ---------------
            pr = dot(g_r, ybrb) - dot(g_i, ybib)    # (h, nCp)
            pi = dot(g_r, ybib) + dot(g_i, ybrb)
            prb, pib = pr.astype(bf16), pi.astype(bf16)
            corr = dot(prb, h_r) - dot(pib, h_i)    # (h, w) f32
            # ---- out = x_den - corr (main term kept exact f32) -------------
            o_ref[t] = (scale * x - corr).astype(o_ref.dtype)

    return kernel


def _make_scale_kernel(scale):
    # Empty-mask case (int(beta*h)==0 or int(beta*w)==0): torch's slice is
    # empty, so out == ifft2(fft2(x_den)).real == x_den exactly.
    def kernel(x_ref, o_ref):
        o_ref[...] = (scale * x_ref[...]).astype(o_ref.dtype)
    return kernel


def _tensorcores_per_chip():
    """2 on v7x (two TensorCores share the chip), 1 on v5e/v6e.  Defensive:
    falls back to 1 if the runtime exposes nothing usable."""
    try:
        d = jax.devices()[0]
        n = getattr(d, "num_cores", None)
        if isinstance(n, int) and n > 0:
            return n
        kind = str(getattr(d, "device_kind", "")).lower()
        if "v7" in kind or "7x" in kind:
            return 2
    except Exception:
        pass
    return 1


def _pick_images_per_step(n_img, h, w, min_steps, budget_bytes, cap=8):
    """Largest divisor of n_img (<= cap, VMEM budget respected) that still
    leaves >= min_steps grid steps.  min_steps is 2 only on 2-TC chips (v7x);
    on single-TC chips a single big step avoids the ~0.35us/step overhead."""
    per_step_bytes = 4 * h * w * 4           # in + out blocks, double-buffered f32
    best = 1
    for tb in range(1, min(n_img, cap) + 1):
        if n_img % tb:
            continue
        if n_img // tb < min_steps:
            continue
        if tb * per_step_bytes > budget_bytes:
            continue
        best = tb
    return best


def fourier_converter(x, beta=0.008, is_normalized=True):
    b, c, h, w = x.shape
    n_img = b * c
    xf = x.reshape(n_img, h, w).astype(jnp.float32)
    scale = 255.0 if is_normalized else 1.0

    mh, mw = int(beta * h), int(beta * w)
    cy, cx = h // 2, w // 2
    apply_mask = (mh > 0) and (mw > 0)
    if apply_mask:
        # TODO(synk): torch wraps a negative start index; only the
        # non-wrapping case (mh <= h//2, mw <= w//2) is implemented.
        assert cy - mh >= 0 and cx - mw >= 0, "wrapping frequency mask unsupported"

    # ---- generation-aware grid / VMEM sizing --------------------------------
    cores = _tensorcores_per_chip()
    min_steps = 2 if cores >= 2 else 1
    vmem_budget = 40 * 1024 * 1024
    tb = _pick_images_per_step(n_img, h, w, min_steps, vmem_budget)
    grid = (n_img // tb,)

    nr_pad = _round_up(2 * mh, 8) if apply_mask else 0
    nc_pad = _round_up(2 * mw, 8) if apply_mask else 0
    const_bytes = 2 * 2 * 2 * (nr_pad * h + nc_pad * w)        # bf16, double-buffered
    vmem_need = 4 * tb * h * w * 4 + const_bytes + 2 * h * w * 4 + (2 << 20)
    vmem_limit = int(min(max(vmem_need, 16 << 20), 48 << 20))  # valid on v7x's 64 MiB

    img_spec = pl.BlockSpec((tb, h, w), lambda i: (i, 0, 0))
    if apply_mask:
        rows = np.arange(cy - mh, cy + mh)
        cols = np.arange(cx - mw, cx + mw)
        consts = _block_dft_consts(h, w, rows, cols, scale, nr_pad, nc_pad)
        kernel = _make_masked_kernel(tb, scale)
        in_specs = [img_spec] + [pl.BlockSpec(m.shape, lambda i: (0, 0)) for m in consts]
        operands = [xf] + consts
    else:
        kernel = _make_scale_kernel(scale)
        in_specs = [img_spec]
        operands = [xf]

    out = pl.pallas_call(
        kernel,
        out_shape=jax.ShapeDtypeStruct((n_img, h, w), jnp.float32),
        grid_spec=pltpu.PrefetchScalarGridSpec(
            num_scalar_prefetch=0,
            grid=grid,
            in_specs=in_specs,
            out_specs=pl.BlockSpec((tb, h, w), lambda i: (i, 0, 0)),
        ),
        # x and out have identical shapes / index maps; each block is fully
        # read before its slot is written back, so aliasing is safe.
        input_output_aliases={0: 0},
        compiler_params=pltpu.CompilerParams(
            dimension_semantics=("parallel",),   # shards steps across v7x's 2 TCs
            vmem_limit_bytes=vmem_limit,
        ),
    )(*operands)

    return out.reshape(b, c, h, w)


def _reference(x, beta=0.008, is_normalized=True):
    xd = x * 255.0 if is_normalized else x
    xfft = jnp.fft.fft2(xd, axes=(-2, -1))
    _, _, h, w = xfft.shape
    mh, mw = int(beta * h), int(beta * w)
    cy, cx = h // 2, w // 2
    mask = np.ones((h, w), dtype=np.float32)
    mask[-mh + cy:mh + cy, -mw + cx:mw + cx] = 0.0
    xfft = xfft * mask
    return jnp.real(jnp.fft.ifft2(xfft, axes=(-2, -1)))


if __name__ == "__main__":
    key = jax.random.PRNGKey(0)
    # h=w=128 so int(beta*h)=1 and the zeroed frequency block is non-trivial.
    x = jax.random.uniform(key, (2, 3, 128, 128), dtype=jnp.float32)

    out = fourier_converter(x, beta=0.008, is_normalized=True)
    out = jax.block_until_ready(out)

    ref = _reference(x, beta=0.008, is_normalized=True)
    max_err = float(jnp.max(jnp.abs(out - ref)))
    assert out.shape == (2, 3, 128, 128)
    assert max_err < 0.5, f"max abs err {max_err}"

    # Also exercise the empty-mask path (int(beta*64)==0): out must equal 255*x.
    x2 = jax.random.uniform(jax.random.PRNGKey(1), (1, 2, 64, 64), dtype=jnp.float32)
    out2 = jax.block_until_ready(fourier_converter(x2, beta=0.008, is_normalized=True))
    err2 = float(jnp.max(jnp.abs(out2 - 255.0 * x2)))
    assert err2 < 1e-3, f"empty-mask err {err2}"

    print("KERNEL_OK")
</pallas_src>

<mosaic_0001>
module attributes {stable_mosaic.version = 11 : i64} {
  func.func @kernel(%arg0: i32, %arg1: memref<6x128x128xf32, #tpu.memory_space<vmem>>, %arg2: memref<8x128xbf16, #tpu.memory_space<vmem>>, %arg3: memref<8x128xbf16, #tpu.memory_space<vmem>>, %arg4: memref<128x8xbf16, #tpu.memory_space<vmem>>, %arg5: memref<128x8xbf16, #tpu.memory_space<vmem>>, %arg6: memref<128x8xbf16, #tpu.memory_space<vmem>>, %arg7: memref<128x8xbf16, #tpu.memory_space<vmem>>, %arg8: memref<8x128xbf16, #tpu.memory_space<vmem>>, %arg9: memref<8x128xbf16, #tpu.memory_space<vmem>>, %arg10: memref<6x128x128xf32, #tpu.memory_space<vmem>>) attributes {dimension_semantics = [#tpu.dimension_semantics<parallel>], iteration_bounds = array<i64: 1>, scalar_prefetch = 0 : i64, scratch_operands = 0 : i64, tpu.core_type = #tpu.core_type<tc>, window_params = [{transform_indices = @transform_0, window_bounds = array<i64: 6, 128, 128>}, {pipeline_mode = #tpu.pipeline_mode<synchronous>, transform_indices = @transform_1, window_bounds = array<i64: 8, 128>}, {pipeline_mode = #tpu.pipeline_mode<synchronous>, transform_indices = @transform_2, window_bounds = array<i64: 8, 128>}, {pipeline_mode = #tpu.pipeline_mode<synchronous>, transform_indices = @transform_3, window_bounds = array<i64: 128, 8>}, {pipeline_mode = #tpu.pipeline_mode<synchronous>, transform_indices = @transform_4, window_bounds = array<i64: 128, 8>}, {pipeline_mode = #tpu.pipeline_mode<synchronous>, transform_indices = @transform_5, window_bounds = array<i64: 128, 8>}, {pipeline_mode = #tpu.pipeline_mode<synchronous>, transform_indices = @transform_6, window_bounds = array<i64: 128, 8>}, {pipeline_mode = #tpu.pipeline_mode<synchronous>, transform_indices = @transform_7, window_bounds = array<i64: 8, 128>}, {pipeline_mode = #tpu.pipeline_mode<synchronous>, transform_indices = @transform_8, window_bounds = array<i64: 8, 128>}, {transform_indices = @transform_9, window_bounds = array<i64: 6, 128, 128>}]} {
    %c0 = arith.constant 0 : index
    %c0_0 = arith.constant 0 : index
    %0 = vector.load %arg2[%c0, %c0_0] : memref<8x128xbf16, #tpu.memory_space<vmem>>, vector<8x128xbf16>
    %c0_1 = arith.constant 0 : index
    %c0_2 = arith.constant 0 : index
    %1 = vector.load %arg3[%c0_1, %c0_2] : memref<8x128xbf16, #tpu.memory_space<vmem>>, vector<8x128xbf16>
    %c0_3 = arith.constant 0 : index
    %c0_4 = arith.constant 0 : index
    %2 = vector.load %arg4[%c0_3, %c0_4] : memref<128x8xbf16, #tpu.memory_space<vmem>>, vector<128x8xbf16>
    %c0_5 = arith.constant 0 : index
    %c0_6 = arith.constant 0 : index
    %3 = vector.load %arg5[%c0_5, %c0_6] : memref<128x8xbf16, #tpu.memory_space<vmem>>, vector<128x8xbf16>
    %c0_7 = arith.constant 0 : index
    %c0_8 = arith.constant 0 : index
    %4 = vector.load %arg6[%c0_7, %c0_8] : memref<128x8xbf16, #tpu.memory_space<vmem>>, vector<128x8xbf16>
    %c0_9 = arith.constant 0 : index
    %c0_10 = arith.constant 0 : index
    %5 = vector.load %arg7[%c0_9, %c0_10] : memref<128x8xbf16, #tpu.memory_space<vmem>>, vector<128x8xbf16>
    %c0_11 = arith.constant 0 : index
    %c0_12 = arith.constant 0 : index
    %6 = vector.load %arg8[%c0_11, %c0_12] : memref<8x128xbf16, #tpu.memory_space<vmem>>, vector<8x128xbf16>
    %c0_13 = arith.constant 0 : index
    %c0_14 = arith.constant 0 : index
    %7 = vector.load %arg9[%c0_13, %c0_14] : memref<8x128xbf16, #tpu.memory_space<vmem>>, vector<8x128xbf16>
    %c0_15 = arith.constant 0 : index
    %c0_16 = arith.constant 0 : index
    %c0_17 = arith.constant 0 : index
    %8 = vector.load %arg1[%c0_15, %c0_16, %c0_17] : memref<6x128x128xf32, #tpu.memory_space<vmem>>, vector<1x128x128xf32>
    %9 = vector.shape_cast %8 : vector<1x128x128xf32> to vector<128x128xf32>
    %10 = arith.truncf %9 : vector<128x128xf32> to vector<128x128xbf16>
    %cst = arith.constant dense<0.000000e+00> : vector<8x128xf32>
    %11 = tpu.matmul %0, %10, %cst {dimension_numbers = #tpu.dot_dimension_numbers<[1], [0], [0], [1], [0, 0, 1, 1], [], []>} : vector<8x128xbf16>, vector<128x128xbf16>, vector<8x128xf32> -> vector<8x128xf32>
    %cst_18 = arith.constant dense<0.000000e+00> : vector<8x128xf32>
    %12 = tpu.matmul %1, %10, %cst_18 {dimension_numbers = #tpu.dot_dimension_numbers<[1], [0], [0], [1], [0, 0, 1, 1], [], []>} : vector<8x128xbf16>, vector<128x128xbf16>, vector<8x128xf32> -> vector<8x128xf32>
    %13 = arith.truncf %11 : vector<8x128xf32> to vector<8x128xbf16>
    %14 = arith.truncf %12 : vector<8x128xf32> to vector<8x128xbf16>
    %cst_19 = arith.constant dense<0.000000e+00> : vector<8x8xf32>
    %15 = tpu.matmul %13, %2, %cst_19 {dimension_numbers = #tpu.dot_dimension_numbers<[1], [0], [0], [1], [0, 0, 1, 1], [], []>} : vector<8x128xbf16>, vector<128x8xbf16>, vector<8x8xf32> -> vector<8x8xf32>
    %cst_20 = arith.constant dense<0.000000e+00> : vector<8x8xf32>
    %16 = tpu.matmul %14, %3, %cst_20 {dimension_numbers = #tpu.dot_dimension_numbers<[1], [0], [0], [1], [0, 0, 1, 1], [], []>} : vector<8x128xbf16>, vector<128x8xbf16>, vector<8x8xf32> -> vector<8x8xf32>
    %17 = arith.subf %15, %16 : vector<8x8xf32>
    %cst_21 = arith.constant dense<0.000000e+00> : vector<8x8xf32>
    %18 = tpu.matmul %13, %3, %cst_21 {dimension_numbers = #tpu.dot_dimension_numbers<[1], [0], [0], [1], [0, 0, 1, 1], [], []>} : vector<8x128xbf16>, vector<128x8xbf16>, vector<8x8xf32> -> vector<8x8xf32>
    %cst_22 = arith.constant dense<0.000000e+00> : vector<8x8xf32>
    %19 = tpu.matmul %14, %2, %cst_22 {dimension_numbers = #tpu.dot_dimension_numbers<[1], [0], [0], [1], [0, 0, 1, 1], [], []>} : vector<8x128xbf16>, vector<128x8xbf16>, vector<8x8xf32> -> vector<8x8xf32>
    %20 = arith.addf %18, %19 : vector<8x8xf32>
    %21 = arith.truncf %17 : vector<8x8xf32> to vector<8x8xbf16>
    %22 = arith.truncf %20 : vector<8x8xf32> to vector<8x8xbf16>
    %cst_23 = arith.constant dense<0.000000e+00> : vector<128x8xf32>
    %23 = tpu.matmul %4, %21, %cst_23 {dimension_numbers = #tpu.dot_dimension_numbers<[1], [0], [0], [1], [0, 0, 1, 1], [], []>} : vector<128x8xbf16>, vector<8x8xbf16>, vector<128x8xf32> -> vector<128x8xf32>
    %cst_24 = arith.constant dense<0.000000e+00> : vector<128x8xf32>
    %24 = tpu.matmul %5, %22, %cst_24 {dimension_numbers = #tpu.dot_dimension_numbers<[1], [0], [0], [1], [0, 0, 1, 1], [], []>} : vector<128x8xbf16>, vector<8x8xbf16>, vector<128x8xf32> -> vector<128x8xf32>
    %25 = arith.subf %23, %24 : vector<128x8xf32>
    %cst_25 = arith.constant dense<0.000000e+00> : vector<128x8xf32>
    %26 = tpu.matmul %4, %22, %cst_25 {dimension_numbers = #tpu.dot_dimension_numbers<[1], [0], [0], [1], [0, 0, 1, 1], [], []>} : vector<128x8xbf16>, vector<8x8xbf16>, vector<128x8xf32> -> vector<128x8xf32>
    %cst_26 = arith.constant dense<0.000000e+00> : vector<128x8xf32>
    %27 = tpu.matmul %5, %21, %cst_26 {dimension_numbers = #tpu.dot_dimension_numbers<[1], [0], [0], [1], [0, 0, 1, 1], [], []>} : vector<128x8xbf16>, vector<8x8xbf16>, vector<128x8xf32> -> vector<128x8xf32>
    %28 = arith.addf %26, %27 : vector<128x8xf32>
    %29 = arith.truncf %25 : vector<128x8xf32> to vector<128x8xbf16>
    %30 = arith.truncf %28 : vector<128x8xf32> to vector<128x8xbf16>
    %cst_27 = arith.constant dense<0.000000e+00> : vector<128x128xf32>
    %31 = tpu.matmul %29, %6, %cst_27 {dimension_numbers = #tpu.dot_dimension_numbers<[1], [0], [0], [1], [0, 0, 1, 1], [], []>} : vector<128x8xbf16>, vector<8x128xbf16>, vector<128x128xf32> -> vector<128x128xf32>
    %cst_28 = arith.constant dense<0.000000e+00> : vector<128x128xf32>
    %32 = tpu.matmul %30, %7, %cst_28 {dimension_numbers = #tpu.dot_dimension_numbers<[1], [0], [0], [1], [0, 0, 1, 1], [], []>} : vector<128x8xbf16>, vector<8x128xbf16>, vector<128x128xf32> -> vector<128x128xf32>
    %33 = arith.subf %31, %32 : vector<128x128xf32>
    %cst_29 = arith.constant 2.550000e+02 : f32
    %34 = vector.broadcast %cst_29 : f32 to vector<128x128xf32>
    %35 = arith.mulf %34, %9 : vector<128x128xf32>
    %36 = arith.subf %35, %33 : vector<128x128xf32>
    %c0_30 = arith.constant 0 : index
    %c0_31 = arith.constant 0 : index
    %c0_32 = arith.constant 0 : index
    %37 = vector.load %arg10[%c0_30, %c0_31, %c0_32] : memref<6x128x128xf32, #tpu.memory_space<vmem>>, vector<1x128x128xf32>
    %38 = vector.shape_cast %37 : vector<1x128x128xf32> to vector<128x128xf32>
    %39 = vector.shape_cast %36 : vector<128x128xf32> to vector<1x128x128xf32>
    tpu.vector_store %arg10[%c0_30, %c0_31, %c0_32], %39 {strides = array<i32>} : memref<6x128x128xf32, #tpu.memory_space<vmem>>, vector<1x128x128xf32>,
    %c1 = arith.constant 1 : index
    %c0_33 = arith.constant 0 : index
    %c0_34 = arith.constant 0 : index
    %40 = vector.load %arg1[%c1, %c0_33, %c0_34] : memref<6x128x128xf32, #tpu.memory_space<vmem>>, vector<1x128x128xf32>
    %41 = vector.shape_cast %40 : vector<1x128x128xf32> to vector<128x128xf32>
    %42 = arith.truncf %41 : vector<128x128xf32> to vector<128x128xbf16>
    %cst_35 = arith.constant dense<0.000000e+00> : vector<8x128xf32>
    %43 = tpu.matmul %0, %42, %cst_35 {dimension_numbers = #tpu.dot_dimension_numbers<[1], [0], [0], [1], [0, 0, 1, 1], [], []>} : vector<8x128xbf16>, vector<128x128xbf16>, vector<8x128xf32> -> vector<8x128xf32>
    %cst_36 = arith.constant dense<0.000000e+00> : vector<8x128xf32>
    %44 = tpu.matmul %1, %42, %cst_36 {dimension_numbers = #tpu.dot_dimension_numbers<[1], [0], [0], [1], [0, 0, 1, 1], [], []>} : vector<8x128xbf16>, vector<128x128xbf16>, vector<8x128xf32> -> vector<8x128xf32>
    %45 = arith.truncf %43 : vector<8x128xf32> to vector<8x128xbf16>
    %46 = arith.truncf %44 : vector<8x128xf32> to vector<8x128xbf16>
    %cst_37 = arith.constant dense<0.000000e+00> : vector<8x8xf32>
    %47 = tpu.matmul %45, %2, %cst_37 {dimension_numbers = #tpu.dot_dimension_numbers<[1], [0], [0], [1], [0, 0, 1, 1], [], []>} : vector<8x128xbf16>, vector<128x8xbf16>, vector<8x8xf32> -> vector<8x8xf32>
    %cst_38 = arith.constant dense<0.000000e+00> : vector<8x8xf32>
    %48 = tpu.matmul %46, %3, %cst_38 {dimension_numbers = #tpu.dot_dimension_numbers<[1], [0], [0], [1], [0, 0, 1, 1], [], []>} : vector<8x128xbf16>, vector<128x8xbf16>, vector<8x8xf32> -> vector<8x8xf32>
    %49 = arith.subf %47, %48 : vector<8x8xf32>
    %cst_39 = arith.constant dense<0.000000e+00> : vector<8x8xf32>
    %50 = tpu.matmul %45, %3, %cst_39 {dimension_numbers = #tpu.dot_dimension_numbers<[1], [0], [0], [1], [0, 0, 1, 1], [], []>} : vector<8x128xbf16>, vector<128x8xbf16>, vector<8x8xf32> -> vector<8x8xf32>
    %cst_40 = arith.constant dense<0.000000e+00> : vector<8x8xf32>
    %51 = tpu.matmul %46, %2, %cst_40 {dimension_numbers = #tpu.dot_dimension_numbers<[1], [0], [0], [1], [0, 0, 1, 1], [], []>} : vector<8x128xbf16>, vector<128x8xbf16>, vector<8x8xf32> -> vector<8x8xf32>
    %52 = arith.addf %50, %51 : vector<8x8xf32>
    %53 = arith.truncf %49 : vector<8x8xf32> to vector<8x8xbf16>
    %54 = arith.truncf %52 : vector<8x8xf32> to vector<8x8xbf16>
    %cst_41 = arith.constant dense<0.000000e+00> : vector<128x8xf32>
    %55 = tpu.matmul %4, %53, %cst_41 {dimension_numbers = #tpu.dot_dimension_numbers<[1], [0], [0], [1], [0, 0, 1, 1], [], []>} : vector<128x8xbf16>, vector<8x8xbf16>, vector<128x8xf32> -> vector<128x8xf32>
    %cst_42 = arith.constant dense<0.000000e+00> : vector<128x8xf32>
    %56 = tpu.matmul %5, %54, %cst_42 {dimension_numbers = #tpu.dot_dimension_numbers<[1], [0], [0], [1], [0, 0, 1, 1], [], []>} : vector<128x8xbf16>, vector<8x8xbf16>, vector<128x8xf32> -> vector<128x8xf32>
    %57 = arith.subf %55, %56 : vector<128x8xf32>
    %cst_43 = arith.constant dense<0.000000e+00> : vector<128x8xf32>
    %58 = tpu.matmul %4, %54, %cst_43 {dimension_numbers = #tpu.dot_dimension_numbers<[1], [0], [0], [1], [0, 0, 1, 1], [], []>} : vector<128x8xbf16>, vector<8x8xbf16>, vector<128x8xf32> -> vector<128x8xf32>
    %cst_44 = arith.constant dense<0.000000e+00> : vector<128x8xf32>
    %59 = tpu.matmul %5, %53, %cst_44 {dimension_numbers = #tpu.dot_dimension_numbers<[1], [0], [0], [1], [0, 0, 1, 1], [], []>} : vector<128x8xbf16>, vector<8x8xbf16>, vector<128x8xf32> -> vector<128x8xf32>
    %60 = arith.addf %58, %59 : vector<128x8xf32>
    %61 = arith.truncf %57 : vector<128x8xf32> to vector<128x8xbf16>
    %62 = arith.truncf %60 : vector<128x8xf32> to vector<128x8xbf16>
    %cst_45 = arith.constant dense<0.000000e+00> : vector<128x128xf32>
    %63 = tpu.matmul %61, %6, %cst_45 {dimension_numbers = #tpu.dot_dimension_numbers<[1], [0], [0], [1], [0, 0, 1, 1], [], []>} : vector<128x8xbf16>, vector<8x128xbf16>, vector<128x128xf32> -> vector<128x128xf32>
    %cst_46 = arith.constant dense<0.000000e+00> : vector<128x128xf32>
    %64 = tpu.matmul %62, %7, %cst_46 {dimension_numbers = #tpu.dot_dimension_numbers<[1], [0], [0], [1], [0, 0, 1, 1], [], []>} : vector<128x8xbf16>, vector<8x128xbf16>, vector<128x128xf32> -> vector<128x128xf32>
    %65 = arith.subf %63, %64 : vector<128x128xf32>
    %cst_47 = arith.constant 2.550000e+02 : f32
    %66 = vector.broadcast %cst_47 : f32 to vector<128x128xf32>
    %67 = arith.mulf %66, %41 : vector<128x128xf32>
    %68 = arith.subf %67, %65 : vector<128x128xf32>
    %c1_48 = arith.constant 1 : index
    %c0_49 = arith.constant 0 : index
    %c0_50 = arith.constant 0 : index
    %69 = vector.load %arg10[%c1_48, %c0_49, %c0_50] : memref<6x128x128xf32, #tpu.memory_space<vmem>>, vector<1x128x128xf32>
    %70 = vector.shape_cast %69 : vector<1x128x128xf32> to vector<128x128xf32>
    %71 = vector.shape_cast %68 : vector<128x128xf32> to vector<1x128x128xf32>
    tpu.vector_store %arg10[%c1_48, %c0_49, %c0_50], %71 {strides = array<i32>} : memref<6x128x128xf32, #tpu.memory_space<vmem>>, vector<1x128x128xf32>,
    %c2 = arith.constant 2 : index
    %c0_51 = arith.constant 0 : index
    %c0_52 = arith.constant 0 : index
    %72 = vector.load %arg1[%c2, %c0_51, %c0_52] : memref<6x128x128xf32, #tpu.memory_space<vmem>>, vector<1x128x128xf32>
    %73 = vector.shape_cast %72 : vector<1x128x128xf32> to vector<128x128xf32>
    %74 = arith.truncf %73 : vector<128x128xf32> to vector<128x128xbf16>
    %cst_53 = arith.constant dense<0.000000e+00> : vector<8x128xf32>
    %75 = tpu.matmul %0, %74, %cst_53 {dimension_numbers = #tpu.dot_dimension_numbers<[1], [0], [0], [1], [0, 0, 1, 1], [], []>} : vector<8x128xbf16>, vector<128x128xbf16>, vector<8x128xf32> -> vector<8x128xf32>
    %cst_54 = arith.constant dense<0.000000e+00> : vector<8x128xf32>
    %76 = tpu.matmul %1, %74, %cst_54 {dimension_numbers = #tpu.dot_dimension_numbers<[1], [0], [0], [1], [0, 0, 1, 1], [], []>} : vector<8x128xbf16>, vector<128x128xbf16>, vector<8x128xf32> -> vector<8x128xf32>
    %77 = arith.truncf %75 : vector<8x128xf32> to vector<8x128xbf16>
    %78 = arith.truncf %76 : vector<8x128xf32> to vector<8x128xbf16>
    %cst_55 = arith.constant dense<0.000000e+00> : vector<8x8xf32>
    %79 = tpu.matmul %77, %2, %cst_55 {dimension_numbers = #tpu.dot_dimension_numbers<[1], [0], [0], [1], [0, 0, 1, 1], [], []>} : vector<8x128xbf16>, vector<128x8xbf16>, vector<8x8xf32> -> vector<8x8xf32>
    %cst_56 = arith.constant dense<0.000000e+00> : vector<8x8xf32>
    %80 = tpu.matmul %78, %3, %cst_56 {dimension_numbers = #tpu.dot_dimension_numbers<[1], [0], [0], [1], [0, 0, 1, 1], [], []>} : vector<8x128xbf16>, vector<128x8xbf16>, vector<8x8xf32> -> vector<8x8xf32>
    %81 = arith.subf %79, %80 : vector<8x8xf32>
    %cst_57 = arith.constant dense<0.000000e+00> : vector<8x8xf32>
    %82 = tpu.matmul %77, %3, %cst_57 {dimension_numbers = #tpu.dot_dimension_numbers<[1], [0], [0], [1], [0, 0, 1, 1], [], []>} : vector<8x128xbf16>, vector<128x8xbf16>, vector<8x8xf32> -> vector<8x8xf32>
    %cst_58 = arith.constant dense<0.000000e+00> : vector<8x8xf32>
    %83 = tpu.matmul %78, %2, %cst_58 {dimension_numbers = #tpu.dot_dimension_numbers<[1], [0], [0], [1], [0, 0, 1, 1], [], []>} : vector<8x128xbf16>, vector<128x8xbf16>, vector<8x8xf32> -> vector<8x8xf32>
    %84 = arith.addf %82, %83 : vector<8x8xf32>
    %85 = arith.truncf %81 : vector<8x8xf32> to vector<8x8xbf16>
    %86 = arith.truncf %84 : vector<8x8xf32> to vector<8x8xbf16>
    %cst_59 = arith.constant dense<0.000000e+00> : vector<128x8xf32>
    %87 = tpu.matmul %4, %85, %cst_59 {dimension_numbers = #tpu.dot_dimension_numbers<[1], [0], [0], [1], [0, 0, 1, 1], [], []>} : vector<128x8xbf16>, vector<8x8xbf16>, vector<128x8xf32> -> vector<128x8xf32>
    %cst_60 = arith.constant dense<0.000000e+00> : vector<128x8xf32>
    %88 = tpu.matmul %5, %86, %cst_60 {dimension_numbers = #tpu.dot_dimension_numbers<[1], [0], [0], [1], [0, 0, 1, 1], [], []>} : vector<128x8xbf16>, vector<8x8xbf16>, vector<128x8xf32> -> vector<128x8xf32>
    %89 = arith.subf %87, %88 : vector<128x8xf32>
    %cst_61 = arith.constant dense<0.000000e+00> : vector<128x8xf32>
    %90 = tpu.matmul %4, %86, %cst_61 {dimension_numbers = #tpu.dot_dimension_numbers<[1], [0], [0], [1], [0, 0, 1, 1], [], []>} : vector<128x8xbf16>, vector<8x8xbf16>, vector<128x8xf32> -> vector<128x8xf32>
    %cst_62 = arith.constant dense<0.000000e+00> : vector<128x8xf32>
    %91 = tpu.matmul %5, %85, %cst_62 {dimension_numbers = #tpu.dot_dimension_numbers<[1], [0], [0], [1], [0, 0, 1, 1], [], []>} : vector<128x8xbf16>, vector<8x8xbf16>, vector<128x8xf32> -> vector<128x8xf32>
    %92 = arith.addf %90, %91 : vector<128x8xf32>
    %93 = arith.truncf %89 : vector<128x8xf32> to vector<128x8xbf16>
    %94 = arith.truncf %92 : vector<128x8xf32> to vector<128x8xbf16>
    %cst_63 = arith.constant dense<0.000000e+00> : vector<128x128xf32>
    %95 = tpu.matmul %93, %6, %cst_63 {dimension_numbers = #tpu.dot_dimension_numbers<[1], [0], [0], [1], [0, 0, 1, 1], [], []>} : vector<128x8xbf16>, vector<8x128xbf16>, vector<128x128xf32> -> vector<128x128xf32>
    %cst_64 = arith.constant dense<0.000000e+00> : vector<128x128xf32>
    %96 = tpu.matmul %94, %7, %cst_64 {dimension_numbers = #tpu.dot_dimension_numbers<[1], [0], [0], [1], [0, 0, 1, 1], [], []>} : vector<128x8xbf16>, vector<8x128xbf16>, vector<128x128xf32> -> vector<128x128xf32>
    %97 = arith.subf %95, %96 : vector<128x128xf32>
    %cst_65 = arith.constant 2.550000e+02 : f32
    %98 = vector.broadcast %cst_65 : f32 to vector<128x128xf32>
    %99 = arith.mulf %98, %73 : vector<128x128xf32>
    %100 = arith.subf %99, %97 : vector<128x128xf32>
    %c2_66 = arith.constant 2 : index
    %c0_67 = arith.constant 0 : index
    %c0_68 = arith.constant 0 : index
    %101 = vector.load %arg10[%c2_66, %c0_67, %c0_68] : memref<6x128x128xf32, #tpu.memory_space<vmem>>, vector<1x128x128xf32>
    %102 = vector.shape_cast %101 : vector<1x128x128xf32> to vector<128x128xf32>
    %103 = vector.shape_cast %100 : vector<128x128xf32> to vector<1x128x128xf32>
    tpu.vector_store %arg10[%c2_66, %c0_67, %c0_68], %103 {strides = array<i32>} : memref<6x128x128xf32, #tpu.memory_space<vmem>>, vector<1x128x128xf32>,
    %c3 = arith.constant 3 : index
    %c0_69 = arith.constant 0 : index
    %c0_70 = arith.constant 0 : index
    %104 = vector.load %arg1[%c3, %c0_69, %c0_70] : memref<6x128x128xf32, #tpu.memory_space<vmem>>, vector<1x128x128xf32>
    %105 = vector.shape_cast %104 : vector<1x128x128xf32> to vector<128x128xf32>
    %106 = arith.truncf %105 : vector<128x128xf32> to vector<128x128xbf16>
    %cst_71 = arith.constant dense<0.000000e+00> : vector<8x128xf32>
    %107 = tpu.matmul %0, %106, %cst_71 {dimension_numbers = #tpu.dot_dimension_numbers<[1], [0], [0], [1], [0, 0, 1, 1], [], []>} : vector<8x128xbf16>, vector<128x128xbf16>, vector<8x128xf32> -> vector<8x128xf32>
    %cst_72 = arith.constant dense<0.000000e+00> : vector<8x128xf32>
    %108 = tpu.matmul %1, %106, %cst_72 {dimension_numbers = #tpu.dot_dimension_numbers<[1], [0], [0], [1], [0, 0, 1, 1], [], []>} : vector<8x128xbf16>, vector<128x128xbf16>, vector<8x128xf32> -> vector<8x128xf32>
    %109 = arith.truncf %107 : vector<8x128xf32> to vector<8x128xbf16>
    %110 = arith.truncf %108 : vector<8x128xf32> to vector<8x128xbf16>
    %cst_73 = arith.constant dense<0.000000e+00> : vector<8x8xf32>
    %111 = tpu.matmul %109, %2, %cst_73 {dimension_numbers = #tpu.dot_dimension_numbers<[1], [0], [0], [1], [0, 0, 1, 1], [], []>} : vector<8x128xbf16>, vector<128x8xbf16>, vector<8x8xf32> -> vector<8x8xf32>
    %cst_74 = arith.constant dense<0.000000e+00> : vector<8x8xf32>
    %112 = tpu.matmul %110, %3, %cst_74 {dimension_numbers = #tpu.dot_dimension_numbers<[1], [0], [0], [1], [0, 0, 1, 1], [], []>} : vector<8x128xbf16>, vector<128x8xbf16>, vector<8x8xf32> -> vector<8x8xf32>
    %113 = arith.subf %111, %112 : vector<8x8xf32>
    %cst_75 = arith.constant dense<0.000000e+00> : vector<8x8xf32>
    %114 = tpu.matmul %109, %3, %cst_75 {dimension_numbers = #tpu.dot_dimension_numbers<[1], [0], [0], [1], [0, 0, 1, 1], [], []>} : vector<8x128xbf16>, vector<128x8xbf16>, vector<8x8xf32> -> vector<8x8xf32>
    %cst_76 = arith.constant dense<0.000000e+00> : vector<8x8xf32>
    %115 = tpu.matmul %110, %2, %cst_76 {dimension_numbers = #tpu.dot_dimension_numbers<[1], [0], [0], [1], [0, 0, 1, 1], [], []>} : vector<8x128xbf16>, vector<128x8xbf16>, vector<8x8xf32> -> vector<8x8xf32>
    %116 = arith.addf %114, %115 : vector<8x8xf32>
    %117 = arith.truncf %113 : vector<8x8xf32> to vector<8x8xbf16>
    %118 = arith.truncf %116 : vector<8x8xf32> to vector<8x8xbf16>
    %cst_77 = arith.constant dense<0.000000e+00> : vector<128x8xf32>
    %119 = tpu.matmul %4, %117, %cst_77 {dimension_numbers = #tpu.dot_dimension_numbers<[1], [0], [0], [1], [0, 0, 1, 1], [], []>} : vector<128x8xbf16>, vector<8x8xbf16>, vector<128x8xf32> -> vector<128x8xf32>
    %cst_78 = arith.constant dense<0.000000e+00> : vector<128x8xf32>
    %120 = tpu.matmul %5, %118, %cst_78 {dimension_numbers = #tpu.dot_dimension_numbers<[1], [0], [0], [1], [0, 0, 1, 1], [], []>} : vector<128x8xbf16>, vector<8x8xbf16>, vector<128x8xf32> -> vector<128x8xf32>
    %121 = arith.subf %119, %120 : vector<128x8xf32>
    %cst_79 = arith.constant dense<0.000000e+00> : vector<128x8xf32>
    %122 = tpu.matmul %4, %118, %cst_79 {dimension_numbers = #tpu.dot_dimension_numbers<[1], [0], [0], [1], [0, 0, 1, 1], [], []>} : vector<128x8xbf16>, vector<8x8xbf16>, vector<128x8xf32> -> vector<128x8xf32>
    %cst_80 = arith.constant dense<0.000000e+00> : vector<128x8xf32>
    %123 = tpu.matmul %5, %117, %cst_80 {dimension_numbers = #tpu.dot_dimension_numbers<[1], [0], [0], [1], [0, 0, 1, 1], [], []>} : vector<128x8xbf16>, vector<8x8xbf16>, vector<128x8xf32> -> vector<128x8xf32>
    %124 = arith.addf %122, %123 : vector<128x8xf32>
    %125 = arith.truncf %121 : vector<128x8xf32> to vector<128x8xbf16>
    %126 = arith.truncf %124 : vector<128x8xf32> to vector<128x8xbf16>
    %cst_81 = arith.constant dense<0.000000e+00> : vector<128x128xf32>
    %127 = tpu.matmul %125, %6, %cst_81 {dimension_numbers = #tpu.dot_dimension_numbers<[1], [0], [0], [1], [0, 0, 1, 1], [], []>} : vector<128x8xbf16>, vector<8x128xbf16>, vector<128x128xf32> -> vector<128x128xf32>
    %cst_82 = arith.constant dense<0.000000e+00> : vector<128x128xf32>
    %128 = tpu.matmul %126, %7, %cst_82 {dimension_numbers = #tpu.dot_dimension_numbers<[1], [0], [0], [1], [0, 0, 1, 1], [], []>} : vector<128x8xbf16>, vector<8x128xbf16>, vector<128x128xf32> -> vector<128x128xf32>
    %129 = arith.subf %127, %128 : vector<128x128xf32>
    %cst_83 = arith.constant 2.550000e+02 : f32
    %130 = vector.broadcast %cst_83 : f32 to vector<128x128xf32>
    %131 = arith.mulf %130, %105 : vector<128x128xf32>
    %132 = arith.subf %131, %129 : vector<128x128xf32>
    %c3_84 = arith.constant 3 : index
    %c0_85 = arith.constant 0 : index
    %c0_86 = arith.constant 0 : index
    %133 = vector.load %arg10[%c3_84, %c0_85, %c0_86] : memref<6x128x128xf32, #tpu.memory_space<vmem>>, vector<1x128x128xf32>
    %134 = vector.shape_cast %133 : vector<1x128x128xf32> to vector<128x128xf32>
    %135 = vector.shape_cast %132 : vector<128x128xf32> to vector<1x128x128xf32>
    tpu.vector_store %arg10[%c3_84, %c0_85, %c0_86], %135 {strides = array<i32>} : memref<6x128x128xf32, #tpu.memory_space<vmem>>, vector<1x128x128xf32>,
    %c4 = arith.constant 4 : index
    %c0_87 = arith.constant 0 : index
    %c0_88 = arith.constant 0 : index
    %136 = vector.load %arg1[%c4, %c0_87, %c0_88] : memref<6x128x128xf32, #tpu.memory_space<vmem>>, vector<1x128x128xf32>
    %137 = vector.shape_cast %136 : vector<1x128x128xf32> to vector<128x128xf32>
    %138 = arith.truncf %137 : vector<128x128xf32> to vector<128x128xbf16>
    %cst_89 = arith.constant dense<0.000000e+00> : vector<8x128xf32>
    %139 = tpu.matmul %0, %138, %cst_89 {dimension_numbers = #tpu.dot_dimension_numbers<[1], [0], [0], [1], [0, 0, 1, 1], [], []>} : vector<8x128xbf16>, vector<128x128xbf16>, vector<8x128xf32> -> vector<8x128xf32>
    %cst_90 = arith.constant dense<0.000000e+00> : vector<8x128xf32>
    %140 = tpu.matmul %1, %138, %cst_90 {dimension_numbers = #tpu.dot_dimension_numbers<[1], [0], [0], [1], [0, 0, 1, 1], [], []>} : vector<8x128xbf16>, vector<128x128xbf16>, vector<8x128xf32> -> vector<8x128xf32>
    %141 = arith.truncf %139 : vector<8x128xf32> to vector<8x128xbf16>
    %142 = arith.truncf %140 : vector<8x128xf32> to vector<8x128xbf16>
    %cst_91 = arith.constant dense<0.000000e+00> : vector<8x8xf32>
    %143 = tpu.matmul %141, %2, %cst_91 {dimension_numbers = #tpu.dot_dimension_numbers<[1], [0], [0], [1], [0, 0, 1, 1], [], []>} : vector<8x128xbf16>, vector<128x8xbf16>, vector<8x8xf32> -> vector<8x8xf32>
    %cst_92 = arith.constant dense<0.000000e+00> : vector<8x8xf32>
    %144 = tpu.matmul %142, %3, %cst_92 {dimension_numbers = #tpu.dot_dimension_numbers<[1], [0], [0], [1], [0, 0, 1, 1], [], []>} : vector<8x128xbf16>, vector<128x8xbf16>, vector<8x8xf32> -> vector<8x8xf32>
    %145 = arith.subf %143, %144 : vector<8x8xf32>
    %cst_93 = arith.constant dense<0.000000e+00> : vector<8x8xf32>
    %146 = tpu.matmul %141, %3, %cst_93 {dimension_numbers = #tpu.dot_dimension_numbers<[1], [0], [0], [1], [0, 0, 1, 1], [], []>} : vector<8x128xbf16>, vector<128x8xbf16>, vector<8x8xf32> -> vector<8x8xf32>
    %cst_94 = arith.constant dense<0.000000e+00> : vector<8x8xf32>
    %147 = tpu.matmul %142, %2, %cst_94 {dimension_numbers = #tpu.dot_dimension_numbers<[1], [0], [0], [1], [0, 0, 1, 1], [], []>} : vector<8x128xbf16>, vector<128x8xbf16>, vector<8x8xf32> -> vector<8x8xf32>
    %148 = arith.addf %146, %147 : vector<8x8xf32>
    %149 = arith.truncf %145 : vector<8x8xf32> to vector<8x8xbf16>
    %150 = arith.truncf %148 : vector<8x8xf32> to vector<8x8xbf16>
    %cst_95 = arith.constant dense<0.000000e+00> : vector<128x8xf32>
    %151 = tpu.matmul %4, %149, %cst_95 {dimension_numbers = #tpu.dot_dimension_numbers<[1], [0], [0], [1], [0, 0, 1, 1], [], []>} : vector<128x8xbf16>, vector<8x8xbf16>, vector<128x8xf32> -> vector<128x8xf32>
    %cst_96 = arith.constant dense<0.000000e+00> : vector<128x8xf32>
    %152 = tpu.matmul %5, %150, %cst_96 {dimension_numbers = #tpu.dot_dimension_numbers<[1], [0], [0], [1], [0, 0, 1, 1], [], []>} : vector<128x8xbf16>, vector<8x8xbf16>, vector<128x8xf32> -> vector<128x8xf32>
    %153 = arith.subf %151, %152 : vector<128x8xf32>
    %cst_97 = arith.constant dense<0.000000e+00> : vector<128x8xf32>
    %154 = tpu.matmul %4, %150, %cst_97 {dimension_numbers = #tpu.dot_dimension_numbers<[1], [0], [0], [1], [0, 0, 1, 1], [], []>} : vector<128x8xbf16>, vector<8x8xbf16>, vector<128x8xf32> -> vector<128x8xf32>
    %cst_98 = arith.constant dense<0.000000e+00> : vector<128x8xf32>
    %155 = tpu.matmul %5, %149, %cst_98 {dimension_numbers = #tpu.dot_dimension_numbers<[1], [0], [0], [1], [0, 0, 1, 1], [], []>} : vector<128x8xbf16>, vector<8x8xbf16>, vector<128x8xf32> -> vector<128x8xf32>
    %156 = arith.addf %154, %155 : vector<128x8xf32>
    %157 = arith.truncf %153 : vector<128x8xf32> to vector<128x8xbf16>
    %158 = arith.truncf %156 : vector<128x8xf32> to vector<128x8xbf16>
    %cst_99 = arith.constant dense<0.000000e+00> : vector<128x128xf32>
    %159 = tpu.matmul %157, %6, %cst_99 {dimension_numbers = #tpu.dot_dimension_numbers<[1], [0], [0], [1], [0, 0, 1, 1], [], []>} : vector<128x8xbf16>, vector<8x128xbf16>, vector<128x128xf32> -> vector<128x128xf32>
    %cst_100 = arith.constant dense<0.000000e+00> : vector<128x128xf32>
    %160 = tpu.matmul %158, %7, %cst_100 {dimension_numbers = #tpu.dot_dimension_numbers<[1], [0], [0], [1], [0, 0, 1, 1], [], []>} : vector<128x8xbf16>, vector<8x128xbf16>, vector<128x128xf32> -> vector<128x128xf32>
    %161 = arith.subf %159, %160 : vector<128x128xf32>
    %cst_101 = arith.constant 2.550000e+02 : f32
    %162 = vector.broadcast %cst_101 : f32 to vector<128x128xf32>
    %163 = arith.mulf %162, %137 : vector<128x128xf32>
    %164 = arith.subf %163, %161 : vector<128x128xf32>
    %c4_102 = arith.constant 4 : index
    %c0_103 = arith.constant 0 : index
    %c0_104 = arith.constant 0 : index
    %165 = vector.load %arg10[%c4_102, %c0_103, %c0_104] : memref<6x128x128xf32, #tpu.memory_space<vmem>>, vector<1x128x128xf32>
    %166 = vector.shape_cast %165 : vector<1x128x128xf32> to vector<128x128xf32>
    %167 = vector.shape_cast %164 : vector<128x128xf32> to vector<1x128x128xf32>
    tpu.vector_store %arg10[%c4_102, %c0_103, %c0_104], %167 {strides = array<i32>} : memref<6x128x128xf32, #tpu.memory_space<vmem>>, vector<1x128x128xf32>,
    %c5 = arith.constant 5 : index
    %c0_105 = arith.constant 0 : index
    %c0_106 = arith.constant 0 : index
    %168 = vector.load %arg1[%c5, %c0_105, %c0_106] : memref<6x128x128xf32, #tpu.memory_space<vmem>>, vector<1x128x128xf32>
    %169 = vector.shape_cast %168 : vector<1x128x128xf32> to vector<128x128xf32>
    %170 = arith.truncf %169 : vector<128x128xf32> to vector<128x128xbf16>
    %cst_107 = arith.constant dense<0.000000e+00> : vector<8x128xf32>
    %171 = tpu.matmul %0, %170, %cst_107 {dimension_numbers = #tpu.dot_dimension_numbers<[1], [0], [0], [1], [0, 0, 1, 1], [], []>} : vector<8x128xbf16>, vector<128x128xbf16>, vector<8x128xf32> -> vector<8x128xf32>
    %cst_108 = arith.constant dense<0.000000e+00> : vector<8x128xf32>
    %172 = tpu.matmul %1, %170, %cst_108 {dimension_numbers = #tpu.dot_dimension_numbers<[1], [0], [0], [1], [0, 0, 1, 1], [], []>} : vector<8x128xbf16>, vector<128x128xbf16>, vector<8x128xf32> -> vector<8x128xf32>
    %173 = arith.truncf %171 : vector<8x128xf32> to vector<8x128xbf16>
    %174 = arith.truncf %172 : vector<8x128xf32> to vector<8x128xbf16>
    %cst_109 = arith.constant dense<0.000000e+00> : vector<8x8xf32>
    %175 = tpu.matmul %173, %2, %cst_109 {dimension_numbers = #tpu.dot_dimension_numbers<[1], [0], [0], [1], [0, 0, 1, 1], [], []>} : vector<8x128xbf16>, vector<128x8xbf16>, vector<8x8xf32> -> vector<8x8xf32>
    %cst_110 = arith.constant dense<0.000000e+00> : vector<8x8xf32>
    %176 = tpu.matmul %174, %3, %cst_110 {dimension_numbers = #tpu.dot_dimension_numbers<[1], [0], [0], [1], [0, 0, 1, 1], [], []>} : vector<8x128xbf16>, vector<128x8xbf16>, vector<8x8xf32> -> vector<8x8xf32>
    %177 = arith.subf %175, %176 : vector<8x8xf32>
    %cst_111 = arith.constant dense<0.000000e+00> : vector<8x8xf32>
    %178 = tpu.matmul %173, %3, %cst_111 {dimension_numbers = #tpu.dot_dimension_numbers<[1], [0], [0], [1], [0, 0, 1, 1], [], []>} : vector<8x128xbf16>, vector<128x8xbf16>, vector<8x8xf32> -> vector<8x8xf32>
    %cst_112 = arith.constant dense<0.000000e+00> : vector<8x8xf32>
    %179 = tpu.matmul %174, %2, %cst_112 {dimension_numbers = #tpu.dot_dimension_numbers<[1], [0], [0], [1], [0, 0, 1, 1], [], []>} : vector<8x128xbf16>, vector<128x8xbf16>, vector<8x8xf32> -> vector<8x8xf32>
    %180 = arith.addf %178, %179 : vector<8x8xf32>
    %181 = arith.truncf %177 : vector<8x8xf32> to vector<8x8xbf16>
    %182 = arith.truncf %180 : vector<8x8xf32> to vector<8x8xbf16>
    %cst_113 = arith.constant dense<0.000000e+00> : vector<128x8xf32>
    %183 = tpu.matmul %4, %181, %cst_113 {dimension_numbers = #tpu.dot_dimension_numbers<[1], [0], [0], [1], [0, 0, 1, 1], [], []>} : vector<128x8xbf16>, vector<8x8xbf16>, vector<128x8xf32> -> vector<128x8xf32>
    %cst_114 = arith.constant dense<0.000000e+00> : vector<128x8xf32>
    %184 = tpu.matmul %5, %182, %cst_114 {dimension_numbers = #tpu.dot_dimension_numbers<[1], [0], [0], [1], [0, 0, 1, 1], [], []>} : vector<128x8xbf16>, vector<8x8xbf16>, vector<128x8xf32> -> vector<128x8xf32>
    %185 = arith.subf %183, %184 : vector<128x8xf32>
    %cst_115 = arith.constant dense<0.000000e+00> : vector<128x8xf32>
    %186 = tpu.matmul %4, %182, %cst_115 {dimension_numbers = #tpu.dot_dimension_numbers<[1], [0], [0], [1], [0, 0, 1, 1], [], []>} : vector<128x8xbf16>, vector<8x8xbf16>, vector<128x8xf32> -> vector<128x8xf32>
    %cst_116 = arith.constant dense<0.000000e+00> : vector<128x8xf32>
    %187 = tpu.matmul %5, %181, %cst_116 {dimension_numbers = #tpu.dot_dimension_numbers<[1], [0], [0], [1], [0, 0, 1, 1], [], []>} : vector<128x8xbf16>, vector<8x8xbf16>, vector<128x8xf32> -> vector<128x8xf32>
    %188 = arith.addf %186, %187 : vector<128x8xf32>
    %189 = arith.truncf %185 : vector<128x8xf32> to vector<128x8xbf16>
    %190 = arith.truncf %188 : vector<128x8xf32> to vector<128x8xbf16>
    %cst_117 = arith.constant dense<0.000000e+00> : vector<128x128xf32>
    %191 = tpu.matmul %189, %6, %cst_117 {dimension_numbers = #tpu.dot_dimension_numbers<[1], [0], [0], [1], [0, 0, 1, 1], [], []>} : vector<128x8xbf16>, vector<8x128xbf16>, vector<128x128xf32> -> vector<128x128xf32>
    %cst_118 = arith.constant dense<0.000000e+00> : vector<128x128xf32>
    %192 = tpu.matmul %190, %7, %cst_118 {dimension_numbers = #tpu.dot_dimension_numbers<[1], [0], [0], [1], [0, 0, 1, 1], [], []>} : vector<128x8xbf16>, vector<8x128xbf16>, vector<128x128xf32> -> vector<128x128xf32>
    %193 = arith.subf %191, %192 : vector<128x128xf32>
    %cst_119 = arith.constant 2.550000e+02 : f32
    %194 = vector.broadcast %cst_119 : f32 to vector<128x128xf32>
    %195 = arith.mulf %194, %169 : vector<128x128xf32>
    %196 = arith.subf %195, %193 : vector<128x128xf32>
    %c5_120 = arith.constant 5 : index
    %c0_121 = arith.constant 0 : index
    %c0_122 = arith.constant 0 : index
    %197 = vector.load %arg10[%c5_120, %c0_121, %c0_122] : memref<6x128x128xf32, #tpu.memory_space<vmem>>, vector<1x128x128xf32>
    %198 = vector.shape_cast %197 : vector<1x128x128xf32> to vector<128x128xf32>
    %199 = vector.shape_cast %196 : vector<128x128xf32> to vector<1x128x128xf32>
    tpu.vector_store %arg10[%c5_120, %c0_121, %c0_122], %199 {strides = array<i32>} : memref<6x128x128xf32, #tpu.memory_space<vmem>>, vector<1x128x128xf32>,
    return
  }
  func.func @transform_0(%arg0: i32) -> (i32, i32, i32) {
    %c0_i32 = arith.constant 0 : i32
    %c0_i32_0 = arith.constant 0 : i32
    %c0_i32_1 = arith.constant 0 : i32
    return %arg0, %c0_i32, %c0_i32_0 : i32, i32, i32
  }
  func.func @transform_1(%arg0: i32) -> (i32, i32) {
    %c0_i32 = arith.constant 0 : i32
    %c0_i32_0 = arith.constant 0 : i32
    %c0_i32_1 = arith.constant 0 : i32
    return %c0_i32, %c0_i32_0 : i32, i32
  }
  func.func @transform_2(%arg0: i32) -> (i32, i32) {
    %c0_i32 = arith.constant 0 : i32
    %c0_i32_0 = arith.constant 0 : i32
    %c0_i32_1 = arith.constant 0 : i32
    return %c0_i32, %c0_i32_0 : i32, i32
  }
  func.func @transform_3(%arg0: i32) -> (i32, i32) {
    %c0_i32 = arith.constant 0 : i32
    %c0_i32_0 = arith.constant 0 : i32
    %c0_i32_1 = arith.constant 0 : i32
    return %c0_i32, %c0_i32_0 : i32, i32
  }
  func.func @transform_4(%arg0: i32) -> (i32, i32) {
    %c0_i32 = arith.constant 0 : i32
    %c0_i32_0 = arith.constant 0 : i32
    %c0_i32_1 = arith.constant 0 : i32
    return %c0_i32, %c0_i32_0 : i32, i32
  }
  func.func @transform_5(%arg0: i32) -> (i32, i32) {
    %c0_i32 = arith.constant 0 : i32
    %c0_i32_0 = arith.constant 0 : i32
    %c0_i32_1 = arith.constant 0 : i32
    return %c0_i32, %c0_i32_0 : i32, i32
  }
  func.func @transform_6(%arg0: i32) -> (i32, i32) {
    %c0_i32 = arith.constant 0 : i32
    %c0_i32_0 = arith.constant 0 : i32
    %c0_i32_1 = arith.constant 0 : i32
    return %c0_i32, %c0_i32_0 : i32, i32
  }
  func.func @transform_7(%arg0: i32) -> (i32, i32) {
    %c0_i32 = arith.constant 0 : i32
    %c0_i32_0 = arith.constant 0 : i32
    %c0_i32_1 = arith.constant 0 : i32
    return %c0_i32, %c0_i32_0 : i32, i32
  }
  func.func @transform_8(%arg0: i32) -> (i32, i32) {
    %c0_i32 = arith.constant 0 : i32
    %c0_i32_0 = arith.constant 0 : i32
    %c0_i32_1 = arith.constant 0 : i32
    return %c0_i32, %c0_i32_0 : i32, i32
  }
  func.func @transform_9(%arg0: i32) -> (i32, i32, i32) {
    %c0_i32 = arith.constant 0 : i32
    %c0_i32_0 = arith.constant 0 : i32
    %c0_i32_1 = arith.constant 0 : i32
    return %arg0, %c0_i32, %c0_i32_0 : i32, i32, i32
  }
}

</mosaic_0001>

<llo_original>
// kernel: tpu_custom_call.1
$region0: #{tpu_custom_call.1}
  #allocation0 [shape = 'u32[]', space=smem, size = 0x4, offset = 0x4, fixed_abs, tag = 'smem constant byte address 0x4 - core index']
  #allocation1 [shape = 'u32[144,128]{1,0:T(1,128)}', space=vmem, size = 0x12000, scoped, tag = 'internal scratch']
  %s0 = inlined_call_operand.hbm [shape: f32[6,128,128], index: 0, kind: input, shape index: {}, may-alias: {0,9}]
  %s1 = inlined_call_operand.vmem [shape: bf16[8,128], index: 1, kind: input, shape index: {}]
  %s2 = inlined_call_operand.vmem [shape: bf16[8,128], index: 2, kind: input, shape index: {}]
  %s3 = inlined_call_operand.vmem [shape: bf16[128,8], index: 3, kind: input, shape index: {}]
  %s4 = inlined_call_operand.vmem [shape: bf16[128,8], index: 4, kind: input, shape index: {}]
  %s5 = inlined_call_operand.vmem [shape: bf16[128,8], index: 5, kind: input, shape index: {}]
  %s6 = inlined_call_operand.vmem [shape: bf16[128,8], index: 6, kind: input, shape index: {}]
  %s7 = inlined_call_operand.vmem [shape: bf16[8,128], index: 7, kind: input, shape index: {}]
  %s8 = inlined_call_operand.vmem [shape: bf16[8,128], index: 8, kind: input, shape index: {}]
  %s9 = inlined_call_operand.hbm [shape: f32[6,128,128], index: 9, kind: output, shape index: {}, may-alias: {0,9}]
  %s10 = sld [smem:[#allocation0]]
  $region50: #{tpu_custom_call.1} parent=0
    _
  %s12 = ssub.s32 1, %s10
  %s13 = scalar_select 0, %s12, %s10
  $region1: #{tpu_custom_call.1} parent=0
    #allocation2 [shape = 'u8[393216]{0}', space=vmem, size = 0x60000, scoped, tag = 'input window, operand 0, single buffered']
    #allocation3 [shape = 's32[1]{0}', space=sflag, size = 0x4, scoped, tag = 'scoped memory for tpu_custom_call.1']
    #allocation4 [shape = 's32[1]{0}', space=sflag, size = 0x4, scoped, tag = 'scoped memory for tpu_custom_call.1']
    #allocation5 [shape = 'u8[393216]{0}', space=vmem, size = 0x60000, scoped, tag = 'output window, operand 0, single buffered']
    %14 = vsyncpa [#allocation3], 0
    %15 = vsyncpa [#allocation4], 0
    // Predicated region
    $region2: #{tpu_custom_call.1} parent=1 // pred_check
      _
    $region3: #{tpu_custom_call.1} parent=1 // pred_check_branch
      %17 = sbr.rel (0) target = $region5
    $region4: #{tpu_custom_call.1} parent=1 // pred_region
      %s19 = ssub.s32 12288, 12288
      %20 = vsyncadd [#allocation3], %s19
      %s21 = sshll.u32 [#allocation2], 4
      %s22 = int_to_ptr.vmem [resolvable:$true] %s21
      %27 = dma.hbm_to_vmem [thread:$0]  %s0, 12288, %s22, [#allocation3], 128, 128, 8
    $region5: #{tpu_custom_call.1} parent=1 // pred_fallthru
      _
    // Predicated region
    $region6: #{tpu_custom_call.1} parent=1 // pred_check
      _
    $region7: #{tpu_custom_call.1} parent=1 // pred_check_branch
      %29 = sbr.rel (0) target = $region9
    $region8: #{tpu_custom_call.1} parent=1 // pred_region
      _
    $region9: #{tpu_custom_call.1} parent=1 // pred_fallthru
      _
    // Predicated region
    $region10: #{tpu_custom_call.1} parent=1 // pred_check
      _
    $region11: #{tpu_custom_call.1} parent=1 // pred_check_branch
      %31 = sbr.rel (0) target = $region13
    $region12: #{tpu_custom_call.1} parent=1 // pred_region
      _
    $region13: #{tpu_custom_call.1} parent=1 // pred_fallthru
      _
    // Predicated region
    $region14: #{tpu_custom_call.1} parent=1 // pred_check
      _
    $region15: #{tpu_custom_call.1} parent=1 // pred_check_branch
      %33 = sbr.rel (0) target = $region17
    $region16: #{tpu_custom_call.1} parent=1 // pred_region
      _
    $region17: #{tpu_custom_call.1} parent=1 // pred_fallthru
      _
    // Predicated region
    $region18: #{tpu_custom_call.1} parent=1 // pred_check
      _
    $region19: #{tpu_custom_call.1} parent=1 // pred_check_branch
      %35 = sbr.rel (0) target = $region21
    $region20: #{tpu_custom_call.1} parent=1 // pred_region
      _
    $region21: #{tpu_custom_call.1} parent=1 // pred_fallthru
      _
    // Predicated region
    $region22: #{tpu_custom_call.1} parent=1 // pred_check
      _
    $region23: #{tpu_custom_call.1} parent=1 // pred_check_branch
      %37 = sbr.rel (0) target = $region25
    $region24: #{tpu_custom_call.1} parent=1 // pred_region
      _
    $region25: #{tpu_custom_call.1} parent=1 // pred_fallthru
      _
    // Predicated region
    $region26: #{tpu_custom_call.1} parent=1 // pred_check
      _
    $region27: #{tpu_custom_call.1} parent=1 // pred_check_branch
      %39 = sbr.rel (0) target = $region29
    $region28: #{tpu_custom_call.1} parent=1 // pred_region
      _
    $region29: #{tpu_custom_call.1} parent=1 // pred_fallthru
      _
    // Predicated region
    $region30: #{tpu_custom_call.1} parent=1 // pred_check
      _
    $region31: #{tpu_custom_call.1} parent=1 // pred_check_branch
      %41 = sbr.rel (0) target = $region33
    $region32: #{tpu_custom_call.1} parent=1 // pred_region
      _
    $region33: #{tpu_custom_call.1} parent=1 // pred_fallthru
      _
    // Predicated region
    $region34: #{tpu_custom_call.1} parent=1 // pred_check
      _
    $region35: #{tpu_custom_call.1} parent=1 // pred_check_branch
      %43 = sbr.rel (0) target = $region37
    $region36: #{tpu_custom_call.1} parent=1 // pred_region
      _
    $region37: #{tpu_custom_call.1} parent=1 // pred_fallthru
      _
    // Predicated region
    $region38: #{tpu_custom_call.1} parent=1 // pred_check
      _
    $region39: #{tpu_custom_call.1} parent=1 // pred_check_branch
      %45 = sbr.rel (0) target = $region41
    $region40: #{tpu_custom_call.1} parent=1 // pred_region
      %46 = dma.done [#allocation3], 12288
    $region41: #{tpu_custom_call.1} parent=1 // pred_fallthru
      _
    %v48 = vld [vmem:[%s1] sm:$0xf]
    %v49 = vld [vmem:[%s2] sm:$0xf]
    %v50 = vld [vmem:[%s3] sm:$0xf]
    %v51 = vld [vmem:[%s3 + $0x4] sm:$0xf]
    %v52 = vld [vmem:[%s3 + $0x8] sm:$0xf]
    %v53 = vld [vmem:[%s3 + $0xc] sm:$0xf]
    %v54 = vld [vmem:[%s3 + $0x10] sm:$0xf]
    %v55 = vld [vmem:[%s3 + $0x14] sm:$0xf]
    %v56 = vld [vmem:[%s3 + $0x18] sm:$0xf]
    %v57 = vld [vmem:[%s3 + $0x1c] sm:$0xf]
    %v58 = vld [vmem:[%s3 + $0x20] sm:$0xf]
    %v59 = vld [vmem:[%s3 + $0x24] sm:$0xf]
    %v60 = vld [vmem:[%s3 + $0x28] sm:$0xf]
    %v61 = vld [vmem:[%s3 + $0x2c] sm:$0xf]
    %v62 = vld [vmem:[%s3 + $0x30] sm:$0xf]
    %v63 = vld [vmem:[%s3 + $0x34] sm:$0xf]
    %v64 = vld [vmem:[%s3 + $0x38] sm:$0xf]
    %v65 = vld [vmem:[%s3 + $0x3c] sm:$0xf]
    %v66 = vld [vmem:[%s4] sm:$0xf]
    %v67 = vld [vmem:[%s4 + $0x4] sm:$0xf]
    %v68 = vld [vmem:[%s4 + $0x8] sm:$0xf]
    %v69 = vld [vmem:[%s4 + $0xc] sm:$0xf]
    %v70 = vld [vmem:[%s4 + $0x10] sm:$0xf]
    %v71 = vld [vmem:[%s4 + $0x14] sm:$0xf]
    %v72 = vld [vmem:[%s4 + $0x18] sm:$0xf]
    %v73 = vld [vmem:[%s4 + $0x1c] sm:$0xf]
    %v74 = vld [vmem:[%s4 + $0x20] sm:$0xf]
    %v75 = vld [vmem:[%s4 + $0x24] sm:$0xf]
    %v76 = vld [vmem:[%s4 + $0x28] sm:$0xf]
    %v77 = vld [vmem:[%s4 + $0x2c] sm:$0xf]
    %v78 = vld [vmem:[%s4 + $0x30] sm:$0xf]
    %v79 = vld [vmem:[%s4 + $0x34] sm:$0xf]
    %v80 = vld [vmem:[%s4 + $0x38] sm:$0xf]
    %v81 = vld [vmem:[%s4 + $0x3c] sm:$0xf]
    %v82 = vld [vmem:[%s5] sm:$0xf]
    %v83 = vld [vmem:[%s5 + $0x4] sm:$0xf]
    %v84 = vld [vmem:[%s5 + $0x8] sm:$0xf]
    %v85 = vld [vmem:[%s5 + $0xc] sm:$0xf]
    %v86 = vld [vmem:[%s5 + $0x10] sm:$0xf]
    %v87 = vld [vmem:[%s5 + $0x14] sm:$0xf]
    %v88 = vld [vmem:[%s5 + $0x18] sm:$0xf]
    %v89 = vld [vmem:[%s5 + $0x1c] sm:$0xf]
    %v90 = vld [vmem:[%s5 + $0x20] sm:$0xf]
    %v91 = vld [vmem:[%s5 + $0x24] sm:$0xf]
    %v92 = vld [vmem:[%s5 + $0x28] sm:$0xf]
    %v93 = vld [vmem:[%s5 + $0x2c] sm:$0xf]
    %v94 = vld [vmem:[%s5 + $0x30] sm:$0xf]
    %v95 = vld [vmem:[%s5 + $0x34] sm:$0xf]
    %v96 = vld [vmem:[%s5 + $0x38] sm:$0xf]
    %v97 = vld [vmem:[%s5 + $0x3c] sm:$0xf]
    %v98 = vld [vmem:[%s6] sm:$0xf]
    %v99 = vld [vmem:[%s6 + $0x4] sm:$0xf]
    %v100 = vld [vmem:[%s6 + $0x8] sm:$0xf]
    %v101 = vld [vmem:[%s6 + $0xc] sm:$0xf]
    %v102 = vld [vmem:[%s6 + $0x10] sm:$0xf]
    %v103 = vld [vmem:[%s6 + $0x14] sm:$0xf]
    %v104 = vld [vmem:[%s6 + $0x18] sm:$0xf]
    %v105 = vld [vmem:[%s6 + $0x1c] sm:$0xf]
    %v106 = vld [vmem:[%s6 + $0x20] sm:$0xf]
    %v107 = vld [vmem:[%s6 + $0x24] sm:$0xf]
    %v108 = vld [vmem:[%s6 + $0x28] sm:$0xf]
    %v109 = vld [vmem:[%s6 + $0x2c] sm:$0xf]
    %v110 = vld [vmem:[%s6 + $0x30] sm:$0xf]
    %v111 = vld [vmem:[%s6 + $0x34] sm:$0xf]
    %v112 = vld [vmem:[%s6 + $0x38] sm:$0xf]
    %v113 = vld [vmem:[%s6 + $0x3c] sm:$0xf]
    %v114 = vld [vmem:[%s7] sm:$0xf]
    %v115 = vld [vmem:[%s8] sm:$0xf]
    %v116 = vld [vmem:[#allocation2] sm:$0xff]
    %v117 = vld [vmem:[#allocation2 + $0x8] sm:$0xff]
    %v118 = vld [vmem:[#allocation2 + $0x10] sm:$0xff]
    %v119 = vld [vmem:[#allocation2 + $0x18] sm:$0xff]
    %v120 = vld [vmem:[#allocation2 + $0x20] sm:$0xff]
    %v121 = vld [vmem:[#allocation2 + $0x28] sm:$0xff]
    %v122 = vld [vmem:[#allocation2 + $0x30] sm:$0xff]
    %v123 = vld [vmem:[#allocation2 + $0x38] sm:$0xff]
    %v124 = vld [vmem:[#allocation2 + $0x40] sm:$0xff]
    %v125 = vld [vmem:[#allocation2 + $0x48] sm:$0xff]
    %v126 = vld [vmem:[#allocation2 + $0x50] sm:$0xff]
    %v127 = vld [vmem:[#allocation2 + $0x58] sm:$0xff]
    %v128 = vld [vmem:[#allocation2 + $0x60] sm:$0xff]
    %v129 = vld [vmem:[#allocation2 + $0x68] sm:$0xff]
    %v130 = vld [vmem:[#allocation2 + $0x70] sm:$0xff]
    %v131 = vld [vmem:[#allocation2 + $0x78] sm:$0xff]
    %v132 = vpack.c.bf16 %v117, %v116
    %v133 = vpack.c.bf16 %v119, %v118
    %v134 = vpack.c.bf16 %v121, %v120
    %v135 = vpack.c.bf16 %v123, %v122
    %v136 = vpack.c.bf16 %v125, %v124
    %v137 = vpack.c.bf16 %v127, %v126
    %v138 = vpack.c.bf16 %v129, %v128
    %v139 = vpack.c.bf16 %v131, %v130
    %140 = vmatprep.subr.bf16.mxu0 0
    %141 = vmatpush1.bf16.msra.mxu0 %v132
    %142 = vmatprep.subr.bf16.mxu0 0
    %143 = vmatpush1.bf16.msra.mxu0 %v133
    %144 = vmatprep.subr.bf16.mxu0 0
    %145 = vmatpush1.bf16.msra.mxu0 %v134
    %146 = vmatprep.subr.bf16.mxu0 0
    %147 = vmatpush1.bf16.msra.mxu0 %v135
    %148 = vmatprep.subr.bf16.mxu0 0
    %149 = vmatpush1.bf16.msra.mxu0 %v136
    %150 = vmatprep.subr.bf16.mxu0 0
    %151 = vmatpush1.bf16.msra.mxu0 %v137
    %152 = vmatprep.subr.bf16.mxu0 0
    %153 = vmatpush1.bf16.msra.mxu0 %v138
    %154 = vmatprep.subr.bf16.mxu0 0
    %155 = vmatpush1.bf16.msra.mxu0 %v139
    %156 = vmatprep.subr.bf16.mxu0 0
    %157 = vmatpush1.bf16.msra.mxu0 0
    %158 = vmatprep.subr.bf16.mxu0 0
    %159 = vmatpush1.bf16.msra.mxu0 0
    %160 = vmatprep.subr.bf16.mxu0 0
    %161 = vmatpush1.bf16.msra.mxu0 0
    %162 = vmatprep.subr.bf16.mxu0 0
    %163 = vmatpush1.bf16.msra.mxu0 0
    %164 = vmatprep.subr.bf16.mxu0 0
    %165 = vmatpush1.bf16.msra.mxu0 0
    %166 = vmatprep.subr.bf16.mxu0 0
    %167 = vmatpush1.bf16.msra.mxu0 0
    %168 = vmatprep.subr.bf16.mxu0 0
    %169 = vmatpush1.bf16.msra.mxu0 0
    %170 = vmatprep.subr.bf16.mxu0 0
    %171 = vmatpush1.bf16.msra.mxu0 0
    %172 = vmatprep.mubr.bf16.mxu0 0
    %173 = vmatmul.mubr.bf16.gmra.mrb[0].mxu0 %v48
    %v174 = vpop.f32.mrb[0].mxu0
    %v175 = vadd.f32 0.0, %v174
    %v176 = vpop.f32.mrb[0].mxu0
    %v177 = vpop.f32.mrb[0].mxu0
    %v178 = vpop.f32.mrb[0].mxu0
    %179 = vdwg.mxu0
    %180 = vmatprep.subr.bf16.mxu0 0
    %181 = vmatpush1.bf16.msra.mxu0 %v132
    %182 = vmatprep.subr.bf16.mxu0 0
    %183 = vmatpush1.bf16.msra.mxu0 %v133
    %184 = vmatprep.subr.bf16.mxu0 0
    %185 = vmatpush1.bf16.msra.mxu0 %v134
    %186 = vmatprep.subr.bf16.mxu0 0
    %187 = vmatpush1.bf16.msra.mxu0 %v135
    %188 = vmatprep.subr.bf16.mxu0 0
    %189 = vmatpush1.bf16.msra.mxu0 %v136
    %190 = vmatprep.subr.bf16.mxu0 0
    %191 = vmatpush1.bf16.msra.mxu0 %v137
    %192 = vmatprep.subr.bf16.mxu0 0
    %193 = vmatpush1.bf16.msra.mxu0 %v138
    %194 = vmatprep.subr.bf16.mxu0 0
    %195 = vmatpush1.bf16.msra.mxu0 %v139
    %196 = vmatprep.subr.bf16.mxu0 0
    %197 = vmatpush1.bf16.msra.mxu0 0
    %198 = vmatprep.subr.bf16.mxu0 0
    %199 = vmatpush1.bf16.msra.mxu0 0
    %200 = vmatprep.subr.bf16.mxu0 0
    %201 = vmatpush1.bf16.msra.mxu0 0
    %202 = vmatprep.subr.bf16.mxu0 0
    %203 = vmatpush1.bf16.msra.mxu0 0
    %204 = vmatprep.subr.bf16.mxu0 0
    %205 = vmatpush1.bf16.msra.mxu0 0
    %206 = vmatprep.subr.bf16.mxu0 0
    %207 = vmatpush1.bf16.msra.mxu0 0
    %208 = vmatprep.subr.bf16.mxu0 0
    %209 = vmatpush1.bf16.msra.mxu0 0
    %210 = vmatprep.subr.bf16.mxu0 0
    %211 = vmatpush1.bf16.msra.mxu0 0
    %212 = vmatprep.mubr.bf16.mxu0 0
    %213 = vmatmul.mubr.bf16.gmra.mrb[0].mxu0 %v49
    %v214 = vpop.f32.mrb[0].mxu0
    %v215 = vadd.f32 0.0, %v214
    %v216 = vpop.f32.mrb[0].mxu0
    %v217 = vpop.f32.mrb[0].mxu0
    %v218 = vpop.f32.mrb[0].mxu0
    %219 = vdwg.mxu0
    %v220 = vpack.c.bf16 %v175, %v175
    %v221 = vpack.c.bf16 %v215, %v215
    %v238 = vunpack.c.l.b16 %v50
    %v239 = vunpack.c.l.b16 %v51
    %v240 = vunpack.c.l.b16 %v52
    %v241 = vunpack.c.l.b16 %v53
    %v242 = vunpack.c.l.b16 %v54
    %v243 = vunpack.c.l.b16 %v55
    %v244 = vunpack.c.l.b16 %v56
    %v245 = vunpack.c.l.b16 %v57
    %v246 = vunpack.c.l.b16 %v58
    %v247 = vunpack.c.l.b16 %v59
    %v248 = vunpack.c.l.b16 %v60
    %v249 = vunpack.c.l.b16 %v61
    %v250 = vunpack.c.l.b16 %v62
    %v251 = vunpack.c.l.b16 %v63
    %v252 = vunpack.c.l.b16 %v64
    %v253 = vunpack.c.l.b16 %v65
    %v254 = vpack.c.b16 %v239, %v238
    %v255 = vpack.c.b16 %v241, %v240
    %v256 = vpack.c.b16 %v243, %v242
    %v257 = vpack.c.b16 %v245, %v244
    %v258 = vpack.c.b16 %v247, %v246
    %v259 = vpack.c.b16 %v249, %v248
    %v260 = vpack.c.b16 %v251, %v250
    %v261 = vpack.c.b16 %v253, %v252
    %270 = vmatprep.subr.bf16.mxu0 0
    %271 = vmatpush1.bf16.msra.mxu0 %v254
    %272 = vmatprep.subr.bf16.mxu0 0
    %273 = vmatpush1.bf16.msra.mxu0 %v255
    %274 = vmatprep.subr.bf16.mxu0 0
    %275 = vmatpush1.bf16.msra.mxu0 %v256
    %276 = vmatprep.subr.bf16.mxu0 0
    %277 = vmatpush1.bf16.msra.mxu0 %v257
    %278 = vmatprep.subr.bf16.mxu0 0
    %279 = vmatpush1.bf16.msra.mxu0 %v258
    %280 = vmatprep.subr.bf16.mxu0 0
    %281 = vmatpush1.bf16.msra.mxu0 %v259
    %282 = vmatprep.subr.bf16.mxu0 0
    %283 = vmatpush1.bf16.msra.mxu0 %v260
    %284 = vmatprep.subr.bf16.mxu0 0
    %285 = vmatpush1.bf16.msra.mxu0 %v261
    %286 = vmatprep.subr.bf16.mxu0 0
    %287 = vmatpush1.bf16.msra.mxu0 0
    %288 = vmatprep.subr.bf16.mxu0 0
    %289 = vmatpush1.bf16.msra.mxu0 0
    %290 = vmatprep.subr.bf16.mxu0 0
    %291 = vmatpush1.bf16.msra.mxu0 0
    %292 = vmatprep.subr.bf16.mxu0 0
    %293 = vmatpush1.bf16.msra.mxu0 0
    %294 = vmatprep.subr.bf16.mxu0 0
    %295 = vmatpush1.bf16.msra.mxu0 0
    %296 = vmatprep.subr.bf16.mxu0 0
    %297 = vmatpush1.bf16.msra.mxu0 0
    %298 = vmatprep.subr.bf16.mxu0 0
    %299 = vmatpush1.bf16.msra.mxu0 0
    %300 = vmatprep.subr.bf16.mxu0 0
    %301 = vmatpush1.bf16.msra.mxu0 0
    %302 = vmatprep.mubr.bf16.mxu0 0
    %303 = vmatmul.mubr.bf16.gmra.mrb[0].mxu0 %v220
    %v304 = vpop.f32.mrb[0].mxu0
    %v305 = vadd.f32 0.0, %v304
    %v306 = vpop.f32.mrb[0].mxu0
    %v307 = vpop.f32.mrb[0].mxu0
    %v308 = vpop.f32.mrb[0].mxu0
    %309 = vdwg.mxu0
    %v326 = vunpack.c.l.b16 %v66
    %v327 = vunpack.c.l.b16 %v67
    %v328 = vunpack.c.l.b16 %v68
    %v329 = vunpack.c.l.b16 %v69
    %v330 = vunpack.c.l.b16 %v70
    %v331 = vunpack.c.l.b16 %v71
    %v332 = vunpack.c.l.b16 %v72
    %v333 = vunpack.c.l.b16 %v73
    %v334 = vunpack.c.l.b16 %v74
    %v335 = vunpack.c.l.b16 %v75
    %v336 = vunpack.c.l.b16 %v76
    %v337 = vunpack.c.l.b16 %v77
    %v338 = vunpack.c.l.b16 %v78
    %v339 = vunpack.c.l.b16 %v79
    %v340 = vunpack.c.l.b16 %v80
    %v341 = vunpack.c.l.b16 %v81
    %v342 = vpack.c.b16 %v327, %v326
    %v343 = vpack.c.b16 %v329, %v328
    %v344 = vpack.c.b16 %v331, %v330
    %v345 = vpack.c.b16 %v333, %v332
    %v346 = vpack.c.b16 %v335, %v334
    %v347 = vpack.c.b16 %v337, %v336
    %v348 = vpack.c.b16 %v339, %v338
    %v349 = vpack.c.b16 %v341, %v340
    %358 = vmatprep.subr.bf16.mxu0 0
    %359 = vmatpush1.bf16.msra.mxu0 %v342
    %360 = vmatprep.subr.bf16.mxu0 0
    %361 = vmatpush1.bf16.msra.mxu0 %v343
    %362 = vmatprep.subr.bf16.mxu0 0
    %363 = vmatpush1.bf16.msra.mxu0 %v344
    %364 = vmatprep.subr.bf16.mxu0 0
    %365 = vmatpush1.bf16.msra.mxu0 %v345
    %366 = vmatprep.subr.bf16.mxu0 0
    %367 = vmatpush1.bf16.msra.mxu0 %v346
    %368 = vmatprep.subr.bf16.mxu0 0
    %369 = vmatpush1.bf16.msra.mxu0 %v347
    %370 = vmatprep.subr.bf16.mxu0 0
    %371 = vmatpush1.bf16.msra.mxu0 %v348
    %372 = vmatprep.subr.bf16.mxu0 0
    %373 = vmatpush1.bf16.msra.mxu0 %v349
    %374 = vmatprep.subr.bf16.mxu0 0
    %375 = vmatpush1.bf16.msra.mxu0 0
    %376 = vmatprep.subr.bf16.mxu0 0
    %377 = vmatpush1.bf16.msra.mxu0 0
    %378 = vmatprep.subr.bf16.mxu0 0
    %379 = vmatpush1.bf16.msra.mxu0 0
    %380 = vmatprep.subr.bf16.mxu0 0
    %381 = vmatpush1.bf16.msra.mxu0 0
    %382 = vmatprep.subr.bf16.mxu0 0
    %383 = vmatpush1.bf16.msra.mxu0 0
    %384 = vmatprep.subr.bf16.mxu0 0
    %385 = vmatpush1.bf16.msra.mxu0 0
    %386 = vmatprep.subr.bf16.mxu0 0
    %387 = vmatpush1.bf16.msra.mxu0 0
    %388 = vmatprep.subr.bf16.mxu0 0
    %389 = vmatpush1.bf16.msra.mxu0 0
    %390 = vmatprep.mubr.bf16.mxu0 0
    %391 = vmatmul.mubr.bf16.gmra.mrb[0].mxu0 %v221
    %v392 = vpop.f32.mrb[0].mxu0
    %v393 = vadd.f32 0.0, %v392
    %v394 = vpop.f32.mrb[0].mxu0
    %v395 = vpop.f32.mrb[0].mxu0
    %v396 = vpop.f32.mrb[0].mxu0
    %397 = vdwg.mxu0
    %v398 = vsub.f32 %v305, %v393
    %399 = vmatprep.subr.bf16.mxu0 0
    %400 = vmatpush1.bf16.msra.mxu0 %v254
    %401 = vmatprep.subr.bf16.mxu0 0
    %402 = vmatpush1.bf16.msra.mxu0 %v255
    %403 = vmatprep.subr.bf16.mxu0 0
    %404 = vmatpush1.bf16.msra.mxu0 %v256
    %405 = vmatprep.subr.bf16.mxu0 0
    %406 = vmatpush1.bf16.msra.mxu0 %v257
    %407 = vmatprep.subr.bf16.mxu0 0
    %408 = vmatpush1.bf16.msra.mxu0 %v258
    %409 = vmatprep.subr.bf16.mxu0 0
    %410 = vmatpush1.bf16.msra.mxu0 %v259
    %411 = vmatprep.subr.bf16.mxu0 0
    %412 = vmatpush1.bf16.msra.mxu0 %v260
    %413 = vmatprep.subr.bf16.mxu0 0
    %414 = vmatpush1.bf16.msra.mxu0 %v261
    %415 = vmatprep.subr.bf16.mxu0 0
    %416 = vmatpush1.bf16.msra.mxu0 0
    %417 = vmatprep.subr.bf16.mxu0 0
    %418 = vmatpush1.bf16.msra.mxu0 0
    %419 = vmatprep.subr.bf16.mxu0 0
    %420 = vmatpush1.bf16.msra.mxu0 0
    %421 = vmatprep.subr.bf16.mxu0 0
    %422 = vmatpush1.bf16.msra.mxu0 0
    %423 = vmatprep.subr.bf16.mxu0 0
    %424 = vmatpush1.bf16.msra.mxu0 0
    %425 = vmatprep.subr.bf16.mxu0 0
    %426 = vmatpush1.bf16.msra.mxu0 0
    %427 = vmatprep.subr.bf16.mxu0 0
    %428 = vmatpush1.bf16.msra.mxu0 0
    %429 = vmatprep.subr.bf16.mxu0 0
    %430 = vmatpush1.bf16.msra.mxu0 0
    %431 = vmatprep.mubr.bf16.mxu0 0
    %432 = vmatmul.mubr.bf16.gmra.mrb[0].mxu0 %v221
    %v433 = vpop.f32.mrb[0].mxu0
    %v434 = vadd.f32 0.0, %v433
    %v435 = vpop.f32.mrb[0].mxu0
    %v436 = vpop.f32.mrb[0].mxu0
    %v437 = vpop.f32.mrb[0].mxu0
    %438 = vdwg.mxu0
    %439 = vmatprep.subr.bf16.mxu0 0
    %440 = vmatpush1.bf16.msra.mxu0 %v342
    %441 = vmatprep.subr.bf16.mxu0 0
    %442 = vmatpush1.bf16.msra.mxu0 %v343
    %443 = vmatprep.subr.bf16.mxu0 0
    %444 = vmatpush1.bf16.msra.mxu0 %v344
    %445 = vmatprep.subr.bf16.mxu0 0
    %446 = vmatpush1.bf16.msra.mxu0 %v345
    %447 = vmatprep.subr.bf16.mxu0 0
    %448 = vmatpush1.bf16.msra.mxu0 %v346
    %449 = vmatprep.subr.bf16.mxu0 0
    %450 = vmatpush1.bf16.msra.mxu0 %v347
    %451 = vmatprep.subr.bf16.mxu0 0
    %452 = vmatpush1.bf16.msra.mxu0 %v348
    %453 = vmatprep.subr.bf16.mxu0 0
    %454 = vmatpush1.bf16.msra.mxu0 %v349
    %455 = vmatprep.subr.bf16.mxu0 0
    %456 = vmatpush1.bf16.msra.mxu0 0
    %457 = vmatprep.subr.bf16.mxu0 0
    %458 = vmatpush1.bf16.msra.mxu0 0
    %459 = vmatprep.subr.bf16.mxu0 0
    %460 = vmatpush1.bf16.msra.mxu0 0
    %461 = vmatprep.subr.bf16.mxu0 0
    %462 = vmatpush1.bf16.msra.mxu0 0
    %463 = vmatprep.subr.bf16.mxu0 0
    %464 = vmatpush1.bf16.msra.mxu0 0
    %465 = vmatprep.subr.bf16.mxu0 0
    %466 = vmatpush1.bf16.msra.mxu0 0
    %467 = vmatprep.subr.bf16.mxu0 0
    %468 = vmatpush1.bf16.msra.mxu0 0
    %469 = vmatprep.subr.bf16.mxu0 0
    %470 = vmatpush1.bf16.msra.mxu0 0
    %471 = vmatprep.mubr.bf16.mxu0 0
    %472 = vmatmul.mubr.bf16.gmra.mrb[0].mxu0 %v220
    %v473 = vpop.f32.mrb[0].mxu0
    %v474 = vadd.f32 %v434, %v473
    %v475 = vpop.f32.mrb[0].mxu0
    %v476 = vpop.f32.mrb[0].mxu0
    %v477 = vpop.f32.mrb[0].mxu0
    %478 = vdwg.mxu0
    %v479 = vpack.c.bf16 %v398, %v398
    %v480 = vpack.c.bf16 %v474, %v474
    %v497 = vunpack.c.l.b16 %v82
    %v498 = vunpack.c.l.b16 %v83
    %v499 = vunpack.c.l.b16 %v84
    %v500 = vunpack.c.l.b16 %v85
    %v501 = vunpack.c.l.b16 %v86
    %v502 = vunpack.c.l.b16 %v87
    %v503 = vunpack.c.l.b16 %v88
    %v504 = vunpack.c.l.b16 %v89
    %v505 = vunpack.c.l.b16 %v90
    %v506 = vunpack.c.l.b16 %v91
    %v507 = vunpack.c.l.b16 %v92
    %v508 = vunpack.c.l.b16 %v93
    %v509 = vunpack.c.l.b16 %v94
    %v510 = vunpack.c.l.b16 %v95
    %v511 = vunpack.c.l.b16 %v96
    %v512 = vunpack.c.l.b16 %v97
    %v513 = vpack.c.b16 %v498, %v497
    %v514 = vpack.c.b16 %v500, %v499
    %v515 = vpack.c.b16 %v502, %v501
    %v516 = vpack.c.b16 %v504, %v503
    %v517 = vpack.c.b16 %v506, %v505
    %v518 = vpack.c.b16 %v508, %v507
    %v519 = vpack.c.b16 %v510, %v509
    %v520 = vpack.c.b16 %v512, %v511
    %vm521 = vcmask 64512
    %v523 = vsel %vm521, %v513, 0
    %v526 = vsel %vm521, %v514, 0
    %v529 = vsel %vm521, %v515, 0
    %v532 = vsel %vm521, %v516, 0
    %v535 = vsel %vm521, %v517, 0
    %v538 = vsel %vm521, %v518, 0
    %v541 = vsel %vm521, %v519, 0
    %v544 = vsel %vm521, %v520, 0
    %vm546 = vcmask 1043456
    %v548 = vsel %vm546, %v479, 0
    %550 = vmatprep.subr.bf16.mxu0 0
    %551 = vmatpush1.bf16.msra.mxu0 %v548
    %552 = vmatprep.subr.bf16.mxu0 0
    %553 = vmatpush1.bf16.msra.mxu0 0
    %554 = vmatprep.subr.bf16.mxu0 0
    %555 = vmatpush1.bf16.msra.mxu0 0
    %556 = vmatprep.subr.bf16.mxu0 0
    %557 = vmatpush1.bf16.msra.mxu0 0
    %558 = vmatprep.subr.bf16.mxu0 0
    %559 = vmatpush1.bf16.msra.mxu0 0
    %560 = vmatprep.subr.bf16.mxu0 0
    %561 = vmatpush1.bf16.msra.mxu0 0
    %562 = vmatprep.subr.bf16.mxu0 0
    %563 = vmatpush1.bf16.msra.mxu0 0
    %564 = vmatprep.subr.bf16.mxu0 0
    %565 = vmatpush1.bf16.msra.mxu0 0
    %566 = vmatprep.subr.bf16.mxu0 0
    %567 = vmatpush1.bf16.msra.mxu0 0
    %568 = vmatprep.subr.bf16.mxu0 0
    %569 = vmatpush1.bf16.msra.mxu0 0
    %570 = vmatprep.subr.bf16.mxu0 0
    %571 = vmatpush1.bf16.msra.mxu0 0
    %572 = vmatprep.subr.bf16.mxu0 0
    %573 = vmatpush1.bf16.msra.mxu0 0
    %574 = vmatprep.subr.bf16.mxu0 0
    %575 = vmatpush1.bf16.msra.mxu0 0
    %576 = vmatprep.subr.bf16.mxu0 0
    %577 = vmatpush1.bf16.msra.mxu0 0
    %578 = vmatprep.subr.bf16.mxu0 0
    %579 = vmatpush1.bf16.msra.mxu0 0
    %580 = vmatprep.subr.bf16.mxu0 0
    %581 = vmatpush1.bf16.msra.mxu0 0
    %582 = vmatprep.mubr.bf16.mxu0 0
    %583 = vmatmul.mubr.bf16.gmra.mrb[0].mxu0 %v523
    %v584 = vpop.f32.mrb[0].mxu0
    %v585 = vadd.f32 0.0, %v584
    %v586 = vpop.f32.mrb[0].mxu0
    %v587 = vpop.f32.mrb[0].mxu0
    %v588 = vadd.f32 0.0, %v587
    %v589 = vpop.f32.mrb[0].mxu0
    %590 = vmatprep.mubr.bf16.mxu0 0
    %591 = vmatmul.mubr.bf16.gmra.mrb[0].mxu0 %v526
    %v592 = vpop.f32.mrb[0].mxu0
    %v593 = vadd.f32 0.0, %v592
    %v594 = vpop.f32.mrb[0].mxu0
    %v595 = vpop.f32.mrb[0].mxu0
    %v596 = vadd.f32 0.0, %v595
    %v597 = vpop.f32.mrb[0].mxu0
    %598 = vmatprep.mubr.bf16.mxu0 0
    %599 = vmatmul.mubr.bf16.gmra.mrb[0].mxu0 %v529
    %v600 = vpop.f32.mrb[0].mxu0
    %v601 = vadd.f32 0.0, %v600
    %v602 = vpop.f32.mrb[0].mxu0
    %v603 = vpop.f32.mrb[0].mxu0
    %v604 = vadd.f32 0.0, %v603
    %v605 = vpop.f32.mrb[0].mxu0
    %606 = vmatprep.mubr.bf16.mxu0 0
    %607 = vmatmul.mubr.bf16.gmra.mrb[0].mxu0 %v532
    %v608 = vpop.f32.mrb[0].mxu0
    %v609 = vadd.f32 0.0, %v608
    %v610 = vpop.f32.mrb[0].mxu0
    %v611 = vpop.f32.mrb[0].mxu0
    %v612 = vadd.f32 0.0, %v611
    %v613 = vpop.f32.mrb[0].mxu0
    %614 = vmatprep.mubr.bf16.mxu0 0
    %615 = vmatmul.mubr.bf16.gmra.mrb[0].mxu0 %v535
    %v616 = vpop.f32.mrb[0].mxu0
    %v617 = vadd.f32 0.0, %v616
    %v618 = vpop.f32.mrb[0].mxu0
    %v619 = vpop.f32.mrb[0].mxu0
    %v620 = vadd.f32 0.0, %v619
    %v621 = vpop.f32.mrb[0].mxu0
    %622 = vmatprep.mubr.bf16.mxu0 0
    %623 = vmatmul.mubr.bf16.gmra.mrb[0].mxu0 %v538
    %v624 = vpop.f32.mrb[0].mxu0
    %v625 = vadd.f32 0.0, %v624
    %v626 = vpop.f32.mrb[0].mxu0
    %v627 = vpop.f32.mrb[0].mxu0
    %v628 = vadd.f32 0.0, %v627
    %v629 = vpop.f32.mrb[0].mxu0
    %630 = vmatprep.mubr.bf16.mxu0 0
    %631 = vmatmul.mubr.bf16.gmra.mrb[0].mxu0 %v541
    %v632 = vpop.f32.mrb[0].mxu0
    %v633 = vadd.f32 0.0, %v632
    %v634 = vpop.f32.mrb[0].mxu0
    %v635 = vpop.f32.mrb[0].mxu0
    %v636 = vadd.f32 0.0, %v635
    %v637 = vpop.f32.mrb[0].mxu0
    %638 = vmatprep.mubr.bf16.mxu0 0
    %639 = vmatmul.mubr.bf16.gmra.mrb[0].mxu0 %v544
    %v640 = vpop.f32.mrb[0].mxu0
    %v641 = vadd.f32 0.0, %v640
    %v642 = vpop.f32.mrb[0].mxu0
    %v643 = vpop.f32.mrb[0].mxu0
    %v644 = vadd.f32 0.0, %v643
    %v645 = vpop.f32.mrb[0].mxu0
    %646 = vdwg.mxu0
    %v663 = vunpack.c.l.b16 %v98
    %v664 = vunpack.c.l.b16 %v99
    %v665 = vunpack.c.l.b16 %v100
    %v666 = vunpack.c.l.b16 %v101
    %v667 = vunpack.c.l.b16 %v102
    %v668 = vunpack.c.l.b16 %v103
    %v669 = vunpack.c.l.b16 %v104
    %v670 = vunpack.c.l.b16 %v105
    %v671 = vunpack.c.l.b16 %v106
    %v672 = vunpack.c.l.b16 %v107
    %v673 = vunpack.c.l.b16 %v108
    %v674 = vunpack.c.l.b16 %v109
    %v675 = vunpack.c.l.b16 %v110
    %v676 = vunpack.c.l.b16 %v111
    %v677 = vunpack.c.l.b16 %v112
    %v678 = vunpack.c.l.b16 %v113
    %v679 = vpack.c.b16 %v664, %v663
    %v680 = vpack.c.b16 %v666, %v665
    %v681 = vpack.c.b16 %v668, %v667
    %v682 = vpack.c.b16 %v670, %v669
    %v683 = vpack.c.b16 %v672, %v671
    %v684 = vpack.c.b16 %v674, %v673
    %v685 = vpack.c.b16 %v676, %v675
    %v686 = vpack.c.b16 %v678, %v677
    %v688 = vsel %vm521, %v679, 0
    %v691 = vsel %vm521, %v680, 0
    %v694 = vsel %vm521, %v681, 0
    %v697 = vsel %vm521, %v682, 0
    %v700 = vsel %vm521, %v683, 0
    %v703 = vsel %vm521, %v684, 0
    %v706 = vsel %vm521, %v685, 0
    %v709 = vsel %vm521, %v686, 0
    %v712 = vsel %vm546, %v480, 0
    %714 = vmatprep.subr.bf16.mxu0 0
    %715 = vmatpush1.bf16.msra.mxu0 %v712
    %716 = vmatprep.subr.bf16.mxu0 0
    %717 = vmatpush1.bf16.msra.mxu0 0
    %718 = vmatprep.subr.bf16.mxu0 0
    %719 = vmatpush1.bf16.msra.mxu0 0
    %720 = vmatprep.subr.bf16.mxu0 0
    %721 = vmatpush1.bf16.msra.mxu0 0
    %722 = vmatprep.subr.bf16.mxu0 0
    %723 = vmatpush1.bf16.msra.mxu0 0
    %724 = vmatprep.subr.bf16.mxu0 0
    %725 = vmatpush1.bf16.msra.mxu0 0
    %726 = vmatprep.subr.bf16.mxu0 0
    %727 = vmatpush1.bf16.msra.mxu0 0
    %728 = vmatprep.subr.bf16.mxu0 0
    %729 = vmatpush1.bf16.msra.mxu0 0
    %730 = vmatprep.subr.bf16.mxu0 0
    %731 = vmatpush1.bf16.msra.mxu0 0
    %732 = vmatprep.subr.bf16.mxu0 0
    %733 = vmatpush1.bf16.msra.mxu0 0
    %734 = vmatprep.subr.bf16.mxu0 0
    %735 = vmatpush1.bf16.msra.mxu0 0
    %736 = vmatprep.subr.bf16.mxu0 0
    %737 = vmatpush1.bf16.msra.mxu0 0
    %738 = vmatprep.subr.bf16.mxu0 0
    %739 = vmatpush1.bf16.msra.mxu0 0
    %740 = vmatprep.subr.bf16.mxu0 0
    %741 = vmatpush1.bf16.msra.mxu0 0
    %742 = vmatprep.subr.bf16.mxu0 0
    %743 = vmatpush1.bf16.msra.mxu0 0
    %744 = vmatprep.subr.bf16.mxu0 0
    %745 = vmatpush1.bf16.msra.mxu0 0
    %746 = vmatprep.mubr.bf16.mxu0 0
    %747 = vmatmul.mubr.bf16.gmra.mrb[0].mxu0 %v688
    %v748 = vpop.f32.mrb[0].mxu0
    %v749 = vadd.f32 0.0, %v748
    %v750 = vpop.f32.mrb[0].mxu0
    %v751 = vpop.f32.mrb[0].mxu0
    %v752 = vadd.f32 0.0, %v751
    %v753 = vpop.f32.mrb[0].mxu0
    %754 = vmatprep.mubr.bf16.mxu0 0
    %755 = vmatmul.mubr.bf16.gmra.mrb[0].mxu0 %v691
    %v756 = vpop.f32.mrb[0].mxu0
    %v757 = vadd.f32 0.0, %v756
    %v758 = vpop.f32.mrb[0].mxu0
    %v759 = vpop.f32.mrb[0].mxu0
    %v760 = vadd.f32 0.0, %v759
    %v761 = vpop.f32.mrb[0].mxu0
    %762 = vmatprep.mubr.bf16.mxu0 0
    %763 = vmatmul.mubr.bf16.gmra.mrb[0].mxu0 %v694
    %v764 = vpop.f32.mrb[0].mxu0
    %v765 = vadd.f32 0.0, %v764
    %v766 = vpop.f32.mrb[0].mxu0
    %v767 = vpop.f32.mrb[0].mxu0
    %v768 = vadd.f32 0.0, %v767
    %v769 = vpop.f32.mrb[0].mxu0
    %770 = vmatprep.mubr.bf16.mxu0 0
    %771 = vmatmul.mubr.bf16.gmra.mrb[0].mxu0 %v697
    %v772 = vpop.f32.mrb[0].mxu0
    %v773 = vadd.f32 0.0, %v772
    %v774 = vpop.f32.mrb[0].mxu0
    %v775 = vpop.f32.mrb[0].mxu0
    %v776 = vadd.f32 0.0, %v775
    %v777 = vpop.f32.mrb[0].mxu0
    %778 = vmatprep.mubr.bf16.mxu0 0
    %779 = vmatmul.mubr.bf16.gmra.mrb[0].mxu0 %v700
    %v780 = vpop.f32.mrb[0].mxu0
    %v781 = vadd.f32 0.0, %v780
    %v782 = vpop.f32.mrb[0].mxu0
    %v783 = vpop.f32.mrb[0].mxu0
    %v784 = vadd.f32 0.0, %v783
    %v785 = vpop.f32.mrb[0].mxu0
    %786 = vmatprep.mubr.bf16.mxu0 0
    %787 = vmatmul.mubr.bf16.gmra.mrb[0].mxu0 %v703
    %v788 = vpop.f32.mrb[0].mxu0
    %v789 = vadd.f32 0.0, %v788
    %v790 = vpop.f32.mrb[0].mxu0
    %v791 = vpop.f32.mrb[0].mxu0
    %v792 = vadd.f32 0.0, %v791
    %v793 = vpop.f32.mrb[0].mxu0
    %794 = vmatprep.mubr.bf16.mxu0 0
    %795 = vmatmul.mubr.bf16.gmra.mrb[0].mxu0 %v706
    %v796 = vpop.f32.mrb[0].mxu0
    %v797 = vadd.f32 0.0, %v796
    %v798 = vpop.f32.mrb[0].mxu0
    %v799 = vpop.f32.mrb[0].mxu0
    %v800 = vadd.f32 0.0, %v799
    %v801 = vpop.f32.mrb[0].mxu0
    %802 = vmatprep.mubr.bf16.mxu0 0
    %803 = vmatmul.mubr.bf16.gmra.mrb[0].mxu0 %v709
    %v804 = vpop.f32.mrb[0].mxu0
    %v805 = vadd.f32 0.0, %v804
    %v806 = vpop.f32.mrb[0].mxu0
    %v807 = vpop.f32.mrb[0].mxu0
    %v808 = vadd.f32 0.0, %v807
    %v809 = vpop.f32.mrb[0].mxu0
    %810 = vdwg.mxu0
    %v811 = vsub.f32 %v585, %v749
    %v812 = vsub.f32 %v588, %v752
    %v813 = vsub.f32 %v593, %v757
    %v814 = vsub.f32 %v596, %v760
    %v815 = vsub.f32 %v601, %v765
    %v816 = vsub.f32 %v604, %v768
    %v817 = vsub.f32 %v609, %v773
    %v818 = vsub.f32 %v612, %v776
    %v819 = vsub.f32 %v617, %v781
    %v820 = vsub.f32 %v620, %v784
    %v821 = vsub.f32 %v625, %v789
    %v822 = vsub.f32 %v628, %v792
    %v823 = vsub.f32 %v633, %v797
    %v824 = vsub.f32 %v636, %v800
    %v825 = vsub.f32 %v641, %v805
    %v826 = vsub.f32 %v644, %v808
    %827 = vmatprep.subr.bf16.mxu0 0
    %828 = vmatpush1.bf16.msra.mxu0 %v548
    %829 = vmatprep.subr.bf16.mxu0 0
    %830 = vmatpush1.bf16.msra.mxu0 0
    %831 = vmatprep.subr.bf16.mxu0 0
    %832 = vmatpush1.bf16.msra.mxu0 0
    %833 = vmatprep.subr.bf16.mxu0 0
    %834 = vmatpush1.bf16.msra.mxu0 0
    %835 = vmatprep.subr.bf16.mxu0 0
    %836 = vmatpush1.bf16.msra.mxu0 0
    %837 = vmatprep.subr.bf16.mxu0 0
    %838 = vmatpush1.bf16.msra.mxu0 0
    %839 = vmatprep.subr.bf16.mxu0 0
    %840 = vmatpush1.bf16.msra.mxu0 0
    %841 = vmatprep.subr.bf16.mxu0 0
    %842 = vmatpush1.bf16.msra.mxu0 0
    %843 = vmatprep.subr.bf16.mxu0 0
    %844 = vmatpush1.bf16.msra.mxu0 0
    %845 = vmatprep.subr.bf16.mxu0 0
    %846 = vmatpush1.bf16.msra.mxu0 0
    %847 = vmatprep.subr.bf16.mxu0 0
    %848 = vmatpush1.bf16.msra.mxu0 0
    %849 = vmatprep.subr.bf16.mxu0 0
    %850 = vmatpush1.bf16.msra.mxu0 0
    %851 = vmatprep.subr.bf16.mxu0 0
    %852 = vmatpush1.bf16.msra.mxu0 0
    %853 = vmatprep.subr.bf16.mxu0 0
    %854 = vmatpush1.bf16.msra.mxu0 0
    %855 = vmatprep.subr.bf16.mxu0 0
    %856 = vmatpush1.bf16.msra.mxu0 0
    %857 = vmatprep.subr.bf16.mxu0 0
    %858 = vmatpush1.bf16.msra.mxu0 0
    %859 = vmatprep.mubr.bf16.mxu0 0
    %860 = vmatmul.mubr.bf16.gmra.mrb[0].mxu0 %v688
    %v861 = vpop.f32.mrb[0].mxu0
    %v862 = vadd.f32 0.0, %v861
    %v863 = vpop.f32.mrb[0].mxu0
    %v864 = vpop.f32.mrb[0].mxu0
    %v865 = vadd.f32 0.0, %v864
    %v866 = vpop.f32.mrb[0].mxu0
    %867 = vmatprep.mubr.bf16.mxu0 0
    %868 = vmatmul.mubr.bf16.gmra.mrb[0].mxu0 %v691
    %v869 = vpop.f32.mrb[0].mxu0
    %v870 = vadd.f32 0.0, %v869
    %v871 = vpop.f32.mrb[0].mxu0
    %v872 = vpop.f32.mrb[0].mxu0
    %v873 = vadd.f32 0.0, %v872
    %v874 = vpop.f32.mrb[0].mxu0
    %875 = vmatprep.mubr.bf16.mxu0 0
    %876 = vmatmul.mubr.bf16.gmra.mrb[0].mxu0 %v694
    %v877 = vpop.f32.mrb[0].mxu0
    %v878 = vadd.f32 0.0, %v877
    %v879 = vpop.f32.mrb[0].mxu0
    %v880 = vpop.f32.mrb[0].mxu0
    %v881 = vadd.f32 0.0, %v880
    %v882 = vpop.f32.mrb[0].mxu0
    %883 = vmatprep.mubr.bf16.mxu0 0
    %884 = vmatmul.mubr.bf16.gmra.mrb[0].mxu0 %v697
    %v885 = vpop.f32.mrb[0].mxu0
    %v886 = vadd.f32 0.0, %v885
    %v887 = vpop.f32.mrb[0].mxu0
    %v888 = vpop.f32.mrb[0].mxu0
    %v889 = vadd.f32 0.0, %v888
    %v890 = vpop.f32.mrb[0].mxu0
    %891 = vmatprep.mubr.bf16.mxu0 0
    %892 = vmatmul.mubr.bf16.gmra.mrb[0].mxu0 %v700
    %v893 = vpop.f32.mrb[0].mxu0
    %v894 = vadd.f32 0.0, %v893
    %v895 = vpop.f32.mrb[0].mxu0
    %v896 = vpop.f32.mrb[0].mxu0
    %v897 = vadd.f32 0.0, %v896
    %v898 = vpop.f32.mrb[0].mxu0
    %899 = vmatprep.mubr.bf16.mxu0 0
    %900 = vmatmul.mubr.bf16.gmra.mrb[0].mxu0 %v703
    %v901 = vpop.f32.mrb[0].mxu0
    %v902 = vadd.f32 0.0, %v901
    %v903 = vpop.f32.mrb[0].mxu0
    %v904 = vpop.f32.mrb[0].mxu0
    %v905 = vadd.f32 0.0, %v904
    %v906 = vpop.f32.mrb[0].mxu0
    %907 = vmatprep.mubr.bf16.mxu0 0
    %908 = vmatmul.mubr.bf16.gmra.mrb[0].mxu0 %v706
    %v909 = vpop.f32.mrb[0].mxu0
    %v910 = vadd.f32 0.0, %v909
    %v911 = vpop.f32.mrb[0].mxu0
    %v912 = vpop.f32.mrb[0].mxu0
    %v913 = vadd.f32 0.0, %v912
    %v914 = vpop.f32.mrb[0].mxu0
    %915 = vmatprep.mubr.bf16.mxu0 0
    %916 = vmatmul.mubr.bf16.gmra.mrb[0].mxu0 %v709
    %v917 = vpop.f32.mrb[0].mxu0
    %v918 = vadd.f32 0.0, %v917
    %v919 = vpop.f32.mrb[0].mxu0
    %v920 = vpop.f32.mrb[0].mxu0
    %v921 = vadd.f32 0.0, %v920
    %v922 = vpop.f32.mrb[0].mxu0
    %923 = vdwg.mxu0
    %924 = vmatprep.subr.bf16.mxu0 0
    %925 = vmatpush1.bf16.msra.mxu0 %v712
    %926 = vmatprep.subr.bf16.mxu0 0
    %927 = vmatpush1.bf16.msra.mxu0 0
    %928 = vmatprep.subr.bf16.mxu0 0
    %929 = vmatpush1.bf16.msra.mxu0 0
    %930 = vmatprep.subr.bf16.mxu0 0
    %931 = vmatpush1.bf16.msra.mxu0 0
    %932 = vmatprep.subr.bf16.mxu0 0
    %933 = vmatpush1.bf16.msra.mxu0 0
    %934 = vmatprep.subr.bf16.mxu0 0
    %935 = vmatpush1.bf16.msra.mxu0 0
    %936 = vmatprep.subr.bf16.mxu0 0
    %937 = vmatpush1.bf16.msra.mxu0 0
    %938 = vmatprep.subr.bf16.mxu0 0
    %939 = vmatpush1.bf16.msra.mxu0 0
    %940 = vmatprep.subr.bf16.mxu0 0
    %941 = vmatpush1.bf16.msra.mxu0 0
    %942 = vmatprep.subr.bf16.mxu0 0
    %943 = vmatpush1.bf16.msra.mxu0 0
    %944 = vmatprep.subr.bf16.mxu0 0
    %945 = vmatpush1.bf16.msra.mxu0 0
    %946 = vmatprep.subr.bf16.mxu0 0
    %947 = vmatpush1.bf16.msra.mxu0 0
    %948 = vmatprep.subr.bf16.mxu0 0
    %949 = vmatpush1.bf16.msra.mxu0 0
    %950 = vmatprep.subr.bf16.mxu0 0
    %951 = vmatpush1.bf16.msra.mxu0 0
    %952 = vmatprep.subr.bf16.mxu0 0
    %953 = vmatpush1.bf16.msra.mxu0 0
    %954 = vmatprep.subr.bf16.mxu0 0
    %955 = vmatpush1.bf16.msra.mxu0 0
    %956 = vmatprep.mubr.bf16.mxu0 0
    %957 = vmatmul.mubr.bf16.gmra.mrb[0].mxu0 %v523
    %v958 = vpop.f32.mrb[0].mxu0
    %v959 = vadd.f32 %v862, %v958
    %v960 = vpop.f32.mrb[0].mxu0
    %v961 = vpop.f32.mrb[0].mxu0
    %v962 = vadd.f32 %v865, %v961
    %v963 = vpop.f32.mrb[0].mxu0
    %964 = vmatprep.mubr.bf16.mxu0 0
    %965 = vmatmul.mubr.bf16.gmra.mrb[0].mxu0 %v526
    %v966 = vpop.f32.mrb[0].mxu0
    %v967 = vadd.f32 %v870, %v966
    %v968 = vpop.f32.mrb[0].mxu0
    %v969 = vpop.f32.mrb[0].mxu0
    %v970 = vadd.f32 %v873, %v969
    %v971 = vpop.f32.mrb[0].mxu0
    %972 = vmatprep.mubr.bf16.mxu0 0
    %973 = vmatmul.mubr.bf16.gmra.mrb[0].mxu0 %v529
    %v974 = vpop.f32.mrb[0].mxu0
    %v975 = vadd.f32 %v878, %v974
    %v976 = vpop.f32.mrb[0].mxu0
    %v977 = vpop.f32.mrb[0].mxu0
    %v978 = vadd.f32 %v881, %v977
    %v979 = vpop.f32.mrb[0].mxu0
    %980 = vmatprep.mubr.bf16.mxu0 0
    %981 = vmatmul.mubr.bf16.gmra.mrb[0].mxu0 %v532
    %v982 = vpop.f32.mrb[0].mxu0
    %v983 = vadd.f32 %v886, %v982
    %v984 = vpop.f32.mrb[0].mxu0
    %v985 = vpop.f32.mrb[0].mxu0
    %v986 = vadd.f32 %v889, %v985
    %v987 = vpop.f32.mrb[0].mxu0
    %988 = vmatprep.mubr.bf16.mxu0 0
    %989 = vmatmul.mubr.bf16.gmra.mrb[0].mxu0 %v535
    %v990 = vpop.f32.mrb[0].mxu0
    %v991 = vadd.f32 %v894, %v990
    %v992 = vpop.f32.mrb[0].mxu0
    %v993 = vpop.f32.mrb[0].mxu0
    %v994 = vadd.f32 %v897, %v993
    %v995 = vpop.f32.mrb[0].mxu0
    %996 = vmatprep.mubr.bf16.mxu0 0
    %997 = vmatmul.mubr.bf16.gmra.mrb[0].mxu0 %v538
    %v998 = vpop.f32.mrb[0].mxu0
    %v999 = vadd.f32 %v902, %v998
    %v1000 = vpop.f32.mrb[0].mxu0
    %v1001 = vpop.f32.mrb[0].mxu0
    %v1002 = vadd.f32 %v905, %v1001
    %v1003 = vpop.f32.mrb[0].mxu0
    %1004 = vmatprep.mubr.bf16.mxu0 0
    %1005 = vmatmul.mubr.bf16.gmra.mrb[0].mxu0 %v541
    %v1006 = vpop.f32.mrb[0].mxu0
    %v1007 = vadd.f32 %v910, %v1006
    %v1008 = vpop.f32.mrb[0].mxu0
    %v1009 = vpop.f32.mrb[0].mxu0
    %v1010 = vadd.f32 %v913, %v1009
    %v1011 = vpop.f32.mrb[0].mxu0
    %1012 = vmatprep.mubr.bf16.mxu0 0
    %1013 = vmatmul.mubr.bf16.gmra.mrb[0].mxu0 %v544
    %v1014 = vpop.f32.mrb[0].mxu0
    %v1015 = vadd.f32 %v918, %v1014
    %v1016 = vpop.f32.mrb[0].mxu0
    %v1017 = vpop.f32.mrb[0].mxu0
    %v1018 = vadd.f32 %v921, %v1017
    %v1019 = vpop.f32.mrb[0].mxu0
    %1020 = vdwg.mxu0
    %v1021 = vpack.c.bf16 %v812, %v811
    %v1022 = vpack.c.bf16 %v814, %v813
    %v1023 = vpack.c.bf16 %v816, %v815
    %v1024 = vpack.c.bf16 %v818, %v817
    %v1025 = vpack.c.bf16 %v820, %v819
    %v1026 = vpack.c.bf16 %v822, %v821
    %v1027 = vpack.c.bf16 %v824, %v823
    %v1028 = vpack.c.bf16 %v826, %v825
    %v1029 = vpack.c.bf16 %v962, %v959
    %v1030 = vpack.c.bf16 %v970, %v967
    %v1031 = vpack.c.bf16 %v978, %v975
    %v1032 = vpack.c.bf16 %v986, %v983
    %v1033 = vpack.c.bf16 %v994, %v991
    %v1034 = vpack.c.bf16 %v1002, %v999
    %v1035 = vpack.c.bf16 %v1010, %v1007
    %v1036 = vpack.c.bf16 %v1018, %v1015
    %v1038 = vsel %vm521, %v1021, 0
    %v1041 = vsel %vm521, %v1022, 0
    %v1044 = vsel %vm521, %v1023, 0
    %v1047 = vsel %vm521, %v1024, 0
    %v1050 = vsel %vm521, %v1025, 0
    %v1053 = vsel %vm521, %v1026, 0
    %v1056 = vsel %vm521, %v1027, 0
    %v1059 = vsel %vm521, %v1028, 0
    %v1062 = vsel %vm546, %v114, 0
    %1064 = vmatprep.subr.bf16.mxu0 0
    %1065 = vmatpush1.bf16.msra.mxu0 %v1062
    %1066 = vmatprep.subr.bf16.mxu0 0
    %1067 = vmatpush1.bf16.msra.mxu0 0
    %1068 = vmatprep.subr.bf16.mxu0 0
    %1069 = vmatpush1.bf16.msra.mxu0 0
    %1070 = vmatprep.subr.bf16.mxu0 0
    %1071 = vmatpush1.bf16.msra.mxu0 0
    %1072 = vmatprep.subr.bf16.mxu0 0
    %1073 = vmatpush1.bf16.msra.mxu0 0
    %1074 = vmatprep.subr.bf16.mxu0 0
    %1075 = vmatpush1.bf16.msra.mxu0 0
    %1076 = vmatprep.subr.bf16.mxu0 0
    %1077 = vmatpush1.bf16.msra.mxu0 0
    %1078 = vmatprep.subr.bf16.mxu0 0
    %1079 = vmatpush1.bf16.msra.mxu0 0
    %1080 = vmatprep.subr.bf16.mxu0 0
    %1081 = vmatpush1.bf16.msra.mxu0 0
    %1082 = vmatprep.subr.bf16.mxu0 0
    %1083 = vmatpush1.bf16.msra.mxu0 0
    %1084 = vmatprep.subr.bf16.mxu0 0
    %1085 = vmatpush1.bf16.msra.mxu0 0
    %1086 = vmatprep.subr.bf16.mxu0 0
    %1087 = vmatpush1.bf16.msra.mxu0 0
    %1088 = vmatprep.subr.bf16.mxu0 0
    %1089 = vmatpush1.bf16.msra.mxu0 0
    %1090 = vmatprep.subr.bf16.mxu0 0
    %1091 = vmatpush1.bf16.msra.mxu0 0
    %1092 = vmatprep.subr.bf16.mxu0 0
    %1093 = vmatpush1.bf16.msra.mxu0 0
    %1094 = vmatprep.subr.bf16.mxu0 0
    %1095 = vmatpush1.bf16.msra.mxu0 0
    %1096 = vmatprep.mubr.bf16.mxu0 0
    %1097 = vmatmul.mubr.bf16.gmra.mrb[0].mxu0 %v1038
    %v1098 = vpop.f32.mrb[0].mxu0
    %v1099 = vadd.f32 0.0, %v1098
    %v1100 = vpop.f32.mrb[0].mxu0
    %v1101 = vpop.f32.mrb[0].mxu0
    %v1102 = vadd.f32 0.0, %v1101
    %v1103 = vpop.f32.mrb[0].mxu0
    %1104 = vmatprep.mubr.bf16.mxu0 0
    %1105 = vmatmul.mubr.bf16.gmra.mrb[0].mxu0 %v1041
    %v1106 = vpop.f32.mrb[0].mxu0
    %v1107 = vadd.f32 0.0, %v1106
    %v1108 = vpop.f32.mrb[0].mxu0
    %v1109 = vpop.f32.mrb[0].mxu0
    %v1110 = vadd.f32 0.0, %v1109
    %v1111 = vpop.f32.mrb[0].mxu0
    %1112 = vmatprep.mubr.bf16.mxu0 0
    %1113 = vmatmul.mubr.bf16.gmra.mrb[0].mxu0 %v1044
    %v1114 = vpop.f32.mrb[0].mxu0
    %v1115 = vadd.f32 0.0, %v1114
    %v1116 = vpop.f32.mrb[0].mxu0
    %v1117 = vpop.f32.mrb[0].mxu0
    %v1118 = vadd.f32 0.0, %v1117
    %v1119 = vpop.f32.mrb[0].mxu0
    %1120 = vmatprep.mubr.bf16.mxu0 0
    %1121 = vmatmul.mubr.bf16.gmra.mrb[0].mxu0 %v1047
    %v1122 = vpop.f32.mrb[0].mxu0
    %v1123 = vadd.f32 0.0, %v1122
    %v1124 = vpop.f32.mrb[0].mxu0
    %v1125 = vpop.f32.mrb[0].mxu0
    %v1126 = vadd.f32 0.0, %v1125
    %v1127 = vpop.f32.mrb[0].mxu0
    %1128 = vmatprep.mubr.bf16.mxu0 0
    %1129 = vmatmul.mubr.bf16.gmra.mrb[0].mxu0 %v1050
    %v1130 = vpop.f32.mrb[0].mxu0
    %v1131 = vadd.f32 0.0, %v1130
    %v1132 = vpop.f32.mrb[0].mxu0
    %v1133 = vpop.f32.mrb[0].mxu0
    %v1134 = vadd.f32 0.0, %v1133
    %v1135 = vpop.f32.mrb[0].mxu0
    %1136 = vmatprep.mubr.bf16.mxu0 0
    %1137 = vmatmul.mubr.bf16.gmra.mrb[0].mxu0 %v1053
    %v1138 = vpop.f32.mrb[0].mxu0
    %v1139 = vadd.f32 0.0, %v1138
    %v1140 = vpop.f32.mrb[0].mxu0
    %v1141 = vpop.f32.mrb[0].mxu0
    %v1142 = vadd.f32 0.0, %v1141
    %v1143 = vpop.f32.mrb[0].mxu0
    %1144 = vmatprep.mubr.bf16.mxu0 0
    %1145 = vmatmul.mubr.bf16.gmra.mrb[0].mxu0 %v1056
    %v1146 = vpop.f32.mrb[0].mxu0
    %v1147 = vadd.f32 0.0, %v1146
    %v1148 = vpop.f32.mrb[0].mxu0
    %v1149 = vpop.f32.mrb[0].mxu0
    %v1150 = vadd.f32 0.0, %v1149
    %v1151 = vpop.f32.mrb[0].mxu0
    %1152 = vmatprep.mubr.bf16.mxu0 0
    %1153 = vmatmul.mubr.bf16.gmra.mrb[0].mxu0 %v1059
    %v1154 = vpop.f32.mrb[0].mxu0
    %v1155 = vadd.f32 0.0, %v1154
    %v1156 = vpop.f32.mrb[0].mxu0
    %v1157 = vpop.f32.mrb[0].mxu0
    %v1158 = vadd.f32 0.0, %v1157
    %v1159 = vpop.f32.mrb[0].mxu0
    %1160 = vdwg.mxu0
    %v1162 = vsel %vm521, %v1029, 0
    %v1165 = vsel %vm521, %v1030, 0
    %v1168 = vsel %vm521, %v1031, 0
    %v1171 = vsel %vm521, %v1032, 0
    %v1174 = vsel %vm521, %v1033, 0
    %v1177 = vsel %vm521, %v1034, 0
    %v1180 = vsel %vm521, %v1035, 0
    %v1183 = vsel %vm521, %v1036, 0
    %v1186 = vsel %vm546, %v115, 0
    %1188 = vmatprep.subr.bf16.mxu0 0
    %1189 = vmatpush1.bf16.msra.mxu0 %v1186
    %1190 = vmatprep.subr.bf16.mxu0 0
    %1191 = vmatpush1.bf16.msra.mxu0 0
    %1192 = vmatprep.subr.bf16.mxu0 0
    %1193 = vmatpush1.bf16.msra.mxu0 0
    %1194 = vmatprep.subr.bf16.mxu0 0
    %1195 = vmatpush1.bf16.msra.mxu0 0
    %1196 = vmatprep.subr.bf16.mxu0 0
    %1197 = vmatpush1.bf16.msra.mxu0 0
    %1198 = vmatprep.subr.bf16.mxu0 0
    %1199 = vmatpush1.bf16.msra.mxu0 0
    %1200 = vmatprep.subr.bf16.mxu0 0
    %1201 = vmatpush1.bf16.msra.mxu0 0
    %1202 = vmatprep.subr.bf16.mxu0 0
    %1203 = vmatpush1.bf16.msra.mxu0 0
    %1204 = vmatprep.subr.bf16.mxu0 0
    %1205 = vmatpush1.bf16.msra.mxu0 0
    %1206 = vmatprep.subr.bf16.mxu0 0
    %1207 = vmatpush1.bf16.msra.mxu0 0
    %1208 = vmatprep.subr.bf16.mxu0 0
    %1209 = vmatpush1.bf16.msra.mxu0 0
    %1210 = vmatprep.subr.bf16.mxu0 0
    %1211 = vmatpush1.bf16.msra.mxu0 0
    %1212 = vmatprep.subr.bf16.mxu0 0
    %1213 = vmatpush1.bf16.msra.mxu0 0
    %1214 = vmatprep.subr.bf16.mxu0 0
    %1215 = vmatpush1.bf16.msra.mxu0 0
    %1216 = vmatprep.subr.bf16.mxu0 0
    %1217 = vmatpush1.bf16.msra.mxu0 0
    %1218 = vmatprep.subr.bf16.mxu0 0
    %1219 = vmatpush1.bf16.msra.mxu0 0
    %1220 = vmatprep.mubr.bf16.mxu0 0
    %1221 = vmatmul.mubr.bf16.gmra.mrb[0].mxu0 %v1162
    %v1222 = vpop.f32.mrb[0].mxu0
    %v1223 = vadd.f32 0.0, %v1222
    %v1224 = vpop.f32.mrb[0].mxu0
    %v1225 = vpop.f32.mrb[0].mxu0
    %v1226 = vadd.f32 0.0, %v1225
    %v1227 = vpop.f32.mrb[0].mxu0
    %1228 = vmatprep.mubr.bf16.mxu0 0
    %1229 = vmatmul.mubr.bf16.gmra.mrb[0].mxu0 %v1165
    %v1230 = vpop.f32.mrb[0].mxu0
    %v1231 = vadd.f32 0.0, %v1230
    %v1232 = vpop.f32.mrb[0].mxu0
    %v1233 = vpop.f32.mrb[0].mxu0
    %v1234 = vadd.f32 0.0, %v1233
    %v1235 = vpop.f32.mrb[0].mxu0
    %1236 = vmatprep.mubr.bf16.mxu0 0
    %1237 = vmatmul.mubr.bf16.gmra.mrb[0].mxu0 %v1168
    %v1238 = vpop.f32.mrb[0].mxu0
    %v1239 = vadd.f32 0.0, %v1238
    %v1240 = vpop.f32.mrb[0].mxu0
    %v1241 = vpop.f32.mrb[0].mxu0
    %v1242 = vadd.f32 0.0, %v1241
    %v1243 = vpop.f32.mrb[0].mxu0
    %1244 = vmatprep.mubr.bf16.mxu0 0
    %1245 = vmatmul.mubr.bf16.gmra.mrb[0].mxu0 %v1171
    %v1246 = vpop.f32.mrb[0].mxu0
    %v1247 = vadd.f32 0.0, %v1246
    %v1248 = vpop.f32.mrb[0].mxu0
    %v1249 = vpop.f32.mrb[0].mxu0
    %v1250 = vadd.f32 0.0, %v1249
    %v1251 = vpop.f32.mrb[0].mxu0
    %1252 = vmatprep.mubr.bf16.mxu0 0
    %1253 = vmatmul.mubr.bf16.gmra.mrb[0].mxu0 %v1174
    %v1254 = vpop.f32.mrb[0].mxu0
    %v1255 = vadd.f32 0.0, %v1254
    %v1256 = vpop.f32.mrb[0].mxu0
    %v1257 = vpop.f32.mrb[0].mxu0
    %v1258 = vadd.f32 0.0, %v1257
    %v1259 = vpop.f32.mrb[0].mxu0
    %1260 = vmatprep.mubr.bf16.mxu0 0
    %1261 = vmatmul.mubr.bf16.gmra.mrb[0].mxu0 %v1177
    %v1262 = vpop.f32.mrb[0].mxu0
    %v1263 = vadd.f32 0.0, %v1262
    %v1264 = vpop.f32.mrb[0].mxu0
    %v1265 = vpop.f32.mrb[0].mxu0
    %v1266 = vadd.f32 0.0, %v1265
    %v1267 = vpop.f32.mrb[0].mxu0
    %1268 = vmatprep.mubr.bf16.mxu0 0
    %1269 = vmatmul.mubr.bf16.gmra.mrb[0].mxu0 %v1180
    %v1270 = vpop.f32.mrb[0].mxu0
    %v1271 = vadd.f32 0.0, %v1270
    %v1272 = vpop.f32.mrb[0].mxu0
    %v1273 = vpop.f32.mrb[0].mxu0
    %v1274 = vadd.f32 0.0, %v1273
    %v1275 = vpop.f32.mrb[0].mxu0
    %1276 = vmatprep.mubr.bf16.mxu0 0
    %1277 = vmatmul.mubr.bf16.gmra.mrb[0].mxu0 %v1183
    %v1278 = vpop.f32.mrb[0].mxu0
    %v1279 = vadd.f32 0.0, %v1278
    %v1280 = vpop.f32.mrb[0].mxu0
    %v1281 = vpop.f32.mrb[0].mxu0
    %v1282 = vadd.f32 0.0, %v1281
    %v1283 = vpop.f32.mrb[0].mxu0
    %1284 = vdwg.mxu0
    %v1285 = vsub.f32 %v1099, %v1223
    %v1286 = vsub.f32 %v1102, %v1226
    %v1287 = vsub.f32 %v1107, %v1231
    %v1288 = vsub.f32 %v1110, %v1234
    %v1289 = vsub.f32 %v1115, %v1239
    %v1290 = vsub.f32 %v1118, %v1242
    %v1291 = vsub.f32 %v1123, %v1247
    %v1292 = vsub.f32 %v1126, %v1250
    %v1293 = vsub.f32 %v1131, %v1255
    %v1294 = vsub.f32 %v1134, %v1258
    %v1295 = vsub.f32 %v1139, %v1263
    %v1296 = vsub.f32 %v1142, %v1266
    %v1297 = vsub.f32 %v1147, %v1271
    %v1298 = vsub.f32 %v1150, %v1274
    %v1299 = vsub.f32 %v1155, %v1279
    %v1300 = vsub.f32 %v1158, %v1282
    %v1301 = vmul.f32 %v116, 255.0
    %v1302 = vmul.f32 %v117, 255.0
    %v1303 = vmul.f32 %v118, 255.0
    %v1304 = vmul.f32 %v119, 255.0
    %v1305 = vmul.f32 %v120, 255.0
    %v1306 = vmul.f32 %v121, 255.0
    %v1307 = vmul.f32 %v122, 255.0
    %v1308 = vmul.f32 %v123, 255.0
    %v1309 = vmul.f32 %v124, 255.0
    %v1310 = vmul.f32 %v125, 255.0
    %v1311 = vmul.f32 %v126, 255.0
    %v1312 = vmul.f32 %v127, 255.0
    %v1313 = vmul.f32 %v128, 255.0
    %v1314 = vmul.f32 %v129, 255.0
    %v1315 = vmul.f32 %v130, 255.0
    %v1316 = vmul.f32 %v131, 255.0
    %v1317 = vsub.f32 %v1301, %v1285
    %v1318 = vsub.f32 %v1302, %v1286
    %v1319 = vsub.f32 %v1303, %v1287
    %v1320 = vsub.f32 %v1304, %v1288
    %v1321 = vsub.f32 %v1305, %v1289
    %v1322 = vsub.f32 %v1306, %v1290
    %v1323 = vsub.f32 %v1307, %v1291
    %v1324 = vsub.f32 %v1308, %v1292
    %v1325 = vsub.f32 %v1309, %v1293
    %v1326 = vsub.f32 %v1310, %v1294
    %v1327 = vsub.f32 %v1311, %v1295
    %v1328 = vsub.f32 %v1312, %v1296
    %v1329 = vsub.f32 %v1313, %v1297
    %v1330 = vsub.f32 %v1314, %v1298
    %v1331 = vsub.f32 %v1315, %v1299
    %v1332 = vsub.f32 %v1316, %v1300
    %1333 = vst [vmem:[#allocation5] sm:$0xff] %v1317
    %1334 = vst [vmem:[#allocation5 + $0x8] sm:$0xff] %v1318
    %1335 = vst [vmem:[#allocation5 + $0x10] sm:$0xff] %v1319
    %1336 = vst [vmem:[#allocation5 + $0x18] sm:$0xff] %v1320
    %1337 = vst [vmem:[#allocation5 + $0x20] sm:$0xff] %v1321
    %1338 = vst [vmem:[#allocation5 + $0x28] sm:$0xff] %v1322
    %1339 = vst [vmem:[#allocation5 + $0x30] sm:$0xff] %v1323
    %1340 = vst [vmem:[#allocation5 + $0x38] sm:$0xff] %v1324
    %1341 = vst [vmem:[#allocation5 + $0x40] sm:$0xff] %v1325
    %1342 = vst [vmem:[#allocation5 + $0x48] sm:$0xff] %v1326
    %1343 = vst [vmem:[#allocation5 + $0x50] sm:$0xff] %v1327
    %1344 = vst [vmem:[#allocation5 + $0x58] sm:$0xff] %v1328
    %1345 = vst [vmem:[#allocation5 + $0x60] sm:$0xff] %v1329
    %1346 = vst [vmem:[#allocation5 + $0x68] sm:$0xff] %v1330
    %1347 = vst [vmem:[#allocation5 + $0x70] sm:$0xff] %v1331
    %1348 = vst [vmem:[#allocation5 + $0x78] sm:$0xff] %v1332
    %s1349 = scalar_lea.vmem [#allocation2], 128
    %v1350 = vld [vmem:[%s1349] sm:$0xff]
    %v1351 = vld [vmem:[%s1349 + $0x8] sm:$0xff]
    %v1352 = vld [vmem:[%s1349 + $0x10] sm:$0xff]
    %v1353 = vld [vmem:[%s1349 + $0x18] sm:$0xff]
    %v1354 = vld [vmem:[%s1349 + $0x20] sm:$0xff]
    %v1355 = vld [vmem:[%s1349 + $0x28] sm:$0xff]
    %v1356 = vld [vmem:[%s1349 + $0x30] sm:$0xff]
    %v1357 = vld [vmem:[%s1349 + $0x38] sm:$0xff]
    %v1358 = vld [vmem:[%s1349 + $0x40] sm:$0xff]
    %v1359 = vld [vmem:[%s1349 + $0x48] sm:$0xff]
    %v1360 = vld [vmem:[%s1349 + $0x50] sm:$0xff]
    %v1361 = vld [vmem:[%s1349 + $0x58] sm:$0xff]
    %v1362 = vld [vmem:[%s1349 + $0x60] sm:$0xff]
    %v1363 = vld [vmem:[%s1349 + $0x68] sm:$0xff]
    %v1364 = vld [vmem:[%s1349 + $0x70] sm:$0xff]
    %v1365 = vld [vmem:[%s1349 + $0x78] sm:$0xff]
    %v1366 = vpack.c.bf16 %v1351, %v1350
    %v1367 = vpack.c.bf16 %v1353, %v1352
    %v1368 = vpack.c.bf16 %v1355, %v1354
    %v1369 = vpack.c.bf16 %v1357, %v1356
    %v1370 = vpack.c.bf16 %v1359, %v1358
    %v1371 = vpack.c.bf16 %v1361, %v1360
    %v1372 = vpack.c.bf16 %v1363, %v1362
    %v1373 = vpack.c.bf16 %v1365, %v1364
    %1374 = vmatprep.subr.bf16.mxu0 0
    %1375 = vmatpush1.bf16.msra.mxu0 %v1366
    %1376 = vmatprep.subr.bf16.mxu0 0
    %1377 = vmatpush1.bf16.msra.mxu0 %v1367
    %1378 = vmatprep.subr.bf16.mxu0 0
    %1379 = vmatpush1.bf16.msra.mxu0 %v1368
    %1380 = vmatprep.subr.bf16.mxu0 0
    %1381 = vmatpush1.bf16.msra.mxu0 %v1369
    %1382 = vmatprep.subr.bf16.mxu0 0
    %1383 = vmatpush1.bf16.msra.mxu0 %v1370
    %1384 = vmatprep.subr.bf16.mxu0 0
    %1385 = vmatpush1.bf16.msra.mxu0 %v1371
    %1386 = vmatprep.subr.bf16.mxu0 0
    %1387 = vmatpush1.bf16.msra.mxu0 %v1372
    %1388 = vmatprep.subr.bf16.mxu0 0
    %1389 = vmatpush1.bf16.msra.mxu0 %v1373
    %1390 = vmatprep.subr.bf16.mxu0 0
    %1391 = vmatpush1.bf16.msra.mxu0 0
    %1392 = vmatprep.subr.bf16.mxu0 0
    %1393 = vmatpush1.bf16.msra.mxu0 0
    %1394 = vmatprep.subr.bf16.mxu0 0
    %1395 = vmatpush1.bf16.msra.mxu0 0
    %1396 = vmatprep.subr.bf16.mxu0 0
    %1397 = vmatpush1.bf16.msra.mxu0 0
    %1398 = vmatprep.subr.bf16.mxu0 0
    %1399 = vmatpush1.bf16.msra.mxu0 0
    %1400 = vmatprep.subr.bf16.mxu0 0
    %1401 = vmatpush1.bf16.msra.mxu0 0
    %1402 = vmatprep.subr.bf16.mxu0 0
    %1403 = vmatpush1.bf16.msra.mxu0 0
    %1404 = vmatprep.subr.bf16.mxu0 0
    %1405 = vmatpush1.bf16.msra.mxu0 0
    %1406 = vmatprep.mubr.bf16.mxu0 0
    %1407 = vmatmul.mubr.bf16.gmra.mrb[0].mxu0 %v48
    %v1408 = vpop.f32.mrb[0].mxu0
    %v1409 = vadd.f32 0.0, %v1408
    %v1410 = vpop.f32.mrb[0].mxu0
    %v1411 = vpop.f32.mrb[0].mxu0
    %v1412 = vpop.f32.mrb[0].mxu0
    %1413 = vdwg.mxu0
    %1414 = vmatprep.subr.bf16.mxu0 0
    %1415 = vmatpush1.bf16.msra.mxu0 %v1366
    %1416 = vmatprep.subr.bf16.mxu0 0
    %1417 = vmatpush1.bf16.msra.mxu0 %v1367
    %1418 = vmatprep.subr.bf16.mxu0 0
    %1419 = vmatpush1.bf16.msra.mxu0 %v1368
    %1420 = vmatprep.subr.bf16.mxu0 0
    %1421 = vmatpush1.bf16.msra.mxu0 %v1369
    %1422 = vmatprep.subr.bf16.mxu0 0
    %1423 = vmatpush1.bf16.msra.mxu0 %v1370
    %1424 = vmatprep.subr.bf16.mxu0 0
    %1425 = vmatpush1.bf16.msra.mxu0 %v1371
    %1426 = vmatprep.subr.bf16.mxu0 0
    %1427 = vmatpush1.bf16.msra.mxu0 %v1372
    %1428 = vmatprep.subr.bf16.mxu0 0
    %1429 = vmatpush1.bf16.msra.mxu0 %v1373
    %1430 = vmatprep.subr.bf16.mxu0 0
    %1431 = vmatpush1.bf16.msra.mxu0 0
    %1432 = vmatprep.subr.bf16.mxu0 0
    %1433 = vmatpush1.bf16.msra.mxu0 0
    %1434 = vmatprep.subr.bf16.mxu0 0
    %1435 = vmatpush1.bf16.msra.mxu0 0
    %1436 = vmatprep.subr.bf16.mxu0 0
    %1437 = vmatpush1.bf16.msra.mxu0 0
    %1438 = vmatprep.subr.bf16.mxu0 0
    %1439 = vmatpush1.bf16.msra.mxu0 0
    %1440 = vmatprep.subr.bf16.mxu0 0
    %1441 = vmatpush1.bf16.msra.mxu0 0
    %1442 = vmatprep.subr.bf16.mxu0 0
    %1443 = vmatpush1.bf16.msra.mxu0 0
    %1444 = vmatprep.subr.bf16.mxu0 0
    %1445 = vmatpush1.bf16.msra.mxu0 0
    %1446 = vmatprep.mubr.bf16.mxu0 0
    %1447 = vmatmul.mubr.bf16.gmra.mrb[0].mxu0 %v49
    %v1448 = vpop.f32.mrb[0].mxu0
    %v1449 = vadd.f32 0.0, %v1448
    %v1450 = vpop.f32.mrb[0].mxu0
    %v1451 = vpop.f32.mrb[0].mxu0
    %v1452 = vpop.f32.mrb[0].mxu0
    %1453 = vdwg.mxu0
    %v1454 = vpack.c.bf16 %v1409, %v1409
    %v1455 = vpack.c.bf16 %v1449, %v1449
    %1456 = vmatprep.subr.bf16.mxu0 0
    %1457 = vmatpush1.bf16.msra.mxu0 %v254
    %1458 = vmatprep.subr.bf16.mxu0 0
    %1459 = vmatpush1.bf16.msra.mxu0 %v255
    %1460 = vmatprep.subr.bf16.mxu0 0
    %1461 = vmatpush1.bf16.msra.mxu0 %v256
    %1462 = vmatprep.subr.bf16.mxu0 0
    %1463 = vmatpush1.bf16.msra.mxu0 %v257
    %1464 = vmatprep.subr.bf16.mxu0 0
    %1465 = vmatpush1.bf16.msra.mxu0 %v258
    %1466 = vmatprep.subr.bf16.mxu0 0
    %1467 = vmatpush1.bf16.msra.mxu0 %v259
    %1468 = vmatprep.subr.bf16.mxu0 0
    %1469 = vmatpush1.bf16.msra.mxu0 %v260
    %1470 = vmatprep.subr.bf16.mxu0 0
    %1471 = vmatpush1.bf16.msra.mxu0 %v261
    %1472 = vmatprep.subr.bf16.mxu0 0
    %1473 = vmatpush1.bf16.msra.mxu0 0
    %1474 = vmatprep.subr.bf16.mxu0 0
    %1475 = vmatpush1.bf16.msra.mxu0 0
    %1476 = vmatprep.subr.bf16.mxu0 0
    %1477 = vmatpush1.bf16.msra.mxu0 0
    %1478 = vmatprep.subr.bf16.mxu0 0
    %1479 = vmatpush1.bf16.msra.mxu0 0
    %1480 = vmatprep.subr.bf16.mxu0 0
    %1481 = vmatpush1.bf16.msra.mxu0 0
    %1482 = vmatprep.subr.bf16.mxu0 0
    %1483 = vmatpush1.bf16.msra.mxu0 0
    %1484 = vmatprep.subr.bf16.mxu0 0
    %1485 = vmatpush1.bf16.msra.mxu0 0
    %1486 = vmatprep.subr.bf16.mxu0 0
    %1487 = vmatpush1.bf16.msra.mxu0 0
    %1488 = vmatprep.mubr.bf16.mxu0 0
    %1489 = vmatmul.mubr.bf16.gmra.mrb[0].mxu0 %v1454
    %v1490 = vpop.f32.mrb[0].mxu0
    %v1491 = vadd.f32 0.0, %v1490
    %v1492 = vpop.f32.mrb[0].mxu0
    %v1493 = vpop.f32.mrb[0].mxu0
    %v1494 = vpop.f32.mrb[0].mxu0
    %1495 = vdwg.mxu0
    %1496 = vmatprep.subr.bf16.mxu0 0
    %1497 = vmatpush1.bf16.msra.mxu0 %v342
    %1498 = vmatprep.subr.bf16.mxu0 0
    %1499 = vmatpush1.bf16.msra.mxu0 %v343
    %1500 = vmatprep.subr.bf16.mxu0 0
    %1501 = vmatpush1.bf16.msra.mxu0 %v344
    %1502 = vmatprep.subr.bf16.mxu0 0
    %1503 = vmatpush1.bf16.msra.mxu0 %v345
    %1504 = vmatprep.subr.bf16.mxu0 0
    %1505 = vmatpush1.bf16.msra.mxu0 %v346
    %1506 = vmatprep.subr.bf16.mxu0 0
    %1507 = vmatpush1.bf16.msra.mxu0 %v347
    %1508 = vmatprep.subr.bf16.mxu0 0
    %1509 = vmatpush1.bf16.msra.mxu0 %v348
    %1510 = vmatprep.subr.bf16.mxu0 0
    %1511 = vmatpush1.bf16.msra.mxu0 %v349
    %1512 = vmatprep.subr.bf16.mxu0 0
    %1513 = vmatpush1.bf16.msra.mxu0 0
    %1514 = vmatprep.subr.bf16.mxu0 0
    %1515 = vmatpush1.bf16.msra.mxu0 0
    %1516 = vmatprep.subr.bf16.mxu0 0
    %1517 = vmatpush1.bf16.msra.mxu0 0
    %1518 = vmatprep.subr.bf16.mxu0 0
    %1519 = vmatpush1.bf16.msra.mxu0 0
    %1520 = vmatprep.subr.bf16.mxu0 0
    %1521 = vmatpush1.bf16.msra.mxu0 0
    %1522 = vmatprep.subr.bf16.mxu0 0
    %1523 = vmatpush1.bf16.msra.mxu0 0
    %1524 = vmatprep.subr.bf16.mxu0 0
    %1525 = vmatpush1.bf16.msra.mxu0 0
    %1526 = vmatprep.subr.bf16.mxu0 0
    %1527 = vmatpush1.bf16.msra.mxu0 0
    %1528 = vmatprep.mubr.bf16.mxu0 0
    %1529 = vmatmul.mubr.bf16.gmra.mrb[0].mxu0 %v1455
    %v1530 = vpop.f32.mrb[0].mxu0
    %v1531 = vadd.f32 0.0, %v1530
    %v1532 = vpop.f32.mrb[0].mxu0
    %v1533 = vpop.f32.mrb[0].mxu0
    %v1534 = vpop.f32.mrb[0].mxu0
    %1535 = vdwg.mxu0
    %v1536 = vsub.f32 %v1491, %v1531
    %1537 = vmatprep.subr.bf16.mxu0 0
    %1538 = vmatpush1.bf16.msra.mxu0 %v254
    %1539 = vmatprep.subr.bf16.mxu0 0
    %1540 = vmatpush1.bf16.msra.mxu0 %v255
    %1541 = vmatprep.subr.bf16.mxu0 0
    %1542 = vmatpush1.bf16.msra.mxu0 %v256
    %1543 = vmatprep.subr.bf16.mxu0 0
    %1544 = vmatpush1.bf16.msra.mxu0 %v257
    %1545 = vmatprep.subr.bf16.mxu0 0
    %1546 = vmatpush1.bf16.msra.mxu0 %v258
    %1547 = vmatprep.subr.bf16.mxu0 0
    %1548 = vmatpush1.bf16.msra.mxu0 %v259
    %1549 = vmatprep.subr.bf16.mxu0 0
    %1550 = vmatpush1.bf16.msra.mxu0 %v260
    %1551 = vmatprep.subr.bf16.mxu0 0
    %1552 = vmatpush1.bf16.msra.mxu0 %v261
    %1553 = vmatprep.subr.bf16.mxu0 0
    %1554 = vmatpush1.bf16.msra.mxu0 0
    %1555 = vmatprep.subr.bf16.mxu0 0
    %1556 = vmatpush1.bf16.msra.mxu0 0
    %1557 = vmatprep.subr.bf16.mxu0 0
    %1558 = vmatpush1.bf16.msra.mxu0 0
    %1559 = vmatprep.subr.bf16.mxu0 0
    %1560 = vmatpush1.bf16.msra.mxu0 0
    %1561 = vmatprep.subr.bf16.mxu0 0
    %1562 = vmatpush1.bf16.msra.mxu0 0
    %1563 = vmatprep.subr.bf16.mxu0 0
    %1564 = vmatpush1.bf16.msra.mxu0 0
    %1565 = vmatprep.subr.bf16.mxu0 0
    %1566 = vmatpush1.bf16.msra.mxu0 0
    %1567 = vmatprep.subr.bf16.mxu0 0
    %1568 = vmatpush1.bf16.msra.mxu0 0
    %1569 = vmatprep.mubr.bf16.mxu0 0
    %1570 = vmatmul.mubr.bf16.gmra.mrb[0].mxu0 %v1455
    %v1571 = vpop.f32.mrb[0].mxu0
    %v1572 = vadd.f32 0.0, %v1571
    %v1573 = vpop.f32.mrb[0].mxu0
    %v1574 = vpop.f32.mrb[0].mxu0
    %v1575 = vpop.f32.mrb[0].mxu0
    %1576 = vdwg.mxu0
    %1577 = vmatprep.subr.bf16.mxu0 0
    %1578 = vmatpush1.bf16.msra.mxu0 %v342
    %1579 = vmatprep.subr.bf16.mxu0 0
    %1580 = vmatpush1.bf16.msra.mxu0 %v343
    %1581 = vmatprep.subr.bf16.mxu0 0
    %1582 = vmatpush1.bf16.msra.mxu0 %v344
    %1583 = vmatprep.subr.bf16.mxu0 0
    %1584 = vmatpush1.bf16.msra.mxu0 %v345
    %1585 = vmatprep.subr.bf16.mxu0 0
    %1586 = vmatpush1.bf16.msra.mxu0 %v346
    %1587 = vmatprep.subr.bf16.mxu0 0
    %1588 = vmatpush1.bf16.msra.mxu0 %v347
    %1589 = vmatprep.subr.bf16.mxu0 0
    %1590 = vmatpush1.bf16.msra.mxu0 %v348
    %1591 = vmatprep.subr.bf16.mxu0 0
    %1592 = vmatpush1.bf16.msra.mxu0 %v349
    %1593 = vmatprep.subr.bf16.mxu0 0
    %1594 = vmatpush1.bf16.msra.mxu0 0
    %1595 = vmatprep.subr.bf16.mxu0 0
    %1596 = vmatpush1.bf16.msra.mxu0 0
    %1597 = vmatprep.subr.bf16.mxu0 0
    %1598 = vmatpush1.bf16.msra.mxu0 0
    %1599 = vmatprep.subr.bf16.mxu0 0
    %1600 = vmatpush1.bf16.msra.mxu0 0
    %1601 = vmatprep.subr.bf16.mxu0 0
    %1602 = vmatpush1.bf16.msra.mxu0 0
    %1603 = vmatprep.subr.bf16.mxu0 0
    %1604 = vmatpush1.bf16.msra.mxu0 0
    %1605 = vmatprep.subr.bf16.mxu0 0
    %1606 = vmatpush1.bf16.msra.mxu0 0
    %1607 = vmatprep.subr.bf16.mxu0 0
    %1608 = vmatpush1.bf16.msra.mxu0 0
    %1609 = vmatprep.mubr.bf16.mxu0 0
    %1610 = vmatmul.mubr.bf16.gmra.mrb[0].mxu0 %v1454
    %v1611 = vpop.f32.mrb[0].mxu0
    %v1612 = vadd.f32 %v1572, %v1611
    %v1613 = vpop.f32.mrb[0].mxu0
    %v1614 = vpop.f32.mrb[0].mxu0
    %v1615 = vpop.f32.mrb[0].mxu0
    %1616 = vdwg.mxu0
    %v1617 = vpack.c.bf16 %v1536, %v1536
    %v1618 = vpack.c.bf16 %v1612, %v1612
    %v1620 = vsel %vm546, %v1617, 0
    %1622 = vmatprep.subr.bf16.mxu0 0
    %1623 = vmatpush1.bf16.msra.mxu0 %v1620
    %1624 = vmatprep.subr.bf16.mxu0 0
    %1625 = vmatpush1.bf16.msra.mxu0 0
    %1626 = vmatprep.subr.bf16.mxu0 0
    %1627 = vmatpush1.bf16.msra.mxu0 0
    %1628 = vmatprep.subr.bf16.mxu0 0
    %1629 = vmatpush1.bf16.msra.mxu0 0
    %1630 = vmatprep.subr.bf16.mxu0 0
    %1631 = vmatpush1.bf16.msra.mxu0 0
    %1632 = vmatprep.subr.bf16.mxu0 0
    %1633 = vmatpush1.bf16.msra.mxu0 0
    %1634 = vmatprep.subr.bf16.mxu0 0
    %1635 = vmatpush1.bf16.msra.mxu0 0
    %1636 = vmatprep.subr.bf16.mxu0 0
    %1637 = vmatpush1.bf16.msra.mxu0 0
    %1638 = vmatprep.subr.bf16.mxu0 0
    %1639 = vmatpush1.bf16.msra.mxu0 0
    %1640 = vmatprep.subr.bf16.mxu0 0
    %1641 = vmatpush1.bf16.msra.mxu0 0
    %1642 = vmatprep.subr.bf16.mxu0 0
    %1643 = vmatpush1.bf16.msra.mxu0 0
    %1644 = vmatprep.subr.bf16.mxu0 0
    %1645 = vmatpush1.bf16.msra.mxu0 0
    %1646 = vmatprep.subr.bf16.mxu0 0
    %1647 = vmatpush1.bf16.msra.mxu0 0
    %1648 = vmatprep.subr.bf16.mxu0 0
    %1649 = vmatpush1.bf16.msra.mxu0 0
    %1650 = vmatprep.subr.bf16.mxu0 0
    %1651 = vmatpush1.bf16.msra.mxu0 0
    %1652 = vmatprep.subr.bf16.mxu0 0
    %1653 = vmatpush1.bf16.msra.mxu0 0
    %1654 = vmatprep.mubr.bf16.mxu0 0
    %1655 = vmatmul.mubr.bf16.gmra.mrb[0].mxu0 %v523
    %v1656 = vpop.f32.mrb[0].mxu0
    %v1657 = vadd.f32 0.0, %v1656
    %v1658 = vpop.f32.mrb[0].mxu0
    %v1659 = vpop.f32.mrb[0].mxu0
    %v1660 = vadd.f32 0.0, %v1659
    %v1661 = vpop.f32.mrb[0].mxu0
    %1662 = vmatprep.mubr.bf16.mxu0 0
    %1663 = vmatmul.mubr.bf16.gmra.mrb[0].mxu0 %v526
    %v1664 = vpop.f32.mrb[0].mxu0
    %v1665 = vadd.f32 0.0, %v1664
    %v1666 = vpop.f32.mrb[0].mxu0
    %v1667 = vpop.f32.mrb[0].mxu0
    %v1668 = vadd.f32 0.0, %v1667
    %v1669 = vpop.f32.mrb[0].mxu0
    %1670 = vmatprep.mubr.bf16.mxu0 0
    %1671 = vmatmul.mubr.bf16.gmra.mrb[0].mxu0 %v529
    %v1672 = vpop.f32.mrb[0].mxu0
    %v1673 = vadd.f32 0.0, %v1672
    %v1674 = vpop.f32.mrb[0].mxu0
    %v1675 = vpop.f32.mrb[0].mxu0
    %v1676 = vadd.f32 0.0, %v1675
    %v1677 = vpop.f32.mrb[0].mxu0
    %1678 = vmatprep.mubr.bf16.mxu0 0
    %1679 = vmatmul.mubr.bf16.gmra.mrb[0].mxu0 %v532
    %v1680 = vpop.f32.mrb[0].mxu0
    %v1681 = vadd.f32 0.0, %v1680
    %v1682 = vpop.f32.mrb[0].mxu0
    %v1683 = vpop.f32.mrb[0].mxu0
    %v1684 = vadd.f32 0.0, %v1683
    %v1685 = vpop.f32.mrb[0].mxu0
    %1686 = vmatprep.mubr.bf16.mxu0 0
    %1687 = vmatmul.mubr.bf16.gmra.mrb[0].mxu0 %v535
    %v1688 = vpop.f32.mrb[0].mxu0
    %v1689 = vadd.f32 0.0, %v1688
    %v1690 = vpop.f32.mrb[0].mxu0
    %v1691 = vpop.f32.mrb[0].mxu0
    %v1692 = vadd.f32 0.0, %v1691
    %v1693 = vpop.f32.mrb[0].mxu0
    %1694 = vmatprep.mubr.bf16.mxu0 0
    %1695 = vmatmul.mubr.bf16.gmra.mrb[0].mxu0 %v538
    %v1696 = vpop.f32.mrb[0].mxu0
    %v1697 = vadd.f32 0.0, %v1696
    %v1698 = vpop.f32.mrb[0].mxu0
    %v1699 = vpop.f32.mrb[0].mxu0
    %v1700 = vadd.f32 0.0, %v1699
    %v1701 = vpop.f32.mrb[0].mxu0
    %1702 = vmatprep.mubr.bf16.mxu0 0
    %1703 = vmatmul.mubr.bf16.gmra.mrb[0].mxu0 %v541
    %v1704 = vpop.f32.mrb[0].mxu0
    %v1705 = vadd.f32 0.0, %v1704
    %v1706 = vpop.f32.mrb[0].mxu0
    %v1707 = vpop.f32.mrb[0].mxu0
    %v1708 = vadd.f32 0.0, %v1707
    %v1709 = vpop.f32.mrb[0].mxu0
    %1710 = vmatprep.mubr.bf16.mxu0 0
    %1711 = vmatmul.mubr.bf16.gmra.mrb[0].mxu0 %v544
    %v1712 = vpop.f32.mrb[0].mxu0
    %v1713 = vadd.f32 0.0, %v1712
    %v1714 = vpop.f32.mrb[0].mxu0
    %v1715 = vpop.f32.mrb[0].mxu0
    %v1716 = vadd.f32 0.0, %v1715
    %v1717 = vpop.f32.mrb[0].mxu0
    %1718 = vdwg.mxu0
    %v1720 = vsel %vm546, %v1618, 0
    %1722 = vmatprep.subr.bf16.mxu0 0
    %1723 = vmatpush1.bf16.msra.mxu0 %v1720
    %1724 = vmatprep.subr.bf16.mxu0 0
    %1725 = vmatpush1.bf16.msra.mxu0 0
    %1726 = vmatprep.subr.bf16.mxu0 0
    %1727 = vmatpush1.bf16.msra.mxu0 0
    %1728 = vmatprep.subr.bf16.mxu0 0
    %1729 = vmatpush1.bf16.msra.mxu0 0
    %1730 = vmatprep.subr.bf16.mxu0 0
    %1731 = vmatpush1.bf16.msra.mxu0 0
    %1732 = vmatprep.subr.bf16.mxu0 0
    %1733 = vmatpush1.bf16.msra.mxu0 0
    %1734 = vmatprep.subr.bf16.mxu0 0
    %1735 = vmatpush1.bf16.msra.mxu0 0
    %1736 = vmatprep.subr.bf16.mxu0 0
    %1737 = vmatpush1.bf16.msra.mxu0 0
    %1738 = vmatprep.subr.bf16.mxu0 0
    %1739 = vmatpush1.bf16.msra.mxu0 0
    %1740 = vmatprep.subr.bf16.mxu0 0
    %1741 = vmatpush1.bf16.msra.mxu0 0
    %1742 = vmatprep.subr.bf16.mxu0 0
    %1743 = vmatpush1.bf16.msra.mxu0 0
    %1744 = vmatprep.subr.bf16.mxu0 0
    %1745 = vmatpush1.bf16.msra.mxu0 0
    %1746 = vmatprep.subr.bf16.mxu0 0
    %1747 = vmatpush1.bf16.msra.mxu0 0
    %1748 = vmatprep.subr.bf16.mxu0 0
    %1749 = vmatpush1.bf16.msra.mxu0 0
    %1750 = vmatprep.subr.bf16.mxu0 0
    %1751 = vmatpush1.bf16.msra.mxu0 0
    %1752 = vmatprep.subr.bf16.mxu0 0
    %1753 = vmatpush1.bf16.msra.mxu0 0
    %1754 = vmatprep.mubr.bf16.mxu0 0
    %1755 = vmatmul.mubr.bf16.gmra.mrb[0].mxu0 %v688
    %v1756 = vpop.f32.mrb[0].mxu0
    %v1757 = vadd.f32 0.0, %v1756
    %v1758 = vpop.f32.mrb[0].mxu0
    %v1759 = vpop.f32.mrb[0].mxu0
    %v1760 = vadd.f32 0.0, %v1759
    %v1761 = vpop.f32.mrb[0].mxu0
    %1762 = vmatprep.mubr.bf16.mxu0 0
    %1763 = vmatmul.mubr.bf16.gmra.mrb[0].mxu0 %v691
    %v1764 = vpop.f32.mrb[0].mxu0
    %v1765 = vadd.f32 0.0, %v1764
    %v1766 = vpop.f32.mrb[0].mxu0
    %v1767 = vpop.f32.mrb[0].mxu0
    %v1768 = vadd.f32 0.0, %v1767
    %v1769 = vpop.f32.mrb[0].mxu0
    %1770 = vmatprep.mubr.bf16.mxu0 0
    %1771 = vmatmul.mubr.bf16.gmra.mrb[0].mxu0 %v694
    %v1772 = vpop.f32.mrb[0].mxu0
    %v1773 = vadd.f32 0.0, %v1772
    %v1774 = vpop.f32.mrb[0].mxu0
    %v1775 = vpop.f32.mrb[0].mxu0
    %v1776 = vadd.f32 0.0, %v1775
    %v1777 = vpop.f32.mrb[0].mxu0
    %1778 = vmatprep.mubr.bf16.mxu0 0
    %1779 = vmatmul.mubr.bf16.gmra.mrb[0].mxu0 %v697
    %v1780 = vpop.f32.mrb[0].mxu0
    %v1781 = vadd.f32 0.0, %v1780
    %v1782 = vpop.f32.mrb[0].mxu0
    %v1783 = vpop.f32.mrb[0].mxu0
    %v1784 = vadd.f32 0.0, %v1783
    %v1785 = vpop.f32.mrb[0].mxu0
    %1786 = vmatprep.mubr.bf16.mxu0 0
    %1787 = vmatmul.mubr.bf16.gmra.mrb[0].mxu0 %v700
    %v1788 = vpop.f32.mrb[0].mxu0
    %v1789 = vadd.f32 0.0, %v1788
    %v1790 = vpop.f32.mrb[0].mxu0
    %v1791 = vpop.f32.mrb[0].mxu0
    %v1792 = vadd.f32 0.0, %v1791
    %v1793 = vpop.f32.mrb[0].mxu0
    %1794 = vmatprep.mubr.bf16.mxu0 0
    %1795 = vmatmul.mubr.bf16.gmra.mrb[0].mxu0 %v703
    %v1796 = vpop.f32.mrb[0].mxu0
    %v1797 = vadd.f32 0.0, %v1796
    %v1798 = vpop.f32.mrb[0].mxu0
    %v1799 = vpop.f32.mrb[0].mxu0
    %v1800 = vadd.f32 0.0, %v1799
    %v1801 = vpop.f32.mrb[0].mxu0
    %1802 = vmatprep.mubr.bf16.mxu0 0
    %1803 = vmatmul.mubr.bf16.gmra.mrb[0].mxu0 %v706
    %v1804 = vpop.f32.mrb[0].mxu0
    %v1805 = vadd.f32 0.0, %v1804
    %v1806 = vpop.f32.mrb[0].mxu0
    %v1807 = vpop.f32.mrb[0].mxu0
    %v1808 = vadd.f32 0.0, %v1807
    %v1809 = vpop.f32.mrb[0].mxu0
    %1810 = vmatprep.mubr.bf16.mxu0 0
    %1811 = vmatmul.mubr.bf16.gmra.mrb[0].mxu0 %v709
    %v1812 = vpop.f32.mrb[0].mxu0
    %v1813 = vadd.f32 0.0, %v1812
    %v1814 = vpop.f32.mrb[0].mxu0
    %v1815 = vpop.f32.mrb[0].mxu0
    %v1816 = vadd.f32 0.0, %v1815
    %v1817 = vpop.f32.mrb[0].mxu0
    %1818 = vdwg.mxu0
    %v1819 = vsub.f32 %v1657, %v1757
    %v1820 = vsub.f32 %v1660, %v1760
    %v1821 = vsub.f32 %v1665, %v1765
    %v1822 = vsub.f32 %v1668, %v1768
    %v1823 = vsub.f32 %v1673, %v1773
    %v1824 = vsub.f32 %v1676, %v1776
    %v1825 = vsub.f32 %v1681, %v1781
    %v1826 = vsub.f32 %v1684, %v1784
    %v1827 = vsub.f32 %v1689, %v1789
    %v1828 = vsub.f32 %v1692, %v1792
    %v1829 = vsub.f32 %v1697, %v1797
    %v1830 = vsub.f32 %v1700, %v1800
    %v1831 = vsub.f32 %v1705, %v1805
    %v1832 = vsub.f32 %v1708, %v1808
    %v1833 = vsub.f32 %v1713, %v1813
    %v1834 = vsub.f32 %v1716, %v1816
    %1835 = vmatprep.subr.bf16.mxu0 0
    %1836 = vmatpush1.bf16.msra.mxu0 %v1620
    %1837 = vmatprep.subr.bf16.mxu0 0
    %1838 = vmatpush1.bf16.msra.mxu0 0
    %1839 = vmatprep.subr.bf16.mxu0 0
    %1840 = vmatpush1.bf16.msra.mxu0 0
    %1841 = vmatprep.subr.bf16.mxu0 0
    %1842 = vmatpush1.bf16.msra.mxu0 0
    %1843 = vmatprep.subr.bf16.mxu0 0
    %1844 = vmatpush1.bf16.msra.mxu0 0
    %1845 = vmatprep.subr.bf16.mxu0 0
    %1846 = vmatpush1.bf16.msra.mxu0 0
    %1847 = vmatprep.subr.bf16.mxu0 0
    %1848 = vmatpush1.bf16.msra.mxu0 0
    %1849 = vmatprep.subr.bf16.mxu0 0
    %1850 = vmatpush1.bf16.msra.mxu0 0
    %1851 = vmatprep.subr.bf16.mxu0 0
    %1852 = vmatpush1.bf16.msra.mxu0 0
    %1853 = vmatprep.subr.bf16.mxu0 0
    %1854 = vmatpush1.bf16.msra.mxu0 0
    %1855 = vmatprep.subr.bf16.mxu0 0
    %1856 = vmatpush1.bf16.msra.mxu0 0
    %1857 = vmatprep.subr.bf16.mxu0 0
    %1858 = vmatpush1.bf16.msra.mxu0 0
    %1859 = vmatprep.subr.bf16.mxu0 0
    %1860 = vmatpush1.bf16.msra.mxu0 0
    %1861 = vmatprep.subr.bf16.mxu0 0
    %1862 = vmatpush1.bf16.msra.mxu0 0
    %1863 = vmatprep.subr.bf16.mxu0 0
    %1864 = vmatpush1.bf16.msra.mxu0 0
    %1865 = vmatprep.subr.bf16.mxu0 0
    %1866 = vmatpush1.bf16.msra.mxu0 0
    %1867 = vmatprep.mubr.bf16.mxu0 0
    %1868 = vmatmul.mubr.bf16.gmra.mrb[0].mxu0 %v688
    %v1869 = vpop.f32.mrb[0].mxu0
    %v1870 = vadd.f32 0.0, %v1869
    %v1871 = vpop.f32.mrb[0].mxu0
    %v1872 = vpop.f32.mrb[0].mxu0
    %v1873 = vadd.f32 0.0, %v1872
    %v1874 = vpop.f32.mrb[0].mxu0
    %1875 = vmatprep.mubr.bf16.mxu0 0
    %1876 = vmatmul.mubr.bf16.gmra.mrb[0].mxu0 %v691
    %v1877 = vpop.f32.mrb[0].mxu0
    %v1878 = vadd.f32 0.0, %v1877
    %v1879 = vpop.f32.mrb[0].mxu0
    %v1880 = vpop.f32.mrb[0].mxu0
    %v1881 = vadd.f32 0.0, %v1880
    %v1882 = vpop.f32.mrb[0].mxu0
    %1883 = vmatprep.mubr.bf16.mxu0 0
    %1884 = vmatmul.mubr.bf16.gmra.mrb[0].mxu0 %v694
    %v1885 = vpop.f32.mrb[0].mxu0
    %v1886 = vadd.f32 0.0, %v1885
    %v1887 = vpop.f32.mrb[0].mxu0
    %v1888 = vpop.f32.mrb[0].mxu0
    %v1889 = vadd.f32 0.0, %v1888
    %v1890 = vpop.f32.mrb[0].mxu0
    %1891 = vmatprep.mubr.bf16.mxu0 0
    %1892 = vmatmul.mubr.bf16.gmra.mrb[0].mxu0 %v697
    %v1893 = vpop.f32.mrb[0].mxu0
    %v1894 = vadd.f32 0.0, %v1893
    %v1895 = vpop.f32.mrb[0].mxu0
    %v1896 = vpop.f32.mrb[0].mxu0
    %v1897 = vadd.f32 0.0, %v1896
    %v1898 = vpop.f32.mrb[0].mxu0
    %1899 = vmatprep.mubr.bf16.mxu0 0
    %1900 = vmatmul.mubr.bf16.gmra.mrb[0].mxu0 %v700
    %v1901 = vpop.f32.mrb[0].mxu0
    %v1902 = vadd.f32 0.0, %v1901
    %v1903 = vpop.f32.mrb[0].mxu0
    %v1904 = vpop.f32.mrb[0].mxu0
    %v1905 = vadd.f32 0.0, %v1904
    %v1906 = vpop.f32.mrb[0].mxu0
    %1907 = vmatprep.mubr.bf16.mxu0 0
    %1908 = vmatmul.mubr.bf16.gmra.mrb[0].mxu0 %v703
    %v1909 = vpop.f32.mrb[0].mxu0
    %v1910 = vadd.f32 0.0, %v1909
    %v1911 = vpop.f32.mrb[0].mxu0
    %v1912 = vpop.f32.mrb[0].mxu0
    %v1913 = vadd.f32 0.0, %v1912
    %v1914 = vpop.f32.mrb[0].mxu0
    %1915 = vmatprep.mubr.bf16.mxu0 0
    %1916 = vmatmul.mubr.bf16.gmra.mrb[0].mxu0 %v706
    %v1917 = vpop.f32.mrb[0].mxu0
    %v1918 = vadd.f32 0.0, %v1917
    %v1919 = vpop.f32.mrb[0].mxu0
    %v1920 = vpop.f32.mrb[0].mxu0
    %v1921 = vadd.f32 0.0, %v1920
    %v1922 = vpop.f32.mrb[0].mxu0
    %1923 = vmatprep.mubr.bf16.mxu0 0
    %1924 = vmatmul.mubr.bf16.gmra.mrb[0].mxu0 %v709
    %v1925 = vpop.f32.mrb[0].mxu0
    %v1926 = vadd.f32 0.0, %v1925
    %v1927 = vpop.f32.mrb[0].mxu0
    %v1928 = vpop.f32.mrb[0].mxu0
    %v1929 = vadd.f32 0.0, %v1928
    %v1930 = vpop.f32.mrb[0].mxu0
    %1931 = vdwg.mxu0
    %1932 = vmatprep.subr.bf16.mxu0 0
    %1933 = vmatpush1.bf16.msra.mxu0 %v1720
    %1934 = vmatprep.subr.bf16.mxu0 0
    %1935 = vmatpush1.bf16.msra.mxu0 0
    %1936 = vmatprep.subr.bf16.mxu0 0
    %1937 = vmatpush1.bf16.msra.mxu0 0
    %1938 = vmatprep.subr.bf16.mxu0 0
    %1939 = vmatpush1.bf16.msra.mxu0 0
    %1940 = vmatprep.subr.bf16.mxu0 0
    %1941 = vmatpush1.bf16.msra.mxu0 0
    %1942 = vmatprep.subr.bf16.mxu0 0
    %1943 = vmatpush1.bf16.msra.mxu0 0
    %1944 = vmatprep.subr.bf16.mxu0 0
    %1945 = vmatpush1.bf16.msra.mxu0 0
    %1946 = vmatprep.subr.bf16.mxu0 0
    %1947 = vmatpush1.bf16.msra.mxu0 0
    %1948 = vmatprep.subr.bf16.mxu0 0
    %1949 = vmatpush1.bf16.msra.mxu0 0
    %1950 = vmatprep.subr.bf16.mxu0 0
    %1951 = vmatpush1.bf16.msra.mxu0 0
    %1952 = vmatprep.subr.bf16.mxu0 0
    %1953 = vmatpush1.bf16.msra.mxu0 0
    %1954 = vmatprep.subr.bf16.mxu0 0
    %1955 = vmatpush1.bf16.msra.mxu0 0
    %1956 = vmatprep.subr.bf16.mxu0 0
    %1957 = vmatpush1.bf16.msra.mxu0 0
    %1958 = vmatprep.subr.bf16.mxu0 0
    %1959 = vmatpush1.bf16.msra.mxu0 0
    %1960 = vmatprep.subr.bf16.mxu0 0
    %1961 = vmatpush1.bf16.msra.mxu0 0
    %1962 = vmatprep.subr.bf16.mxu0 0
    %1963 = vmatpush1.bf16.msra.mxu0 0
    %1964 = vmatprep.mubr.bf16.mxu0 0
    %1965 = vmatmul.mubr.bf16.gmra.mrb[0].mxu0 %v523
    %v1966 = vpop.f32.mrb[0].mxu0
    %v1967 = vadd.f32 %v1870, %v1966
    %v1968 = vpop.f32.mrb[0].mxu0
    %v1969 = vpop.f32.mrb[0].mxu0
    %v1970 = vadd.f32 %v1873, %v1969
    %v1971 = vpop.f32.mrb[0].mxu0
    %1972 = vmatprep.mubr.bf16.mxu0 0
    %1973 = vmatmul.mubr.bf16.gmra.mrb[0].mxu0 %v526
    %v1974 = vpop.f32.mrb[0].mxu0
    %v1975 = vadd.f32 %v1878, %v1974
    %v1976 = vpop.f32.mrb[0].mxu0
    %v1977 = vpop.f32.mrb[0].mxu0
    %v1978 = vadd.f32 %v1881, %v1977
    %v1979 = vpop.f32.mrb[0].mxu0
    %1980 = vmatprep.mubr.bf16.mxu0 0
    %1981 = vmatmul.mubr.bf16.gmra.mrb[0].mxu0 %v529
    %v1982 = vpop.f32.mrb[0].mxu0
    %v1983 = vadd.f32 %v1886, %v1982
    %v1984 = vpop.f32.mrb[0].mxu0
    %v1985 = vpop.f32.mrb[0].mxu0
    %v1986 = vadd.f32 %v1889, %v1985
    %v1987 = vpop.f32.mrb[0].mxu0
    %1988 = vmatprep.mubr.bf16.mxu0 0
    %1989 = vmatmul.mubr.bf16.gmra.mrb[0].mxu0 %v532
    %v1990 = vpop.f32.mrb[0].mxu0
    %v1991 = vadd.f32 %v1894, %v1990
    %v1992 = vpop.f32.mrb[0].mxu0
    %v1993 = vpop.f32.mrb[0].mxu0
    %v1994 = vadd.f32 %v1897, %v1993
    %v1995 = vpop.f32.mrb[0].mxu0
    %1996 = vmatprep.mubr.bf16.mxu0 0
    %1997 = vmatmul.mubr.bf16.gmra.mrb[0].mxu0 %v535
    %v1998 = vpop.f32.mrb[0].mxu0
    %v1999 = vadd.f32 %v1902, %v1998
    %v2000 = vpop.f32.mrb[0].mxu0
    %v2001 = vpop.f32.mrb[0].mxu0
    %v2002 = vadd.f32 %v1905, %v2001
    %v2003 = vpop.f32.mrb[0].mxu0
    %2004 = vmatprep.mubr.bf16.mxu0 0
    %2005 = vmatmul.mubr.bf16.gmra.mrb[0].mxu0 %v538
    %v2006 = vpop.f32.mrb[0].mxu0
    %v2007 = vadd.f32 %v1910, %v2006
    %v2008 = vpop.f32.mrb[0].mxu0
    %v2009 = vpop.f32.mrb[0].mxu0
    %v2010 = vadd.f32 %v1913, %v2009
    %v2011 = vpop.f32.mrb[0].mxu0
    %2012 = vmatprep.mubr.bf16.mxu0 0
    %2013 = vmatmul.mubr.bf16.gmra.mrb[0].mxu0 %v541
    %v2014 = vpop.f32.mrb[0].mxu0
    %v2015 = vadd.f32 %v1918, %v2014
    %v2016 = vpop.f32.mrb[0].mxu0
    %v2017 = vpop.f32.mrb[0].mxu0
    %v2018 = vadd.f32 %v1921, %v2017
    %v2019 = vpop.f32.mrb[0].mxu0
    %2020 = vmatprep.mubr.bf16.mxu0 0
    %2021 = vmatmul.mubr.bf16.gmra.mrb[0].mxu0 %v544
    %v2022 = vpop.f32.mrb[0].mxu0
    %v2023 = vadd.f32 %v1926, %v2022
    %v2024 = vpop.f32.mrb[0].mxu0
    %v2025 = vpop.f32.mrb[0].mxu0
    %v2026 = vadd.f32 %v1929, %v2025
    %v2027 = vpop.f32.mrb[0].mxu0
    %2028 = vdwg.mxu0
    %v2029 = vpack.c.bf16 %v1820, %v1819
    %v2030 = vpack.c.bf16 %v1822, %v1821
    %v2031 = vpack.c.bf16 %v1824, %v1823
    %v2032 = vpack.c.bf16 %v1826, %v1825
    %v2033 = vpack.c.bf16 %v1828, %v1827
    %v2034 = vpack.c.bf16 %v1830, %v1829
    %v2035 = vpack.c.bf16 %v1832, %v1831
    %v2036 = vpack.c.bf16 %v1834, %v1833
    %v2037 = vpack.c.bf16 %v1970, %v1967
    %v2038 = vpack.c.bf16 %v1978, %v1975
    %v2039 = vpack.c.bf16 %v1986, %v1983
    %v2040 = vpack.c.bf16 %v1994, %v1991
    %v2041 = vpack.c.bf16 %v2002, %v1999
    %v2042 = vpack.c.bf16 %v2010, %v2007
    %v2043 = vpack.c.bf16 %v2018, %v2015
    %v2044 = vpack.c.bf16 %v2026, %v2023
    %v2046 = vsel %vm521, %v2029, 0
    %v2049 = vsel %vm521, %v2030, 0
    %v2052 = vsel %vm521, %v2031, 0
    %v2055 = vsel %vm521, %v2032, 0
    %v2058 = vsel %vm521, %v2033, 0
    %v2061 = vsel %vm521, %v2034, 0
    %v2064 = vsel %vm521, %v2035, 0
    %v2067 = vsel %vm521, %v2036, 0
    %2069 = vmatprep.subr.bf16.mxu0 0
    %2070 = vmatpush1.bf16.msra.mxu0 %v1062
    %2071 = vmatprep.subr.bf16.mxu0 0
    %2072 = vmatpush1.bf16.msra.mxu0 0
    %2073 = vmatprep.subr.bf16.mxu0 0
    %2074 = vmatpush1.bf16.msra.mxu0 0
    %2075 = vmatprep.subr.bf16.mxu0 0
    %2076 = vmatpush1.bf16.msra.mxu0 0
    %2077 = vmatprep.subr.bf16.mxu0 0
    %2078 = vmatpush1.bf16.msra.mxu0 0
    %2079 = vmatprep.subr.bf16.mxu0 0
    %2080 = vmatpush1.bf16.msra.mxu0 0
    %2081 = vmatprep.subr.bf16.mxu0 0
    %2082 = vmatpush1.bf16.msra.mxu0 0
    %2083 = vmatprep.subr.bf16.mxu0 0
    %2084 = vmatpush1.bf16.msra.mxu0 0
    %2085 = vmatprep.subr.bf16.mxu0 0
    %2086 = vmatpush1.bf16.msra.mxu0 0
    %2087 = vmatprep.subr.bf16.mxu0 0
    %2088 = vmatpush1.bf16.msra.mxu0 0
    %2089 = vmatprep.subr.bf16.mxu0 0
    %2090 = vmatpush1.bf16.msra.mxu0 0
    %2091 = vmatprep.subr.bf16.mxu0 0
    %2092 = vmatpush1.bf16.msra.mxu0 0
    %2093 = vmatprep.subr.bf16.mxu0 0
    %2094 = vmatpush1.bf16.msra.mxu0 0
    %2095 = vmatprep.subr.bf16.mxu0 0
    %2096 = vmatpush1.bf16.msra.mxu0 0
    %2097 = vmatprep.subr.bf16.mxu0 0
    %2098 = vmatpush1.bf16.msra.mxu0 0
    %2099 = vmatprep.subr.bf16.mxu0 0
    %2100 = vmatpush1.bf16.msra.mxu0 0
    %2101 = vmatprep.mubr.bf16.mxu0 0
    %2102 = vmatmul.mubr.bf16.gmra.mrb[0].mxu0 %v2046
    %v2103 = vpop.f32.mrb[0].mxu0
    %v2104 = vadd.f32 0.0, %v2103
    %v2105 = vpop.f32.mrb[0].mxu0
    %v2106 = vpop.f32.mrb[0].mxu0
    %v2107 = vadd.f32 0.0, %v2106
    %v2108 = vpop.f32.mrb[0].mxu0
    %2109 = vmatprep.mubr.bf16.mxu0 0
    %2110 = vmatmul.mubr.bf16.gmra.mrb[0].mxu0 %v2049
    %v2111 = vpop.f32.mrb[0].mxu0
    %v2112 = vadd.f32 0.0, %v2111
    %v2113 = vpop.f32.mrb[0].mxu0
    %v2114 = vpop.f32.mrb[0].mxu0
    %v2115 = vadd.f32 0.0, %v2114
    %v2116 = vpop.f32.mrb[0].mxu0
    %2117 = vmatprep.mubr.bf16.mxu0 0
    %2118 = vmatmul.mubr.bf16.gmra.mrb[0].mxu0 %v2052
    %v2119 = vpop.f32.mrb[0].mxu0
    %v2120 = vadd.f32 0.0, %v2119
    %v2121 = vpop.f32.mrb[0].mxu0
    %v2122 = vpop.f32.mrb[0].mxu0
    %v2123 = vadd.f32 0.0, %v2122
    %v2124 = vpop.f32.mrb[0].mxu0
    %2125 = vmatprep.mubr.bf16.mxu0 0
    %2126 = vmatmul.mubr.bf16.gmra.mrb[0].mxu0 %v2055
    %v2127 = vpop.f32.mrb[0].mxu0
    %v2128 = vadd.f32 0.0, %v2127
    %v2129 = vpop.f32.mrb[0].mxu0
    %v2130 = vpop.f32.mrb[0].mxu0
    %v2131 = vadd.f32 0.0, %v2130
    %v2132 = vpop.f32.mrb[0].mxu0
    %2133 = vmatprep.mubr.bf16.mxu0 0
    %2134 = vmatmul.mubr.bf16.gmra.mrb[0].mxu0 %v2058
    %v2135 = vpop.f32.mrb[0].mxu0
    %v2136 = vadd.f32 0.0, %v2135
    %v2137 = vpop.f32.mrb[0].mxu0
    %v2138 = vpop.f32.mrb[0].mxu0
    %v2139 = vadd.f32 0.0, %v2138
    %v2140 = vpop.f32.mrb[0].mxu0
    %2141 = vmatprep.mubr.bf16.mxu0 0
    %2142 = vmatmul.mubr.bf16.gmra.mrb[0].mxu0 %v2061
    %v2143 = vpop.f32.mrb[0].mxu0
    %v2144 = vadd.f32 0.0, %v2143
    %v2145 = vpop.f32.mrb[0].mxu0
    %v2146 = vpop.f32.mrb[0].mxu0
    %v2147 = vadd.f32 0.0, %v2146
    %v2148 = vpop.f32.mrb[0].mxu0
    %2149 = vmatprep.mubr.bf16.mxu0 0
    %2150 = vmatmul.mubr.bf16.gmra.mrb[0].mxu0 %v2064
    %v2151 = vpop.f32.mrb[0].mxu0
    %v2152 = vadd.f32 0.0, %v2151
    %v2153 = vpop.f32.mrb[0].mxu0
    %v2154 = vpop.f32.mrb[0].mxu0
    %v2155 = vadd.f32 0.0, %v2154
    %v2156 = vpop.f32.mrb[0].mxu0
    %2157 = vmatprep.mubr.bf16.mxu0 0
    %2158 = vmatmul.mubr.bf16.gmra.mrb[0].mxu0 %v2067
    %v2159 = vpop.f32.mrb[0].mxu0
    %v2160 = vadd.f32 0.0, %v2159
    %v2161 = vpop.f32.mrb[0].mxu0
    %v2162 = vpop.f32.mrb[0].mxu0
    %v2163 = vadd.f32 0.0, %v2162
    %v2164 = vpop.f32.mrb[0].mxu0
    %2165 = vdwg.mxu0
    %v2167 = vsel %vm521, %v2037, 0
    %v2170 = vsel %vm521, %v2038, 0
    %v2173 = vsel %vm521, %v2039, 0
    %v2176 = vsel %vm521, %v2040, 0
    %v2179 = vsel %vm521, %v2041, 0
    %v2182 = vsel %vm521, %v2042, 0
    %v2185 = vsel %vm521, %v2043, 0
    %v2188 = vsel %vm521, %v2044, 0
    %2190 = vmatprep.subr.bf16.mxu0 0
    %2191 = vmatpush1.bf16.msra.mxu0 %v1186
    %2192 = vmatprep.subr.bf16.mxu0 0
    %2193 = vmatpush1.bf16.msra.mxu0 0
    %2194 = vmatprep.subr.bf16.mxu0 0
    %2195 = vmatpush1.bf16.msra.mxu0 0
    %2196 = vmatprep.subr.bf16.mxu0 0
    %2197 = vmatpush1.bf16.msra.mxu0 0
    %2198 = vmatprep.subr.bf16.mxu0 0
    %2199 = vmatpush1.bf16.msra.mxu0 0
    %2200 = vmatprep.subr.bf16.mxu0 0
    %2201 = vmatpush1.bf16.msra.mxu0 0
    %2202 = vmatprep.subr.bf16.mxu0 0
    %2203 = vmatpush1.bf16.msra.mxu0 0
    %2204 = vmatprep.subr.bf16.mxu0 0
    %2205 = vmatpush1.bf16.msra.mxu0 0
    %2206 = vmatprep.subr.bf16.mxu0 0
    %2207 = vmatpush1.bf16.msra.mxu0 0
    %2208 = vmatprep.subr.bf16.mxu0 0
    %2209 = vmatpush1.bf16.msra.mxu0 0
    %2210 = vmatprep.subr.bf16.mxu0 0
    %2211 = vmatpush1.bf16.msra.mxu0 0
    %2212 = vmatprep.subr.bf16.mxu0 0
    %2213 = vmatpush1.bf16.msra.mxu0 0
    %2214 = vmatprep.subr.bf16.mxu0 0
    %2215 = vmatpush1.bf16.msra.mxu0 0
    %2216 = vmatprep.subr.bf16.mxu0 0
    %2217 = vmatpush1.bf16.msra.mxu0 0
    %2218 = vmatprep.subr.bf16.mxu0 0
    %2219 = vmatpush1.bf16.msra.mxu0 0
    %2220 = vmatprep.subr.bf16.mxu0 0
    %2221 = vmatpush1.bf16.msra.mxu0 0
    %2222 = vmatprep.mubr.bf16.mxu0 0
    %2223 = vmatmul.mubr.bf16.gmra.mrb[0].mxu0 %v2167
    %v2224 = vpop.f32.mrb[0].mxu0
    %v2225 = vadd.f32 0.0, %v2224
    %v2226 = vpop.f32.mrb[0].mxu0
    %v2227 = vpop.f32.mrb[0].mxu0
    %v2228 = vadd.f32 0.0, %v2227
    %v2229 = vpop.f32.mrb[0].mxu0
    %2230 = vmatprep.mubr.bf16.mxu0 0
    %2231 = vmatmul.mubr.bf16.gmra.mrb[0].mxu0 %v2170
    %v2232 = vpop.f32.mrb[0].mxu0
    %v2233 = vadd.f32 0.0, %v2232
    %v2234 = vpop.f32.mrb[0].mxu0
    %v2235 = vpop.f32.mrb[0].mxu0
    %v2236 = vadd.f32 0.0, %v2235
    %v2237 = vpop.f32.mrb[0].mxu0
    %2238 = vmatprep.mubr.bf16.mxu0 0
    %2239 = vmatmul.mubr.bf16.gmra.mrb[0].mxu0 %v2173
    %v2240 = vpop.f32.mrb[0].mxu0
    %v2241 = vadd.f32 0.0, %v2240
    %v2242 = vpop.f32.mrb[0].mxu0
    %v2243 = vpop.f32.mrb[0].mxu0
    %v2244 = vadd.f32 0.0, %v2243
    %v2245 = vpop.f32.mrb[0].mxu0
    %2246 = vmatprep.mubr.bf16.mxu0 0
    %2247 = vmatmul.mubr.bf16.gmra.mrb[0].mxu0 %v2176
    %v2248 = vpop.f32.mrb[0].mxu0
    %v2249 = vadd.f32 0.0, %v2248
    %v2250 = vpop.f32.mrb[0].mxu0
    %v2251 = vpop.f32.mrb[0].mxu0
    %v2252 = vadd.f32 0.0, %v2251
    %v2253 = vpop.f32.mrb[0].mxu0
    %2254 = vmatprep.mubr.bf16.mxu0 0
    %2255 = vmatmul.mubr.bf16.gmra.mrb[0].mxu0 %v2179
    %v2256 = vpop.f32.mrb[0].mxu0
    %v2257 = vadd.f32 0.0, %v2256
    %v2258 = vpop.f32.mrb[0].mxu0
    %v2259 = vpop.f32.mrb[0].mxu0
    %v2260 = vadd.f32 0.0, %v2259
    %v2261 = vpop.f32.mrb[0].mxu0
    %2262 = vmatprep.mubr.bf16.mxu0 0
    %2263 = vmatmul.mubr.bf16.gmra.mrb[0].mxu0 %v2182
    %v2264 = vpop.f32.mrb[0].mxu0
    %v2265 = vadd.f32 0.0, %v2264
    %v2266 = vpop.f32.mrb[0].mxu0
    %v2267 = vpop.f32.mrb[0].mxu0
    %v2268 = vadd.f32 0.0, %v2267
    %v2269 = vpop.f32.mrb[0].mxu0
    %2270 = vmatprep.mubr.bf16.mxu0 0
    %2271 = vmatmul.mubr.bf16.gmra.mrb[0].mxu0 %v2185
    %v2272 = vpop.f32.mrb[0].mxu0
    %v2273 = vadd.f32 0.0, %v2272
    %v2274 = vpop.f32.mrb[0].mxu0
    %v2275 = vpop.f32.mrb[0].mxu0
    %v2276 = vadd.f32 0.0, %v2275
    %v2277 = vpop.f32.mrb[0].mxu0
    %2278 = vmatprep.mubr.bf16.mxu0 0
    %2279 = vmatmul.mubr.bf16.gmra.mrb[0].mxu0 %v2188
    %v2280 = vpop.f32.mrb[0].mxu0
    %v2281 = vadd.f32 0.0, %v2280
    %v2282 = vpop.f32.mrb[0].mxu0
    %v2283 = vpop.f32.mrb[0].mxu0
    %v2284 = vadd.f32 0.0, %v2283
    %v2285 = vpop.f32.mrb[0].mxu0
    %2286 = vdwg.mxu0
    %v2287 = vsub.f32 %v2104, %v2225
    %v2288 = vsub.f32 %v2107, %v2228
    %v2289 = vsub.f32 %v2112, %v2233
    %v2290 = vsub.f32 %v2115, %v2236
    %v2291 = vsub.f32 %v2120, %v2241
    %v2292 = vsub.f32 %v2123, %v2244
    %v2293 = vsub.f32 %v2128, %v2249
    %v2294 = vsub.f32 %v2131, %v2252
    %v2295 = vsub.f32 %v2136, %v2257
    %v2296 = vsub.f32 %v2139, %v2260
    %v2297 = vsub.f32 %v2144, %v2265
    %v2298 = vsub.f32 %v2147, %v2268
    %v2299 = vsub.f32 %v2152, %v2273
    %v2300 = vsub.f32 %v2155, %v2276
    %v2301 = vsub.f32 %v2160, %v2281
    %v2302 = vsub.f32 %v2163, %v2284
    %v2303 = vmul.f32 %v1350, 255.0
    %v2304 = vmul.f32 %v1351, 255.0
    %v2305 = vmul.f32 %v1352, 255.0
    %v2306 = vmul.f32 %v1353, 255.0
    %v2307 = vmul.f32 %v1354, 255.0
    %v2308 = vmul.f32 %v1355, 255.0
    %v2309 = vmul.f32 %v1356, 255.0
    %v2310 = vmul.f32 %v1357, 255.0
    %v2311 = vmul.f32 %v1358, 255.0
    %v2312 = vmul.f32 %v1359, 255.0
    %v2313 = vmul.f32 %v1360, 255.0
    %v2314 = vmul.f32 %v1361, 255.0
    %v2315 = vmul.f32 %v1362, 255.0
    %v2316 = vmul.f32 %v1363, 255.0
    %v2317 = vmul.f32 %v1364, 255.0
    %v2318 = vmul.f32 %v1365, 255.0
    %v2319 = vsub.f32 %v2303, %v2287
    %v2320 = vsub.f32 %v2304, %v2288
    %v2321 = vsub.f32 %v2305, %v2289
    %v2322 = vsub.f32 %v2306, %v2290
    %v2323 = vsub.f32 %v2307, %v2291
    %v2324 = vsub.f32 %v2308, %v2292
    %v2325 = vsub.f32 %v2309, %v2293
    %v2326 = vsub.f32 %v2310, %v2294
    %v2327 = vsub.f32 %v2311, %v2295
    %v2328 = vsub.f32 %v2312, %v2296
    %v2329 = vsub.f32 %v2313, %v2297
    %v2330 = vsub.f32 %v2314, %v2298
    %v2331 = vsub.f32 %v2315, %v2299
    %v2332 = vsub.f32 %v2316, %v2300
    %v2333 = vsub.f32 %v2317, %v2301
    %v2334 = vsub.f32 %v2318, %v2302
    %s2335 = scalar_lea.vmem [#allocation5], 128
    %2336 = vst [vmem:[%s2335] sm:$0xff] %v2319
    %2337 = vst [vmem:[%s2335 + $0x8] sm:$0xff] %v2320
    %2338 = vst [vmem:[%s2335 + $0x10] sm:$0xff] %v2321
    %2339 = vst [vmem:[%s2335 + $0x18] sm:$0xff] %v2322
    %2340 = vst [vmem:[%s2335 + $0x20] sm:$0xff] %v2323
    %2341 = vst [vmem:[%s2335 + $0x28] sm:$0xff] %v2324
    %2342 = vst [vmem:[%s2335 + $0x30] sm:$0xff] %v2325
    %2343 = vst [vmem:[%s2335 + $0x38] sm:$0xff] %v2326
    %2344 = vst [vmem:[%s2335 + $0x40] sm:$0xff] %v2327
    %2345 = vst [vmem:[%s2335 + $0x48] sm:$0xff] %v2328
    %2346 = vst [vmem:[%s2335 + $0x50] sm:$0xff] %v2329
    %2347 = vst [vmem:[%s2335 + $0x58] sm:$0xff] %v2330
    %2348 = vst [vmem:[%s2335 + $0x60] sm:$0xff] %v2331
    %2349 = vst [vmem:[%s2335 + $0x68] sm:$0xff] %v2332
    %2350 = vst [vmem:[%s2335 + $0x70] sm:$0xff] %v2333
    %2351 = vst [vmem:[%s2335 + $0x78] sm:$0xff] %v2334
    %s2352 = scalar_lea.vmem [#allocation2], 256
    %v2353 = vld [vmem:[%s2352] sm:$0xff]
    %v2354 = vld [vmem:[%s2352 + $0x8] sm:$0xff]
    %v2355 = vld [vmem:[%s2352 + $0x10] sm:$0xff]
    %v2356 = vld [vmem:[%s2352 + $0x18] sm:$0xff]
    %v2357 = vld [vmem:[%s2352 + $0x20] sm:$0xff]
    %v2358 = vld [vmem:[%s2352 + $0x28] sm:$0xff]
    %v2359 = vld [vmem:[%s2352 + $0x30] sm:$0xff]
    %v2360 = vld [vmem:[%s2352 + $0x38] sm:$0xff]
    %v2361 = vld [vmem:[%s2352 + $0x40] sm:$0xff]
    %v2362 = vld [vmem:[%s2352 + $0x48] sm:$0xff]
    %v2363 = vld [vmem:[%s2352 + $0x50] sm:$0xff]
    %v2364 = vld [vmem:[%s2352 + $0x58] sm:$0xff]
    %v2365 = vld [vmem:[%s2352 + $0x60] sm:$0xff]
    %v2366 = vld [vmem:[%s2352 + $0x68] sm:$0xff]
    %v2367 = vld [vmem:[%s2352 + $0x70] sm:$0xff]
    %v2368 = vld [vmem:[%s2352 + $0x78] sm:$0xff]
    %v2369 = vpack.c.bf16 %v2354, %v2353
    %v2370 = vpack.c.bf16 %v2356, %v2355
    %v2371 = vpack.c.bf16 %v2358, %v2357
    %v2372 = vpack.c.bf16 %v2360, %v2359
    %v2373 = vpack.c.bf16 %v2362, %v2361
    %v2374 = vpack.c.bf16 %v2364, %v2363
    %v2375 = vpack.c.bf16 %v2366, %v2365
    %v2376 = vpack.c.bf16 %v2368, %v2367
    %2377 = vmatprep.subr.bf16.mxu0 0
    %2378 = vmatpush1.bf16.msra.mxu0 %v2369
    %2379 = vmatprep.subr.bf16.mxu0 0
    %2380 = vmatpush1.bf16.msra.mxu0 %v2370
    %2381 = vmatprep.subr.bf16.mxu0 0
    %2382 = vmatpush1.bf16.msra.mxu0 %v2371
    %2383 = vmatprep.subr.bf16.mxu0 0
    %2384 = vmatpush1.bf16.msra.mxu0 %v2372
    %2385 = vmatprep.subr.bf16.mxu0 0
    %2386 = vmatpush1.bf16.msra.mxu0 %v2373
    %2387 = vmatprep.subr.bf16.mxu0 0
    %2388 = vmatpush1.bf16.msra.mxu0 %v2374
    %2389 = vmatprep.subr.bf16.mxu0 0
    %2390 = vmatpush1.bf16.msra.mxu0 %v2375
    %2391 = vmatprep.subr.bf16.mxu0 0
    %2392 = vmatpush1.bf16.msra.mxu0 %v2376
    %2393 = vmatprep.subr.bf16.mxu0 0
    %2394 = vmatpush1.bf16.msra.mxu0 0
    %2395 = vmatprep.subr.bf16.mxu0 0
    %2396 = vmatpush1.bf16.msra.mxu0 0
    %2397 = vmatprep.subr.bf16.mxu0 0
    %2398 = vmatpush1.bf16.msra.mxu0 0
    %2399 = vmatprep.subr.bf16.mxu0 0
    %2400 = vmatpush1.bf16.msra.mxu0 0
    %2401 = vmatprep.subr.bf16.mxu0 0
    %2402 = vmatpush1.bf16.msra.mxu0 0
    %2403 = vmatprep.subr.bf16.mxu0 0
    %2404 = vmatpush1.bf16.msra.mxu0 0
    %2405 = vmatprep.subr.bf16.mxu0 0
    %2406 = vmatpush1.bf16.msra.mxu0 0
    %2407 = vmatprep.subr.bf16.mxu0 0
    %2408 = vmatpush1.bf16.msra.mxu0 0
    %2409 = vmatprep.mubr.bf16.mxu0 0
    %2410 = vmatmul.mubr.bf16.gmra.mrb[0].mxu0 %v48
    %v2411 = vpop.f32.mrb[0].mxu0
    %v2412 = vadd.f32 0.0, %v2411
    %v2413 = vpop.f32.mrb[0].mxu0
    %v2414 = vpop.f32.mrb[0].mxu0
    %v2415 = vpop.f32.mrb[0].mxu0
    %2416 = vdwg.mxu0
    %2417 = vmatprep.subr.bf16.mxu0 0
    %2418 = vmatpush1.bf16.msra.mxu0 %v2369
    %2419 = vmatprep.subr.bf16.mxu0 0
    %2420 = vmatpush1.bf16.msra.mxu0 %v2370
    %2421 = vmatprep.subr.bf16.mxu0 0
    %2422 = vmatpush1.bf16.msra.mxu0 %v2371
    %2423 = vmatprep.subr.bf16.mxu0 0
    %2424 = vmatpush1.bf16.msra.mxu0 %v2372
    %2425 = vmatprep.subr.bf16.mxu0 0
    %2426 = vmatpush1.bf16.msra.mxu0 %v2373
    %2427 = vmatprep.subr.bf16.mxu0 0
    %2428 = vmatpush1.bf16.msra.mxu0 %v2374
    %2429 = vmatprep.subr.bf16.mxu0 0
    %2430 = vmatpush1.bf16.msra.mxu0 %v2375
    %2431 = vmatprep.subr.bf16.mxu0 0
    %2432 = vmatpush1.bf16.msra.mxu0 %v2376
    %2433 = vmatprep.subr.bf16.mxu0 0
    %2434 = vmatpush1.bf16.msra.mxu0 0
    %2435 = vmatprep.subr.bf16.mxu0 0
    %2436 = vmatpush1.bf16.msra.mxu0 0
    %2437 = vmatprep.subr.bf16.mxu0 0
    %2438 = vmatpush1.bf16.msra.mxu0 0
    %2439 = vmatprep.subr.bf16.mxu0 0
    %2440 = vmatpush1.bf16.msra.mxu0 0
    %2441 = vmatprep.subr.bf16.mxu0 0
    %2442 = vmatpush1.bf16.msra.mxu0 0
    %2443 = vmatprep.subr.bf16.mxu0 0
    %2444 = vmatpush1.bf16.msra.mxu0 0
    %2445 = vmatprep.subr.bf16.mxu0 0
    %2446 = vmatpush1.bf16.msra.mxu0 0
    %2447 = vmatprep.subr.bf16.mxu0 0
    %2448 = vmatpush1.bf16.msra.mxu0 0
    %2449 = vmatprep.mubr.bf16.mxu0 0
    %2450 = vmatmul.mubr.bf16.gmra.mrb[0].mxu0 %v49
    %v2451 = vpop.f32.mrb[0].mxu0
    %v2452 = vadd.f32 0.0, %v2451
    %v2453 = vpop.f32.mrb[0].mxu0
    %v2454 = vpop.f32.mrb[0].mxu0
    %v2455 = vpop.f32.mrb[0].mxu0
    %2456 = vdwg.mxu0
    %v2457 = vpack.c.bf16 %v2412, %v2412
    %v2458 = vpack.c.bf16 %v2452, %v2452
    %2459 = vmatprep.subr.bf16.mxu0 0
    %2460 = vmatpush1.bf16.msra.mxu0 %v254
    %2461 = vmatprep.subr.bf16.mxu0 0
    %2462 = vmatpush1.bf16.msra.mxu0 %v255
    %2463 = vmatprep.subr.bf16.mxu0 0
    %2464 = vmatpush1.bf16.msra.mxu0 %v256
    %2465 = vmatprep.subr.bf16.mxu0 0
    %2466 = vmatpush1.bf16.msra.mxu0 %v257
    %2467 = vmatprep.subr.bf16.mxu0 0
    %2468 = vmatpush1.bf16.msra.mxu0 %v258
    %2469 = vmatprep.subr.bf16.mxu0 0
    %2470 = vmatpush1.bf16.msra.mxu0 %v259
    %2471 = vmatprep.subr.bf16.mxu0 0
    %2472 = vmatpush1.bf16.msra.mxu0 %v260
    %2473 = vmatprep.subr.bf16.mxu0 0
    %2474 = vmatpush1.bf16.msra.mxu0 %v261
    %2475 = vmatprep.subr.bf16.mxu0 0
    %2476 = vmatpush1.bf16.msra.mxu0 0
    %2477 = vmatprep.subr.bf16.mxu0 0
    %2478 = vmatpush1.bf16.msra.mxu0 0
    %2479 = vmatprep.subr.bf16.mxu0 0
    %2480 = vmatpush1.bf16.msra.mxu0 0
    %2481 = vmatprep.subr.bf16.mxu0 0
    %2482 = vmatpush1.bf16.msra.mxu0 0
    %2483 = vmatprep.subr.bf16.mxu0 0
    %2484 = vmatpush1.bf16.msra.mxu0 0
    %2485 = vmatprep.subr.bf16.mxu0 0
    %2486 = vmatpush1.bf16.msra.mxu0 0
    %2487 = vmatprep.subr.bf16.mxu0 0
    %2488 = vmatpush1.bf16.msra.mxu0 0
    %2489 = vmatprep.subr.bf16.mxu0 0
    %2490 = vmatpush1.bf16.msra.mxu0 0
    %2491 = vmatprep.mubr.bf16.mxu0 0
    %2492 = vmatmul.mubr.bf16.gmra.mrb[0].mxu0 %v2457
    %v2493 = vpop.f32.mrb[0].mxu0
    %v2494 = vadd.f32 0.0, %v2493
    %v2495 = vpop.f32.mrb[0].mxu0
    %v2496 = vpop.f32.mrb[0].mxu0
    %v2497 = vpop.f32.mrb[0].mxu0
    %2498 = vdwg.mxu0
    %2499 = vmatprep.subr.bf16.mxu0 0
    %2500 = vmatpush1.bf16.msra.mxu0 %v342
    %2501 = vmatprep.subr.bf16.mxu0 0
    %2502 = vmatpush1.bf16.msra.mxu0 %v343
    %2503 = vmatprep.subr.bf16.mxu0 0
    %2504 = vmatpush1.bf16.msra.mxu0 %v344
    %2505 = vmatprep.subr.bf16.mxu0 0
    %2506 = vmatpush1.bf16.msra.mxu0 %v345
    %2507 = vmatprep.subr.bf16.mxu0 0
    %2508 = vmatpush1.bf16.msra.mxu0 %v346
    %2509 = vmatprep.subr.bf16.mxu0 0
    %2510 = vmatpush1.bf16.msra.mxu0 %v347
    %2511 = vmatprep.subr.bf16.mxu0 0
    %2512 = vmatpush1.bf16.msra.mxu0 %v348
    %2513 = vmatprep.subr.bf16.mxu0 0
    %2514 = vmatpush1.bf16.msra.mxu0 %v349
    %2515 = vmatprep.subr.bf16.mxu0 0
    %2516 = vmatpush1.bf16.msra.mxu0 0
    %2517 = vmatprep.subr.bf16.mxu0 0
    %2518 = vmatpush1.bf16.msra.mxu0 0
    %2519 = vmatprep.subr.bf16.mxu0 0
    %2520 = vmatpush1.bf16.msra.mxu0 0
    %2521 = vmatprep.subr.bf16.mxu0 0
    %2522 = vmatpush1.bf16.msra.mxu0 0
    %2523 = vmatprep.subr.bf16.mxu0 0
    %2524 = vmatpush1.bf16.msra.mxu0 0
    %2525 = vmatprep.subr.bf16.mxu0 0
    %2526 = vmatpush1.bf16.msra.mxu0 0
    %2527 = vmatprep.subr.bf16.mxu0 0
    %2528 = vmatpush1.bf16.msra.mxu0 0
    %2529 = vmatprep.subr.bf16.mxu0 0
    %2530 = vmatpush1.bf16.msra.mxu0 0
    %2531 = vmatprep.mubr.bf16.mxu0 0
    %2532 = vmatmul.mubr.bf16.gmra.mrb[0].mxu0 %v2458
    %v2533 = vpop.f32.mrb[0].mxu0
    %v2534 = vadd.f32 0.0, %v2533
    %v2535 = vpop.f32.mrb[0].mxu0
    %v2536 = vpop.f32.mrb[0].mxu0
    %v2537 = vpop.f32.mrb[0].mxu0
    %2538 = vdwg.mxu0
    %v2539 = vsub.f32 %v2494, %v2534
    %2540 = vmatprep.subr.bf16.mxu0 0
    %2541 = vmatpush1.bf16.msra.mxu0 %v254
    %2542 = vmatprep.subr.bf16.mxu0 0
    %2543 = vmatpush1.bf16.msra.mxu0 %v255
    %2544 = vmatprep.subr.bf16.mxu0 0
    %2545 = vmatpush1.bf16.msra.mxu0 %v256
    %2546 = vmatprep.subr.bf16.mxu0 0
    %2547 = vmatpush1.bf16.msra.mxu0 %v257
    %2548 = vmatprep.subr.bf16.mxu0 0
    %2549 = vmatpush1.bf16.msra.mxu0 %v258
    %2550 = vmatprep.subr.bf16.mxu0 0
    %2551 = vmatpush1.bf16.msra.mxu0 %v259
    %2552 = vmatprep.subr.bf16.mxu0 0
    %2553 = vmatpush1.bf16.msra.mxu0 %v260
    %2554 = vmatprep.subr.bf16.mxu0 0
    %2555 = vmatpush1.bf16.msra.mxu0 %v261
    %2556 = vmatprep.subr.bf16.mxu0 0
    %2557 = vmatpush1.bf16.msra.mxu0 0
    %2558 = vmatprep.subr.bf16.mxu0 0
    %2559 = vmatpush1.bf16.msra.mxu0 0
    %2560 = vmatprep.subr.bf16.mxu0 0
    %2561 = vmatpush1.bf16.msra.mxu0 0
    %2562 = vmatprep.subr.bf16.mxu0 0
    %2563 = vmatpush1.bf16.msra.mxu0 0
    %2564 = vmatprep.subr.bf16.mxu0 0
    %2565 = vmatpush1.bf16.msra.mxu0 0
    %2566 = vmatprep.subr.bf16.mxu0 0
    %2567 = vmatpush1.bf16.msra.mxu0 0
    %2568 = vmatprep.subr.bf16.mxu0 0
    %2569 = vmatpush1.bf16.msra.mxu0 0
    %2570 = vmatprep.subr.bf16.mxu0 0
    %2571 = vmatpush1.bf16.msra.mxu0 0
    %2572 = vmatprep.mubr.bf16.mxu0 0
    %2573 = vmatmul.mubr.bf16.gmra.mrb[0].mxu0 %v2458
    %v2574 = vpop.f32.mrb[0].mxu0
    %v2575 = vadd.f32 0.0, %v2574
    %v2576 = vpop.f32.mrb[0].mxu0
    %v2577 = vpop.f32.mrb[0].mxu0
    %v2578 = vpop.f32.mrb[0].mxu0
    %2579 = vdwg.mxu0
    %2580 = vmatprep.subr.bf16.mxu0 0
    %2581 = vmatpush1.bf16.msra.mxu0 %v342
    %2582 = vmatprep.subr.bf16.mxu0 0
    %2583 = vmatpush1.bf16.msra.mxu0 %v343
    %2584 = vmatprep.subr.bf16.mxu0 0
    %2585 = vmatpush1.bf16.msra.mxu0 %v344
    %2586 = vmatprep.subr.bf16.mxu0 0
    %2587 = vmatpush1.bf16.msra.mxu0 %v345
    %2588 = vmatprep.subr.bf16.mxu0 0
    %2589 = vmatpush1.bf16.msra.mxu0 %v346
    %2590 = vmatprep.subr.bf16.mxu0 0
    %2591 = vmatpush1.bf16.msra.mxu0 %v347
    %2592 = vmatprep.subr.bf16.mxu0 0
    %2593 = vmatpush1.bf16.msra.mxu0 %v348
    %2594 = vmatprep.subr.bf16.mxu0 0
    %2595 = vmatpush1.bf16.msra.mxu0 %v349
    %2596 = vmatprep.subr.bf16.mxu0 0
    %2597 = vmatpush1.bf16.msra.mxu0 0
    %2598 = vmatprep.subr.bf16.mxu0 0
    %2599 = vmatpush1.bf16.msra.mxu0 0
    %2600 = vmatprep.subr.bf16.mxu0 0
    %2601 = vmatpush1.bf16.msra.mxu0 0
    %2602 = vmatprep.subr.bf16.mxu0 0
    %2603 = vmatpush1.bf16.msra.mxu0 0
    %2604 = vmatprep.subr.bf16.mxu0 0
    %2605 = vmatpush1.bf16.msra.mxu0 0
    %2606 = vmatprep.subr.bf16.mxu0 0
    %2607 = vmatpush1.bf16.msra.mxu0 0
    %2608 = vmatprep.subr.bf16.mxu0 0
    %2609 = vmatpush1.bf16.msra.mxu0 0
    %2610 = vmatprep.subr.bf16.mxu0 0
    %2611 = vmatpush1.bf16.msra.mxu0 0
    %2612 = vmatprep.mubr.bf16.mxu0 0
    %2613 = vmatmul.mubr.bf16.gmra.mrb[0].mxu0 %v2457
    %v2614 = vpop.f32.mrb[0].mxu0
    %v2615 = vadd.f32 %v2575, %v2614
    %v2616 = vpop.f32.mrb[0].mxu0
    %v2617 = vpop.f32.mrb[0].mxu0
    %v2618 = vpop.f32.mrb[0].mxu0
    %2619 = vdwg.mxu0
    %v2620 = vpack.c.bf16 %v2539, %v2539
    %v2621 = vpack.c.bf16 %v2615, %v2615
    %v2623 = vsel %vm546, %v2620, 0
    %2625 = vmatprep.subr.bf16.mxu0 0
    %2626 = vmatpush1.bf16.msra.mxu0 %v2623
    %2627 = vmatprep.subr.bf16.mxu0 0
    %2628 = vmatpush1.bf16.msra.mxu0 0
    %2629 = vmatprep.subr.bf16.mxu0 0
    %2630 = vmatpush1.bf16.msra.mxu0 0
    %2631 = vmatprep.subr.bf16.mxu0 0
    %2632 = vmatpush1.bf16.msra.mxu0 0
    %2633 = vmatprep.subr.bf16.mxu0 0
    %2634 = vmatpush1.bf16.msra.mxu0 0
    %2635 = vmatprep.subr.bf16.mxu0 0
    %2636 = vmatpush1.bf16.msra.mxu0 0
    %2637 = vmatprep.subr.bf16.mxu0 0
    %2638 = vmatpush1.bf16.msra.mxu0 0
    %2639 = vmatprep.subr.bf16.mxu0 0
    %2640 = vmatpush1.bf16.msra.mxu0 0
    %2641 = vmatprep.subr.bf16.mxu0 0
    %2642 = vmatpush1.bf16.msra.mxu0 0
    %2643 = vmatprep.subr.bf16.mxu0 0
    %2644 = vmatpush1.bf16.msra.mxu0 0
    %2645 = vmatprep.subr.bf16.mxu0 0
    %2646 = vmatpush1.bf16.msra.mxu0 0
    %2647 = vmatprep.subr.bf16.mxu0 0
    %2648 = vmatpush1.bf16.msra.mxu0 0
    %2649 = vmatprep.subr.bf16.mxu0 0
    %2650 = vmatpush1.bf16.msra.mxu0 0
    %2651 = vmatprep.subr.bf16.mxu0 0
    %2652 = vmatpush1.bf16.msra.mxu0 0
    %2653 = vmatprep.subr.bf16.mxu0 0
    %2654 = vmatpush1.bf16.msra.mxu0 0
    %2655 = vmatprep.subr.bf16.mxu0 0
    %2656 = vmatpush1.bf16.msra.mxu0 0
    %2657 = vmatprep.mubr.bf16.mxu0 0
    %2658 = vmatmul.mubr.bf16.gmra.mrb[0].mxu0 %v523
    %v2659 = vpop.f32.mrb[0].mxu0
    %v2660 = vadd.f32 0.0, %v2659
    %v2661 = vpop.f32.mrb[0].mxu0
    %v2662 = vpop.f32.mrb[0].mxu0
    %v2663 = vadd.f32 0.0, %v2662
    %v2664 = vpop.f32.mrb[0].mxu0
    %2665 = vmatprep.mubr.bf16.mxu0 0
    %2666 = vmatmul.mubr.bf16.gmra.mrb[0].mxu0 %v526
    %v2667 = vpop.f32.mrb[0].mxu0
    %v2668 = vadd.f32 0.0, %v2667
    %v2669 = vpop.f32.mrb[0].mxu0
    %v2670 = vpop.f32.mrb[0].mxu0
    %v2671 = vadd.f32 0.0, %v2670
    %v2672 = vpop.f32.mrb[0].mxu0
    %2673 = vmatprep.mubr.bf16.mxu0 0
    %2674 = vmatmul.mubr.bf16.gmra.mrb[0].mxu0 %v529
    %v2675 = vpop.f32.mrb[0].mxu0
    %v2676 = vadd.f32 0.0, %v2675
    %v2677 = vpop.f32.mrb[0].mxu0
    %v2678 = vpop.f32.mrb[0].mxu0
    %v2679 = vadd.f32 0.0, %v2678
    %v2680 = vpop.f32.mrb[0].mxu0
    %2681 = vmatprep.mubr.bf16.mxu0 0
    %2682 = vmatmul.mubr.bf16.gmra.mrb[0].mxu0 %v532
    %v2683 = vpop.f32.mrb[0].mxu0
    %v2684 = vadd.f32 0.0, %v2683
    %v2685 = vpop.f32.mrb[0].mxu0
    %v2686 = vpop.f32.mrb[0].mxu0
    %v2687 = vadd.f32 0.0, %v2686
    %v2688 = vpop.f32.mrb[0].mxu0
    %2689 = vmatprep.mubr.bf16.mxu0 0
    %2690 = vmatmul.mubr.bf16.gmra.mrb[0].mxu0 %v535
    %v2691 = vpop.f32.mrb[0].mxu0
    %v2692 = vadd.f32 0.0, %v2691
    %v2693 = vpop.f32.mrb[0].mxu0
    %v2694 = vpop.f32.mrb[0].mxu0
    %v2695 = vadd.f32 0.0, %v2694
    %v2696 = vpop.f32.mrb[0].mxu0
    %2697 = vmatprep.mubr.bf16.mxu0 0
    %2698 = vmatmul.mubr.bf16.gmra.mrb[0].mxu0 %v538
    %v2699 = vpop.f32.mrb[0].mxu0
    %v2700 = vadd.f32 0.0, %v2699
    %v2701 = vpop.f32.mrb[0].mxu0
    %v2702 = vpop.f32.mrb[0].mxu0
    %v2703 = vadd.f32 0.0, %v2702
    %v2704 = vpop.f32.mrb[0].mxu0
    %2705 = vmatprep.mubr.bf16.mxu0 0
    %2706 = vmatmul.mubr.bf16.gmra.mrb[0].mxu0 %v541
    %v2707 = vpop.f32.mrb[0].mxu0
    %v2708 = vadd.f32 0.0, %v2707
    %v2709 = vpop.f32.mrb[0].mxu0
    %v2710 = vpop.f32.mrb[0].mxu0
    %v2711 = vadd.f32 0.0, %v2710
    %v2712 = vpop.f32.mrb[0].mxu0
    %2713 = vmatprep.mubr.bf16.mxu0 0
    %2714 = vmatmul.mubr.bf16.gmra.mrb[0].mxu0 %v544
    %v2715 = vpop.f32.mrb[0].mxu0
    %v2716 = vadd.f32 0.0, %v2715
    %v2717 = vpop.f32.mrb[0].mxu0
    %v2718 = vpop.f32.mrb[0].mxu0
    %v2719 = vadd.f32 0.0, %v2718
    %v2720 = vpop.f32.mrb[0].mxu0
    %2721 = vdwg.mxu0
    %v2723 = vsel %vm546, %v2621, 0
    %2725 = vmatprep.subr.bf16.mxu0 0
    %2726 = vmatpush1.bf16.msra.mxu0 %v2723
    %2727 = vmatprep.subr.bf16.mxu0 0
    %2728 = vmatpush1.bf16.msra.mxu0 0
    %2729 = vmatprep.subr.bf16.mxu0 0
    %2730 = vmatpush1.bf16.msra.mxu0 0
    %2731 = vmatprep.subr.bf16.mxu0 0
    %2732 = vmatpush1.bf16.msra.mxu0 0
    %2733 = vmatprep.subr.bf16.mxu0 0
    %2734 = vmatpush1.bf16.msra.mxu0 0
    %2735 = vmatprep.subr.bf16.mxu0 0
    %2736 = vmatpush1.bf16.msra.mxu0 0
    %2737 = vmatprep.subr.bf16.mxu0 0
    %2738 = vmatpush1.bf16.msra.mxu0 0
    %2739 = vmatprep.subr.bf16.mxu0 0
    %2740 = vmatpush1.bf16.msra.mxu0 0
    %2741 = vmatprep.subr.bf16.mxu0 0
    %2742 = vmatpush1.bf16.msra.mxu0 0
    %2743 = vmatprep.subr.bf16.mxu0 0
    %2744 = vmatpush1.bf16.msra.mxu0 0
    %2745 = vmatprep.subr.bf16.mxu0 0
    %2746 = vmatpush1.bf16.msra.mxu0 0
    %2747 = vmatprep.subr.bf16.mxu0 0
    %2748 = vmatpush1.bf16.msra.mxu0 0
    %2749 = vmatprep.subr.bf16.mxu0 0
    %2750 = vmatpush1.bf16.msra.mxu0 0
    %2751 = vmatprep.subr.bf16.mxu0 0
    %2752 = vmatpush1.bf16.msra.mxu0 0
    %2753 = vmatprep.subr.bf16.mxu0 0
    %2754 = vmatpush1.bf16.msra.mxu0 0
    %2755 = vmatprep.subr.bf16.mxu0 0
    %2756 = vmatpush1.bf16.msra.mxu0 0
    %2757 = vmatprep.mubr.bf16.mxu0 0
    %2758 = vmatmul.mubr.bf16.gmra.mrb[0].mxu0 %v688
    %v2759 = vpop.f32.mrb[0].mxu0
    %v2760 = vadd.f32 0.0, %v2759
    %v2761 = vpop.f32.mrb[0].mxu0
    %v2762 = vpop.f32.mrb[0].mxu0
    %v2763 = vadd.f32 0.0, %v2762
    %v2764 = vpop.f32.mrb[0].mxu0
    %2765 = vmatprep.mubr.bf16.mxu0 0
    %2766 = vmatmul.mubr.bf16.gmra.mrb[0].mxu0 %v691
    %v2767 = vpop.f32.mrb[0].mxu0
    %v2768 = vadd.f32 0.0, %v2767
    %v2769 = vpop.f32.mrb[0].mxu0
    %v2770 = vpop.f32.mrb[0].mxu0
    %v2771 = vadd.f32 0.0, %v2770
    %v2772 = vpop.f32.mrb[0].mxu0
    %2773 = vmatprep.mubr.bf16.mxu0 0
    %2774 = vmatmul.mubr.bf16.gmra.mrb[0].mxu0 %v694
    %v2775 = vpop.f32.mrb[0].mxu0
    %v2776 = vadd.f32 0.0, %v2775
    %v2777 = vpop.f32.mrb[0].mxu0
    %v2778 = vpop.f32.mrb[0].mxu0
    %v2779 = vadd.f32 0.0, %v2778
    %v2780 = vpop.f32.mrb[0].mxu0
    %2781 = vmatprep.mubr.bf16.mxu0 0
    %2782 = vmatmul.mubr.bf16.gmra.mrb[0].mxu0 %v697
    %v2783 = vpop.f32.mrb[0].mxu0
    %v2784 = vadd.f32 0.0, %v2783
    %v2785 = vpop.f32.mrb[0].mxu0
    %v2786 = vpop.f32.mrb[0].mxu0
    %v2787 = vadd.f32 0.0, %v2786
    %v2788 = vpop.f32.mrb[0].mxu0
    %2789 = vmatprep.mubr.bf16.mxu0 0
    %2790 = vmatmul.mubr.bf16.gmra.mrb[0].mxu0 %v700
    %v2791 = vpop.f32.mrb[0].mxu0
    %v2792 = vadd.f32 0.0, %v2791
    %v2793 = vpop.f32.mrb[0].mxu0
    %v2794 = vpop.f32.mrb[0].mxu0
    %v2795 = vadd.f32 0.0, %v2794
    %v2796 = vpop.f32.mrb[0].mxu0
    %2797 = vmatprep.mubr.bf16.mxu0 0
    %2798 = vmatmul.mubr.bf16.gmra.mrb[0].mxu0 %v703
    %v2799 = vpop.f32.mrb[0].mxu0
    %v2800 = vadd.f32 0.0, %v2799
    %v2801 = vpop.f32.mrb[0].mxu0
    %v2802 = vpop.f32.mrb[0].mxu0
    %v2803 = vadd.f32 0.0, %v2802
    %v2804 = vpop.f32.mrb[0].mxu0
    %2805 = vmatprep.mubr.bf16.mxu0 0
    %2806 = vmatmul.mubr.bf16.gmra.mrb[0].mxu0 %v706
    %v2807 = vpop.f32.mrb[0].mxu0
    %v2808 = vadd.f32 0.0, %v2807
    %v2809 = vpop.f32.mrb[0].mxu0
    %v2810 = vpop.f32.mrb[0].mxu0
    %v2811 = vadd.f32 0.0, %v2810
    %v2812 = vpop.f32.mrb[0].mxu0
    %2813 = vmatprep.mubr.bf16.mxu0 0
    %2814 = vmatmul.mubr.bf16.gmra.mrb[0].mxu0 %v709
    %v2815 = vpop.f32.mrb[0].mxu0
    %v2816 = vadd.f32 0.0, %v2815
    %v2817 = vpop.f32.mrb[0].mxu0
    %v2818 = vpop.f32.mrb[0].mxu0
    %v2819 = vadd.f32 0.0, %v2818
    %v2820 = vpop.f32.mrb[0].mxu0
    %2821 = vdwg.mxu0
    %v2822 = vsub.f32 %v2660, %v2760
    %v2823 = vsub.f32 %v2663, %v2763
    %v2824 = vsub.f32 %v2668, %v2768
    %v2825 = vsub.f32 %v2671, %v2771
    %v2826 = vsub.f32 %v2676, %v2776
    %v2827 = vsub.f32 %v2679, %v2779
    %v2828 = vsub.f32 %v2684, %v2784
    %v2829 = vsub.f32 %v2687, %v2787
    %v2830 = vsub.f32 %v2692, %v2792
    %v2831 = vsub.f32 %v2695, %v2795
    %v2832 = vsub.f32 %v2700, %v2800
    %v2833 = vsub.f32 %v2703, %v2803
    %v2834 = vsub.f32 %v2708, %v2808
    %v2835 = vsub.f32 %v2711, %v2811
    %v2836 = vsub.f32 %v2716, %v2816
    %v2837 = vsub.f32 %v2719, %v2819
    %2838 = vmatprep.subr.bf16.mxu0 0
    %2839 = vmatpush1.bf16.msra.mxu0 %v2623
    %2840 = vmatprep.subr.bf16.mxu0 0
    %2841 = vmatpush1.bf16.msra.mxu0 0
    %2842 = vmatprep.subr.bf16.mxu0 0
    %2843 = vmatpush1.bf16.msra.mxu0 0
    %2844 = vmatprep.subr.bf16.mxu0 0
    %2845 = vmatpush1.bf16.msra.mxu0 0
    %2846 = vmatprep.subr.bf16.mxu0 0
    %2847 = vmatpush1.bf16.msra.mxu0 0
    %2848 = vmatprep.subr.bf16.mxu0 0
    %2849 = vmatpush1.bf16.msra.mxu0 0
    %2850 = vmatprep.subr.bf16.mxu0 0
    %2851 = vmatpush1.bf16.msra.mxu0 0
    %2852 = vmatprep.subr.bf16.mxu0 0
    %2853 = vmatpush1.bf16.msra.mxu0 0
    %2854 = vmatprep.subr.bf16.mxu0 0
    %2855 = vmatpush1.bf16.msra.mxu0 0
    %2856 = vmatprep.subr.bf16.mxu0 0
    %2857 = vmatpush1.bf16.msra.mxu0 0
    %2858 = vmatprep.subr.bf16.mxu0 0
    %2859 = vmatpush1.bf16.msra.mxu0 0
    %2860 = vmatprep.subr.bf16.mxu0 0
    %2861 = vmatpush1.bf16.msra.mxu0 0
    %2862 = vmatprep.subr.bf16.mxu0 0
    %2863 = vmatpush1.bf16.msra.mxu0 0
    %2864 = vmatprep.subr.bf16.mxu0 0
    %2865 = vmatpush1.bf16.msra.mxu0 0
    %2866 = vmatprep.subr.bf16.mxu0 0
    %2867 = vmatpush1.bf16.msra.mxu0 0
    %2868 = vmatprep.subr.bf16.mxu0 0
    %2869 = vmatpush1.bf16.msra.mxu0 0
    %2870 = vmatprep.mubr.bf16.mxu0 0
    %2871 = vmatmul.mubr.bf16.gmra.mrb[0].mxu0 %v688
    %v2872 = vpop.f32.mrb[0].mxu0
    %v2873 = vadd.f32 0.0, %v2872
    %v2874 = vpop.f32.mrb[0].mxu0
    %v2875 = vpop.f32.mrb[0].mxu0
    %v2876 = vadd.f32 0.0, %v2875
    %v2877 = vpop.f32.mrb[0].mxu0
    %2878 = vmatprep.mubr.bf16.mxu0 0
    %2879 = vmatmul.mubr.bf16.gmra.mrb[0].mxu0 %v691
    %v2880 = vpop.f32.mrb[0].mxu0
    %v2881 = vadd.f32 0.0, %v2880
    %v2882 = vpop.f32.mrb[0].mxu0
    %v2883 = vpop.f32.mrb[0].mxu0
    %v2884 = vadd.f32 0.0, %v2883
    %v2885 = vpop.f32.mrb[0].mxu0
    %2886 = vmatprep.mubr.bf16.mxu0 0
    %2887 = vmatmul.mubr.bf16.gmra.mrb[0].mxu0 %v694
    %v2888 = vpop.f32.mrb[0].mxu0
    %v2889 = vadd.f32 0.0, %v2888
    %v2890 = vpop.f32.mrb[0].mxu0
    %v2891 = vpop.f32.mrb[0].mxu0
    %v2892 = vadd.f32 0.0, %v2891
    %v2893 = vpop.f32.mrb[0].mxu0
    %2894 = vmatprep.mubr.bf16.mxu0 0
    %2895 = vmatmul.mubr.bf16.gmra.mrb[0].mxu0 %v697
    %v2896 = vpop.f32.mrb[0].mxu0
    %v2897 = vadd.f32 0.0, %v2896
    %v2898 = vpop.f32.mrb[0].mxu0
    %v2899 = vpop.f32.mrb[0].mxu0
    %v2900 = vadd.f32 0.0, %v2899
    %v2901 = vpop.f32.mrb[0].mxu0
    %2902 = vmatprep.mubr.bf16.mxu0 0
    %2903 = vmatmul.mubr.bf16.gmra.mrb[0].mxu0 %v700
    %v2904 = vpop.f32.mrb[0].mxu0
    %v2905 = vadd.f32 0.0, %v2904
    %v2906 = vpop.f32.mrb[0].mxu0
    %v2907 = vpop.f32.mrb[0].mxu0
    %v2908 = vadd.f32 0.0, %v2907
    %v2909 = vpop.f32.mrb[0].mxu0
    %2910 = vmatprep.mubr.bf16.mxu0 0
    %2911 = vmatmul.mubr.bf16.gmra.mrb[0].mxu0 %v703
    %v2912 = vpop.f32.mrb[0].mxu0
    %v2913 = vadd.f32 0.0, %v2912
    %v2914 = vpop.f32.mrb[0].mxu0
    %v2915 = vpop.f32.mrb[0].mxu0
    %v2916 = vadd.f32 0.0, %v2915
    %v2917 = vpop.f32.mrb[0].mxu0
    %2918 = vmatprep.mubr.bf16.mxu0 0
    %2919 = vmatmul.mubr.bf16.gmra.mrb[0].mxu0 %v706
    %v2920 = vpop.f32.mrb[0].mxu0
    %v2921 = vadd.f32 0.0, %v2920
    %v2922 = vpop.f32.mrb[0].mxu0
    %v2923 = vpop.f32.mrb[0].mxu0
    %v2924 = vadd.f32 0.0, %v2923
    %v2925 = vpop.f32.mrb[0].mxu0
    %2926 = vmatprep.mubr.bf16.mxu0 0
    %2927 = vmatmul.mubr.bf16.gmra.mrb[0].mxu0 %v709
    %v2928 = vpop.f32.mrb[0].mxu0
    %v2929 = vadd.f32 0.0, %v2928
    %v2930 = vpop.f32.mrb[0].mxu0
    %v2931 = vpop.f32.mrb[0].mxu0
    %v2932 = vadd.f32 0.0, %v2931
    %v2933 = vpop.f32.mrb[0].mxu0
    %2934 = vdwg.mxu0
    %2935 = vmatprep.subr.bf16.mxu0 0
    %2936 = vmatpush1.bf16.msra.mxu0 %v2723
    %2937 = vmatprep.subr.bf16.mxu0 0
    %2938 = vmatpush1.bf16.msra.mxu0 0
    %2939 = vmatprep.subr.bf16.mxu0 0
    %2940 = vmatpush1.bf16.msra.mxu0 0
    %2941 = vmatprep.subr.bf16.mxu0 0
    %2942 = vmatpush1.bf16.msra.mxu0 0
    %2943 = vmatprep.subr.bf16.mxu0 0
    %2944 = vmatpush1.bf16.msra.mxu0 0
    %2945 = vmatprep.subr.bf16.mxu0 0
    %2946 = vmatpush1.bf16.msra.mxu0 0
    %2947 = vmatprep.subr.bf16.mxu0 0
    %2948 = vmatpush1.bf16.msra.mxu0 0
    %2949 = vmatprep.subr.bf16.mxu0 0
    %2950 = vmatpush1.bf16.msra.mxu0 0
    %2951 = vmatprep.subr.bf16.mxu0 0
    %2952 = vmatpush1.bf16.msra.mxu0 0
    %2953 = vmatprep.subr.bf16.mxu0 0
    %2954 = vmatpush1.bf16.msra.mxu0 0
    %2955 = vmatprep.subr.bf16.mxu0 0
    %2956 = vmatpush1.bf16.msra.mxu0 0
    %2957 = vmatprep.subr.bf16.mxu0 0
    %2958 = vmatpush1.bf16.msra.mxu0 0
    %2959 = vmatprep.subr.bf16.mxu0 0
    %2960 = vmatpush1.bf16.msra.mxu0 0
    %2961 = vmatprep.subr.bf16.mxu0 0
    %2962 = vmatpush1.bf16.msra.mxu0 0
    %2963 = vmatprep.subr.bf16.mxu0 0
    %2964 = vmatpush1.bf16.msra.mxu0 0
    %2965 = vmatprep.subr.bf16.mxu0 0
    %2966 = vmatpush1.bf16.msra.mxu0 0
    %2967 = vmatprep.mubr.bf16.mxu0 0
    %2968 = vmatmul.mubr.bf16.gmra.mrb[0].mxu0 %v523
    %v2969 = vpop.f32.mrb[0].mxu0
    %v2970 = vadd.f32 %v2873, %v2969
    %v2971 = vpop.f32.mrb[0].mxu0
    %v2972 = vpop.f32.mrb[0].mxu0
    %v2973 = vadd.f32 %v2876, %v2972
    %v2974 = vpop.f32.mrb[0].mxu0
    %2975 = vmatprep.mubr.bf16.mxu0 0
    %2976 = vmatmul.mubr.bf16.gmra.mrb[0].mxu0 %v526
    %v2977 = vpop.f32.mrb[0].mxu0
    %v2978 = vadd.f32 %v2881, %v2977
    %v2979 = vpop.f32.mrb[0].mxu0
    %v2980 = vpop.f32.mrb[0].mxu0
    %v2981 = vadd.f32 %v2884, %v2980
    %v2982 = vpop.f32.mrb[0].mxu0
    %2983 = vmatprep.mubr.bf16.mxu0 0
    %2984 = vmatmul.mubr.bf16.gmra.mrb[0].mxu0 %v529
    %v2985 = vpop.f32.mrb[0].mxu0
    %v2986 = vadd.f32 %v2889, %v2985
    %v2987 = vpop.f32.mrb[0].mxu0
    %v2988 = vpop.f32.mrb[0].mxu0
    %v2989 = vadd.f32 %v2892, %v2988
    %v2990 = vpop.f32.mrb[0].mxu0
    %2991 = vmatprep.mubr.bf16.mxu0 0
    %2992 = vmatmul.mubr.bf16.gmra.mrb[0].mxu0 %v532
    %v2993 = vpop.f32.mrb[0].mxu0
    %v2994 = vadd.f32 %v2897, %v2993
    %v2995 = vpop.f32.mrb[0].mxu0
    %v2996 = vpop.f32.mrb[0].mxu0
    %v2997 = vadd.f32 %v2900, %v2996
    %v2998 = vpop.f32.mrb[0].mxu0
    %2999 = vmatprep.mubr.bf16.mxu0 0
    %3000 = vmatmul.mubr.bf16.gmra.mrb[0].mxu0 %v535
    %v3001 = vpop.f32.mrb[0].mxu0
    %v3002 = vadd.f32 %v2905, %v3001
    %v3003 = vpop.f32.mrb[0].mxu0
    %v3004 = vpop.f32.mrb[0].mxu0
    %v3005 = vadd.f32 %v2908, %v3004
    %v3006 = vpop.f32.mrb[0].mxu0
    %3007 = vmatprep.mubr.bf16.mxu0 0
    %3008 = vmatmul.mubr.bf16.gmra.mrb[0].mxu0 %v538
    %v3009 = vpop.f32.mrb[0].mxu0
    %v3010 = vadd.f32 %v2913, %v3009
    %v3011 = vpop.f32.mrb[0].mxu0
    %v3012 = vpop.f32.mrb[0].mxu0
    %v3013 = vadd.f32 %v2916, %v3012
    %v3014 = vpop.f32.mrb[0].mxu0
    %3015 = vmatprep.mubr.bf16.mxu0 0
    %3016 = vmatmul.mubr.bf16.gmra.mrb[0].mxu0 %v541
    %v3017 = vpop.f32.mrb[0].mxu0
    %v3018 = vadd.f32 %v2921, %v3017
    %v3019 = vpop.f32.mrb[0].mxu0
    %v3020 = vpop.f32.mrb[0].mxu0
    %v3021 = vadd.f32 %v2924, %v3020
    %v3022 = vpop.f32.mrb[0].mxu0
    %3023 = vmatprep.mubr.bf16.mxu0 0
    %3024 = vmatmul.mubr.bf16.gmra.mrb[0].mxu0 %v544
    %v3025 = vpop.f32.mrb[0].mxu0
    %v3026 = vadd.f32 %v2929, %v3025
    %v3027 = vpop.f32.mrb[0].mxu0
    %v3028 = vpop.f32.mrb[0].mxu0
    %v3029 = vadd.f32 %v2932, %v3028
    %v3030 = vpop.f32.mrb[0].mxu0
    %3031 = vdwg.mxu0
    %v3032 = vpack.c.bf16 %v2823, %v2822
    %v3033 = vpack.c.bf16 %v2825, %v2824
    %v3034 = vpack.c.bf16 %v2827, %v2826
    %v3035 = vpack.c.bf16 %v2829, %v2828
    %v3036 = vpack.c.bf16 %v2831, %v2830
    %v3037 = vpack.c.bf16 %v2833, %v2832
    %v3038 = vpack.c.bf16 %v2835, %v2834
    %v3039 = vpack.c.bf16 %v2837, %v2836
    %v3040 = vpack.c.bf16 %v2973, %v2970
    %v3041 = vpack.c.bf16 %v2981, %v2978
    %v3042 = vpack.c.bf16 %v2989, %v2986
    %v3043 = vpack.c.bf16 %v2997, %v2994
    %v3044 = vpack.c.bf16 %v3005, %v3002
    %v3045 = vpack.c.bf16 %v3013, %v3010
    %v3046 = vpack.c.bf16 %v3021, %v3018
    %v3047 = vpack.c.bf16 %v3029, %v3026
    %v3049 = vsel %vm521, %v3032, 0
    %v3052 = vsel %vm521, %v3033, 0
    %v3055 = vsel %vm521, %v3034, 0
    %v3058 = vsel %vm521, %v3035, 0
    %v3061 = vsel %vm521, %v3036, 0
    %v3064 = vsel %vm521, %v3037, 0
    %v3067 = vsel %vm521, %v3038, 0
    %v3070 = vsel %vm521, %v3039, 0
    %3072 = vmatprep.subr.bf16.mxu0 0
    %3073 = vmatpush1.bf16.msra.mxu0 %v1062
    %3074 = vmatprep.subr.bf16.mxu0 0
    %3075 = vmatpush1.bf16.msra.mxu0 0
    %3076 = vmatprep.subr.bf16.mxu0 0
    %3077 = vmatpush1.bf16.msra.mxu0 0
    %3078 = vmatprep.subr.bf16.mxu0 0
    %3079 = vmatpush1.bf16.msra.mxu0 0
    %3080 = vmatprep.subr.bf16.mxu0 0
    %3081 = vmatpush1.bf16.msra.mxu0 0
    %3082 = vmatprep.subr.bf16.mxu0 0
    %3083 = vmatpush1.bf16.msra.mxu0 0
    %3084 = vmatprep.subr.bf16.mxu0 0
    %3085 = vmatpush1.bf16.msra.mxu0 0
    %3086 = vmatprep.subr.bf16.mxu0 0
    %3087 = vmatpush1.bf16.msra.mxu0 0
    %3088 = vmatprep.subr.bf16.mxu0 0
    %3089 = vmatpush1.bf16.msra.mxu0 0
    %3090 = vmatprep.subr.bf16.mxu0 0
    %3091 = vmatpush1.bf16.msra.mxu0 0
    %3092 = vmatprep.subr.bf16.mxu0 0
    %3093 = vmatpush1.bf16.msra.mxu0 0
    %3094 = vmatprep.subr.bf16.mxu0 0
    %3095 = vmatpush1.bf16.msra.mxu0 0
    %3096 = vmatprep.subr.bf16.mxu0 0
    %3097 = vmatpush1.bf16.msra.mxu0 0
    %3098 = vmatprep.subr.bf16.mxu0 0
    %3099 = vmatpush1.bf16.msra.mxu0 0
    %3100 = vmatprep.subr.bf16.mxu0 0
    %3101 = vmatpush1.bf16.msra.mxu0 0
    %3102 = vmatprep.subr.bf16.mxu0 0
    %3103 = vmatpush1.bf16.msra.mxu0 0
    %3104 = vmatprep.mubr.bf16.mxu0 0
    %3105 = vmatmul.mubr.bf16.gmra.mrb[0].mxu0 %v3049
    %v3106 = vpop.f32.mrb[0].mxu0
    %v3107 = vadd.f32 0.0, %v3106
    %v3108 = vpop.f32.mrb[0].mxu0
    %v3109 = vpop.f32.mrb[0].mxu0
    %v3110 = vadd.f32 0.0, %v3109
    %v3111 = vpop.f32.mrb[0].mxu0
    %3112 = vmatprep.mubr.bf16.mxu0 0
    %3113 = vmatmul.mubr.bf16.gmra.mrb[0].mxu0 %v3052
    %v3114 = vpop.f32.mrb[0].mxu0
    %v3115 = vadd.f32 0.0, %v3114
    %v3116 = vpop.f32.mrb[0].mxu0
    %v3117 = vpop.f32.mrb[0].mxu0
    %v3118 = vadd.f32 0.0, %v3117
    %v3119 = vpop.f32.mrb[0].mxu0
    %3120 = vmatprep.mubr.bf16.mxu0 0
    %3121 = vmatmul.mubr.bf16.gmra.mrb[0].mxu0 %v3055
    %v3122 = vpop.f32.mrb[0].mxu0
    %v3123 = vadd.f32 0.0, %v3122
    %v3124 = vpop.f32.mrb[0].mxu0
    %v3125 = vpop.f32.mrb[0].mxu0
    %v3126 = vadd.f32 0.0, %v3125
    %v3127 = vpop.f32.mrb[0].mxu0
    %3128 = vmatprep.mubr.bf16.mxu0 0
    %3129 = vmatmul.mubr.bf16.gmra.mrb[0].mxu0 %v3058
    %v3130 = vpop.f32.mrb[0].mxu0
    %v3131 = vadd.f32 0.0, %v3130
    %v3132 = vpop.f32.mrb[0].mxu0
    %v3133 = vpop.f32.mrb[0].mxu0
    %v3134 = vadd.f32 0.0, %v3133
    %v3135 = vpop.f32.mrb[0].mxu0
    %3136 = vmatprep.mubr.bf16.mxu0 0
    %3137 = vmatmul.mubr.bf16.gmra.mrb[0].mxu0 %v3061
    %v3138 = vpop.f32.mrb[0].mxu0
    %v3139 = vadd.f32 0.0, %v3138
    %v3140 = vpop.f32.mrb[0].mxu0
    %v3141 = vpop.f32.mrb[0].mxu0
    %v3142 = vadd.f32 0.0, %v3141
    %v3143 = vpop.f32.mrb[0].mxu0
    %3144 = vmatprep.mubr.bf16.mxu0 0
    %3145 = vmatmul.mubr.bf16.gmra.mrb[0].mxu0 %v3064
    %v3146 = vpop.f32.mrb[0].mxu0
    %v3147 = vadd.f32 0.0, %v3146
    %v3148 = vpop.f32.mrb[0].mxu0
    %v3149 = vpop.f32.mrb[0].mxu0
    %v3150 = vadd.f32 0.0, %v3149
    %v3151 = vpop.f32.mrb[0].mxu0
    %3152 = vmatprep.mubr.bf16.mxu0 0
    %3153 = vmatmul.mubr.bf16.gmra.mrb[0].mxu0 %v3067
    %v3154 = vpop.f32.mrb[0].mxu0
    %v3155 = vadd.f32 0.0, %v3154
    %v3156 = vpop.f32.mrb[0].mxu0
    %v3157 = vpop.f32.mrb[0].mxu0
    %v3158 = vadd.f32 0.0, %v3157
    %v3159 = vpop.f32.mrb[0].mxu0
    %3160 = vmatprep.mubr.bf16.mxu0 0
    %3161 = vmatmul.mubr.bf16.gmra.mrb[0].mxu0 %v3070
    %v3162 = vpop.f32.mrb[0].mxu0
    %v3163 = vadd.f32 0.0, %v3162
    %v3164 = vpop.f32.mrb[0].mxu0
    %v3165 = vpop.f32.mrb[0].mxu0
    %v3166 = vadd.f32 0.0, %v3165
    %v3167 = vpop.f32.mrb[0].mxu0
    %3168 = vdwg.mxu0
    %v3170 = vsel %vm521, %v3040, 0
    %v3173 = vsel %vm521, %v3041, 0
    %v3176 = vsel %vm521, %v3042, 0
    %v3179 = vsel %vm521, %v3043, 0
    %v3182 = vsel %vm521, %v3044, 0
    %v3185 = vsel %vm521, %v3045, 0
    %v3188 = vsel %vm521, %v3046, 0
    %v3191 = vsel %vm521, %v3047, 0
    %3193 = vmatprep.subr.bf16.mxu0 0
    %3194 = vmatpush1.bf16.msra.mxu0 %v1186
    %3195 = vmatprep.subr.bf16.mxu0 0
    %3196 = vmatpush1.bf16.msra.mxu0 0
    %3197 = vmatprep.subr.bf16.mxu0 0
    %3198 = vmatpush1.bf16.msra.mxu0 0
    %3199 = vmatprep.subr.bf16.mxu0 0
    %3200 = vmatpush1.bf16.msra.mxu0 0
    %3201 = vmatprep.subr.bf16.mxu0 0
    %3202 = vmatpush1.bf16.msra.mxu0 0
    %3203 = vmatprep.subr.bf16.mxu0 0
    %3204 = vmatpush1.bf16.msra.mxu0 0
    %3205 = vmatprep.subr.bf16.mxu0 0
    %3206 = vmatpush1.bf16.msra.mxu0 0
    %3207 = vmatprep.subr.bf16.mxu0 0
    %3208 = vmatpush1.bf16.msra.mxu0 0
    %3209 = vmatprep.subr.bf16.mxu0 0
    %3210 = vmatpush1.bf16.msra.mxu0 0
    %3211 = vmatprep.subr.bf16.mxu0 0
    %3212 = vmatpush1.bf16.msra.mxu0 0
    %3213 = vmatprep.subr.bf16.mxu0 0
    %3214 = vmatpush1.bf16.msra.mxu0 0
    %3215 = vmatprep.subr.bf16.mxu0 0
    %3216 = vmatpush1.bf16.msra.mxu0 0
    %3217 = vmatprep.subr.bf16.mxu0 0
    %3218 = vmatpush1.bf16.msra.mxu0 0
    %3219 = vmatprep.subr.bf16.mxu0 0
    %3220 = vmatpush1.bf16.msra.mxu0 0
    %3221 = vmatprep.subr.bf16.mxu0 0
    %3222 = vmatpush1.bf16.msra.mxu0 0
    %3223 = vmatprep.subr.bf16.mxu0 0
    %3224 = vmatpush1.bf16.msra.mxu0 0
    %3225 = vmatprep.mubr.bf16.mxu0 0
    %3226 = vmatmul.mubr.bf16.gmra.mrb[0].mxu0 %v3170
    %v3227 = vpop.f32.mrb[0].mxu0
    %v3228 = vadd.f32 0.0, %v3227
    %v3229 = vpop.f32.mrb[0].mxu0
    %v3230 = vpop.f32.mrb[0].mxu0
    %v3231 = vadd.f32 0.0, %v3230
    %v3232 = vpop.f32.mrb[0].mxu0
    %3233 = vmatprep.mubr.bf16.mxu0 0
    %3234 = vmatmul.mubr.bf16.gmra.mrb[0].mxu0 %v3173
    %v3235 = vpop.f32.mrb[0].mxu0
    %v3236 = vadd.f32 0.0, %v3235
    %v3237 = vpop.f32.mrb[0].mxu0
    %v3238 = vpop.f32.mrb[0].mxu0
    %v3239 = vadd.f32 0.0, %v3238
    %v3240 = vpop.f32.mrb[0].mxu0
    %3241 = vmatprep.mubr.bf16.mxu0 0
    %3242 = vmatmul.mubr.bf16.gmra.mrb[0].mxu0 %v3176
    %v3243 = vpop.f32.mrb[0].mxu0
    %v3244 = vadd.f32 0.0, %v3243
    %v3245 = vpop.f32.mrb[0].mxu0
    %v3246 = vpop.f32.mrb[0].mxu0
    %v3247 = vadd.f32 0.0, %v3246
    %v3248 = vpop.f32.mrb[0].mxu0
    %3249 = vmatprep.mubr.bf16.mxu0 0
    %3250 = vmatmul.mubr.bf16.gmra.mrb[0].mxu0 %v3179
    %v3251 = vpop.f32.mrb[0].mxu0
    %v3252 = vadd.f32 0.0, %v3251
    %v3253 = vpop.f32.mrb[0].mxu0
    %v3254 = vpop.f32.mrb[0].mxu0
    %v3255 = vadd.f32 0.0, %v3254
    %v3256 = vpop.f32.mrb[0].mxu0
    %3257 = vmatprep.mubr.bf16.mxu0 0
    %3258 = vmatmul.mubr.bf16.gmra.mrb[0].mxu0 %v3182
    %v3259 = vpop.f32.mrb[0].mxu0
    %v3260 = vadd.f32 0.0, %v3259
    %v3261 = vpop.f32.mrb[0].mxu0
    %v3262 = vpop.f32.mrb[0].mxu0
    %v3263 = vadd.f32 0.0, %v3262
    %v3264 = vpop.f32.mrb[0].mxu0
    %3265 = vmatprep.mubr.bf16.mxu0 0
    %3266 = vmatmul.mubr.bf16.gmra.mrb[0].mxu0 %v3185
    %v3267 = vpop.f32.mrb[0].mxu0
    %v3268 = vadd.f32 0.0, %v3267
    %v3269 = vpop.f32.mrb[0].mxu0
    %v3270 = vpop.f32.mrb[0].mxu0
    %v3271 = vadd.f32 0.0, %v3270
    %v3272 = vpop.f32.mrb[0].mxu0
    %3273 = vmatprep.mubr.bf16.mxu0 0
    %3274 = vmatmul.mubr.bf16.gmra.mrb[0].mxu0 %v3188
    %v3275 = vpop.f32.mrb[0].mxu0
    %v3276 = vadd.f32 0.0, %v3275
    %v3277 = vpop.f32.mrb[0].mxu0
    %v3278 = vpop.f32.mrb[0].mxu0
    %v3279 = vadd.f32 0.0, %v3278
    %v3280 = vpop.f32.mrb[0].mxu0
    %3281 = vmatprep.mubr.bf16.mxu0 0
    %3282 = vmatmul.mubr.bf16.gmra.mrb[0].mxu0 %v3191
    %v3283 = vpop.f32.mrb[0].mxu0
    %v3284 = vadd.f32 0.0, %v3283
    %v3285 = vpop.f32.mrb[0].mxu0
    %v3286 = vpop.f32.mrb[0].mxu0
    %v3287 = vadd.f32 0.0, %v3286
    %v3288 = vpop.f32.mrb[0].mxu0
    %3289 = vdwg.mxu0
    %v3290 = vsub.f32 %v3107, %v3228
    %v3291 = vsub.f32 %v3110, %v3231
    %v3292 = vsub.f32 %v3115, %v3236
    %v3293 = vsub.f32 %v3118, %v3239
    %v3294 = vsub.f32 %v3123, %v3244
    %v3295 = vsub.f32 %v3126, %v3247
    %v3296 = vsub.f32 %v3131, %v3252
    %v3297 = vsub.f32 %v3134, %v3255
    %v3298 = vsub.f32 %v3139, %v3260
    %v3299 = vsub.f32 %v3142, %v3263
    %v3300 = vsub.f32 %v3147, %v3268
    %v3301 = vsub.f32 %v3150, %v3271
    %v3302 = vsub.f32 %v3155, %v3276
    %v3303 = vsub.f32 %v3158, %v3279
    %v3304 = vsub.f32 %v3163, %v3284
    %v3305 = vsub.f32 %v3166, %v3287
    %v3306 = vmul.f32 %v2353, 255.0
    %v3307 = vmul.f32 %v2354, 255.0
    %v3308 = vmul.f32 %v2355, 255.0
    %v3309 = vmul.f32 %v2356, 255.0
    %v3310 = vmul.f32 %v2357, 255.0
    %v3311 = vmul.f32 %v2358, 255.0
    %v3312 = vmul.f32 %v2359, 255.0
    %v3313 = vmul.f32 %v2360, 255.0
    %v3314 = vmul.f32 %v2361, 255.0
    %v3315 = vmul.f32 %v2362, 255.0
    %v3316 = vmul.f32 %v2363, 255.0
    %v3317 = vmul.f32 %v2364, 255.0
    %v3318 = vmul.f32 %v2365, 255.0
    %v3319 = vmul.f32 %v2366, 255.0
    %v3320 = vmul.f32 %v2367, 255.0
    %v3321 = vmul.f32 %v2368, 255.0
    %v3322 = vsub.f32 %v3306, %v3290
    %v3323 = vsub.f32 %v3307, %v3291
    %v3324 = vsub.f32 %v3308, %v3292
    %v3325 = vsub.f32 %v3309, %v3293
    %v3326 = vsub.f32 %v3310, %v3294
    %v3327 = vsub.f32 %v3311, %v3295
    %v3328 = vsub.f32 %v3312, %v3296
    %v3329 = vsub.f32 %v3313, %v3297
    %v3330 = vsub.f32 %v3314, %v3298
    %v3331 = vsub.f32 %v3315, %v3299
    %v3332 = vsub.f32 %v3316, %v3300
    %v3333 = vsub.f32 %v3317, %v3301
    %v3334 = vsub.f32 %v3318, %v3302
    %v3335 = vsub.f32 %v3319, %v3303
    %v3336 = vsub.f32 %v3320, %v3304
    %v3337 = vsub.f32 %v3321, %v3305
    %s3338 = scalar_lea.vmem [#allocation5], 256
    %3339 = vst [vmem:[%s3338] sm:$0xff] %v3322
    %3340 = vst [vmem:[%s3338 + $0x8] sm:$0xff] %v3323
    %3341 = vst [vmem:[%s3338 + $0x10] sm:$0xff] %v3324
    %3342 = vst [vmem:[%s3338 + $0x18] sm:$0xff] %v3325
    %3343 = vst [vmem:[%s3338 + $0x20] sm:$0xff] %v3326
    %3344 = vst [vmem:[%s3338 + $0x28] sm:$0xff] %v3327
    %3345 = vst [vmem:[%s3338 + $0x30] sm:$0xff] %v3328
    %3346 = vst [vmem:[%s3338 + $0x38] sm:$0xff] %v3329
    %3347 = vst [vmem:[%s3338 + $0x40] sm:$0xff] %v3330
    %3348 = vst [vmem:[%s3338 + $0x48] sm:$0xff] %v3331
    %3349 = vst [vmem:[%s3338 + $0x50] sm:$0xff] %v3332
    %3350 = vst [vmem:[%s3338 + $0x58] sm:$0xff] %v3333
    %3351 = vst [vmem:[%s3338 + $0x60] sm:$0xff] %v3334
    %3352 = vst [vmem:[%s3338 + $0x68] sm:$0xff] %v3335
    %3353 = vst [vmem:[%s3338 + $0x70] sm:$0xff] %v3336
    %3354 = vst [vmem:[%s3338 + $0x78] sm:$0xff] %v3337
    %s3355 = scalar_lea.vmem [#allocation2], 384
    %v3356 = vld [vmem:[%s3355] sm:$0xff]
    %v3357 = vld [vmem:[%s3355 + $0x8] sm:$0xff]
    %v3358 = vld [vmem:[%s3355 + $0x10] sm:$0xff]
    %v3359 = vld [vmem:[%s3355 + $0x18] sm:$0xff]
    %v3360 = vld [vmem:[%s3355 + $0x20] sm:$0xff]
    %v3361 = vld [vmem:[%s3355 + $0x28] sm:$0xff]
    %v3362 = vld [vmem:[%s3355 + $0x30] sm:$0xff]
    %v3363 = vld [vmem:[%s3355 + $0x38] sm:$0xff]
    %v3364 = vld [vmem:[%s3355 + $0x40] sm:$0xff]
    %v3365 = vld [vmem:[%s3355 + $0x48] sm:$0xff]
    %v3366 = vld [vmem:[%s3355 + $0x50] sm:$0xff]
    %v3367 = vld [vmem:[%s3355 + $0x58] sm:$0xff]
    %v3368 = vld [vmem:[%s3355 + $0x60] sm:$0xff]
    %v3369 = vld [vmem:[%s3355 + $0x68] sm:$0xff]
    %v3370 = vld [vmem:[%s3355 + $0x70] sm:$0xff]
    %v3371 = vld [vmem:[%s3355 + $0x78] sm:$0xff]
    %v3372 = vpack.c.bf16 %v3357, %v3356
    %v3373 = vpack.c.bf16 %v3359, %v3358
    %v3374 = vpack.c.bf16 %v3361, %v3360
    %v3375 = vpack.c.bf16 %v3363, %v3362
    %v3376 = vpack.c.bf16 %v3365, %v3364
    %v3377 = vpack.c.bf16 %v3367, %v3366
    %v3378 = vpack.c.bf16 %v3369, %v3368
    %v3379 = vpack.c.bf16 %v3371, %v3370
    %3380 = vmatprep.subr.bf16.mxu0 0
    %3381 = vmatpush1.bf16.msra.mxu0 %v3372
    %3382 = vmatprep.subr.bf16.mxu0 0
    %3383 = vmatpush1.bf16.msra.mxu0 %v3373
    %3384 = vmatprep.subr.bf16.mxu0 0
    %3385 = vmatpush1.bf16.msra.mxu0 %v3374
    %3386 = vmatprep.subr.bf16.mxu0 0
    %3387 = vmatpush1.bf16.msra.mxu0 %v3375
    %3388 = vmatprep.subr.bf16.mxu0 0
    %3389 = vmatpush1.bf16.msra.mxu0 %v3376
    %3390 = vmatprep.subr.bf16.mxu0 0
    %3391 = vmatpush1.bf16.msra.mxu0 %v3377
    %3392 = vmatprep.subr.bf16.mxu0 0
    %3393 = vmatpush1.bf16.msra.mxu0 %v3378
    %3394 = vmatprep.subr.bf16.mxu0 0
    %3395 = vmatpush1.bf16.msra.mxu0 %v3379
    %3396 = vmatprep.subr.bf16.mxu0 0
    %3397 = vmatpush1.bf16.msra.mxu0 0
    %3398 = vmatprep.subr.bf16.mxu0 0
    %3399 = vmatpush1.bf16.msra.mxu0 0
    %3400 = vmatprep.subr.bf16.mxu0 0
    %3401 = vmatpush1.bf16.msra.mxu0 0
    %3402 = vmatprep.subr.bf16.mxu0 0
    %3403 = vmatpush1.bf16.msra.mxu0 0
    %3404 = vmatprep.subr.bf16.mxu0 0
    %3405 = vmatpush1.bf16.msra.mxu0 0
    %3406 = vmatprep.subr.bf16.mxu0 0
    %3407 = vmatpush1.bf16.msra.mxu0 0
    %3408 = vmatprep.subr.bf16.mxu0 0
    %3409 = vmatpush1.bf16.msra.mxu0 0
    %3410 = vmatprep.subr.bf16.mxu0 0
    %3411 = vmatpush1.bf16.msra.mxu0 0
    %3412 = vmatprep.mubr.bf16.mxu0 0
    %3413 = vmatmul.mubr.bf16.gmra.mrb[0].mxu0 %v48
    %v3414 = vpop.f32.mrb[0].mxu0
    %v3415 = vadd.f32 0.0, %v3414
    %v3416 = vpop.f32.mrb[0].mxu0
    %v3417 = vpop.f32.mrb[0].mxu0
    %v3418 = vpop.f32.mrb[0].mxu0
    %3419 = vdwg.mxu0
    %3420 = vmatprep.subr.bf16.mxu0 0
    %3421 = vmatpush1.bf16.msra.mxu0 %v3372
    %3422 = vmatprep.subr.bf16.mxu0 0
    %3423 = vmatpush1.bf16.msra.mxu0 %v3373
    %3424 = vmatprep.subr.bf16.mxu0 0
    %3425 = vmatpush1.bf16.msra.mxu0 %v3374
    %3426 = vmatprep.subr.bf16.mxu0 0
    %3427 = vmatpush1.bf16.msra.mxu0 %v3375
    %3428 = vmatprep.subr.bf16.mxu0 0
    %3429 = vmatpush1.bf16.msra.mxu0 %v3376
    %3430 = vmatprep.subr.bf16.mxu0 0
    %3431 = vmatpush1.bf16.msra.mxu0 %v3377
    %3432 = vmatprep.subr.bf16.mxu0 0
    %3433 = vmatpush1.bf16.msra.mxu0 %v3378
    %3434 = vmatprep.subr.bf16.mxu0 0
    %3435 = vmatpush1.bf16.msra.mxu0 %v3379
    %3436 = vmatprep.subr.bf16.mxu0 0
    %3437 = vmatpush1.bf16.msra.mxu0 0
    %3438 = vmatprep.subr.bf16.mxu0 0
    %3439 = vmatpush1.bf16.msra.mxu0 0
    %3440 = vmatprep.subr.bf16.mxu0 0
    %3441 = vmatpush1.bf16.msra.mxu0 0
    %3442 = vmatprep.subr.bf16.mxu0 0
    %3443 = vmatpush1.bf16.msra.mxu0 0
    %3444 = vmatprep.subr.bf16.mxu0 0
    %3445 = vmatpush1.bf16.msra.mxu0 0
    %3446 = vmatprep.subr.bf16.mxu0 0
    %3447 = vmatpush1.bf16.msra.mxu0 0
    %3448 = vmatprep.subr.bf16.mxu0 0
    %3449 = vmatpush1.bf16.msra.mxu0 0
    %3450 = vmatprep.subr.bf16.mxu0 0
    %3451 = vmatpush1.bf16.msra.mxu0 0
    %3452 = vmatprep.mubr.bf16.mxu0 0
    %3453 = vmatmul.mubr.bf16.gmra.mrb[0].mxu0 %v49
    %v3454 = vpop.f32.mrb[0].mxu0
    %v3455 = vadd.f32 0.0, %v3454
    %v3456 = vpop.f32.mrb[0].mxu0
    %v3457 = vpop.f32.mrb[0].mxu0
    %v3458 = vpop.f32.mrb[0].mxu0
    %3459 = vdwg.mxu0
    %v3460 = vpack.c.bf16 %v3415, %v3415
    %v3461 = vpack.c.bf16 %v3455, %v3455
    %3462 = vmatprep.subr.bf16.mxu0 0
    %3463 = vmatpush1.bf16.msra.mxu0 %v254
    %3464 = vmatprep.subr.bf16.mxu0 0
    %3465 = vmatpush1.bf16.msra.mxu0 %v255
    %3466 = vmatprep.subr.bf16.mxu0 0
    %3467 = vmatpush1.bf16.msra.mxu0 %v256
    %3468 = vmatprep.subr.bf16.mxu0 0
    %3469 = vmatpush1.bf16.msra.mxu0 %v257
    %3470 = vmatprep.subr.bf16.mxu0 0
    %3471 = vmatpush1.bf16.msra.mxu0 %v258
    %3472 = vmatprep.subr.bf16.mxu0 0
    %3473 = vmatpush1.bf16.msra.mxu0 %v259
    %3474 = vmatprep.subr.bf16.mxu0 0
    %3475 = vmatpush1.bf16.msra.mxu0 %v260
    %3476 = vmatprep.subr.bf16.mxu0 0
    %3477 = vmatpush1.bf16.msra.mxu0 %v261
    %3478 = vmatprep.subr.bf16.mxu0 0
    %3479 = vmatpush1.bf16.msra.mxu0 0
    %3480 = vmatprep.subr.bf16.mxu0 0
    %3481 = vmatpush1.bf16.msra.mxu0 0
    %3482 = vmatprep.subr.bf16.mxu0 0
    %3483 = vmatpush1.bf16.msra.mxu0 0
    %3484 = vmatprep.subr.bf16.mxu0 0
    %3485 = vmatpush1.bf16.msra.mxu0 0
    %3486 = vmatprep.subr.bf16.mxu0 0
    %3487 = vmatpush1.bf16.msra.mxu0 0
    %3488 = vmatprep.subr.bf16.mxu0 0
    %3489 = vmatpush1.bf16.msra.mxu0 0
    %3490 = vmatprep.subr.bf16.mxu0 0
    %3491 = vmatpush1.bf16.msra.mxu0 0
    %3492 = vmatprep.subr.bf16.mxu0 0
    %3493 = vmatpush1.bf16.msra.mxu0 0
    %3494 = vmatprep.mubr.bf16.mxu0 0
    %3495 = vmatmul.mubr.bf16.gmra.mrb[0].mxu0 %v3460
    %v3496 = vpop.f32.mrb[0].mxu0
    %v3497 = vadd.f32 0.0, %v3496
    %v3498 = vpop.f32.mrb[0].mxu0
    %v3499 = vpop.f32.mrb[0].mxu0
    %v3500 = vpop.f32.mrb[0].mxu0
    %3501 = vdwg.mxu0
    %3502 = vmatprep.subr.bf16.mxu0 0
    %3503 = vmatpush1.bf16.msra.mxu0 %v342
    %3504 = vmatprep.subr.bf16.mxu0 0
    %3505 = vmatpush1.bf16.msra.mxu0 %v343
    %3506 = vmatprep.subr.bf16.mxu0 0
    %3507 = vmatpush1.bf16.msra.mxu0 %v344
    %3508 = vmatprep.subr.bf16.mxu0 0
    %3509 = vmatpush1.bf16.msra.mxu0 %v345
    %3510 = vmatprep.subr.bf16.mxu0 0
    %3511 = vmatpush1.bf16.msra.mxu0 %v346
    %3512 = vmatprep.subr.bf16.mxu0 0
    %3513 = vmatpush1.bf16.msra.mxu0 %v347
    %3514 = vmatprep.subr.bf16.mxu0 0
    %3515 = vmatpush1.bf16.msra.mxu0 %v348
    %3516 = vmatprep.subr.bf16.mxu0 0
    %3517 = vmatpush1.bf16.msra.mxu0 %v349
    %3518 = vmatprep.subr.bf16.mxu0 0
    %3519 = vmatpush1.bf16.msra.mxu0 0
    %3520 = vmatprep.subr.bf16.mxu0 0
    %3521 = vmatpush1.bf16.msra.mxu0 0
    %3522 = vmatprep.subr.bf16.mxu0 0
    %3523 = vmatpush1.bf16.msra.mxu0 0
    %3524 = vmatprep.subr.bf16.mxu0 0
    %3525 = vmatpush1.bf16.msra.mxu0 0
    %3526 = vmatprep.subr.bf16.mxu0 0
    %3527 = vmatpush1.bf16.msra.mxu0 0
    %3528 = vmatprep.subr.bf16.mxu0 0
    %3529 = vmatpush1.bf16.msra.mxu0 0
    %3530 = vmatprep.subr.bf16.mxu0 0
    %3531 = vmatpush1.bf16.msra.mxu0 0
    %3532 = vmatprep.subr.bf16.mxu0 0
    %3533 = vmatpush1.bf16.msra.mxu0 0
    %3534 = vmatprep.mubr.bf16.mxu0 0
    %3535 = vmatmul.mubr.bf16.gmra.mrb[0].mxu0 %v3461
    %v3536 = vpop.f32.mrb[0].mxu0
    %v3537 = vadd.f32 0.0, %v3536
    %v3538 = vpop.f32.mrb[0].mxu0
    %v3539 = vpop.f32.mrb[0].mxu0
    %v3540 = vpop.f32.mrb[0].mxu0
    %3541 = vdwg.mxu0
    %v3542 = vsub.f32 %v3497, %v3537
    %3543 = vmatprep.subr.bf16.mxu0 0
    %3544 = vmatpush1.bf16.msra.mxu0 %v254
    %3545 = vmatprep.subr.bf16.mxu0 0
    %3546 = vmatpush1.bf16.msra.mxu0 %v255
    %3547 = vmatprep.subr.bf16.mxu0 0
    %3548 = vmatpush1.bf16.msra.mxu0 %v256
    %3549 = vmatprep.subr.bf16.mxu0 0
    %3550 = vmatpush1.bf16.msra.mxu0 %v257
    %3551 = vmatprep.subr.bf16.mxu0 0
    %3552 = vmatpush1.bf16.msra.mxu0 %v258
    %3553 = vmatprep.subr.bf16.mxu0 0
    %3554 = vmatpush1.bf16.msra.mxu0 %v259
    %3555 = vmatprep.subr.bf16.mxu0 0
    %3556 = vmatpush1.bf16.msra.mxu0 %v260
    %3557 = vmatprep.subr.bf16.mxu0 0
    %3558 = vmatpush1.bf16.msra.mxu0 %v261
    %3559 = vmatprep.subr.bf16.mxu0 0
    %3560 = vmatpush1.bf16.msra.mxu0 0
    %3561 = vmatprep.subr.bf16.mxu0 0
    %3562 = vmatpush1.bf16.msra.mxu0 0
    %3563 = vmatprep.subr.bf16.mxu0 0
    %3564 = vmatpush1.bf16.msra.mxu0 0
    %3565 = vmatprep.subr.bf16.mxu0 0
    %3566 = vmatpush1.bf16.msra.mxu0 0
    %3567 = vmatprep.subr.bf16.mxu0 0
    %3568 = vmatpush1.bf16.msra.mxu0 0
    %3569 = vmatprep.subr.bf16.mxu0 0
    %3570 = vmatpush1.bf16.msra.mxu0 0
    %3571 = vmatprep.subr.bf16.mxu0 0
    %3572 = vmatpush1.bf16.msra.mxu0 0
    %3573 = vmatprep.subr.bf16.mxu0 0
    %3574 = vmatpush1.bf16.msra.mxu0 0
    %3575 = vmatprep.mubr.bf16.mxu0 0
    %3576 = vmatmul.mubr.bf16.gmra.mrb[0].mxu0 %v3461
    %v3577 = vpop.f32.mrb[0].mxu0
    %v3578 = vadd.f32 0.0, %v3577
    %v3579 = vpop.f32.mrb[0].mxu0
    %v3580 = vpop.f32.mrb[0].mxu0
    %v3581 = vpop.f32.mrb[0].mxu0
    %3582 = vdwg.mxu0
    %3583 = vmatprep.subr.bf16.mxu0 0
    %3584 = vmatpush1.bf16.msra.mxu0 %v342
    %3585 = vmatprep.subr.bf16.mxu0 0
    %3586 = vmatpush1.bf16.msra.mxu0 %v343
    %3587 = vmatprep.subr.bf16.mxu0 0
    %3588 = vmatpush1.bf16.msra.mxu0 %v344
    %3589 = vmatprep.subr.bf16.mxu0 0
    %3590 = vmatpush1.bf16.msra.mxu0 %v345
    %3591 = vmatprep.subr.bf16.mxu0 0
    %3592 = vmatpush1.bf16.msra.mxu0 %v346
    %3593 = vmatprep.subr.bf16.mxu0 0
    %3594 = vmatpush1.bf16.msra.mxu0 %v347
    %3595 = vmatprep.subr.bf16.mxu0 0
    %3596 = vmatpush1.bf16.msra.mxu0 %v348
    %3597 = vmatprep.subr.bf16.mxu0 0
    %3598 = vmatpush1.bf16.msra.mxu0 %v349
    %3599 = vmatprep.subr.bf16.mxu0 0
    %3600 = vmatpush1.bf16.msra.mxu0 0
    %3601 = vmatprep.subr.bf16.mxu0 0
    %3602 = vmatpush1.bf16.msra.mxu0 0
    %3603 = vmatprep.subr.bf16.mxu0 0
    %3604 = vmatpush1.bf16.msra.mxu0 0
    %3605 = vmatprep.subr.bf16.mxu0 0
    %3606 = vmatpush1.bf16.msra.mxu0 0
    %3607 = vmatprep.subr.bf16.mxu0 0
    %3608 = vmatpush1.bf16.msra.mxu0 0
    %3609 = vmatprep.subr.bf16.mxu0 0
    %3610 = vmatpush1.bf16.msra.mxu0 0
    %3611 = vmatprep.subr.bf16.mxu0 0
    %3612 = vmatpush1.bf16.msra.mxu0 0
    %3613 = vmatprep.subr.bf16.mxu0 0
    %3614 = vmatpush1.bf16.msra.mxu0 0
    %3615 = vmatprep.mubr.bf16.mxu0 0
    %3616 = vmatmul.mubr.bf16.gmra.mrb[0].mxu0 %v3460
    %v3617 = vpop.f32.mrb[0].mxu0
    %v3618 = vadd.f32 %v3578, %v3617
    %v3619 = vpop.f32.mrb[0].mxu0
    %v3620 = vpop.f32.mrb[0].mxu0
    %v3621 = vpop.f32.mrb[0].mxu0
    %3622 = vdwg.mxu0
    %v3623 = vpack.c.bf16 %v3542, %v3542
    %v3624 = vpack.c.bf16 %v3618, %v3618
    %v3626 = vsel %vm546, %v3623, 0
    %3628 = vmatprep.subr.bf16.mxu0 0
    %3629 = vmatpush1.bf16.msra.mxu0 %v3626
    %3630 = vmatprep.subr.bf16.mxu0 0
    %3631 = vmatpush1.bf16.msra.mxu0 0
    %3632 = vmatprep.subr.bf16.mxu0 0
    %3633 = vmatpush1.bf16.msra.mxu0 0
    %3634 = vmatprep.subr.bf16.mxu0 0
    %3635 = vmatpush1.bf16.msra.mxu0 0
    %3636 = vmatprep.subr.bf16.mxu0 0
    %3637 = vmatpush1.bf16.msra.mxu0 0
    %3638 = vmatprep.subr.bf16.mxu0 0
    %3639 = vmatpush1.bf16.msra.mxu0 0
    %3640 = vmatprep.subr.bf16.mxu0 0
    %3641 = vmatpush1.bf16.msra.mxu0 0
    %3642 = vmatprep.subr.bf16.mxu0 0
    %3643 = vmatpush1.bf16.msra.mxu0 0
    %3644 = vmatprep.subr.bf16.mxu0 0
    %3645 = vmatpush1.bf16.msra.mxu0 0
    %3646 = vmatprep.subr.bf16.mxu0 0
    %3647 = vmatpush1.bf16.msra.mxu0 0
    %3648 = vmatprep.subr.bf16.mxu0 0
    %3649 = vmatpush1.bf16.msra.mxu0 0
    %3650 = vmatprep.subr.bf16.mxu0 0
    %3651 = vmatpush1.bf16.msra.mxu0 0
    %3652 = vmatprep.subr.bf16.mxu0 0
    %3653 = vmatpush1.bf16.msra.mxu0 0
    %3654 = vmatprep.subr.bf16.mxu0 0
    %3655 = vmatpush1.bf16.msra.mxu0 0
    %3656 = vmatprep.subr.bf16.mxu0 0
    %3657 = vmatpush1.bf16.msra.mxu0 0
    %3658 = vmatprep.subr.bf16.mxu0 0
    %3659 = vmatpush1.bf16.msra.mxu0 0
    %3660 = vmatprep.mubr.bf16.mxu0 0
    %3661 = vmatmul.mubr.bf16.gmra.mrb[0].mxu0 %v523
    %v3662 = vpop.f32.mrb[0].mxu0
    %v3663 = vadd.f32 0.0, %v3662
    %v3664 = vpop.f32.mrb[0].mxu0
    %v3665 = vpop.f32.mrb[0].mxu0
    %v3666 = vadd.f32 0.0, %v3665
    %v3667 = vpop.f32.mrb[0].mxu0
    %3668 = vmatprep.mubr.bf16.mxu0 0
    %3669 = vmatmul.mubr.bf16.gmra.mrb[0].mxu0 %v526
    %v3670 = vpop.f32.mrb[0].mxu0
    %v3671 = vadd.f32 0.0, %v3670
    %v3672 = vpop.f32.mrb[0].mxu0
    %v3673 = vpop.f32.mrb[0].mxu0
    %v3674 = vadd.f32 0.0, %v3673
    %v3675 = vpop.f32.mrb[0].mxu0
    %3676 = vmatprep.mubr.bf16.mxu0 0
    %3677 = vmatmul.mubr.bf16.gmra.mrb[0].mxu0 %v529
    %v3678 = vpop.f32.mrb[0].mxu0
    %v3679 = vadd.f32 0.0, %v3678
    %v3680 = vpop.f32.mrb[0].mxu0
    %v3681 = vpop.f32.mrb[0].mxu0
    %v3682 = vadd.f32 0.0, %v3681
    %v3683 = vpop.f32.mrb[0].mxu0
    %3684 = vmatprep.mubr.bf16.mxu0 0
    %3685 = vmatmul.mubr.bf16.gmra.mrb[0].mxu0 %v532
    %v3686 = vpop.f32.mrb[0].mxu0
    %v3687 = vadd.f32 0.0, %v3686
    %v3688 = vpop.f32.mrb[0].mxu0
    %v3689 = vpop.f32.mrb[0].mxu0
    %v3690 = vadd.f32 0.0, %v3689
    %v3691 = vpop.f32.mrb[0].mxu0
    %3692 = vmatprep.mubr.bf16.mxu0 0
    %3693 = vmatmul.mubr.bf16.gmra.mrb[0].mxu0 %v535
    %v3694 = vpop.f32.mrb[0].mxu0
    %v3695 = vadd.f32 0.0, %v3694
    %v3696 = vpop.f32.mrb[0].mxu0
    %v3697 = vpop.f32.mrb[0].mxu0
    %v3698 = vadd.f32 0.0, %v3697
    %v3699 = vpop.f32.mrb[0].mxu0
    %3700 = vmatprep.mubr.bf16.mxu0 0
    %3701 = vmatmul.mubr.bf16.gmra.mrb[0].mxu0 %v538
    %v3702 = vpop.f32.mrb[0].mxu0
    %v3703 = vadd.f32 0.0, %v3702
    %v3704 = vpop.f32.mrb[0].mxu0
    %v3705 = vpop.f32.mrb[0].mxu0
    %v3706 = vadd.f32 0.0, %v3705
    %v3707 = vpop.f32.mrb[0].mxu0
    %3708 = vmatprep.mubr.bf16.mxu0 0
    %3709 = vmatmul.mubr.bf16.gmra.mrb[0].mxu0 %v541
    %v3710 = vpop.f32.mrb[0].mxu0
    %v3711 = vadd.f32 0.0, %v3710
    %v3712 = vpop.f32.mrb[0].mxu0
    %v3713 = vpop.f32.mrb[0].mxu0
    %v3714 = vadd.f32 0.0, %v3713
    %v3715 = vpop.f32.mrb[0].mxu0
    %3716 = vmatprep.mubr.bf16.mxu0 0
    %3717 = vmatmul.mubr.bf16.gmra.mrb[0].mxu0 %v544
    %v3718 = vpop.f32.mrb[0].mxu0
    %v3719 = vadd.f32 0.0, %v3718
    %v3720 = vpop.f32.mrb[0].mxu0
    %v3721 = vpop.f32.mrb[0].mxu0
    %v3722 = vadd.f32 0.0, %v3721
    %v3723 = vpop.f32.mrb[0].mxu0
    %3724 = vdwg.mxu0
    %v3726 = vsel %vm546, %v3624, 0
    %3728 = vmatprep.subr.bf16.mxu0 0
    %3729 = vmatpush1.bf16.msra.mxu0 %v3726
    %3730 = vmatprep.subr.bf16.mxu0 0
    %3731 = vmatpush1.bf16.msra.mxu0 0
    %3732 = vmatprep.subr.bf16.mxu0 0
    %3733 = vmatpush1.bf16.msra.mxu0 0
    %3734 = vmatprep.subr.bf16.mxu0 0
    %3735 = vmatpush1.bf16.msra.mxu0 0
    %3736 = vmatprep.subr.bf16.mxu0 0
    %3737 = vmatpush1.bf16.msra.mxu0 0
    %3738 = vmatprep.subr.bf16.mxu0 0
    %3739 = vmatpush1.bf16.msra.mxu0 0
    %3740 = vmatprep.subr.bf16.mxu0 0
    %3741 = vmatpush1.bf16.msra.mxu0 0
    %3742 = vmatprep.subr.bf16.mxu0 0
    %3743 = vmatpush1.bf16.msra.mxu0 0
    %3744 = vmatprep.subr.bf16.mxu0 0
    %3745 = vmatpush1.bf16.msra.mxu0 0
    %3746 = vmatprep.subr.bf16.mxu0 0
    %3747 = vmatpush1.bf16.msra.mxu0 0
    %3748 = vmatprep.subr.bf16.mxu0 0
    %3749 = vmatpush1.bf16.msra.mxu0 0
    %3750 = vmatprep.subr.bf16.mxu0 0
    %3751 = vmatpush1.bf16.msra.mxu0 0
    %3752 = vmatprep.subr.bf16.mxu0 0
    %3753 = vmatpush1.bf16.msra.mxu0 0
    %3754 = vmatprep.subr.bf16.mxu0 0
    %3755 = vmatpush1.bf16.msra.mxu0 0
    %3756 = vmatprep.subr.bf16.mxu0 0
    %3757 = vmatpush1.bf16.msra.mxu0 0
    %3758 = vmatprep.subr.bf16.mxu0 0
    %3759 = vmatpush1.bf16.msra.mxu0 0
    %3760 = vmatprep.mubr.bf16.mxu0 0
    %3761 = vmatmul.mubr.bf16.gmra.mrb[0].mxu0 %v688
    %v3762 = vpop.f32.mrb[0].mxu0
    %v3763 = vadd.f32 0.0, %v3762
    %v3764 = vpop.f32.mrb[0].mxu0
    %v3765 = vpop.f32.mrb[0].mxu0
    %v3766 = vadd.f32 0.0, %v3765
    %v3767 = vpop.f32.mrb[0].mxu0
    %3768 = vmatprep.mubr.bf16.mxu0 0
    %3769 = vmatmul.mubr.bf16.gmra.mrb[0].mxu0 %v691
    %v3770 = vpop.f32.mrb[0].mxu0
    %v3771 = vadd.f32 0.0, %v3770
    %v3772 = vpop.f32.mrb[0].mxu0
    %v3773 = vpop.f32.mrb[0].mxu0
    %v3774 = vadd.f32 0.0, %v3773
    %v3775 = vpop.f32.mrb[0].mxu0
    %3776 = vmatprep.mubr.bf16.mxu0 0
    %3777 = vmatmul.mubr.bf16.gmra.mrb[0].mxu0 %v694
    %v3778 = vpop.f32.mrb[0].mxu0
    %v3779 = vadd.f32 0.0, %v3778
    %v3780 = vpop.f32.mrb[0].mxu0
    %v3781 = vpop.f32.mrb[0].mxu0
    %v3782 = vadd.f32 0.0, %v3781
    %v3783 = vpop.f32.mrb[0].mxu0
    %3784 = vmatprep.mubr.bf16.mxu0 0
    %3785 = vmatmul.mubr.bf16.gmra.mrb[0].mxu0 %v697
    %v3786 = vpop.f32.mrb[0].mxu0
    %v3787 = vadd.f32 0.0, %v3786
    %v3788 = vpop.f32.mrb[0].mxu0
    %v3789 = vpop.f32.mrb[0].mxu0
    %v3790 = vadd.f32 0.0, %v3789
    %v3791 = vpop.f32.mrb[0].mxu0
    %3792 = vmatprep.mubr.bf16.mxu0 0
    %3793 = vmatmul.mubr.bf16.gmra.mrb[0].mxu0 %v700
    %v3794 = vpop.f32.mrb[0].mxu0
    %v3795 = vadd.f32 0.0, %v3794
    %v3796 = vpop.f32.mrb[0].mxu0
    %v3797 = vpop.f32.mrb[0].mxu0
    %v3798 = vadd.f32 0.0, %v3797
    %v3799 = vpop.f32.mrb[0].mxu0
    %3800 = vmatprep.mubr.bf16.mxu0 0
    %3801 = vmatmul.mubr.bf16.gmra.mrb[0].mxu0 %v703
    %v3802 = vpop.f32.mrb[0].mxu0
    %v3803 = vadd.f32 0.0, %v3802
    %v3804 = vpop.f32.mrb[0].mxu0
    %v3805 = vpop.f32.mrb[0].mxu0
    %v3806 = vadd.f32 0.0, %v3805
    %v3807 = vpop.f32.mrb[0].mxu0
    %3808 = vmatprep.mubr.bf16.mxu0 0
    %3809 = vmatmul.mubr.bf16.gmra.mrb[0].mxu0 %v706
    %v3810 = vpop.f32.mrb[0].mxu0
    %v3811 = vadd.f32 0.0, %v3810
    %v3812 = vpop.f32.mrb[0].mxu0
    %v3813 = vpop.f32.mrb[0].mxu0
    %v3814 = vadd.f32 0.0, %v3813
    %v3815 = vpop.f32.mrb[0].mxu0
    %3816 = vmatprep.mubr.bf16.mxu0 0
    %3817 = vmatmul.mubr.bf16.gmra.mrb[0].mxu0 %v709
    %v3818 = vpop.f32.mrb[0].mxu0
    %v3819 = vadd.f32 0.0, %v3818
    %v3820 = vpop.f32.mrb[0].mxu0
    %v3821 = vpop.f32.mrb[0].mxu0
    %v3822 = vadd.f32 0.0, %v3821
    %v3823 = vpop.f32.mrb[0].mxu0
    %3824 = vdwg.mxu0
    %v3825 = vsub.f32 %v3663, %v3763
    %v3826 = vsub.f32 %v3666, %v3766
    %v3827 = vsub.f32 %v3671, %v3771
    %v3828 = vsub.f32 %v3674, %v3774
    %v3829 = vsub.f32 %v3679, %v3779
    %v3830 = vsub.f32 %v3682, %v3782
    %v3831 = vsub.f32 %v3687, %v3787
    %v3832 = vsub.f32 %v3690, %v3790
    %v3833 = vsub.f32 %v3695, %v3795
    %v3834 = vsub.f32 %v3698, %v3798
    %v3835 = vsub.f32 %v3703, %v3803
    %v3836 = vsub.f32 %v3706, %v3806
    %v3837 = vsub.f32 %v3711, %v3811
    %v3838 = vsub.f32 %v3714, %v3814
    %v3839 = vsub.f32 %v3719, %v3819
    %v3840 = vsub.f32 %v3722, %v3822
    %3841 = vmatprep.subr.bf16.mxu0 0
    %3842 = vmatpush1.bf16.msra.mxu0 %v3626
    %3843 = vmatprep.subr.bf16.mxu0 0
    %3844 = vmatpush1.bf16.msra.mxu0 0
    %3845 = vmatprep.subr.bf16.mxu0 0
    %3846 = vmatpush1.bf16.msra.mxu0 0
    %3847 = vmatprep.subr.bf16.mxu0 0
    %3848 = vmatpush1.bf16.msra.mxu0 0
    %3849 = vmatprep.subr.bf16.mxu0 0
    %3850 = vmatpush1.bf16.msra.mxu0 0
    %3851 = vmatprep.subr.bf16.mxu0 0
    %3852 = vmatpush1.bf16.msra.mxu0 0
    %3853 = vmatprep.subr.bf16.mxu0 0
    %3854 = vmatpush1.bf16.msra.mxu0 0
    %3855 = vmatprep.subr.bf16.mxu0 0
    %3856 = vmatpush1.bf16.msra.mxu0 0
    %3857 = vmatprep.subr.bf16.mxu0 0
    %3858 = vmatpush1.bf16.msra.mxu0 0
    %3859 = vmatprep.subr.bf16.mxu0 0
    %3860 = vmatpush1.bf16.msra.mxu0 0
    %3861 = vmatprep.subr.bf16.mxu0 0
    %3862 = vmatpush1.bf16.msra.mxu0 0
    %3863 = vmatprep.subr.bf16.mxu0 0
    %3864 = vmatpush1.bf16.msra.mxu0 0
    %3865 = vmatprep.subr.bf16.mxu0 0
    %3866 = vmatpush1.bf16.msra.mxu0 0
    %3867 = vmatprep.subr.bf16.mxu0 0
    %3868 = vmatpush1.bf16.msra.mxu0 0
    %3869 = vmatprep.subr.bf16.mxu0 0
    %3870 = vmatpush1.bf16.msra.mxu0 0
    %3871 = vmatprep.subr.bf16.mxu0 0
    %3872 = vmatpush1.bf16.msra.mxu0 0
    %3873 = vmatprep.mubr.bf16.mxu0 0
    %3874 = vmatmul.mubr.bf16.gmra.mrb[0].mxu0 %v688
    %v3875 = vpop.f32.mrb[0].mxu0
    %v3876 = vadd.f32 0.0, %v3875
    %v3877 = vpop.f32.mrb[0].mxu0
    %v3878 = vpop.f32.mrb[0].mxu0
    %v3879 = vadd.f32 0.0, %v3878
    %v3880 = vpop.f32.mrb[0].mxu0
    %3881 = vmatprep.mubr.bf16.mxu0 0
    %3882 = vmatmul.mubr.bf16.gmra.mrb[0].mxu0 %v691
    %v3883 = vpop.f32.mrb[0].mxu0
    %v3884 = vadd.f32 0.0, %v3883
    %v3885 = vpop.f32.mrb[0].mxu0
    %v3886 = vpop.f32.mrb[0].mxu0
    %v3887 = vadd.f32 0.0, %v3886
    %v3888 = vpop.f32.mrb[0].mxu0
    %3889 = vmatprep.mubr.bf16.mxu0 0
    %3890 = vmatmul.mubr.bf16.gmra.mrb[0].mxu0 %v694
    %v3891 = vpop.f32.mrb[0].mxu0
    %v3892 = vadd.f32 0.0, %v3891
    %v3893 = vpop.f32.mrb[0].mxu0
    %v3894 = vpop.f32.mrb[0].mxu0
    %v3895 = vadd.f32 0.0, %v3894
    %v3896 = vpop.f32.mrb[0].mxu0
    %3897 = vmatprep.mubr.bf16.mxu0 0
    %3898 = vmatmul.mubr.bf16.gmra.mrb[0].mxu0 %v697
    %v3899 = vpop.f32.mrb[0].mxu0
    %v3900 = vadd.f32 0.0, %v3899
    %v3901 = vpop.f32.mrb[0].mxu0
    %v3902 = vpop.f32.mrb[0].mxu0
    %v3903 = vadd.f32 0.0, %v3902
    %v3904 = vpop.f32.mrb[0].mxu0
    %3905 = vmatprep.mubr.bf16.mxu0 0
    %3906 = vmatmul.mubr.bf16.gmra.mrb[0].mxu0 %v700
    %v3907 = vpop.f32.mrb[0].mxu0
    %v3908 = vadd.f32 0.0, %v3907
    %v3909 = vpop.f32.mrb[0].mxu0
    %v3910 = vpop.f32.mrb[0].mxu0
    %v3911 = vadd.f32 0.0, %v3910
    %v3912 = vpop.f32.mrb[0].mxu0
    %3913 = vmatprep.mubr.bf16.mxu0 0
    %3914 = vmatmul.mubr.bf16.gmra.mrb[0].mxu0 %v703
    %v3915 = vpop.f32.mrb[0].mxu0
    %v3916 = vadd.f32 0.0, %v3915
    %v3917 = vpop.f32.mrb[0].mxu0
    %v3918 = vpop.f32.mrb[0].mxu0
    %v3919 = vadd.f32 0.0, %v3918
    %v3920 = vpop.f32.mrb[0].mxu0
    %3921 = vmatprep.mubr.bf16.mxu0 0
    %3922 = vmatmul.mubr.bf16.gmra.mrb[0].mxu0 %v706
    %v3923 = vpop.f32.mrb[0].mxu0
    %v3924 = vadd.f32 0.0, %v3923
    %v3925 = vpop.f32.mrb[0].mxu0
    %v3926 = vpop.f32.mrb[0].mxu0
    %v3927 = vadd.f32 0.0, %v3926
    %v3928 = vpop.f32.mrb[0].mxu0
    %3929 = vmatprep.mubr.bf16.mxu0 0
    %3930 = vmatmul.mubr.bf16.gmra.mrb[0].mxu0 %v709
    %v3931 = vpop.f32.mrb[0].mxu0
    %v3932 = vadd.f32 0.0, %v3931
    %v3933 = vpop.f32.mrb[0].mxu0
    %v3934 = vpop.f32.mrb[0].mxu0
    %v3935 = vadd.f32 0.0, %v3934
    %v3936 = vpop.f32.mrb[0].mxu0
    %3937 = vdwg.mxu0
    %3938 = vmatprep.subr.bf16.mxu0 0
    %3939 = vmatpush1.bf16.msra.mxu0 %v3726
    %3940 = vmatprep.subr.bf16.mxu0 0
    %3941 = vmatpush1.bf16.msra.mxu0 0
    %3942 = vmatprep.subr.bf16.mxu0 0
    %3943 = vmatpush1.bf16.msra.mxu0 0
    %3944 = vmatprep.subr.bf16.mxu0 0
    %3945 = vmatpush1.bf16.msra.mxu0 0
    %3946 = vmatprep.subr.bf16.mxu0 0
    %3947 = vmatpush1.bf16.msra.mxu0 0
    %3948 = vmatprep.subr.bf16.mxu0 0
    %3949 = vmatpush1.bf16.msra.mxu0 0
    %3950 = vmatprep.subr.bf16.mxu0 0
    %3951 = vmatpush1.bf16.msra.mxu0 0
    %3952 = vmatprep.subr.bf16.mxu0 0
    %3953 = vmatpush1.bf16.msra.mxu0 0
    %3954 = vmatprep.subr.bf16.mxu0 0
    %3955 = vmatpush1.bf16.msra.mxu0 0
    %3956 = vmatprep.subr.bf16.mxu0 0
    %3957 = vmatpush1.bf16.msra.mxu0 0
    %3958 = vmatprep.subr.bf16.mxu0 0
    %3959 = vmatpush1.bf16.msra.mxu0 0
    %3960 = vmatprep.subr.bf16.mxu0 0
    %3961 = vmatpush1.bf16.msra.mxu0 0
    %3962 = vmatprep.subr.bf16.mxu0 0
    %3963 = vmatpush1.bf16.msra.mxu0 0
    %3964 = vmatprep.subr.bf16.mxu0 0
    %3965 = vmatpush1.bf16.msra.mxu0 0
    %3966 = vmatprep.subr.bf16.mxu0 0
    %3967 = vmatpush1.bf16.msra.mxu0 0
    %3968 = vmatprep.subr.bf16.mxu0 0
    %3969 = vmatpush1.bf16.msra.mxu0 0
    %3970 = vmatprep.mubr.bf16.mxu0 0
    %3971 = vmatmul.mubr.bf16.gmra.mrb[0].mxu0 %v523
    %v3972 = vpop.f32.mrb[0].mxu0
    %v3973 = vadd.f32 %v3876, %v3972
    %v3974 = vpop.f32.mrb[0].mxu0
    %v3975 = vpop.f32.mrb[0].mxu0
    %v3976 = vadd.f32 %v3879, %v3975
    %v3977 = vpop.f32.mrb[0].mxu0
    %3978 = vmatprep.mubr.bf16.mxu0 0
    %3979 = vmatmul.mubr.bf16.gmra.mrb[0].mxu0 %v526
    %v3980 = vpop.f32.mrb[0].mxu0
    %v3981 = vadd.f32 %v3884, %v3980
    %v3982 = vpop.f32.mrb[0].mxu0
    %v3983 = vpop.f32.mrb[0].mxu0
    %v3984 = vadd.f32 %v3887, %v3983
    %v3985 = vpop.f32.mrb[0].mxu0
    %3986 = vmatprep.mubr.bf16.mxu0 0
    %3987 = vmatmul.mubr.bf16.gmra.mrb[0].mxu0 %v529
    %v3988 = vpop.f32.mrb[0].mxu0
    %v3989 = vadd.f32 %v3892, %v3988
    %v3990 = vpop.f32.mrb[0].mxu0
    %v3991 = vpop.f32.mrb[0].mxu0
    %v3992 = vadd.f32 %v3895, %v3991
    %v3993 = vpop.f32.mrb[0].mxu0
    %3994 = vmatprep.mubr.bf16.mxu0 0
    %3995 = vmatmul.mubr.bf16.gmra.mrb[0].mxu0 %v532
    %v3996 = vpop.f32.mrb[0].mxu0
    %v3997 = vadd.f32 %v3900, %v3996
    %v3998 = vpop.f32.mrb[0].mxu0
    %v3999 = vpop.f32.mrb[0].mxu0
    %v4000 = vadd.f32 %v3903, %v3999
    %v4001 = vpop.f32.mrb[0].mxu0
    %4002 = vmatprep.mubr.bf16.mxu0 0
    %4003 = vmatmul.mubr.bf16.gmra.mrb[0].mxu0 %v535
    %v4004 = vpop.f32.mrb[0].mxu0
    %v4005 = vadd.f32 %v3908, %v4004
    %v4006 = vpop.f32.mrb[0].mxu0
    %v4007 = vpop.f32.mrb[0].mxu0
    %v4008 = vadd.f32 %v3911, %v4007
    %v4009 = vpop.f32.mrb[0].mxu0
    %4010 = vmatprep.mubr.bf16.mxu0 0
    %4011 = vmatmul.mubr.bf16.gmra.mrb[0].mxu0 %v538
    %v4012 = vpop.f32.mrb[0].mxu0
    %v4013 = vadd.f32 %v3916, %v4012
    %v4014 = vpop.f32.mrb[0].mxu0
    %v4015 = vpop.f32.mrb[0].mxu0
    %v4016 = vadd.f32 %v3919, %v4015
    %v4017 = vpop.f32.mrb[0].mxu0
    %4018 = vmatprep.mubr.bf16.mxu0 0
    %4019 = vmatmul.mubr.bf16.gmra.mrb[0].mxu0 %v541
    %v4020 = vpop.f32.mrb[0].mxu0
    %v4021 = vadd.f32 %v3924, %v4020
    %v4022 = vpop.f32.mrb[0].mxu0
    %v4023 = vpop.f32.mrb[0].mxu0
    %v4024 = vadd.f32 %v3927, %v4023
    %v4025 = vpop.f32.mrb[0].mxu0
    %4026 = vmatprep.mubr.bf16.mxu0 0
    %4027 = vmatmul.mubr.bf16.gmra.mrb[0].mxu0 %v544
    %v4028 = vpop.f32.mrb[0].mxu0
    %v4029 = vadd.f32 %v3932, %v4028
    %v4030 = vpop.f32.mrb[0].mxu0
    %v4031 = vpop.f32.mrb[0].mxu0
    %v4032 = vadd.f32 %v3935, %v4031
    %v4033 = vpop.f32.mrb[0].mxu0
    %4034 = vdwg.mxu0
    %v4035 = vpack.c.bf16 %v3826, %v3825
    %v4036 = vpack.c.bf16 %v3828, %v3827
    %v4037 = vpack.c.bf16 %v3830, %v3829
    %v4038 = vpack.c.bf16 %v3832, %v3831
    %v4039 = vpack.c.bf16 %v3834, %v3833
    %v4040 = vpack.c.bf16 %v3836, %v3835
    %v4041 = vpack.c.bf16 %v3838, %v3837
    %v4042 = vpack.c.bf16 %v3840, %v3839
    %v4043 = vpack.c.bf16 %v3976, %v3973
    %v4044 = vpack.c.bf16 %v3984, %v3981
    %v4045 = vpack.c.bf16 %v3992, %v3989
    %v4046 = vpack.c.bf16 %v4000, %v3997
    %v4047 = vpack.c.bf16 %v4008, %v4005
    %v4048 = vpack.c.bf16 %v4016, %v4013
    %v4049 = vpack.c.bf16 %v4024, %v4021
    %v4050 = vpack.c.bf16 %v4032, %v4029
    %v4052 = vsel %vm521, %v4035, 0
    %v4055 = vsel %vm521, %v4036, 0
    %v4058 = vsel %vm521, %v4037, 0
    %v4061 = vsel %vm521, %v4038, 0
    %v4064 = vsel %vm521, %v4039, 0
    %v4067 = vsel %vm521, %v4040, 0
    %v4070 = vsel %vm521, %v4041, 0
    %v4073 = vsel %vm521, %v4042, 0
    %4075 = vmatprep.subr.bf16.mxu0 0
    %4076 = vmatpush1.bf16.msra.mxu0 %v1062
    %4077 = vmatprep.subr.bf16.mxu0 0
    %4078 = vmatpush1.bf16.msra.mxu0 0
    %4079 = vmatprep.subr.bf16.mxu0 0
    %4080 = vmatpush1.bf16.msra.mxu0 0
    %4081 = vmatprep.subr.bf16.mxu0 0
    %4082 = vmatpush1.bf16.msra.mxu0 0
    %4083 = vmatprep.subr.bf16.mxu0 0
    %4084 = vmatpush1.bf16.msra.mxu0 0
    %4085 = vmatprep.subr.bf16.mxu0 0
    %4086 = vmatpush1.bf16.msra.mxu0 0
    %4087 = vmatprep.subr.bf16.mxu0 0
    %4088 = vmatpush1.bf16.msra.mxu0 0
    %4089 = vmatprep.subr.bf16.mxu0 0
    %4090 = vmatpush1.bf16.msra.mxu0 0
    %4091 = vmatprep.subr.bf16.mxu0 0
    %4092 = vmatpush1.bf16.msra.mxu0 0
    %4093 = vmatprep.subr.bf16.mxu0 0
    %4094 = vmatpush1.bf16.msra.mxu0 0
    %4095 = vmatprep.subr.bf16.mxu0 0
    %4096 = vmatpush1.bf16.msra.mxu0 0
    %4097 = vmatprep.subr.bf16.mxu0 0
    %4098 = vmatpush1.bf16.msra.mxu0 0
    %4099 = vmatprep.subr.bf16.mxu0 0
    %4100 = vmatpush1.bf16.msra.mxu0 0
    %4101 = vmatprep.subr.bf16.mxu0 0
    %4102 = vmatpush1.bf16.msra.mxu0 0
    %4103 = vmatprep.subr.bf16.mxu0 0
    %4104 = vmatpush1.bf16.msra.mxu0 0
    %4105 = vmatprep.subr.bf16.mxu0 0
    %4106 = vmatpush1.bf16.msra.mxu0 0
    %4107 = vmatprep.mubr.bf16.mxu0 0
    %4108 = vmatmul.mubr.bf16.gmra.mrb[0].mxu0 %v4052
    %v4109 = vpop.f32.mrb[0].mxu0
    %v4110 = vadd.f32 0.0, %v4109
    %v4111 = vpop.f32.mrb[0].mxu0
    %v4112 = vpop.f32.mrb[0].mxu0
    %v4113 = vadd.f32 0.0, %v4112
    %v4114 = vpop.f32.mrb[0].mxu0
    %4115 = vmatprep.mubr.bf16.mxu0 0
    %4116 = vmatmul.mubr.bf16.gmra.mrb[0].mxu0 %v4055
    %v4117 = vpop.f32.mrb[0].mxu0
    %v4118 = vadd.f32 0.0, %v4117
    %v4119 = vpop.f32.mrb[0].mxu0
    %v4120 = vpop.f32.mrb[0].mxu0
    %v4121 = vadd.f32 0.0, %v4120
    %v4122 = vpop.f32.mrb[0].mxu0
    %4123 = vmatprep.mubr.bf16.mxu0 0
    %4124 = vmatmul.mubr.bf16.gmra.mrb[0].mxu0 %v4058
    %v4125 = vpop.f32.mrb[0].mxu0
    %v4126 = vadd.f32 0.0, %v4125
    %v4127 = vpop.f32.mrb[0].mxu0
    %v4128 = vpop.f32.mrb[0].mxu0
    %v4129 = vadd.f32 0.0, %v4128
    %v4130 = vpop.f32.mrb[0].mxu0
    %4131 = vmatprep.mubr.bf16.mxu0 0
    %4132 = vmatmul.mubr.bf16.gmra.mrb[0].mxu0 %v4061
    %v4133 = vpop.f32.mrb[0].mxu0
    %v4134 = vadd.f32 0.0, %v4133
    %v4135 = vpop.f32.mrb[0].mxu0
    %v4136 = vpop.f32.mrb[0].mxu0
    %v4137 = vadd.f32 0.0, %v4136
    %v4138 = vpop.f32.mrb[0].mxu0
    %4139 = vmatprep.mubr.bf16.mxu0 0
    %4140 = vmatmul.mubr.bf16.gmra.mrb[0].mxu0 %v4064
    %v4141 = vpop.f32.mrb[0].mxu0
    %v4142 = vadd.f32 0.0, %v4141
    %v4143 = vpop.f32.mrb[0].mxu0
    %v4144 = vpop.f32.mrb[0].mxu0
    %v4145 = vadd.f32 0.0, %v4144
    %v4146 = vpop.f32.mrb[0].mxu0
    %4147 = vmatprep.mubr.bf16.mxu0 0
    %4148 = vmatmul.mubr.bf16.gmra.mrb[0].mxu0 %v4067
    %v4149 = vpop.f32.mrb[0].mxu0
    %v4150 = vadd.f32 0.0, %v4149
    %v4151 = vpop.f32.mrb[0].mxu0
    %v4152 = vpop.f32.mrb[0].mxu0
    %v4153 = vadd.f32 0.0, %v4152
    %v4154 = vpop.f32.mrb[0].mxu0
    %4155 = vmatprep.mubr.bf16.mxu0 0
    %4156 = vmatmul.mubr.bf16.gmra.mrb[0].mxu0 %v4070
    %v4157 = vpop.f32.mrb[0].mxu0
    %v4158 = vadd.f32 0.0, %v4157
    %v4159 = vpop.f32.mrb[0].mxu0
    %v4160 = vpop.f32.mrb[0].mxu0
    %v4161 = vadd.f32 0.0, %v4160
    %v4162 = vpop.f32.mrb[0].mxu0
    %4163 = vmatprep.mubr.bf16.mxu0 0
    %4164 = vmatmul.mubr.bf16.gmra.mrb[0].mxu0 %v4073
    %v4165 = vpop.f32.mrb[0].mxu0
    %v4166 = vadd.f32 0.0, %v4165
    %v4167 = vpop.f32.mrb[0].mxu0
    %v4168 = vpop.f32.mrb[0].mxu0
    %v4169 = vadd.f32 0.0, %v4168
    %v4170 = vpop.f32.mrb[0].mxu0
    %4171 = vdwg.mxu0
    %v4173 = vsel %vm521, %v4043, 0
    %v4176 = vsel %vm521, %v4044, 0
    %v4179 = vsel %vm521, %v4045, 0
    %v4182 = vsel %vm521, %v4046, 0
    %v4185 = vsel %vm521, %v4047, 0
    %v4188 = vsel %vm521, %v4048, 0
    %v4191 = vsel %vm521, %v4049, 0
    %v4194 = vsel %vm521, %v4050, 0
    %4196 = vmatprep.subr.bf16.mxu0 0
    %4197 = vmatpush1.bf16.msra.mxu0 %v1186
    %4198 = vmatprep.subr.bf16.mxu0 0
    %4199 = vmatpush1.bf16.msra.mxu0 0
    %4200 = vmatprep.subr.bf16.mxu0 0
    %4201 = vmatpush1.bf16.msra.mxu0 0
    %4202 = vmatprep.subr.bf16.mxu0 0
    %4203 = vmatpush1.bf16.msra.mxu0 0
    %4204 = vmatprep.subr.bf16.mxu0 0
    %4205 = vmatpush1.bf16.msra.mxu0 0
    %4206 = vmatprep.subr.bf16.mxu0 0
    %4207 = vmatpush1.bf16.msra.mxu0 0
    %4208 = vmatprep.subr.bf16.mxu0 0
    %4209 = vmatpush1.bf16.msra.mxu0 0
    %4210 = vmatprep.subr.bf16.mxu0 0
    %4211 = vmatpush1.bf16.msra.mxu0 0
    %4212 = vmatprep.subr.bf16.mxu0 0
    %4213 = vmatpush1.bf16.msra.mxu0 0
    %4214 = vmatprep.subr.bf16.mxu0 0
    %4215 = vmatpush1.bf16.msra.mxu0 0
    %4216 = vmatprep.subr.bf16.mxu0 0
    %4217 = vmatpush1.bf16.msra.mxu0 0
    %4218 = vmatprep.subr.bf16.mxu0 0
    %4219 = vmatpush1.bf16.msra.mxu0 0
    %4220 = vmatprep.subr.bf16.mxu0 0
    %4221 = vmatpush1.bf16.msra.mxu0 0
    %4222 = vmatprep.subr.bf16.mxu0 0
    %4223 = vmatpush1.bf16.msra.mxu0 0
    %4224 = vmatprep.subr.bf16.mxu0 0
    %4225 = vmatpush1.bf16.msra.mxu0 0
    %4226 = vmatprep.subr.bf16.mxu0 0
    %4227 = vmatpush1.bf16.msra.mxu0 0
    %4228 = vmatprep.mubr.bf16.mxu0 0
    %4229 = vmatmul.mubr.bf16.gmra.mrb[0].mxu0 %v4173
    %v4230 = vpop.f32.mrb[0].mxu0
    %v4231 = vadd.f32 0.0, %v4230
    %v4232 = vpop.f32.mrb[0].mxu0
    %v4233 = vpop.f32.mrb[0].mxu0
    %v4234 = vadd.f32 0.0, %v4233
    %v4235 = vpop.f32.mrb[0].mxu0
    %4236 = vmatprep.mubr.bf16.mxu0 0
    %4237 = vmatmul.mubr.bf16.gmra.mrb[0].mxu0 %v4176
    %v4238 = vpop.f32.mrb[0].mxu0
    %v4239 = vadd.f32 0.0, %v4238
    %v4240 = vpop.f32.mrb[0].mxu0
    %v4241 = vpop.f32.mrb[0].mxu0
    %v4242 = vadd.f32 0.0, %v4241
    %v4243 = vpop.f32.mrb[0].mxu0
    %4244 = vmatprep.mubr.bf16.mxu0 0
    %4245 = vmatmul.mubr.bf16.gmra.mrb[0].mxu0 %v4179
    %v4246 = vpop.f32.mrb[0].mxu0
    %v4247 = vadd.f32 0.0, %v4246
    %v4248 = vpop.f32.mrb[0].mxu0
    %v4249 = vpop.f32.mrb[0].mxu0
    %v4250 = vadd.f32 0.0, %v4249
    %v4251 = vpop.f32.mrb[0].mxu0
    %4252 = vmatprep.mubr.bf16.mxu0 0
    %4253 = vmatmul.mubr.bf16.gmra.mrb[0].mxu0 %v4182
    %v4254 = vpop.f32.mrb[0].mxu0
    %v4255 = vadd.f32 0.0, %v4254
    %v4256 = vpop.f32.mrb[0].mxu0
    %v4257 = vpop.f32.mrb[0].mxu0
    %v4258 = vadd.f32 0.0, %v4257
    %v4259 = vpop.f32.mrb[0].mxu0
    %4260 = vmatprep.mubr.bf16.mxu0 0
    %4261 = vmatmul.mubr.bf16.gmra.mrb[0].mxu0 %v4185
    %v4262 = vpop.f32.mrb[0].mxu0
    %v4263 = vadd.f32 0.0, %v4262
    %v4264 = vpop.f32.mrb[0].mxu0
    %v4265 = vpop.f32.mrb[0].mxu0
    %v4266 = vadd.f32 0.0, %v4265
    %v4267 = vpop.f32.mrb[0].mxu0
    %4268 = vmatprep.mubr.bf16.mxu0 0
    %4269 = vmatmul.mubr.bf16.gmra.mrb[0].mxu0 %v4188
    %v4270 = vpop.f32.mrb[0].mxu0
    %v4271 = vadd.f32 0.0, %v4270
    %v4272 = vpop.f32.mrb[0].mxu0
    %v4273 = vpop.f32.mrb[0].mxu0
    %v4274 = vadd.f32 0.0, %v4273
    %v4275 = vpop.f32.mrb[0].mxu0
    %4276 = vmatprep.mubr.bf16.mxu0 0
    %4277 = vmatmul.mubr.bf16.gmra.mrb[0].mxu0 %v4191
    %v4278 = vpop.f32.mrb[0].mxu0
    %v4279 = vadd.f32 0.0, %v4278
    %v4280 = vpop.f32.mrb[0].mxu0
    %v4281 = vpop.f32.mrb[0].mxu0
    %v4282 = vadd.f32 0.0, %v4281
    %v4283 = vpop.f32.mrb[0].mxu0
    %4284 = vmatprep.mubr.bf16.mxu0 0
    %4285 = vmatmul.mubr.bf16.gmra.mrb[0].mxu0 %v4194
    %v4286 = vpop.f32.mrb[0].mxu0
    %v4287 = vadd.f32 0.0, %v4286
    %v4288 = vpop.f32.mrb[0].mxu0
    %v4289 = vpop.f32.mrb[0].mxu0
    %v4290 = vadd.f32 0.0, %v4289
    %v4291 = vpop.f32.mrb[0].mxu0
    %4292 = vdwg.mxu0
    %v4293 = vsub.f32 %v4110, %v4231
    %v4294 = vsub.f32 %v4113, %v4234
    %v4295 = vsub.f32 %v4118, %v4239
    %v4296 = vsub.f32 %v4121, %v4242
    %v4297 = vsub.f32 %v4126, %v4247
    %v4298 = vsub.f32 %v4129, %v4250
    %v4299 = vsub.f32 %v4134, %v4255
    %v4300 = vsub.f32 %v4137, %v4258
    %v4301 = vsub.f32 %v4142, %v4263
    %v4302 = vsub.f32 %v4145, %v4266
    %v4303 = vsub.f32 %v4150, %v4271
    %v4304 = vsub.f32 %v4153, %v4274
    %v4305 = vsub.f32 %v4158, %v4279
    %v4306 = vsub.f32 %v4161, %v4282
    %v4307 = vsub.f32 %v4166, %v4287
    %v4308 = vsub.f32 %v4169, %v4290
    %v4309 = vmul.f32 %v3356, 255.0
    %v4310 = vmul.f32 %v3357, 255.0
    %v4311 = vmul.f32 %v3358, 255.0
    %v4312 = vmul.f32 %v3359, 255.0
    %v4313 = vmul.f32 %v3360, 255.0
    %v4314 = vmul.f32 %v3361, 255.0
    %v4315 = vmul.f32 %v3362, 255.0
    %v4316 = vmul.f32 %v3363, 255.0
    %v4317 = vmul.f32 %v3364, 255.0
    %v4318 = vmul.f32 %v3365, 255.0
    %v4319 = vmul.f32 %v3366, 255.0
    %v4320 = vmul.f32 %v3367, 255.0
    %v4321 = vmul.f32 %v3368, 255.0
    %v4322 = vmul.f32 %v3369, 255.0
    %v4323 = vmul.f32 %v3370, 255.0
    %v4324 = vmul.f32 %v3371, 255.0
    %v4325 = vsub.f32 %v4309, %v4293
    %v4326 = vsub.f32 %v4310, %v4294
    %v4327 = vsub.f32 %v4311, %v4295
    %v4328 = vsub.f32 %v4312, %v4296
    %v4329 = vsub.f32 %v4313, %v4297
    %v4330 = vsub.f32 %v4314, %v4298
    %v4331 = vsub.f32 %v4315, %v4299
    %v4332 = vsub.f32 %v4316, %v4300
    %v4333 = vsub.f32 %v4317, %v4301
    %v4334 = vsub.f32 %v4318, %v4302
    %v4335 = vsub.f32 %v4319, %v4303
    %v4336 = vsub.f32 %v4320, %v4304
    %v4337 = vsub.f32 %v4321, %v4305
    %v4338 = vsub.f32 %v4322, %v4306
    %v4339 = vsub.f32 %v4323, %v4307
    %v4340 = vsub.f32 %v4324, %v4308
    %s4341 = scalar_lea.vmem [#allocation5], 384
    %4342 = vst [vmem:[%s4341] sm:$0xff] %v4325
    %4343 = vst [vmem:[%s4341 + $0x8] sm:$0xff] %v4326
    %4344 = vst [vmem:[%s4341 + $0x10] sm:$0xff] %v4327
    %4345 = vst [vmem:[%s4341 + $0x18] sm:$0xff] %v4328
    %4346 = vst [vmem:[%s4341 + $0x20] sm:$0xff] %v4329
    %4347 = vst [vmem:[%s4341 + $0x28] sm:$0xff] %v4330
    %4348 = vst [vmem:[%s4341 + $0x30] sm:$0xff] %v4331
    %4349 = vst [vmem:[%s4341 + $0x38] sm:$0xff] %v4332
    %4350 = vst [vmem:[%s4341 + $0x40] sm:$0xff] %v4333
    %4351 = vst [vmem:[%s4341 + $0x48] sm:$0xff] %v4334
    %4352 = vst [vmem:[%s4341 + $0x50] sm:$0xff] %v4335
    %4353 = vst [vmem:[%s4341 + $0x58] sm:$0xff] %v4336
    %4354 = vst [vmem:[%s4341 + $0x60] sm:$0xff] %v4337
    %4355 = vst [vmem:[%s4341 + $0x68] sm:$0xff] %v4338
    %4356 = vst [vmem:[%s4341 + $0x70] sm:$0xff] %v4339
    %4357 = vst [vmem:[%s4341 + $0x78] sm:$0xff] %v4340
    %s4358 = scalar_lea.vmem [#allocation2], 512
    %v4359 = vld [vmem:[%s4358] sm:$0xff]
    %v4360 = vld [vmem:[%s4358 + $0x8] sm:$0xff]
    %v4361 = vld [vmem:[%s4358 + $0x10] sm:$0xff]
    %v4362 = vld [vmem:[%s4358 + $0x18] sm:$0xff]
    %v4363 = vld [vmem:[%s4358 + $0x20] sm:$0xff]
    %v4364 = vld [vmem:[%s4358 + $0x28] sm:$0xff]
    %v4365 = vld [vmem:[%s4358 + $0x30] sm:$0xff]
    %v4366 = vld [vmem:[%s4358 + $0x38] sm:$0xff]
    %v4367 = vld [vmem:[%s4358 + $0x40] sm:$0xff]
    %v4368 = vld [vmem:[%s4358 + $0x48] sm:$0xff]
    %v4369 = vld [vmem:[%s4358 + $0x50] sm:$0xff]
    %v4370 = vld [vmem:[%s4358 + $0x58] sm:$0xff]
    %v4371 = vld [vmem:[%s4358 + $0x60] sm:$0xff]
    %v4372 = vld [vmem:[%s4358 + $0x68] sm:$0xff]
    %v4373 = vld [vmem:[%s4358 + $0x70] sm:$0xff]
    %v4374 = vld [vmem:[%s4358 + $0x78] sm:$0xff]
    %v4375 = vpack.c.bf16 %v4360, %v4359
    %v4376 = vpack.c.bf16 %v4362, %v4361
    %v4377 = vpack.c.bf16 %v4364, %v4363
    %v4378 = vpack.c.bf16 %v4366, %v4365
    %v4379 = vpack.c.bf16 %v4368, %v4367
    %v4380 = vpack.c.bf16 %v4370, %v4369
    %v4381 = vpack.c.bf16 %v4372, %v4371
    %v4382 = vpack.c.bf16 %v4374, %v4373
    %4383 = vmatprep.subr.bf16.mxu0 0
    %4384 = vmatpush1.bf16.msra.mxu0 %v4375
    %4385 = vmatprep.subr.bf16.mxu0 0
    %4386 = vmatpush1.bf16.msra.mxu0 %v4376
    %4387 = vmatprep.subr.bf16.mxu0 0
    %4388 = vmatpush1.bf16.msra.mxu0 %v4377
    %4389 = vmatprep.subr.bf16.mxu0 0
    %4390 = vmatpush1.bf16.msra.mxu0 %v4378
    %4391 = vmatprep.subr.bf16.mxu0 0
    %4392 = vmatpush1.bf16.msra.mxu0 %v4379
    %4393 = vmatprep.subr.bf16.mxu0 0
    %4394 = vmatpush1.bf16.msra.mxu0 %v4380
    %4395 = vmatprep.subr.bf16.mxu0 0
    %4396 = vmatpush1.bf16.msra.mxu0 %v4381
    %4397 = vmatprep.subr.bf16.mxu0 0
    %4398 = vmatpush1.bf16.msra.mxu0 %v4382
    %4399 = vmatprep.subr.bf16.mxu0 0
    %4400 = vmatpush1.bf16.msra.mxu0 0
    %4401 = vmatprep.subr.bf16.mxu0 0
    %4402 = vmatpush1.bf16.msra.mxu0 0
    %4403 = vmatprep.subr.bf16.mxu0 0
    %4404 = vmatpush1.bf16.msra.mxu0 0
    %4405 = vmatprep.subr.bf16.mxu0 0
    %4406 = vmatpush1.bf16.msra.mxu0 0
    %4407 = vmatprep.subr.bf16.mxu0 0
    %4408 = vmatpush1.bf16.msra.mxu0 0
    %4409 = vmatprep.subr.bf16.mxu0 0
    %4410 = vmatpush1.bf16.msra.mxu0 0
    %4411 = vmatprep.subr.bf16.mxu0 0
    %4412 = vmatpush1.bf16.msra.mxu0 0
    %4413 = vmatprep.subr.bf16.mxu0 0
    %4414 = vmatpush1.bf16.msra.mxu0 0
    %4415 = vmatprep.mubr.bf16.mxu0 0
    %4416 = vmatmul.mubr.bf16.gmra.mrb[0].mxu0 %v48
    %v4417 = vpop.f32.mrb[0].mxu0
    %v4418 = vadd.f32 0.0, %v4417
    %v4419 = vpop.f32.mrb[0].mxu0
    %v4420 = vpop.f32.mrb[0].mxu0
    %v4421 = vpop.f32.mrb[0].mxu0
    %4422 = vdwg.mxu0
    %4423 = vmatprep.subr.bf16.mxu0 0
    %4424 = vmatpush1.bf16.msra.mxu0 %v4375
    %4425 = vmatprep.subr.bf16.mxu0 0
    %4426 = vmatpush1.bf16.msra.mxu0 %v4376
    %4427 = vmatprep.subr.bf16.mxu0 0
    %4428 = vmatpush1.bf16.msra.mxu0 %v4377
    %4429 = vmatprep.subr.bf16.mxu0 0
    %4430 = vmatpush1.bf16.msra.mxu0 %v4378
    %4431 = vmatprep.subr.bf16.mxu0 0
    %4432 = vmatpush1.bf16.msra.mxu0 %v4379
    %4433 = vmatprep.subr.bf16.mxu0 0
    %4434 = vmatpush1.bf16.msra.mxu0 %v4380
    %4435 = vmatprep.subr.bf16.mxu0 0
    %4436 = vmatpush1.bf16.msra.mxu0 %v4381
    %4437 = vmatprep.subr.bf16.mxu0 0
    %4438 = vmatpush1.bf16.msra.mxu0 %v4382
    %4439 = vmatprep.subr.bf16.mxu0 0
    %4440 = vmatpush1.bf16.msra.mxu0 0
    %4441 = vmatprep.subr.bf16.mxu0 0
    %4442 = vmatpush1.bf16.msra.mxu0 0
    %4443 = vmatprep.subr.bf16.mxu0 0
    %4444 = vmatpush1.bf16.msra.mxu0 0
    %4445 = vmatprep.subr.bf16.mxu0 0
    %4446 = vmatpush1.bf16.msra.mxu0 0
    %4447 = vmatprep.subr.bf16.mxu0 0
    %4448 = vmatpush1.bf16.msra.mxu0 0
    %4449 = vmatprep.subr.bf16.mxu0 0
    %4450 = vmatpush1.bf16.msra.mxu0 0
    %4451 = vmatprep.subr.bf16.mxu0 0
    %4452 = vmatpush1.bf16.msra.mxu0 0
    %4453 = vmatprep.subr.bf16.mxu0 0
    %4454 = vmatpush1.bf16.msra.mxu0 0
    %4455 = vmatprep.mubr.bf16.mxu0 0
    %4456 = vmatmul.mubr.bf16.gmra.mrb[0].mxu0 %v49
    %v4457 = vpop.f32.mrb[0].mxu0
    %v4458 = vadd.f32 0.0, %v4457
    %v4459 = vpop.f32.mrb[0].mxu0
    %v4460 = vpop.f32.mrb[0].mxu0
    %v4461 = vpop.f32.mrb[0].mxu0
    %4462 = vdwg.mxu0
    %v4463 = vpack.c.bf16 %v4418, %v4418
    %v4464 = vpack.c.bf16 %v4458, %v4458
    %4465 = vmatprep.subr.bf16.mxu0 0
    %4466 = vmatpush1.bf16.msra.mxu0 %v254
    %4467 = vmatprep.subr.bf16.mxu0 0
    %4468 = vmatpush1.bf16.msra.mxu0 %v255
    %4469 = vmatprep.subr.bf16.mxu0 0
    %4470 = vmatpush1.bf16.msra.mxu0 %v256
    %4471 = vmatprep.subr.bf16.mxu0 0
    %4472 = vmatpush1.bf16.msra.mxu0 %v257
    %4473 = vmatprep.subr.bf16.mxu0 0
    %4474 = vmatpush1.bf16.msra.mxu0 %v258
    %4475 = vmatprep.subr.bf16.mxu0 0
    %4476 = vmatpush1.bf16.msra.mxu0 %v259
    %4477 = vmatprep.subr.bf16.mxu0 0
    %4478 = vmatpush1.bf16.msra.mxu0 %v260
    %4479 = vmatprep.subr.bf16.mxu0 0
    %4480 = vmatpush1.bf16.msra.mxu0 %v261
    %4481 = vmatprep.subr.bf16.mxu0 0
    %4482 = vmatpush1.bf16.msra.mxu0 0
    %4483 = vmatprep.subr.bf16.mxu0 0
    %4484 = vmatpush1.bf16.msra.mxu0 0
    %4485 = vmatprep.subr.bf16.mxu0 0
    %4486 = vmatpush1.bf16.msra.mxu0 0
    %4487 = vmatprep.subr.bf16.mxu0 0
    %4488 = vmatpush1.bf16.msra.mxu0 0
    %4489 = vmatprep.subr.bf16.mxu0 0
    %4490 = vmatpush1.bf16.msra.mxu0 0
    %4491 = vmatprep.subr.bf16.mxu0 0
    %4492 = vmatpush1.bf16.msra.mxu0 0
    %4493 = vmatprep.subr.bf16.mxu0 0
    %4494 = vmatpush1.bf16.msra.mxu0 0
    %4495 = vmatprep.subr.bf16.mxu0 0
    %4496 = vmatpush1.bf16.msra.mxu0 0
    %4497 = vmatprep.mubr.bf16.mxu0 0
    %4498 = vmatmul.mubr.bf16.gmra.mrb[0].mxu0 %v4463
    %v4499 = vpop.f32.mrb[0].mxu0
    %v4500 = vadd.f32 0.0, %v4499
    %v4501 = vpop.f32.mrb[0].mxu0
    %v4502 = vpop.f32.mrb[0].mxu0
    %v4503 = vpop.f32.mrb[0].mxu0
    %4504 = vdwg.mxu0
    %4505 = vmatprep.subr.bf16.mxu0 0
    %4506 = vmatpush1.bf16.msra.mxu0 %v342
    %4507 = vmatprep.subr.bf16.mxu0 0
    %4508 = vmatpush1.bf16.msra.mxu0 %v343
    %4509 = vmatprep.subr.bf16.mxu0 0
    %4510 = vmatpush1.bf16.msra.mxu0 %v344
    %4511 = vmatprep.subr.bf16.mxu0 0
    %4512 = vmatpush1.bf16.msra.mxu0 %v345
    %4513 = vmatprep.subr.bf16.mxu0 0
    %4514 = vmatpush1.bf16.msra.mxu0 %v346
    %4515 = vmatprep.subr.bf16.mxu0 0
    %4516 = vmatpush1.bf16.msra.mxu0 %v347
    %4517 = vmatprep.subr.bf16.mxu0 0
    %4518 = vmatpush1.bf16.msra.mxu0 %v348
    %4519 = vmatprep.subr.bf16.mxu0 0
    %4520 = vmatpush1.bf16.msra.mxu0 %v349
    %4521 = vmatprep.subr.bf16.mxu0 0
    %4522 = vmatpush1.bf16.msra.mxu0 0
    %4523 = vmatprep.subr.bf16.mxu0 0
    %4524 = vmatpush1.bf16.msra.mxu0 0
    %4525 = vmatprep.subr.bf16.mxu0 0
    %4526 = vmatpush1.bf16.msra.mxu0 0
    %4527 = vmatprep.subr.bf16.mxu0 0
    %4528 = vmatpush1.bf16.msra.mxu0 0
    %4529 = vmatprep.subr.bf16.mxu0 0
    %4530 = vmatpush1.bf16.msra.mxu0 0
    %4531 = vmatprep.subr.bf16.mxu0 0
    %4532 = vmatpush1.bf16.msra.mxu0 0
    %4533 = vmatprep.subr.bf16.mxu0 0
    %4534 = vmatpush1.bf16.msra.mxu0 0
    %4535 = vmatprep.subr.bf16.mxu0 0
    %4536 = vmatpush1.bf16.msra.mxu0 0
    %4537 = vmatprep.mubr.bf16.mxu0 0
    %4538 = vmatmul.mubr.bf16.gmra.mrb[0].mxu0 %v4464
    %v4539 = vpop.f32.mrb[0].mxu0
    %v4540 = vadd.f32 0.0, %v4539
    %v4541 = vpop.f32.mrb[0].mxu0
    %v4542 = vpop.f32.mrb[0].mxu0
    %v4543 = vpop.f32.mrb[0].mxu0
    %4544 = vdwg.mxu0
    %v4545 = vsub.f32 %v4500, %v4540
    %4546 = vmatprep.subr.bf16.mxu0 0
    %4547 = vmatpush1.bf16.msra.mxu0 %v254
    %4548 = vmatprep.subr.bf16.mxu0 0
    %4549 = vmatpush1.bf16.msra.mxu0 %v255
    %4550 = vmatprep.subr.bf16.mxu0 0
    %4551 = vmatpush1.bf16.msra.mxu0 %v256
    %4552 = vmatprep.subr.bf16.mxu0 0
    %4553 = vmatpush1.bf16.msra.mxu0 %v257
    %4554 = vmatprep.subr.bf16.mxu0 0
    %4555 = vmatpush1.bf16.msra.mxu0 %v258
    %4556 = vmatprep.subr.bf16.mxu0 0
    %4557 = vmatpush1.bf16.msra.mxu0 %v259
    %4558 = vmatprep.subr.bf16.mxu0 0
    %4559 = vmatpush1.bf16.msra.mxu0 %v260
    %4560 = vmatprep.subr.bf16.mxu0 0
    %4561 = vmatpush1.bf16.msra.mxu0 %v261
    %4562 = vmatprep.subr.bf16.mxu0 0
    %4563 = vmatpush1.bf16.msra.mxu0 0
    %4564 = vmatprep.subr.bf16.mxu0 0
    %4565 = vmatpush1.bf16.msra.mxu0 0
    %4566 = vmatprep.subr.bf16.mxu0 0
    %4567 = vmatpush1.bf16.msra.mxu0 0
    %4568 = vmatprep.subr.bf16.mxu0 0
    %4569 = vmatpush1.bf16.msra.mxu0 0
    %4570 = vmatprep.subr.bf16.mxu0 0
    %4571 = vmatpush1.bf16.msra.mxu0 0
    %4572 = vmatprep.subr.bf16.mxu0 0
    %4573 = vmatpush1.bf16.msra.mxu0 0
    %4574 = vmatprep.subr.bf16.mxu0 0
    %4575 = vmatpush1.bf16.msra.mxu0 0
    %4576 = vmatprep.subr.bf16.mxu0 0
    %4577 = vmatpush1.bf16.msra.mxu0 0
    %4578 = vmatprep.mubr.bf16.mxu0 0
    %4579 = vmatmul.mubr.bf16.gmra.mrb[0].mxu0 %v4464
    %v4580 = vpop.f32.mrb[0].mxu0
    %v4581 = vadd.f32 0.0, %v4580
    %v4582 = vpop.f32.mrb[0].mxu0
    %v4583 = vpop.f32.mrb[0].mxu0
    %v4584 = vpop.f32.mrb[0].mxu0
    %4585 = vdwg.mxu0
    %4586 = vmatprep.subr.bf16.mxu0 0
    %4587 = vmatpush1.bf16.msra.mxu0 %v342
    %4588 = vmatprep.subr.bf16.mxu0 0
    %4589 = vmatpush1.bf16.msra.mxu0 %v343
    %4590 = vmatprep.subr.bf16.mxu0 0
    %4591 = vmatpush1.bf16.msra.mxu0 %v344
    %4592 = vmatprep.subr.bf16.mxu0 0
    %4593 = vmatpush1.bf16.msra.mxu0 %v345
    %4594 = vmatprep.subr.bf16.mxu0 0
    %4595 = vmatpush1.bf16.msra.mxu0 %v346
    %4596 = vmatprep.subr.bf16.mxu0 0
    %4597 = vmatpush1.bf16.msra.mxu0 %v347
    %4598 = vmatprep.subr.bf16.mxu0 0
    %4599 = vmatpush1.bf16.msra.mxu0 %v348
    %4600 = vmatprep.subr.bf16.mxu0 0
    %4601 = vmatpush1.bf16.msra.mxu0 %v349
    %4602 = vmatprep.subr.bf16.mxu0 0
    %4603 = vmatpush1.bf16.msra.mxu0 0
    %4604 = vmatprep.subr.bf16.mxu0 0
    %4605 = vmatpush1.bf16.msra.mxu0 0
    %4606 = vmatprep.subr.bf16.mxu0 0
    %4607 = vmatpush1.bf16.msra.mxu0 0
    %4608 = vmatprep.subr.bf16.mxu0 0
    %4609 = vmatpush1.bf16.msra.mxu0 0
    %4610 = vmatprep.subr.bf16.mxu0 0
    %4611 = vmatpush1.bf16.msra.mxu0 0
    %4612 = vmatprep.subr.bf16.mxu0 0
    %4613 = vmatpush1.bf16.msra.mxu0 0
    %4614 = vmatprep.subr.bf16.mxu0 0
    %4615 = vmatpush1.bf16.msra.mxu0 0
    %4616 = vmatprep.subr.bf16.mxu0 0
    %4617 = vmatpush1.bf16.msra.mxu0 0
    %4618 = vmatprep.mubr.bf16.mxu0 0
    %4619 = vmatmul.mubr.bf16.gmra.mrb[0].mxu0 %v4463
    %v4620 = vpop.f32.mrb[0].mxu0
    %v4621 = vadd.f32 %v4581, %v4620
    %v4622 = vpop.f32.mrb[0].mxu0
    %v4623 = vpop.f32.mrb[0].mxu0
    %v4624 = vpop.f32.mrb[0].mxu0
    %4625 = vdwg.mxu0
    %v4626 = vpack.c.bf16 %v4545, %v4545
    %v4627 = vpack.c.bf16 %v4621, %v4621
    %v4629 = vsel %vm546, %v4626, 0
    %4631 = vmatprep.subr.bf16.mxu0 0
    %4632 = vmatpush1.bf16.msra.mxu0 %v4629
    %4633 = vmatprep.subr.bf16.mxu0 0
    %4634 = vmatpush1.bf16.msra.mxu0 0
    %4635 = vmatprep.subr.bf16.mxu0 0
    %4636 = vmatpush1.bf16.msra.mxu0 0
    %4637 = vmatprep.subr.bf16.mxu0 0
    %4638 = vmatpush1.bf16.msra.mxu0 0
    %4639 = vmatprep.subr.bf16.mxu0 0
    %4640 = vmatpush1.bf16.msra.mxu0 0
    %4641 = vmatprep.subr.bf16.mxu0 0
    %4642 = vmatpush1.bf16.msra.mxu0 0
    %4643 = vmatprep.subr.bf16.mxu0 0
    %4644 = vmatpush1.bf16.msra.mxu0 0
    %4645 = vmatprep.subr.bf16.mxu0 0
    %4646 = vmatpush1.bf16.msra.mxu0 0
    %4647 = vmatprep.subr.bf16.mxu0 0
    %4648 = vmatpush1.bf16.msra.mxu0 0
    %4649 = vmatprep.subr.bf16.mxu0 0
    %4650 = vmatpush1.bf16.msra.mxu0 0
    %4651 = vmatprep.subr.bf16.mxu0 0
    %4652 = vmatpush1.bf16.msra.mxu0 0
    %4653 = vmatprep.subr.bf16.mxu0 0
    %4654 = vmatpush1.bf16.msra.mxu0 0
    %4655 = vmatprep.subr.bf16.mxu0 0
    %4656 = vmatpush1.bf16.msra.mxu0 0
    %4657 = vmatprep.subr.bf16.mxu0 0
    %4658 = vmatpush1.bf16.msra.mxu0 0
    %4659 = vmatprep.subr.bf16.mxu0 0
    %4660 = vmatpush1.bf16.msra.mxu0 0
    %4661 = vmatprep.subr.bf16.mxu0 0
    %4662 = vmatpush1.bf16.msra.mxu0 0
    %4663 = vmatprep.mubr.bf16.mxu0 0
    %4664 = vmatmul.mubr.bf16.gmra.mrb[0].mxu0 %v523
    %v4665 = vpop.f32.mrb[0].mxu0
    %v4666 = vadd.f32 0.0, %v4665
    %v4667 = vpop.f32.mrb[0].mxu0
    %v4668 = vpop.f32.mrb[0].mxu0
    %v4669 = vadd.f32 0.0, %v4668
    %v4670 = vpop.f32.mrb[0].mxu0
    %4671 = vmatprep.mubr.bf16.mxu0 0
    %4672 = vmatmul.mubr.bf16.gmra.mrb[0].mxu0 %v526
    %v4673 = vpop.f32.mrb[0].mxu0
    %v4674 = vadd.f32 0.0, %v4673
    %v4675 = vpop.f32.mrb[0].mxu0
    %v4676 = vpop.f32.mrb[0].mxu0
    %v4677 = vadd.f32 0.0, %v4676
    %v4678 = vpop.f32.mrb[0].mxu0
    %4679 = vmatprep.mubr.bf16.mxu0 0
    %4680 = vmatmul.mubr.bf16.gmra.mrb[0].mxu0 %v529
    %v4681 = vpop.f32.mrb[0].mxu0
    %v4682 = vadd.f32 0.0, %v4681
    %v4683 = vpop.f32.mrb[0].mxu0
    %v4684 = vpop.f32.mrb[0].mxu0
    %v4685 = vadd.f32 0.0, %v4684
    %v4686 = vpop.f32.mrb[0].mxu0
    %4687 = vmatprep.mubr.bf16.mxu0 0
    %4688 = vmatmul.mubr.bf16.gmra.mrb[0].mxu0 %v532
    %v4689 = vpop.f32.mrb[0].mxu0
    %v4690 = vadd.f32 0.0, %v4689
    %v4691 = vpop.f32.mrb[0].mxu0
    %v4692 = vpop.f32.mrb[0].mxu0
    %v4693 = vadd.f32 0.0, %v4692
    %v4694 = vpop.f32.mrb[0].mxu0
    %4695 = vmatprep.mubr.bf16.mxu0 0
    %4696 = vmatmul.mubr.bf16.gmra.mrb[0].mxu0 %v535
    %v4697 = vpop.f32.mrb[0].mxu0
    %v4698 = vadd.f32 0.0, %v4697
    %v4699 = vpop.f32.mrb[0].mxu0
    %v4700 = vpop.f32.mrb[0].mxu0
    %v4701 = vadd.f32 0.0, %v4700
    %v4702 = vpop.f32.mrb[0].mxu0
    %4703 = vmatprep.mubr.bf16.mxu0 0
    %4704 = vmatmul.mubr.bf16.gmra.mrb[0].mxu0 %v538
    %v4705 = vpop.f32.mrb[0].mxu0
    %v4706 = vadd.f32 0.0, %v4705
    %v4707 = vpop.f32.mrb[0].mxu0
    %v4708 = vpop.f32.mrb[0].mxu0
    %v4709 = vadd.f32 0.0, %v4708
    %v4710 = vpop.f32.mrb[0].mxu0
    %4711 = vmatprep.mubr.bf16.mxu0 0
    %4712 = vmatmul.mubr.bf16.gmra.mrb[0].mxu0 %v541
    %v4713 = vpop.f32.mrb[0].mxu0
    %v4714 = vadd.f32 0.0, %v4713
    %v4715 = vpop.f32.mrb[0].mxu0
    %v4716 = vpop.f32.mrb[0].mxu0
    %v4717 = vadd.f32 0.0, %v4716
    %v4718 = vpop.f32.mrb[0].mxu0
    %4719 = vmatprep.mubr.bf16.mxu0 0
    %4720 = vmatmul.mubr.bf16.gmra.mrb[0].mxu0 %v544
    %v4721 = vpop.f32.mrb[0].mxu0
    %v4722 = vadd.f32 0.0, %v4721
    %v4723 = vpop.f32.mrb[0].mxu0
    %v4724 = vpop.f32.mrb[0].mxu0
    %v4725 = vadd.f32 0.0, %v4724
    %v4726 = vpop.f32.mrb[0].mxu0
    %4727 = vdwg.mxu0
    %v4729 = vsel %vm546, %v4627, 0
    %4731 = vmatprep.subr.bf16.mxu0 0
    %4732 = vmatpush1.bf16.msra.mxu0 %v4729
    %4733 = vmatprep.subr.bf16.mxu0 0
    %4734 = vmatpush1.bf16.msra.mxu0 0
    %4735 = vmatprep.subr.bf16.mxu0 0
    %4736 = vmatpush1.bf16.msra.mxu0 0
    %4737 = vmatprep.subr.bf16.mxu0 0
    %4738 = vmatpush1.bf16.msra.mxu0 0
    %4739 = vmatprep.subr.bf16.mxu0 0
    %4740 = vmatpush1.bf16.msra.mxu0 0
    %4741 = vmatprep.subr.bf16.mxu0 0
    %4742 = vmatpush1.bf16.msra.mxu0 0
    %4743 = vmatprep.subr.bf16.mxu0 0
    %4744 = vmatpush1.bf16.msra.mxu0 0
    %4745 = vmatprep.subr.bf16.mxu0 0
    %4746 = vmatpush1.bf16.msra.mxu0 0
    %4747 = vmatprep.subr.bf16.mxu0 0
    %4748 = vmatpush1.bf16.msra.mxu0 0
    %4749 = vmatprep.subr.bf16.mxu0 0
    %4750 = vmatpush1.bf16.msra.mxu0 0
    %4751 = vmatprep.subr.bf16.mxu0 0
    %4752 = vmatpush1.bf16.msra.mxu0 0
    %4753 = vmatprep.subr.bf16.mxu0 0
    %4754 = vmatpush1.bf16.msra.mxu0 0
    %4755 = vmatprep.subr.bf16.mxu0 0
    %4756 = vmatpush1.bf16.msra.mxu0 0
    %4757 = vmatprep.subr.bf16.mxu0 0
    %4758 = vmatpush1.bf16.msra.mxu0 0
    %4759 = vmatprep.subr.bf16.mxu0 0
    %4760 = vmatpush1.bf16.msra.mxu0 0
    %4761 = vmatprep.subr.bf16.mxu0 0
    %4762 = vmatpush1.bf16.msra.mxu0 0
    %4763 = vmatprep.mubr.bf16.mxu0 0
    %4764 = vmatmul.mubr.bf16.gmra.mrb[0].mxu0 %v688
    %v4765 = vpop.f32.mrb[0].mxu0
    %v4766 = vadd.f32 0.0, %v4765
    %v4767 = vpop.f32.mrb[0].mxu0
    %v4768 = vpop.f32.mrb[0].mxu0
    %v4769 = vadd.f32 0.0, %v4768
    %v4770 = vpop.f32.mrb[0].mxu0
    %4771 = vmatprep.mubr.bf16.mxu0 0
    %4772 = vmatmul.mubr.bf16.gmra.mrb[0].mxu0 %v691
    %v4773 = vpop.f32.mrb[0].mxu0
    %v4774 = vadd.f32 0.0, %v4773
    %v4775 = vpop.f32.mrb[0].mxu0
    %v4776 = vpop.f32.mrb[0].mxu0
    %v4777 = vadd.f32 0.0, %v4776
    %v4778 = vpop.f32.mrb[0].mxu0
    %4779 = vmatprep.mubr.bf16.mxu0 0
    %4780 = vmatmul.mubr.bf16.gmra.mrb[0].mxu0 %v694
    %v4781 = vpop.f32.mrb[0].mxu0
    %v4782 = vadd.f32 0.0, %v4781
    %v4783 = vpop.f32.mrb[0].mxu0
    %v4784 = vpop.f32.mrb[0].mxu0
    %v4785 = vadd.f32 0.0, %v4784
    %v4786 = vpop.f32.mrb[0].mxu0
    %4787 = vmatprep.mubr.bf16.mxu0 0
    %4788 = vmatmul.mubr.bf16.gmra.mrb[0].mxu0 %v697
    %v4789 = vpop.f32.mrb[0].mxu0
    %v4790 = vadd.f32 0.0, %v4789
    %v4791 = vpop.f32.mrb[0].mxu0
    %v4792 = vpop.f32.mrb[0].mxu0
    %v4793 = vadd.f32 0.0, %v4792
    %v4794 = vpop.f32.mrb[0].mxu0
    %4795 = vmatprep.mubr.bf16.mxu0 0
    %4796 = vmatmul.mubr.bf16.gmra.mrb[0].mxu0 %v700
    %v4797 = vpop.f32.mrb[0].mxu0
    %v4798 = vadd.f32 0.0, %v4797
    %v4799 = vpop.f32.mrb[0].mxu0
    %v4800 = vpop.f32.mrb[0].mxu0
    %v4801 = vadd.f32 0.0, %v4800
    %v4802 = vpop.f32.mrb[0].mxu0
    %4803 = vmatprep.mubr.bf16.mxu0 0
    %4804 = vmatmul.mubr.bf16.gmra.mrb[0].mxu0 %v703
    %v4805 = vpop.f32.mrb[0].mxu0
    %v4806 = vadd.f32 0.0, %v4805
    %v4807 = vpop.f32.mrb[0].mxu0
    %v4808 = vpop.f32.mrb[0].mxu0
    %v4809 = vadd.f32 0.0, %v4808
    %v4810 = vpop.f32.mrb[0].mxu0
    %4811 = vmatprep.mubr.bf16.mxu0 0
    %4812 = vmatmul.mubr.bf16.gmra.mrb[0].mxu0 %v706
    %v4813 = vpop.f32.mrb[0].mxu0
    %v4814 = vadd.f32 0.0, %v4813
    %v4815 = vpop.f32.mrb[0].mxu0
    %v4816 = vpop.f32.mrb[0].mxu0
    %v4817 = vadd.f32 0.0, %v4816
    %v4818 = vpop.f32.mrb[0].mxu0
    %4819 = vmatprep.mubr.bf16.mxu0 0
    %4820 = vmatmul.mubr.bf16.gmra.mrb[0].mxu0 %v709
    %v4821 = vpop.f32.mrb[0].mxu0
    %v4822 = vadd.f32 0.0, %v4821
    %v4823 = vpop.f32.mrb[0].mxu0
    %v4824 = vpop.f32.mrb[0].mxu0
    %v4825 = vadd.f32 0.0, %v4824
    %v4826 = vpop.f32.mrb[0].mxu0
    %4827 = vdwg.mxu0
    %v4828 = vsub.f32 %v4666, %v4766
    %v4829 = vsub.f32 %v4669, %v4769
    %v4830 = vsub.f32 %v4674, %v4774
    %v4831 = vsub.f32 %v4677, %v4777
    %v4832 = vsub.f32 %v4682, %v4782
    %v4833 = vsub.f32 %v4685, %v4785
    %v4834 = vsub.f32 %v4690, %v4790
    %v4835 = vsub.f32 %v4693, %v4793
    %v4836 = vsub.f32 %v4698, %v4798
    %v4837 = vsub.f32 %v4701, %v4801
    %v4838 = vsub.f32 %v4706, %v4806
    %v4839 = vsub.f32 %v4709, %v4809
    %v4840 = vsub.f32 %v4714, %v4814
    %v4841 = vsub.f32 %v4717, %v4817
    %v4842 = vsub.f32 %v4722, %v4822
    %v4843 = vsub.f32 %v4725, %v4825
    %4844 = vmatprep.subr.bf16.mxu0 0
    %4845 = vmatpush1.bf16.msra.mxu0 %v4629
    %4846 = vmatprep.subr.bf16.mxu0 0
    %4847 = vmatpush1.bf16.msra.mxu0 0
    %4848 = vmatprep.subr.bf16.mxu0 0
    %4849 = vmatpush1.bf16.msra.mxu0 0
    %4850 = vmatprep.subr.bf16.mxu0 0
    %4851 = vmatpush1.bf16.msra.mxu0 0
    %4852 = vmatprep.subr.bf16.mxu0 0
    %4853 = vmatpush1.bf16.msra.mxu0 0
    %4854 = vmatprep.subr.bf16.mxu0 0
    %4855 = vmatpush1.bf16.msra.mxu0 0
    %4856 = vmatprep.subr.bf16.mxu0 0
    %4857 = vmatpush1.bf16.msra.mxu0 0
    %4858 = vmatprep.subr.bf16.mxu0 0
    %4859 = vmatpush1.bf16.msra.mxu0 0
    %4860 = vmatprep.subr.bf16.mxu0 0
    %4861 = vmatpush1.bf16.msra.mxu0 0
    %4862 = vmatprep.subr.bf16.mxu0 0
    %4863 = vmatpush1.bf16.msra.mxu0 0
    %4864 = vmatprep.subr.bf16.mxu0 0
    %4865 = vmatpush1.bf16.msra.mxu0 0
    %4866 = vmatprep.subr.bf16.mxu0 0
    %4867 = vmatpush1.bf16.msra.mxu0 0
    %4868 = vmatprep.subr.bf16.mxu0 0
    %4869 = vmatpush1.bf16.msra.mxu0 0
    %4870 = vmatprep.subr.bf16.mxu0 0
    %4871 = vmatpush1.bf16.msra.mxu0 0
    %4872 = vmatprep.subr.bf16.mxu0 0
    %4873 = vmatpush1.bf16.msra.mxu0 0
    %4874 = vmatprep.subr.bf16.mxu0 0
    %4875 = vmatpush1.bf16.msra.mxu0 0
    %4876 = vmatprep.mubr.bf16.mxu0 0
    %4877 = vmatmul.mubr.bf16.gmra.mrb[0].mxu0 %v688
    %v4878 = vpop.f32.mrb[0].mxu0
    %v4879 = vadd.f32 0.0, %v4878
    %v4880 = vpop.f32.mrb[0].mxu0
    %v4881 = vpop.f32.mrb[0].mxu0
    %v4882 = vadd.f32 0.0, %v4881
    %v4883 = vpop.f32.mrb[0].mxu0
    %4884 = vmatprep.mubr.bf16.mxu0 0
    %4885 = vmatmul.mubr.bf16.gmra.mrb[0].mxu0 %v691
    %v4886 = vpop.f32.mrb[0].mxu0
    %v4887 = vadd.f32 0.0, %v4886
    %v4888 = vpop.f32.mrb[0].mxu0
    %v4889 = vpop.f32.mrb[0].mxu0
    %v4890 = vadd.f32 0.0, %v4889
    %v4891 = vpop.f32.mrb[0].mxu0
    %4892 = vmatprep.mubr.bf16.mxu0 0
    %4893 = vmatmul.mubr.bf16.gmra.mrb[0].mxu0 %v694
    %v4894 = vpop.f32.mrb[0].mxu0
    %v4895 = vadd.f32 0.0, %v4894
    %v4896 = vpop.f32.mrb[0].mxu0
    %v4897 = vpop.f32.mrb[0].mxu0
    %v4898 = vadd.f32 0.0, %v4897
    %v4899 = vpop.f32.mrb[0].mxu0
    %4900 = vmatprep.mubr.bf16.mxu0 0
    %4901 = vmatmul.mubr.bf16.gmra.mrb[0].mxu0 %v697
    %v4902 = vpop.f32.mrb[0].mxu0
    %v4903 = vadd.f32 0.0, %v4902
    %v4904 = vpop.f32.mrb[0].mxu0
    %v4905 = vpop.f32.mrb[0].mxu0
    %v4906 = vadd.f32 0.0, %v4905
    %v4907 = vpop.f32.mrb[0].mxu0
    %4908 = vmatprep.mubr.bf16.mxu0 0
    %4909 = vmatmul.mubr.bf16.gmra.mrb[0].mxu0 %v700
    %v4910 = vpop.f32.mrb[0].mxu0
    %v4911 = vadd.f32 0.0, %v4910
    %v4912 = vpop.f32.mrb[0].mxu0
    %v4913 = vpop.f32.mrb[0].mxu0
    %v4914 = vadd.f32 0.0, %v4913
    %v4915 = vpop.f32.mrb[0].mxu0
    %4916 = vmatprep.mubr.bf16.mxu0 0
    %4917 = vmatmul.mubr.bf16.gmra.mrb[0].mxu0 %v703
    %v4918 = vpop.f32.mrb[0].mxu0
    %v4919 = vadd.f32 0.0, %v4918
    %v4920 = vpop.f32.mrb[0].mxu0
    %v4921 = vpop.f32.mrb[0].mxu0
    %v4922 = vadd.f32 0.0, %v4921
    %v4923 = vpop.f32.mrb[0].mxu0
    %4924 = vmatprep.mubr.bf16.mxu0 0
    %4925 = vmatmul.mubr.bf16.gmra.mrb[0].mxu0 %v706
    %v4926 = vpop.f32.mrb[0].mxu0
    %v4927 = vadd.f32 0.0, %v4926
    %v4928 = vpop.f32.mrb[0].mxu0
    %v4929 = vpop.f32.mrb[0].mxu0
    %v4930 = vadd.f32 0.0, %v4929
    %v4931 = vpop.f32.mrb[0].mxu0
    %4932 = vmatprep.mubr.bf16.mxu0 0
    %4933 = vmatmul.mubr.bf16.gmra.mrb[0].mxu0 %v709
    %v4934 = vpop.f32.mrb[0].mxu0
    %v4935 = vadd.f32 0.0, %v4934
    %v4936 = vpop.f32.mrb[0].mxu0
    %v4937 = vpop.f32.mrb[0].mxu0
    %v4938 = vadd.f32 0.0, %v4937
    %v4939 = vpop.f32.mrb[0].mxu0
    %4940 = vdwg.mxu0
    %4941 = vmatprep.subr.bf16.mxu0 0
    %4942 = vmatpush1.bf16.msra.mxu0 %v4729
    %4943 = vmatprep.subr.bf16.mxu0 0
    %4944 = vmatpush1.bf16.msra.mxu0 0
    %4945 = vmatprep.subr.bf16.mxu0 0
    %4946 = vmatpush1.bf16.msra.mxu0 0
    %4947 = vmatprep.subr.bf16.mxu0 0
    %4948 = vmatpush1.bf16.msra.mxu0 0
    %4949 = vmatprep.subr.bf16.mxu0 0
    %4950 = vmatpush1.bf16.msra.mxu0 0
    %4951 = vmatprep.subr.bf16.mxu0 0
    %4952 = vmatpush1.bf16.msra.mxu0 0
    %4953 = vmatprep.subr.bf16.mxu0 0
    %4954 = vmatpush1.bf16.msra.mxu0 0
    %4955 = vmatprep.subr.bf16.mxu0 0
    %4956 = vmatpush1.bf16.msra.mxu0 0
    %4957 = vmatprep.subr.bf16.mxu0 0
    %4958 = vmatpush1.bf16.msra.mxu0 0
    %4959 = vmatprep.subr.bf16.mxu0 0
    %4960 = vmatpush1.bf16.msra.mxu0 0
    %4961 = vmatprep.subr.bf16.mxu0 0
    %4962 = vmatpush1.bf16.msra.mxu0 0
    %4963 = vmatprep.subr.bf16.mxu0 0
    %4964 = vmatpush1.bf16.msra.mxu0 0
    %4965 = vmatprep.subr.bf16.mxu0 0
    %4966 = vmatpush1.bf16.msra.mxu0 0
    %4967 = vmatprep.subr.bf16.mxu0 0
    %4968 = vmatpush1.bf16.msra.mxu0 0
    %4969 = vmatprep.subr.bf16.mxu0 0
    %4970 = vmatpush1.bf16.msra.mxu0 0
    %4971 = vmatprep.subr.bf16.mxu0 0
    %4972 = vmatpush1.bf16.msra.mxu0 0
    %4973 = vmatprep.mubr.bf16.mxu0 0
    %4974 = vmatmul.mubr.bf16.gmra.mrb[0].mxu0 %v523
    %v4975 = vpop.f32.mrb[0].mxu0
    %v4976 = vadd.f32 %v4879, %v4975
    %v4977 = vpop.f32.mrb[0].mxu0
    %v4978 = vpop.f32.mrb[0].mxu0
    %v4979 = vadd.f32 %v4882, %v4978
    %v4980 = vpop.f32.mrb[0].mxu0
    %4981 = vmatprep.mubr.bf16.mxu0 0
    %4982 = vmatmul.mubr.bf16.gmra.mrb[0].mxu0 %v526
    %v4983 = vpop.f32.mrb[0].mxu0
    %v4984 = vadd.f32 %v4887, %v4983
    %v4985 = vpop.f32.mrb[0].mxu0
    %v4986 = vpop.f32.mrb[0].mxu0
    %v4987 = vadd.f32 %v4890, %v4986
    %v4988 = vpop.f32.mrb[0].mxu0
    %4989 = vmatprep.mubr.bf16.mxu0 0
    %4990 = vmatmul.mubr.bf16.gmra.mrb[0].mxu0 %v529
    %v4991 = vpop.f32.mrb[0].mxu0
    %v4992 = vadd.f32 %v4895, %v4991
    %v4993 = vpop.f32.mrb[0].mxu0
    %v4994 = vpop.f32.mrb[0].mxu0
    %v4995 = vadd.f32 %v4898, %v4994
    %v4996 = vpop.f32.mrb[0].mxu0
    %4997 = vmatprep.mubr.bf16.mxu0 0
    %4998 = vmatmul.mubr.bf16.gmra.mrb[0].mxu0 %v532
    %v4999 = vpop.f32.mrb[0].mxu0
    %v5000 = vadd.f32 %v4903, %v4999
    %v5001 = vpop.f32.mrb[0].mxu0
    %v5002 = vpop.f32.mrb[0].mxu0
    %v5003 = vadd.f32 %v4906, %v5002
    %v5004 = vpop.f32.mrb[0].mxu0
    %5005 = vmatprep.mubr.bf16.mxu0 0
    %5006 = vmatmul.mubr.bf16.gmra.mrb[0].mxu0 %v535
    %v5007 = vpop.f32.mrb[0].mxu0
    %v5008 = vadd.f32 %v4911, %v5007
    %v5009 = vpop.f32.mrb[0].mxu0
    %v5010 = vpop.f32.mrb[0].mxu0
    %v5011 = vadd.f32 %v4914, %v5010
    %v5012 = vpop.f32.mrb[0].mxu0
    %5013 = vmatprep.mubr.bf16.mxu0 0
    %5014 = vmatmul.mubr.bf16.gmra.mrb[0].mxu0 %v538
    %v5015 = vpop.f32.mrb[0].mxu0
    %v5016 = vadd.f32 %v4919, %v5015
    %v5017 = vpop.f32.mrb[0].mxu0
    %v5018 = vpop.f32.mrb[0].mxu0
    %v5019 = vadd.f32 %v4922, %v5018
    %v5020 = vpop.f32.mrb[0].mxu0
    %5021 = vmatprep.mubr.bf16.mxu0 0
    %5022 = vmatmul.mubr.bf16.gmra.mrb[0].mxu0 %v541
    %v5023 = vpop.f32.mrb[0].mxu0
    %v5024 = vadd.f32 %v4927, %v5023
    %v5025 = vpop.f32.mrb[0].mxu0
    %v5026 = vpop.f32.mrb[0].mxu0
    %v5027 = vadd.f32 %v4930, %v5026
    %v5028 = vpop.f32.mrb[0].mxu0
    %5029 = vmatprep.mubr.bf16.mxu0 0
    %5030 = vmatmul.mubr.bf16.gmra.mrb[0].mxu0 %v544
    %v5031 = vpop.f32.mrb[0].mxu0
    %v5032 = vadd.f32 %v4935, %v5031
    %v5033 = vpop.f32.mrb[0].mxu0
    %v5034 = vpop.f32.mrb[0].mxu0
    %v5035 = vadd.f32 %v4938, %v5034
    %v5036 = vpop.f32.mrb[0].mxu0
    %5037 = vdwg.mxu0
    %v5038 = vpack.c.bf16 %v4829, %v4828
    %v5039 = vpack.c.bf16 %v4831, %v4830
    %v5040 = vpack.c.bf16 %v4833, %v4832
    %v5041 = vpack.c.bf16 %v4835, %v4834
    %v5042 = vpack.c.bf16 %v4837, %v4836
    %v5043 = vpack.c.bf16 %v4839, %v4838
    %v5044 = vpack.c.bf16 %v4841, %v4840
    %v5045 = vpack.c.bf16 %v4843, %v4842
    %v5046 = vpack.c.bf16 %v4979, %v4976
    %v5047 = vpack.c.bf16 %v4987, %v4984
    %v5048 = vpack.c.bf16 %v4995, %v4992
    %v5049 = vpack.c.bf16 %v5003, %v5000
    %v5050 = vpack.c.bf16 %v5011, %v5008
    %v5051 = vpack.c.bf16 %v5019, %v5016
    %v5052 = vpack.c.bf16 %v5027, %v5024
    %v5053 = vpack.c.bf16 %v5035, %v5032
    %v5055 = vsel %vm521, %v5038, 0
    %v5058 = vsel %vm521, %v5039, 0
    %v5061 = vsel %vm521, %v5040, 0
    %v5064 = vsel %vm521, %v5041, 0
    %v5067 = vsel %vm521, %v5042, 0
    %v5070 = vsel %vm521, %v5043, 0
    %v5073 = vsel %vm521, %v5044, 0
    %v5076 = vsel %vm521, %v5045, 0
    %5078 = vmatprep.subr.bf16.mxu0 0
    %5079 = vmatpush1.bf16.msra.mxu0 %v1062
    %5080 = vmatprep.subr.bf16.mxu0 0
    %5081 = vmatpush1.bf16.msra.mxu0 0
    %5082 = vmatprep.subr.bf16.mxu0 0
    %5083 = vmatpush1.bf16.msra.mxu0 0
    %5084 = vmatprep.subr.bf16.mxu0 0
    %5085 = vmatpush1.bf16.msra.mxu0 0
    %5086 = vmatprep.subr.bf16.mxu0 0
    %5087 = vmatpush1.bf16.msra.mxu0 0
    %5088 = vmatprep.subr.bf16.mxu0 0
    %5089 = vmatpush1.bf16.msra.mxu0 0
    %5090 = vmatprep.subr.bf16.mxu0 0
    %5091 = vmatpush1.bf16.msra.mxu0 0
    %5092 = vmatprep.subr.bf16.mxu0 0
    %5093 = vmatpush1.bf16.msra.mxu0 0
    %5094 = vmatprep.subr.bf16.mxu0 0
    %5095 = vmatpush1.bf16.msra.mxu0 0
    %5096 = vmatprep.subr.bf16.mxu0 0
    %5097 = vmatpush1.bf16.msra.mxu0 0
    %5098 = vmatprep.subr.bf16.mxu0 0
    %5099 = vmatpush1.bf16.msra.mxu0 0
    %5100 = vmatprep.subr.bf16.mxu0 0
    %5101 = vmatpush1.bf16.msra.mxu0 0
    %5102 = vmatprep.subr.bf16.mxu0 0
    %5103 = vmatpush1.bf16.msra.mxu0 0
    %5104 = vmatprep.subr.bf16.mxu0 0
    %5105 = vmatpush1.bf16.msra.mxu0 0
    %5106 = vmatprep.subr.bf16.mxu0 0
    %5107 = vmatpush1.bf16.msra.mxu0 0
    %5108 = vmatprep.subr.bf16.mxu0 0
    %5109 = vmatpush1.bf16.msra.mxu0 0
    %5110 = vmatprep.mubr.bf16.mxu0 0
    %5111 = vmatmul.mubr.bf16.gmra.mrb[0].mxu0 %v5055
    %v5112 = vpop.f32.mrb[0].mxu0
    %v5113 = vadd.f32 0.0, %v5112
    %v5114 = vpop.f32.mrb[0].mxu0
    %v5115 = vpop.f32.mrb[0].mxu0
    %v5116 = vadd.f32 0.0, %v5115
    %v5117 = vpop.f32.mrb[0].mxu0
    %5118 = vmatprep.mubr.bf16.mxu0 0
    %5119 = vmatmul.mubr.bf16.gmra.mrb[0].mxu0 %v5058
    %v5120 = vpop.f32.mrb[0].mxu0
    %v5121 = vadd.f32 0.0, %v5120
    %v5122 = vpop.f32.mrb[0].mxu0
    %v5123 = vpop.f32.mrb[0].mxu0
    %v5124 = vadd.f32 0.0, %v5123
    %v5125 = vpop.f32.mrb[0].mxu0
    %5126 = vmatprep.mubr.bf16.mxu0 0
    %5127 = vmatmul.mubr.bf16.gmra.mrb[0].mxu0 %v5061
    %v5128 = vpop.f32.mrb[0].mxu0
    %v5129 = vadd.f32 0.0, %v5128
    %v5130 = vpop.f32.mrb[0].mxu0
    %v5131 = vpop.f32.mrb[0].mxu0
    %v5132 = vadd.f32 0.0, %v5131
    %v5133 = vpop.f32.mrb[0].mxu0
    %5134 = vmatprep.mubr.bf16.mxu0 0
    %5135 = vmatmul.mubr.bf16.gmra.mrb[0].mxu0 %v5064
    %v5136 = vpop.f32.mrb[0].mxu0
    %v5137 = vadd.f32 0.0, %v5136
    %v5138 = vpop.f32.mrb[0].mxu0
    %v5139 = vpop.f32.mrb[0].mxu0
    %v5140 = vadd.f32 0.0, %v5139
    %v5141 = vpop.f32.mrb[0].mxu0
    %5142 = vmatprep.mubr.bf16.mxu0 0
    %5143 = vmatmul.mubr.bf16.gmra.mrb[0].mxu0 %v5067
    %v5144 = vpop.f32.mrb[0].mxu0
    %v5145 = vadd.f32 0.0, %v5144
    %v5146 = vpop.f32.mrb[0].mxu0
    %v5147 = vpop.f32.mrb[0].mxu0
    %v5148 = vadd.f32 0.0, %v5147
    %v5149 = vpop.f32.mrb[0].mxu0
    %5150 = vmatprep.mubr.bf16.mxu0 0
    %5151 = vmatmul.mubr.bf16.gmra.mrb[0].mxu0 %v5070
    %v5152 = vpop.f32.mrb[0].mxu0
    %v5153 = vadd.f32 0.0, %v5152
    %v5154 = vpop.f32.mrb[0].mxu0
    %v5155 = vpop.f32.mrb[0].mxu0
    %v5156 = vadd.f32 0.0, %v5155
    %v5157 = vpop.f32.mrb[0].mxu0
    %5158 = vmatprep.mubr.bf16.mxu0 0
    %5159 = vmatmul.mubr.bf16.gmra.mrb[0].mxu0 %v5073
    %v5160 = vpop.f32.mrb[0].mxu0
    %v5161 = vadd.f32 0.0, %v5160
    %v5162 = vpop.f32.mrb[0].mxu0
    %v5163 = vpop.f32.mrb[0].mxu0
    %v5164 = vadd.f32 0.0, %v5163
    %v5165 = vpop.f32.mrb[0].mxu0
    %5166 = vmatprep.mubr.bf16.mxu0 0
    %5167 = vmatmul.mubr.bf16.gmra.mrb[0].mxu0 %v5076
    %v5168 = vpop.f32.mrb[0].mxu0
    %v5169 = vadd.f32 0.0, %v5168
    %v5170 = vpop.f32.mrb[0].mxu0
    %v5171 = vpop.f32.mrb[0].mxu0
    %v5172 = vadd.f32 0.0, %v5171
    %v5173 = vpop.f32.mrb[0].mxu0
    %5174 = vdwg.mxu0
    %v5176 = vsel %vm521, %v5046, 0
    %v5179 = vsel %vm521, %v5047, 0
    %v5182 = vsel %vm521, %v5048, 0
    %v5185 = vsel %vm521, %v5049, 0
    %v5188 = vsel %vm521, %v5050, 0
    %v5191 = vsel %vm521, %v5051, 0
    %v5194 = vsel %vm521, %v5052, 0
    %v5197 = vsel %vm521, %v5053, 0
    %5199 = vmatprep.subr.bf16.mxu0 0
    %5200 = vmatpush1.bf16.msra.mxu0 %v1186
    %5201 = vmatprep.subr.bf16.mxu0 0
    %5202 = vmatpush1.bf16.msra.mxu0 0
    %5203 = vmatprep.subr.bf16.mxu0 0
    %5204 = vmatpush1.bf16.msra.mxu0 0
    %5205 = vmatprep.subr.bf16.mxu0 0
    %5206 = vmatpush1.bf16.msra.mxu0 0
    %5207 = vmatprep.subr.bf16.mxu0 0
    %5208 = vmatpush1.bf16.msra.mxu0 0
    %5209 = vmatprep.subr.bf16.mxu0 0
    %5210 = vmatpush1.bf16.msra.mxu0 0
    %5211 = vmatprep.subr.bf16.mxu0 0
    %5212 = vmatpush1.bf16.msra.mxu0 0
    %5213 = vmatprep.subr.bf16.mxu0 0
    %5214 = vmatpush1.bf16.msra.mxu0 0
    %5215 = vmatprep.subr.bf16.mxu0 0
    %5216 = vmatpush1.bf16.msra.mxu0 0
    %5217 = vmatprep.subr.bf16.mxu0 0
    %5218 = vmatpush1.bf16.msra.mxu0 0
    %5219 = vmatprep.subr.bf16.mxu0 0
    %5220 = vmatpush1.bf16.msra.mxu0 0
    %5221 = vmatprep.subr.bf16.mxu0 0
    %5222 = vmatpush1.bf16.msra.mxu0 0
    %5223 = vmatprep.subr.bf16.mxu0 0
    %5224 = vmatpush1.bf16.msra.mxu0 0
    %5225 = vmatprep.subr.bf16.mxu0 0
    %5226 = vmatpush1.bf16.msra.mxu0 0
    %5227 = vmatprep.subr.bf16.mxu0 0
    %5228 = vmatpush1.bf16.msra.mxu0 0
    %5229 = vmatprep.subr.bf16.mxu0 0
    %5230 = vmatpush1.bf16.msra.mxu0 0
    %5231 = vmatprep.mubr.bf16.mxu0 0
    %5232 = vmatmul.mubr.bf16.gmra.mrb[0].mxu0 %v5176
    %v5233 = vpop.f32.mrb[0].mxu0
    %v5234 = vadd.f32 0.0, %v5233
    %v5235 = vpop.f32.mrb[0].mxu0
    %v5236 = vpop.f32.mrb[0].mxu0
    %v5237 = vadd.f32 0.0, %v5236
    %v5238 = vpop.f32.mrb[0].mxu0
    %5239 = vmatprep.mubr.bf16.mxu0 0
    %5240 = vmatmul.mubr.bf16.gmra.mrb[0].mxu0 %v5179
    %v5241 = vpop.f32.mrb[0].mxu0
    %v5242 = vadd.f32 0.0, %v5241
    %v5243 = vpop.f32.mrb[0].mxu0
    %v5244 = vpop.f32.mrb[0].mxu0
    %v5245 = vadd.f32 0.0, %v5244
    %v5246 = vpop.f32.mrb[0].mxu0
    %5247 = vmatprep.mubr.bf16.mxu0 0
    %5248 = vmatmul.mubr.bf16.gmra.mrb[0].mxu0 %v5182
    %v5249 = vpop.f32.mrb[0].mxu0
    %v5250 = vadd.f32 0.0, %v5249
    %v5251 = vpop.f32.mrb[0].mxu0
    %v5252 = vpop.f32.mrb[0].mxu0
    %v5253 = vadd.f32 0.0, %v5252
    %v5254 = vpop.f32.mrb[0].mxu0
    %5255 = vmatprep.mubr.bf16.mxu0 0
    %5256 = vmatmul.mubr.bf16.gmra.mrb[0].mxu0 %v5185
    %v5257 = vpop.f32.mrb[0].mxu0
    %v5258 = vadd.f32 0.0, %v5257
    %v5259 = vpop.f32.mrb[0].mxu0
    %v5260 = vpop.f32.mrb[0].mxu0
    %v5261 = vadd.f32 0.0, %v5260
    %v5262 = vpop.f32.mrb[0].mxu0
    %5263 = vmatprep.mubr.bf16.mxu0 0
    %5264 = vmatmul.mubr.bf16.gmra.mrb[0].mxu0 %v5188
    %v5265 = vpop.f32.mrb[0].mxu0
    %v5266 = vadd.f32 0.0, %v5265
    %v5267 = vpop.f32.mrb[0].mxu0
    %v5268 = vpop.f32.mrb[0].mxu0
    %v5269 = vadd.f32 0.0, %v5268
    %v5270 = vpop.f32.mrb[0].mxu0
    %5271 = vmatprep.mubr.bf16.mxu0 0
    %5272 = vmatmul.mubr.bf16.gmra.mrb[0].mxu0 %v5191
    %v5273 = vpop.f32.mrb[0].mxu0
    %v5274 = vadd.f32 0.0, %v5273
    %v5275 = vpop.f32.mrb[0].mxu0
    %v5276 = vpop.f32.mrb[0].mxu0
    %v5277 = vadd.f32 0.0, %v5276
    %v5278 = vpop.f32.mrb[0].mxu0
    %5279 = vmatprep.mubr.bf16.mxu0 0
    %5280 = vmatmul.mubr.bf16.gmra.mrb[0].mxu0 %v5194
    %v5281 = vpop.f32.mrb[0].mxu0
    %v5282 = vadd.f32 0.0, %v5281
    %v5283 = vpop.f32.mrb[0].mxu0
    %v5284 = vpop.f32.mrb[0].mxu0
    %v5285 = vadd.f32 0.0, %v5284
    %v5286 = vpop.f32.mrb[0].mxu0
    %5287 = vmatprep.mubr.bf16.mxu0 0
    %5288 = vmatmul.mubr.bf16.gmra.mrb[0].mxu0 %v5197
    %v5289 = vpop.f32.mrb[0].mxu0
    %v5290 = vadd.f32 0.0, %v5289
    %v5291 = vpop.f32.mrb[0].mxu0
    %v5292 = vpop.f32.mrb[0].mxu0
    %v5293 = vadd.f32 0.0, %v5292
    %v5294 = vpop.f32.mrb[0].mxu0
    %5295 = vdwg.mxu0
    %v5296 = vsub.f32 %v5113, %v5234
    %v5297 = vsub.f32 %v5116, %v5237
    %v5298 = vsub.f32 %v5121, %v5242
    %v5299 = vsub.f32 %v5124, %v5245
    %v5300 = vsub.f32 %v5129, %v5250
    %v5301 = vsub.f32 %v5132, %v5253
    %v5302 = vsub.f32 %v5137, %v5258
    %v5303 = vsub.f32 %v5140, %v5261
    %v5304 = vsub.f32 %v5145, %v5266
    %v5305 = vsub.f32 %v5148, %v5269
    %v5306 = vsub.f32 %v5153, %v5274
    %v5307 = vsub.f32 %v5156, %v5277
    %v5308 = vsub.f32 %v5161, %v5282
    %v5309 = vsub.f32 %v5164, %v5285
    %v5310 = vsub.f32 %v5169, %v5290
    %v5311 = vsub.f32 %v5172, %v5293
    %v5312 = vmul.f32 %v4359, 255.0
    %v5313 = vmul.f32 %v4360, 255.0
    %v5314 = vmul.f32 %v4361, 255.0
    %v5315 = vmul.f32 %v4362, 255.0
    %v5316 = vmul.f32 %v4363, 255.0
    %v5317 = vmul.f32 %v4364, 255.0
    %v5318 = vmul.f32 %v4365, 255.0
    %v5319 = vmul.f32 %v4366, 255.0
    %v5320 = vmul.f32 %v4367, 255.0
    %v5321 = vmul.f32 %v4368, 255.0
    %v5322 = vmul.f32 %v4369, 255.0
    %v5323 = vmul.f32 %v4370, 255.0
    %v5324 = vmul.f32 %v4371, 255.0
    %v5325 = vmul.f32 %v4372, 255.0
    %v5326 = vmul.f32 %v4373, 255.0
    %v5327 = vmul.f32 %v4374, 255.0
    %v5328 = vsub.f32 %v5312, %v5296
    %v5329 = vsub.f32 %v5313, %v5297
    %v5330 = vsub.f32 %v5314, %v5298
    %v5331 = vsub.f32 %v5315, %v5299
    %v5332 = vsub.f32 %v5316, %v5300
    %v5333 = vsub.f32 %v5317, %v5301
    %v5334 = vsub.f32 %v5318, %v5302
    %v5335 = vsub.f32 %v5319, %v5303
    %v5336 = vsub.f32 %v5320, %v5304
    %v5337 = vsub.f32 %v5321, %v5305
    %v5338 = vsub.f32 %v5322, %v5306
    %v5339 = vsub.f32 %v5323, %v5307
    %v5340 = vsub.f32 %v5324, %v5308
    %v5341 = vsub.f32 %v5325, %v5309
    %v5342 = vsub.f32 %v5326, %v5310
    %v5343 = vsub.f32 %v5327, %v5311
    %s5344 = scalar_lea.vmem [#allocation5], 512
    %5345 = vst [vmem:[%s5344] sm:$0xff] %v5328
    %5346 = vst [vmem:[%s5344 + $0x8] sm:$0xff] %v5329
    %5347 = vst [vmem:[%s5344 + $0x10] sm:$0xff] %v5330
    %5348 = vst [vmem:[%s5344 + $0x18] sm:$0xff] %v5331
    %5349 = vst [vmem:[%s5344 + $0x20] sm:$0xff] %v5332
    %5350 = vst [vmem:[%s5344 + $0x28] sm:$0xff] %v5333
    %5351 = vst [vmem:[%s5344 + $0x30] sm:$0xff] %v5334
    %5352 = vst [vmem:[%s5344 + $0x38] sm:$0xff] %v5335
    %5353 = vst [vmem:[%s5344 + $0x40] sm:$0xff] %v5336
    %5354 = vst [vmem:[%s5344 + $0x48] sm:$0xff] %v5337
    %5355 = vst [vmem:[%s5344 + $0x50] sm:$0xff] %v5338
    %5356 = vst [vmem:[%s5344 + $0x58] sm:$0xff] %v5339
    %5357 = vst [vmem:[%s5344 + $0x60] sm:$0xff] %v5340
    %5358 = vst [vmem:[%s5344 + $0x68] sm:$0xff] %v5341
    %5359 = vst [vmem:[%s5344 + $0x70] sm:$0xff] %v5342
    %5360 = vst [vmem:[%s5344 + $0x78] sm:$0xff] %v5343
    %s5361 = scalar_lea.vmem [#allocation2], 640
    %v5362 = vld [vmem:[%s5361] sm:$0xff]
    %v5363 = vld [vmem:[%s5361 + $0x8] sm:$0xff]
    %v5364 = vld [vmem:[%s5361 + $0x10] sm:$0xff]
    %v5365 = vld [vmem:[%s5361 + $0x18] sm:$0xff]
    %v5366 = vld [vmem:[%s5361 + $0x20] sm:$0xff]
    %v5367 = vld [vmem:[%s5361 + $0x28] sm:$0xff]
    %v5368 = vld [vmem:[%s5361 + $0x30] sm:$0xff]
    %v5369 = vld [vmem:[%s5361 + $0x38] sm:$0xff]
    %v5370 = vld [vmem:[%s5361 + $0x40] sm:$0xff]
    %v5371 = vld [vmem:[%s5361 + $0x48] sm:$0xff]
    %v5372 = vld [vmem:[%s5361 + $0x50] sm:$0xff]
    %v5373 = vld [vmem:[%s5361 + $0x58] sm:$0xff]
    %v5374 = vld [vmem:[%s5361 + $0x60] sm:$0xff]
    %v5375 = vld [vmem:[%s5361 + $0x68] sm:$0xff]
    %v5376 = vld [vmem:[%s5361 + $0x70] sm:$0xff]
    %v5377 = vld [vmem:[%s5361 + $0x78] sm:$0xff]
    %v5378 = vpack.c.bf16 %v5363, %v5362
    %v5379 = vpack.c.bf16 %v5365, %v5364
    %v5380 = vpack.c.bf16 %v5367, %v5366
    %v5381 = vpack.c.bf16 %v5369, %v5368
    %v5382 = vpack.c.bf16 %v5371, %v5370
    %v5383 = vpack.c.bf16 %v5373, %v5372
    %v5384 = vpack.c.bf16 %v5375, %v5374
    %v5385 = vpack.c.bf16 %v5377, %v5376
    %5386 = vmatprep.subr.bf16.mxu0 0
    %5387 = vmatpush1.bf16.msra.mxu0 %v5378
    %5388 = vmatprep.subr.bf16.mxu0 0
    %5389 = vmatpush1.bf16.msra.mxu0 %v5379
    %5390 = vmatprep.subr.bf16.mxu0 0
    %5391 = vmatpush1.bf16.msra.mxu0 %v5380
    %5392 = vmatprep.subr.bf16.mxu0 0
    %5393 = vmatpush1.bf16.msra.mxu0 %v5381
    %5394 = vmatprep.subr.bf16.mxu0 0
    %5395 = vmatpush1.bf16.msra.mxu0 %v5382
    %5396 = vmatprep.subr.bf16.mxu0 0
    %5397 = vmatpush1.bf16.msra.mxu0 %v5383
    %5398 = vmatprep.subr.bf16.mxu0 0
    %5399 = vmatpush1.bf16.msra.mxu0 %v5384
    %5400 = vmatprep.subr.bf16.mxu0 0
    %5401 = vmatpush1.bf16.msra.mxu0 %v5385
    %5402 = vmatprep.subr.bf16.mxu0 0
    %5403 = vmatpush1.bf16.msra.mxu0 0
    %5404 = vmatprep.subr.bf16.mxu0 0
    %5405 = vmatpush1.bf16.msra.mxu0 0
    %5406 = vmatprep.subr.bf16.mxu0 0
    %5407 = vmatpush1.bf16.msra.mxu0 0
    %5408 = vmatprep.subr.bf16.mxu0 0
    %5409 = vmatpush1.bf16.msra.mxu0 0
    %5410 = vmatprep.subr.bf16.mxu0 0
    %5411 = vmatpush1.bf16.msra.mxu0 0
    %5412 = vmatprep.subr.bf16.mxu0 0
    %5413 = vmatpush1.bf16.msra.mxu0 0
    %5414 = vmatprep.subr.bf16.mxu0 0
    %5415 = vmatpush1.bf16.msra.mxu0 0
    %5416 = vmatprep.subr.bf16.mxu0 0
    %5417 = vmatpush1.bf16.msra.mxu0 0
    %5418 = vmatprep.mubr.bf16.mxu0 0
    %5419 = vmatmul.mubr.bf16.gmra.mrb[0].mxu0 %v48
    %v5420 = vpop.f32.mrb[0].mxu0
    %v5421 = vadd.f32 0.0, %v5420
    %v5422 = vpop.f32.mrb[0].mxu0
    %v5423 = vpop.f32.mrb[0].mxu0
    %v5424 = vpop.f32.mrb[0].mxu0
    %5425 = vdwg.mxu0
    %5426 = vmatprep.subr.bf16.mxu0 0
    %5427 = vmatpush1.bf16.msra.mxu0 %v5378
    %5428 = vmatprep.subr.bf16.mxu0 0
    %5429 = vmatpush1.bf16.msra.mxu0 %v5379
    %5430 = vmatprep.subr.bf16.mxu0 0
    %5431 = vmatpush1.bf16.msra.mxu0 %v5380
    %5432 = vmatprep.subr.bf16.mxu0 0
    %5433 = vmatpush1.bf16.msra.mxu0 %v5381
    %5434 = vmatprep.subr.bf16.mxu0 0
    %5435 = vmatpush1.bf16.msra.mxu0 %v5382
    %5436 = vmatprep.subr.bf16.mxu0 0
    %5437 = vmatpush1.bf16.msra.mxu0 %v5383
    %5438 = vmatprep.subr.bf16.mxu0 0
    %5439 = vmatpush1.bf16.msra.mxu0 %v5384
    %5440 = vmatprep.subr.bf16.mxu0 0
    %5441 = vmatpush1.bf16.msra.mxu0 %v5385
    %5442 = vmatprep.subr.bf16.mxu0 0
    %5443 = vmatpush1.bf16.msra.mxu0 0
    %5444 = vmatprep.subr.bf16.mxu0 0
    %5445 = vmatpush1.bf16.msra.mxu0 0
    %5446 = vmatprep.subr.bf16.mxu0 0
    %5447 = vmatpush1.bf16.msra.mxu0 0
    %5448 = vmatprep.subr.bf16.mxu0 0
    %5449 = vmatpush1.bf16.msra.mxu0 0
    %5450 = vmatprep.subr.bf16.mxu0 0
    %5451 = vmatpush1.bf16.msra.mxu0 0
    %5452 = vmatprep.subr.bf16.mxu0 0
    %5453 = vmatpush1.bf16.msra.mxu0 0
    %5454 = vmatprep.subr.bf16.mxu0 0
    %5455 = vmatpush1.bf16.msra.mxu0 0
    %5456 = vmatprep.subr.bf16.mxu0 0
    %5457 = vmatpush1.bf16.msra.mxu0 0
    %5458 = vmatprep.mubr.bf16.mxu0 0
    %5459 = vmatmul.mubr.bf16.gmra.mrb[0].mxu0 %v49
    %v5460 = vpop.f32.mrb[0].mxu0
    %v5461 = vadd.f32 0.0, %v5460
    %v5462 = vpop.f32.mrb[0].mxu0
    %v5463 = vpop.f32.mrb[0].mxu0
    %v5464 = vpop.f32.mrb[0].mxu0
    %5465 = vdwg.mxu0
    %v5466 = vpack.c.bf16 %v5421, %v5421
    %v5467 = vpack.c.bf16 %v5461, %v5461
    %5468 = vmatprep.subr.bf16.mxu0 0
    %5469 = vmatpush1.bf16.msra.mxu0 %v254
    %5470 = vmatprep.subr.bf16.mxu0 0
    %5471 = vmatpush1.bf16.msra.mxu0 %v255
    %5472 = vmatprep.subr.bf16.mxu0 0
    %5473 = vmatpush1.bf16.msra.mxu0 %v256
    %5474 = vmatprep.subr.bf16.mxu0 0
    %5475 = vmatpush1.bf16.msra.mxu0 %v257
    %5476 = vmatprep.subr.bf16.mxu0 0
    %5477 = vmatpush1.bf16.msra.mxu0 %v258
    %5478 = vmatprep.subr.bf16.mxu0 0
    %5479 = vmatpush1.bf16.msra.mxu0 %v259
    %5480 = vmatprep.subr.bf16.mxu0 0
    %5481 = vmatpush1.bf16.msra.mxu0 %v260
    %5482 = vmatprep.subr.bf16.mxu0 0
    %5483 = vmatpush1.bf16.msra.mxu0 %v261
    %5484 = vmatprep.subr.bf16.mxu0 0
    %5485 = vmatpush1.bf16.msra.mxu0 0
    %5486 = vmatprep.subr.bf16.mxu0 0
    %5487 = vmatpush1.bf16.msra.mxu0 0
    %5488 = vmatprep.subr.bf16.mxu0 0
    %5489 = vmatpush1.bf16.msra.mxu0 0
    %5490 = vmatprep.subr.bf16.mxu0 0
    %5491 = vmatpush1.bf16.msra.mxu0 0
    %5492 = vmatprep.subr.bf16.mxu0 0
    %5493 = vmatpush1.bf16.msra.mxu0 0
    %5494 = vmatprep.subr.bf16.mxu0 0
    %5495 = vmatpush1.bf16.msra.mxu0 0
    %5496 = vmatprep.subr.bf16.mxu0 0
    %5497 = vmatpush1.bf16.msra.mxu0 0
    %5498 = vmatprep.subr.bf16.mxu0 0
    %5499 = vmatpush1.bf16.msra.mxu0 0
    %5500 = vmatprep.mubr.bf16.mxu0 0
    %5501 = vmatmul.mubr.bf16.gmra.mrb[0].mxu0 %v5466
    %v5502 = vpop.f32.mrb[0].mxu0
    %v5503 = vadd.f32 0.0, %v5502
    %v5504 = vpop.f32.mrb[0].mxu0
    %v5505 = vpop.f32.mrb[0].mxu0
    %v5506 = vpop.f32.mrb[0].mxu0
    %5507 = vdwg.mxu0
    %5508 = vmatprep.subr.bf16.mxu0 0
    %5509 = vmatpush1.bf16.msra.mxu0 %v342
    %5510 = vmatprep.subr.bf16.mxu0 0
    %5511 = vmatpush1.bf16.msra.mxu0 %v343
    %5512 = vmatprep.subr.bf16.mxu0 0
    %5513 = vmatpush1.bf16.msra.mxu0 %v344
    %5514 = vmatprep.subr.bf16.mxu0 0
    %5515 = vmatpush1.bf16.msra.mxu0 %v345
    %5516 = vmatprep.subr.bf16.mxu0 0
    %5517 = vmatpush1.bf16.msra.mxu0 %v346
    %5518 = vmatprep.subr.bf16.mxu0 0
    %5519 = vmatpush1.bf16.msra.mxu0 %v347
    %5520 = vmatprep.subr.bf16.mxu0 0
    %5521 = vmatpush1.bf16.msra.mxu0 %v348
    %5522 = vmatprep.subr.bf16.mxu0 0
    %5523 = vmatpush1.bf16.msra.mxu0 %v349
    %5524 = vmatprep.subr.bf16.mxu0 0
    %5525 = vmatpush1.bf16.msra.mxu0 0
    %5526 = vmatprep.subr.bf16.mxu0 0
    %5527 = vmatpush1.bf16.msra.mxu0 0
    %5528 = vmatprep.subr.bf16.mxu0 0
    %5529 = vmatpush1.bf16.msra.mxu0 0
    %5530 = vmatprep.subr.bf16.mxu0 0
    %5531 = vmatpush1.bf16.msra.mxu0 0
    %5532 = vmatprep.subr.bf16.mxu0 0
    %5533 = vmatpush1.bf16.msra.mxu0 0
    %5534 = vmatprep.subr.bf16.mxu0 0
    %5535 = vmatpush1.bf16.msra.mxu0 0
    %5536 = vmatprep.subr.bf16.mxu0 0
    %5537 = vmatpush1.bf16.msra.mxu0 0
    %5538 = vmatprep.subr.bf16.mxu0 0
    %5539 = vmatpush1.bf16.msra.mxu0 0
    %5540 = vmatprep.mubr.bf16.mxu0 0
    %5541 = vmatmul.mubr.bf16.gmra.mrb[0].mxu0 %v5467
    %v5542 = vpop.f32.mrb[0].mxu0
    %v5543 = vadd.f32 0.0, %v5542
    %v5544 = vpop.f32.mrb[0].mxu0
    %v5545 = vpop.f32.mrb[0].mxu0
    %v5546 = vpop.f32.mrb[0].mxu0
    %5547 = vdwg.mxu0
    %v5548 = vsub.f32 %v5503, %v5543
    %5549 = vmatprep.subr.bf16.mxu0 0
    %5550 = vmatpush1.bf16.msra.mxu0 %v254
    %5551 = vmatprep.subr.bf16.mxu0 0
    %5552 = vmatpush1.bf16.msra.mxu0 %v255
    %5553 = vmatprep.subr.bf16.mxu0 0
    %5554 = vmatpush1.bf16.msra.mxu0 %v256
    %5555 = vmatprep.subr.bf16.mxu0 0
    %5556 = vmatpush1.bf16.msra.mxu0 %v257
    %5557 = vmatprep.subr.bf16.mxu0 0
    %5558 = vmatpush1.bf16.msra.mxu0 %v258
    %5559 = vmatprep.subr.bf16.mxu0 0
    %5560 = vmatpush1.bf16.msra.mxu0 %v259
    %5561 = vmatprep.subr.bf16.mxu0 0
    %5562 = vmatpush1.bf16.msra.mxu0 %v260
    %5563 = vmatprep.subr.bf16.mxu0 0
    %5564 = vmatpush1.bf16.msra.mxu0 %v261
    %5565 = vmatprep.subr.bf16.mxu0 0
    %5566 = vmatpush1.bf16.msra.mxu0 0
    %5567 = vmatprep.subr.bf16.mxu0 0
    %5568 = vmatpush1.bf16.msra.mxu0 0
    %5569 = vmatprep.subr.bf16.mxu0 0
    %5570 = vmatpush1.bf16.msra.mxu0 0
    %5571 = vmatprep.subr.bf16.mxu0 0
    %5572 = vmatpush1.bf16.msra.mxu0 0
    %5573 = vmatprep.subr.bf16.mxu0 0
    %5574 = vmatpush1.bf16.msra.mxu0 0
    %5575 = vmatprep.subr.bf16.mxu0 0
    %5576 = vmatpush1.bf16.msra.mxu0 0
    %5577 = vmatprep.subr.bf16.mxu0 0
    %5578 = vmatpush1.bf16.msra.mxu0 0
    %5579 = vmatprep.subr.bf16.mxu0 0
    %5580 = vmatpush1.bf16.msra.mxu0 0
    %5581 = vmatprep.mubr.bf16.mxu0 0
    %5582 = vmatmul.mubr.bf16.gmra.mrb[0].mxu0 %v5467
    %v5583 = vpop.f32.mrb[0].mxu0
    %v5584 = vadd.f32 0.0, %v5583
    %v5585 = vpop.f32.mrb[0].mxu0
    %v5586 = vpop.f32.mrb[0].mxu0
    %v5587 = vpop.f32.mrb[0].mxu0
    %5588 = vdwg.mxu0
    %5589 = vmatprep.subr.bf16.mxu0 0
    %5590 = vmatpush1.bf16.msra.mxu0 %v342
    %5591 = vmatprep.subr.bf16.mxu0 0
    %5592 = vmatpush1.bf16.msra.mxu0 %v343
    %5593 = vmatprep.subr.bf16.mxu0 0
    %5594 = vmatpush1.bf16.msra.mxu0 %v344
    %5595 = vmatprep.subr.bf16.mxu0 0
    %5596 = vmatpush1.bf16.msra.mxu0 %v345
    %5597 = vmatprep.subr.bf16.mxu0 0
    %5598 = vmatpush1.bf16.msra.mxu0 %v346
    %5599 = vmatprep.subr.bf16.mxu0 0
    %5600 = vmatpush1.bf16.msra.mxu0 %v347
    %5601 = vmatprep.subr.bf16.mxu0 0
    %5602 = vmatpush1.bf16.msra.mxu0 %v348
    %5603 = vmatprep.subr.bf16.mxu0 0
    %5604 = vmatpush1.bf16.msra.mxu0 %v349
    %5605 = vmatprep.subr.bf16.mxu0 0
    %5606 = vmatpush1.bf16.msra.mxu0 0
    %5607 = vmatprep.subr.bf16.mxu0 0
    %5608 = vmatpush1.bf16.msra.mxu0 0
    %5609 = vmatprep.subr.bf16.mxu0 0
    %5610 = vmatpush1.bf16.msra.mxu0 0
    %5611 = vmatprep.subr.bf16.mxu0 0
    %5612 = vmatpush1.bf16.msra.mxu0 0
    %5613 = vmatprep.subr.bf16.mxu0 0
    %5614 = vmatpush1.bf16.msra.mxu0 0
    %5615 = vmatprep.subr.bf16.mxu0 0
    %5616 = vmatpush1.bf16.msra.mxu0 0
    %5617 = vmatprep.subr.bf16.mxu0 0
    %5618 = vmatpush1.bf16.msra.mxu0 0
    %5619 = vmatprep.subr.bf16.mxu0 0
    %5620 = vmatpush1.bf16.msra.mxu0 0
    %5621 = vmatprep.mubr.bf16.mxu0 0
    %5622 = vmatmul.mubr.bf16.gmra.mrb[0].mxu0 %v5466
    %v5623 = vpop.f32.mrb[0].mxu0
    %v5624 = vadd.f32 %v5584, %v5623
    %v5625 = vpop.f32.mrb[0].mxu0
    %v5626 = vpop.f32.mrb[0].mxu0
    %v5627 = vpop.f32.mrb[0].mxu0
    %5628 = vdwg.mxu0
    %v5629 = vpack.c.bf16 %v5548, %v5548
    %v5630 = vpack.c.bf16 %v5624, %v5624
    %v5632 = vsel %vm546, %v5629, 0
    %5634 = vmatprep.subr.bf16.mxu0 0
    %5635 = vmatpush1.bf16.msra.mxu0 %v5632
    %5636 = vmatprep.subr.bf16.mxu0 0
    %5637 = vmatpush1.bf16.msra.mxu0 0
    %5638 = vmatprep.subr.bf16.mxu0 0
    %5639 = vmatpush1.bf16.msra.mxu0 0
    %5640 = vmatprep.subr.bf16.mxu0 0
    %5641 = vmatpush1.bf16.msra.mxu0 0
    %5642 = vmatprep.subr.bf16.mxu0 0
    %5643 = vmatpush1.bf16.msra.mxu0 0
    %5644 = vmatprep.subr.bf16.mxu0 0
    %5645 = vmatpush1.bf16.msra.mxu0 0
    %5646 = vmatprep.subr.bf16.mxu0 0
    %5647 = vmatpush1.bf16.msra.mxu0 0
    %5648 = vmatprep.subr.bf16.mxu0 0
    %5649 = vmatpush1.bf16.msra.mxu0 0
    %5650 = vmatprep.subr.bf16.mxu0 0
    %5651 = vmatpush1.bf16.msra.mxu0 0
    %5652 = vmatprep.subr.bf16.mxu0 0
    %5653 = vmatpush1.bf16.msra.mxu0 0
    %5654 = vmatprep.subr.bf16.mxu0 0
    %5655 = vmatpush1.bf16.msra.mxu0 0
    %5656 = vmatprep.subr.bf16.mxu0 0
    %5657 = vmatpush1.bf16.msra.mxu0 0
    %5658 = vmatprep.subr.bf16.mxu0 0
    %5659 = vmatpush1.bf16.msra.mxu0 0
    %5660 = vmatprep.subr.bf16.mxu0 0
    %5661 = vmatpush1.bf16.msra.mxu0 0
    %5662 = vmatprep.subr.bf16.mxu0 0
    %5663 = vmatpush1.bf16.msra.mxu0 0
    %5664 = vmatprep.subr.bf16.mxu0 0
    %5665 = vmatpush1.bf16.msra.mxu0 0
    %5666 = vmatprep.mubr.bf16.mxu0 0
    %5667 = vmatmul.mubr.bf16.gmra.mrb[0].mxu0 %v523
    %v5668 = vpop.f32.mrb[0].mxu0
    %v5669 = vadd.f32 0.0, %v5668
    %v5670 = vpop.f32.mrb[0].mxu0
    %v5671 = vpop.f32.mrb[0].mxu0
    %v5672 = vadd.f32 0.0, %v5671
    %v5673 = vpop.f32.mrb[0].mxu0
    %5674 = vmatprep.mubr.bf16.mxu0 0
    %5675 = vmatmul.mubr.bf16.gmra.mrb[0].mxu0 %v526
    %v5676 = vpop.f32.mrb[0].mxu0
    %v5677 = vadd.f32 0.0, %v5676
    %v5678 = vpop.f32.mrb[0].mxu0
    %v5679 = vpop.f32.mrb[0].mxu0
    %v5680 = vadd.f32 0.0, %v5679
    %v5681 = vpop.f32.mrb[0].mxu0
    %5682 = vmatprep.mubr.bf16.mxu0 0
    %5683 = vmatmul.mubr.bf16.gmra.mrb[0].mxu0 %v529
    %v5684 = vpop.f32.mrb[0].mxu0
    %v5685 = vadd.f32 0.0, %v5684
    %v5686 = vpop.f32.mrb[0].mxu0
    %v5687 = vpop.f32.mrb[0].mxu0
    %v5688 = vadd.f32 0.0, %v5687
    %v5689 = vpop.f32.mrb[0].mxu0
    %5690 = vmatprep.mubr.bf16.mxu0 0
    %5691 = vmatmul.mubr.bf16.gmra.mrb[0].mxu0 %v532
    %v5692 = vpop.f32.mrb[0].mxu0
    %v5693 = vadd.f32 0.0, %v5692
    %v5694 = vpop.f32.mrb[0].mxu0
    %v5695 = vpop.f32.mrb[0].mxu0
    %v5696 = vadd.f32 0.0, %v5695
    %v5697 = vpop.f32.mrb[0].mxu0
    %5698 = vmatprep.mubr.bf16.mxu0 0
    %5699 = vmatmul.mubr.bf16.gmra.mrb[0].mxu0 %v535
    %v5700 = vpop.f32.mrb[0].mxu0
    %v5701 = vadd.f32 0.0, %v5700
    %v5702 = vpop.f32.mrb[0].mxu0
    %v5703 = vpop.f32.mrb[0].mxu0
    %v5704 = vadd.f32 0.0, %v5703
    %v5705 = vpop.f32.mrb[0].mxu0
    %5706 = vmatprep.mubr.bf16.mxu0 0
    %5707 = vmatmul.mubr.bf16.gmra.mrb[0].mxu0 %v538
    %v5708 = vpop.f32.mrb[0].mxu0
    %v5709 = vadd.f32 0.0, %v5708
    %v5710 = vpop.f32.mrb[0].mxu0
    %v5711 = vpop.f32.mrb[0].mxu0
    %v5712 = vadd.f32 0.0, %v5711
    %v5713 = vpop.f32.mrb[0].mxu0
    %5714 = vmatprep.mubr.bf16.mxu0 0
    %5715 = vmatmul.mubr.bf16.gmra.mrb[0].mxu0 %v541
    %v5716 = vpop.f32.mrb[0].mxu0
    %v5717 = vadd.f32 0.0, %v5716
    %v5718 = vpop.f32.mrb[0].mxu0
    %v5719 = vpop.f32.mrb[0].mxu0
    %v5720 = vadd.f32 0.0, %v5719
    %v5721 = vpop.f32.mrb[0].mxu0
    %5722 = vmatprep.mubr.bf16.mxu0 0
    %5723 = vmatmul.mubr.bf16.gmra.mrb[0].mxu0 %v544
    %v5724 = vpop.f32.mrb[0].mxu0
    %v5725 = vadd.f32 0.0, %v5724
    %v5726 = vpop.f32.mrb[0].mxu0
    %v5727 = vpop.f32.mrb[0].mxu0
    %v5728 = vadd.f32 0.0, %v5727
    %v5729 = vpop.f32.mrb[0].mxu0
    %5730 = vdwg.mxu0
    %v5732 = vsel %vm546, %v5630, 0
    %5734 = vmatprep.subr.bf16.mxu0 0
    %5735 = vmatpush1.bf16.msra.mxu0 %v5732
    %5736 = vmatprep.subr.bf16.mxu0 0
    %5737 = vmatpush1.bf16.msra.mxu0 0
    %5738 = vmatprep.subr.bf16.mxu0 0
    %5739 = vmatpush1.bf16.msra.mxu0 0
    %5740 = vmatprep.subr.bf16.mxu0 0
    %5741 = vmatpush1.bf16.msra.mxu0 0
    %5742 = vmatprep.subr.bf16.mxu0 0
    %5743 = vmatpush1.bf16.msra.mxu0 0
    %5744 = vmatprep.subr.bf16.mxu0 0
    %5745 = vmatpush1.bf16.msra.mxu0 0
    %5746 = vmatprep.subr.bf16.mxu0 0
    %5747 = vmatpush1.bf16.msra.mxu0 0
    %5748 = vmatprep.subr.bf16.mxu0 0
    %5749 = vmatpush1.bf16.msra.mxu0 0
    %5750 = vmatprep.subr.bf16.mxu0 0
    %5751 = vmatpush1.bf16.msra.mxu0 0
    %5752 = vmatprep.subr.bf16.mxu0 0
    %5753 = vmatpush1.bf16.msra.mxu0 0
    %5754 = vmatprep.subr.bf16.mxu0 0
    %5755 = vmatpush1.bf16.msra.mxu0 0
    %5756 = vmatprep.subr.bf16.mxu0 0
    %5757 = vmatpush1.bf16.msra.mxu0 0
    %5758 = vmatprep.subr.bf16.mxu0 0
    %5759 = vmatpush1.bf16.msra.mxu0 0
    %5760 = vmatprep.subr.bf16.mxu0 0
    %5761 = vmatpush1.bf16.msra.mxu0 0
    %5762 = vmatprep.subr.bf16.mxu0 0
    %5763 = vmatpush1.bf16.msra.mxu0 0
    %5764 = vmatprep.subr.bf16.mxu0 0
    %5765 = vmatpush1.bf16.msra.mxu0 0
    %5766 = vmatprep.mubr.bf16.mxu0 0
    %5767 = vmatmul.mubr.bf16.gmra.mrb[0].mxu0 %v688
    %v5768 = vpop.f32.mrb[0].mxu0
    %v5769 = vadd.f32 0.0, %v5768
    %v5770 = vpop.f32.mrb[0].mxu0
    %v5771 = vpop.f32.mrb[0].mxu0
    %v5772 = vadd.f32 0.0, %v5771
    %v5773 = vpop.f32.mrb[0].mxu0
    %5774 = vmatprep.mubr.bf16.mxu0 0
    %5775 = vmatmul.mubr.bf16.gmra.mrb[0].mxu0 %v691
    %v5776 = vpop.f32.mrb[0].mxu0
    %v5777 = vadd.f32 0.0, %v5776
    %v5778 = vpop.f32.mrb[0].mxu0
    %v5779 = vpop.f32.mrb[0].mxu0
    %v5780 = vadd.f32 0.0, %v5779
    %v5781 = vpop.f32.mrb[0].mxu0
    %5782 = vmatprep.mubr.bf16.mxu0 0
    %5783 = vmatmul.mubr.bf16.gmra.mrb[0].mxu0 %v694
    %v5784 = vpop.f32.mrb[0].mxu0
    %v5785 = vadd.f32 0.0, %v5784
    %v5786 = vpop.f32.mrb[0].mxu0
    %v5787 = vpop.f32.mrb[0].mxu0
    %v5788 = vadd.f32 0.0, %v5787
    %v5789 = vpop.f32.mrb[0].mxu0
    %5790 = vmatprep.mubr.bf16.mxu0 0
    %5791 = vmatmul.mubr.bf16.gmra.mrb[0].mxu0 %v697
    %v5792 = vpop.f32.mrb[0].mxu0
    %v5793 = vadd.f32 0.0, %v5792
    %v5794 = vpop.f32.mrb[0].mxu0
    %v5795 = vpop.f32.mrb[0].mxu0
    %v5796 = vadd.f32 0.0, %v5795
    %v5797 = vpop.f32.mrb[0].mxu0
    %5798 = vmatprep.mubr.bf16.mxu0 0
    %5799 = vmatmul.mubr.bf16.gmra.mrb[0].mxu0 %v700
    %v5800 = vpop.f32.mrb[0].mxu0
    %v5801 = vadd.f32 0.0, %v5800
    %v5802 = vpop.f32.mrb[0].mxu0
    %v5803 = vpop.f32.mrb[0].mxu0
    %v5804 = vadd.f32 0.0, %v5803
    %v5805 = vpop.f32.mrb[0].mxu0
    %5806 = vmatprep.mubr.bf16.mxu0 0
    %5807 = vmatmul.mubr.bf16.gmra.mrb[0].mxu0 %v703
    %v5808 = vpop.f32.mrb[0].mxu0
    %v5809 = vadd.f32 0.0, %v5808
    %v5810 = vpop.f32.mrb[0].mxu0
    %v5811 = vpop.f32.mrb[0].mxu0
    %v5812 = vadd.f32 0.0, %v5811
    %v5813 = vpop.f32.mrb[0].mxu0
    %5814 = vmatprep.mubr.bf16.mxu0 0
    %5815 = vmatmul.mubr.bf16.gmra.mrb[0].mxu0 %v706
    %v5816 = vpop.f32.mrb[0].mxu0
    %v5817 = vadd.f32 0.0, %v5816
    %v5818 = vpop.f32.mrb[0].mxu0
    %v5819 = vpop.f32.mrb[0].mxu0
    %v5820 = vadd.f32 0.0, %v5819
    %v5821 = vpop.f32.mrb[0].mxu0
    %5822 = vmatprep.mubr.bf16.mxu0 0
    %5823 = vmatmul.mubr.bf16.gmra.mrb[0].mxu0 %v709
    %v5824 = vpop.f32.mrb[0].mxu0
    %v5825 = vadd.f32 0.0, %v5824
    %v5826 = vpop.f32.mrb[0].mxu0
    %v5827 = vpop.f32.mrb[0].mxu0
    %v5828 = vadd.f32 0.0, %v5827
    %v5829 = vpop.f32.mrb[0].mxu0
    %5830 = vdwg.mxu0
    %v5831 = vsub.f32 %v5669, %v5769
    %v5832 = vsub.f32 %v5672, %v5772
    %v5833 = vsub.f32 %v5677, %v5777
    %v5834 = vsub.f32 %v5680, %v5780
    %v5835 = vsub.f32 %v5685, %v5785
    %v5836 = vsub.f32 %v5688, %v5788
    %v5837 = vsub.f32 %v5693, %v5793
    %v5838 = vsub.f32 %v5696, %v5796
    %v5839 = vsub.f32 %v5701, %v5801
    %v5840 = vsub.f32 %v5704, %v5804
    %v5841 = vsub.f32 %v5709, %v5809
    %v5842 = vsub.f32 %v5712, %v5812
    %v5843 = vsub.f32 %v5717, %v5817
    %v5844 = vsub.f32 %v5720, %v5820
    %v5845 = vsub.f32 %v5725, %v5825
    %v5846 = vsub.f32 %v5728, %v5828
    %5847 = vmatprep.subr.bf16.mxu0 0
    %5848 = vmatpush1.bf16.msra.mxu0 %v5632
    %5849 = vmatprep.subr.bf16.mxu0 0
    %5850 = vmatpush1.bf16.msra.mxu0 0
    %5851 = vmatprep.subr.bf16.mxu0 0
    %5852 = vmatpush1.bf16.msra.mxu0 0
    %5853 = vmatprep.subr.bf16.mxu0 0
    %5854 = vmatpush1.bf16.msra.mxu0 0
    %5855 = vmatprep.subr.bf16.mxu0 0
    %5856 = vmatpush1.bf16.msra.mxu0 0
    %5857 = vmatprep.subr.bf16.mxu0 0
    %5858 = vmatpush1.bf16.msra.mxu0 0
    %5859 = vmatprep.subr.bf16.mxu0 0
    %5860 = vmatpush1.bf16.msra.mxu0 0
    %5861 = vmatprep.subr.bf16.mxu0 0
    %5862 = vmatpush1.bf16.msra.mxu0 0
    %5863 = vmatprep.subr.bf16.mxu0 0
    %5864 = vmatpush1.bf16.msra.mxu0 0
    %5865 = vmatprep.subr.bf16.mxu0 0
    %5866 = vmatpush1.bf16.msra.mxu0 0
    %5867 = vmatprep.subr.bf16.mxu0 0
    %5868 = vmatpush1.bf16.msra.mxu0 0
    %5869 = vmatprep.subr.bf16.mxu0 0
    %5870 = vmatpush1.bf16.msra.mxu0 0
    %5871 = vmatprep.subr.bf16.mxu0 0
    %5872 = vmatpush1.bf16.msra.mxu0 0
    %5873 = vmatprep.subr.bf16.mxu0 0
    %5874 = vmatpush1.bf16.msra.mxu0 0
    %5875 = vmatprep.subr.bf16.mxu0 0
    %5876 = vmatpush1.bf16.msra.mxu0 0
    %5877 = vmatprep.subr.bf16.mxu0 0
    %5878 = vmatpush1.bf16.msra.mxu0 0
    %5879 = vmatprep.mubr.bf16.mxu0 0
    %5880 = vmatmul.mubr.bf16.gmra.mrb[0].mxu0 %v688
    %v5881 = vpop.f32.mrb[0].mxu0
    %v5882 = vadd.f32 0.0, %v5881
    %v5883 = vpop.f32.mrb[0].mxu0
    %v5884 = vpop.f32.mrb[0].mxu0
    %v5885 = vadd.f32 0.0, %v5884
    %v5886 = vpop.f32.mrb[0].mxu0
    %5887 = vmatprep.mubr.bf16.mxu0 0
    %5888 = vmatmul.mubr.bf16.gmra.mrb[0].mxu0 %v691
    %v5889 = vpop.f32.mrb[0].mxu0
    %v5890 = vadd.f32 0.0, %v5889
    %v5891 = vpop.f32.mrb[0].mxu0
    %v5892 = vpop.f32.mrb[0].mxu0
    %v5893 = vadd.f32 0.0, %v5892
    %v5894 = vpop.f32.mrb[0].mxu0
    %5895 = vmatprep.mubr.bf16.mxu0 0
    %5896 = vmatmul.mubr.bf16.gmra.mrb[0].mxu0 %v694
    %v5897 = vpop.f32.mrb[0].mxu0
    %v5898 = vadd.f32 0.0, %v5897
    %v5899 = vpop.f32.mrb[0].mxu0
    %v5900 = vpop.f32.mrb[0].mxu0
    %v5901 = vadd.f32 0.0, %v5900
    %v5902 = vpop.f32.mrb[0].mxu0
    %5903 = vmatprep.mubr.bf16.mxu0 0
    %5904 = vmatmul.mubr.bf16.gmra.mrb[0].mxu0 %v697
    %v5905 = vpop.f32.mrb[0].mxu0
    %v5906 = vadd.f32 0.0, %v5905
    %v5907 = vpop.f32.mrb[0].mxu0
    %v5908 = vpop.f32.mrb[0].mxu0
    %v5909 = vadd.f32 0.0, %v5908
    %v5910 = vpop.f32.mrb[0].mxu0
    %5911 = vmatprep.mubr.bf16.mxu0 0
    %5912 = vmatmul.mubr.bf16.gmra.mrb[0].mxu0 %v700
    %v5913 = vpop.f32.mrb[0].mxu0
    %v5914 = vadd.f32 0.0, %v5913
    %v5915 = vpop.f32.mrb[0].mxu0
    %v5916 = vpop.f32.mrb[0].mxu0
    %v5917 = vadd.f32 0.0, %v5916
    %v5918 = vpop.f32.mrb[0].mxu0
    %5919 = vmatprep.mubr.bf16.mxu0 0
    %5920 = vmatmul.mubr.bf16.gmra.mrb[0].mxu0 %v703
    %v5921 = vpop.f32.mrb[0].mxu0
    %v5922 = vadd.f32 0.0, %v5921
    %v5923 = vpop.f32.mrb[0].mxu0
    %v5924 = vpop.f32.mrb[0].mxu0
    %v5925 = vadd.f32 0.0, %v5924
    %v5926 = vpop.f32.mrb[0].mxu0
    %5927 = vmatprep.mubr.bf16.mxu0 0
    %5928 = vmatmul.mubr.bf16.gmra.mrb[0].mxu0 %v706
    %v5929 = vpop.f32.mrb[0].mxu0
    %v5930 = vadd.f32 0.0, %v5929
    %v5931 = vpop.f32.mrb[0].mxu0
    %v5932 = vpop.f32.mrb[0].mxu0
    %v5933 = vadd.f32 0.0, %v5932
    %v5934 = vpop.f32.mrb[0].mxu0
    %5935 = vmatprep.mubr.bf16.mxu0 0
    %5936 = vmatmul.mubr.bf16.gmra.mrb[0].mxu0 %v709
    %v5937 = vpop.f32.mrb[0].mxu0
    %v5938 = vadd.f32 0.0, %v5937
    %v5939 = vpop.f32.mrb[0].mxu0
    %v5940 = vpop.f32.mrb[0].mxu0
    %v5941 = vadd.f32 0.0, %v5940
    %v5942 = vpop.f32.mrb[0].mxu0
    %5943 = vdwg.mxu0
    %5944 = vmatprep.subr.bf16.mxu0 0
    %5945 = vmatpush1.bf16.msra.mxu0 %v5732
    %5946 = vmatprep.subr.bf16.mxu0 0
    %5947 = vmatpush1.bf16.msra.mxu0 0
    %5948 = vmatprep.subr.bf16.mxu0 0
    %5949 = vmatpush1.bf16.msra.mxu0 0
    %5950 = vmatprep.subr.bf16.mxu0 0
    %5951 = vmatpush1.bf16.msra.mxu0 0
    %5952 = vmatprep.subr.bf16.mxu0 0
    %5953 = vmatpush1.bf16.msra.mxu0 0
    %5954 = vmatprep.subr.bf16.mxu0 0
    %5955 = vmatpush1.bf16.msra.mxu0 0
    %5956 = vmatprep.subr.bf16.mxu0 0
    %5957 = vmatpush1.bf16.msra.mxu0 0
    %5958 = vmatprep.subr.bf16.mxu0 0
    %5959 = vmatpush1.bf16.msra.mxu0 0
    %5960 = vmatprep.subr.bf16.mxu0 0
    %5961 = vmatpush1.bf16.msra.mxu0 0
    %5962 = vmatprep.subr.bf16.mxu0 0
    %5963 = vmatpush1.bf16.msra.mxu0 0
    %5964 = vmatprep.subr.bf16.mxu0 0
    %5965 = vmatpush1.bf16.msra.mxu0 0
    %5966 = vmatprep.subr.bf16.mxu0 0
    %5967 = vmatpush1.bf16.msra.mxu0 0
    %5968 = vmatprep.subr.bf16.mxu0 0
    %5969 = vmatpush1.bf16.msra.mxu0 0
    %5970 = vmatprep.subr.bf16.mxu0 0
    %5971 = vmatpush1.bf16.msra.mxu0 0
    %5972 = vmatprep.subr.bf16.mxu0 0
    %5973 = vmatpush1.bf16.msra.mxu0 0
    %5974 = vmatprep.subr.bf16.mxu0 0
    %5975 = vmatpush1.bf16.msra.mxu0 0
    %5976 = vmatprep.mubr.bf16.mxu0 0
    %5977 = vmatmul.mubr.bf16.gmra.mrb[0].mxu0 %v523
    %v5978 = vpop.f32.mrb[0].mxu0
    %v5979 = vadd.f32 %v5882, %v5978
    %v5980 = vpop.f32.mrb[0].mxu0
    %v5981 = vpop.f32.mrb[0].mxu0
    %v5982 = vadd.f32 %v5885, %v5981
    %v5983 = vpop.f32.mrb[0].mxu0
    %5984 = vmatprep.mubr.bf16.mxu0 0
    %5985 = vmatmul.mubr.bf16.gmra.mrb[0].mxu0 %v526
    %v5986 = vpop.f32.mrb[0].mxu0
    %v5987 = vadd.f32 %v5890, %v5986
    %v5988 = vpop.f32.mrb[0].mxu0
    %v5989 = vpop.f32.mrb[0].mxu0
    %v5990 = vadd.f32 %v5893, %v5989
    %v5991 = vpop.f32.mrb[0].mxu0
    %5992 = vmatprep.mubr.bf16.mxu0 0
    %5993 = vmatmul.mubr.bf16.gmra.mrb[0].mxu0 %v529
    %v5994 = vpop.f32.mrb[0].mxu0
    %v5995 = vadd.f32 %v5898, %v5994
    %v5996 = vpop.f32.mrb[0].mxu0
    %v5997 = vpop.f32.mrb[0].mxu0
    %v5998 = vadd.f32 %v5901, %v5997
    %v5999 = vpop.f32.mrb[0].mxu0
    %6000 = vmatprep.mubr.bf16.mxu0 0
    %6001 = vmatmul.mubr.bf16.gmra.mrb[0].mxu0 %v532
    %v6002 = vpop.f32.mrb[0].mxu0
    %v6003 = vadd.f32 %v5906, %v6002
    %v6004 = vpop.f32.mrb[0].mxu0
    %v6005 = vpop.f32.mrb[0].mxu0
    %v6006 = vadd.f32 %v5909, %v6005
    %v6007 = vpop.f32.mrb[0].mxu0
    %6008 = vmatprep.mubr.bf16.mxu0 0
    %6009 = vmatmul.mubr.bf16.gmra.mrb[0].mxu0 %v535
    %v6010 = vpop.f32.mrb[0].mxu0
    %v6011 = vadd.f32 %v5914, %v6010
    %v6012 = vpop.f32.mrb[0].mxu0
    %v6013 = vpop.f32.mrb[0].mxu0
    %v6014 = vadd.f32 %v5917, %v6013
    %v6015 = vpop.f32.mrb[0].mxu0
    %6016 = vmatprep.mubr.bf16.mxu0 0
    %6017 = vmatmul.mubr.bf16.gmra.mrb[0].mxu0 %v538
    %v6018 = vpop.f32.mrb[0].mxu0
    %v6019 = vadd.f32 %v5922, %v6018
    %v6020 = vpop.f32.mrb[0].mxu0
    %v6021 = vpop.f32.mrb[0].mxu0
    %v6022 = vadd.f32 %v5925, %v6021
    %v6023 = vpop.f32.mrb[0].mxu0
    %6024 = vmatprep.mubr.bf16.mxu0 0
    %6025 = vmatmul.mubr.bf16.gmra.mrb[0].mxu0 %v541
    %v6026 = vpop.f32.mrb[0].mxu0
    %v6027 = vadd.f32 %v5930, %v6026
    %v6028 = vpop.f32.mrb[0].mxu0
    %v6029 = vpop.f32.mrb[0].mxu0
    %v6030 = vadd.f32 %v5933, %v6029
    %v6031 = vpop.f32.mrb[0].mxu0
    %6032 = vmatprep.mubr.bf16.mxu0 0
    %6033 = vmatmul.mubr.bf16.gmra.mrb[0].mxu0 %v544
    %v6034 = vpop.f32.mrb[0].mxu0
    %v6035 = vadd.f32 %v5938, %v6034
    %v6036 = vpop.f32.mrb[0].mxu0
    %v6037 = vpop.f32.mrb[0].mxu0
    %v6038 = vadd.f32 %v5941, %v6037
    %v6039 = vpop.f32.mrb[0].mxu0
    %6040 = vdwg.mxu0
    %v6041 = vpack.c.bf16 %v5832, %v5831
    %v6042 = vpack.c.bf16 %v5834, %v5833
    %v6043 = vpack.c.bf16 %v5836, %v5835
    %v6044 = vpack.c.bf16 %v5838, %v5837
    %v6045 = vpack.c.bf16 %v5840, %v5839
    %v6046 = vpack.c.bf16 %v5842, %v5841
    %v6047 = vpack.c.bf16 %v5844, %v5843
    %v6048 = vpack.c.bf16 %v5846, %v5845
    %v6049 = vpack.c.bf16 %v5982, %v5979
    %v6050 = vpack.c.bf16 %v5990, %v5987
    %v6051 = vpack.c.bf16 %v5998, %v5995
    %v6052 = vpack.c.bf16 %v6006, %v6003
    %v6053 = vpack.c.bf16 %v6014, %v6011
    %v6054 = vpack.c.bf16 %v6022, %v6019
    %v6055 = vpack.c.bf16 %v6030, %v6027
    %v6056 = vpack.c.bf16 %v6038, %v6035
    %v6058 = vsel %vm521, %v6041, 0
    %v6061 = vsel %vm521, %v6042, 0
    %v6064 = vsel %vm521, %v6043, 0
    %v6067 = vsel %vm521, %v6044, 0
    %v6070 = vsel %vm521, %v6045, 0
    %v6073 = vsel %vm521, %v6046, 0
    %v6076 = vsel %vm521, %v6047, 0
    %v6079 = vsel %vm521, %v6048, 0
    %6081 = vmatprep.subr.bf16.mxu0 0
    %6082 = vmatpush1.bf16.msra.mxu0 %v1062
    %6083 = vmatprep.subr.bf16.mxu0 0
    %6084 = vmatpush1.bf16.msra.mxu0 0
    %6085 = vmatprep.subr.bf16.mxu0 0
    %6086 = vmatpush1.bf16.msra.mxu0 0
    %6087 = vmatprep.subr.bf16.mxu0 0
    %6088 = vmatpush1.bf16.msra.mxu0 0
    %6089 = vmatprep.subr.bf16.mxu0 0
    %6090 = vmatpush1.bf16.msra.mxu0 0
    %6091 = vmatprep.subr.bf16.mxu0 0
    %6092 = vmatpush1.bf16.msra.mxu0 0
    %6093 = vmatprep.subr.bf16.mxu0 0
    %6094 = vmatpush1.bf16.msra.mxu0 0
    %6095 = vmatprep.subr.bf16.mxu0 0
    %6096 = vmatpush1.bf16.msra.mxu0 0
    %6097 = vmatprep.subr.bf16.mxu0 0
    %6098 = vmatpush1.bf16.msra.mxu0 0
    %6099 = vmatprep.subr.bf16.mxu0 0
    %6100 = vmatpush1.bf16.msra.mxu0 0
    %6101 = vmatprep.subr.bf16.mxu0 0
    %6102 = vmatpush1.bf16.msra.mxu0 0
    %6103 = vmatprep.subr.bf16.mxu0 0
    %6104 = vmatpush1.bf16.msra.mxu0 0
    %6105 = vmatprep.subr.bf16.mxu0 0
    %6106 = vmatpush1.bf16.msra.mxu0 0
    %6107 = vmatprep.subr.bf16.mxu0 0
    %6108 = vmatpush1.bf16.msra.mxu0 0
    %6109 = vmatprep.subr.bf16.mxu0 0
    %6110 = vmatpush1.bf16.msra.mxu0 0
    %6111 = vmatprep.subr.bf16.mxu0 0
    %6112 = vmatpush1.bf16.msra.mxu0 0
    %6113 = vmatprep.mubr.bf16.mxu0 0
    %6114 = vmatmul.mubr.bf16.gmra.mrb[0].mxu0 %v6058
    %v6115 = vpop.f32.mrb[0].mxu0
    %v6116 = vadd.f32 0.0, %v6115
    %v6117 = vpop.f32.mrb[0].mxu0
    %v6118 = vpop.f32.mrb[0].mxu0
    %v6119 = vadd.f32 0.0, %v6118
    %v6120 = vpop.f32.mrb[0].mxu0
    %6121 = vmatprep.mubr.bf16.mxu0 0
    %6122 = vmatmul.mubr.bf16.gmra.mrb[0].mxu0 %v6061
    %v6123 = vpop.f32.mrb[0].mxu0
    %v6124 = vadd.f32 0.0, %v6123
    %v6125 = vpop.f32.mrb[0].mxu0
    %v6126 = vpop.f32.mrb[0].mxu0
    %v6127 = vadd.f32 0.0, %v6126
    %v6128 = vpop.f32.mrb[0].mxu0
    %6129 = vmatprep.mubr.bf16.mxu0 0
    %6130 = vmatmul.mubr.bf16.gmra.mrb[0].mxu0 %v6064
    %v6131 = vpop.f32.mrb[0].mxu0
    %v6132 = vadd.f32 0.0, %v6131
    %v6133 = vpop.f32.mrb[0].mxu0
    %v6134 = vpop.f32.mrb[0].mxu0
    %v6135 = vadd.f32 0.0, %v6134
    %v6136 = vpop.f32.mrb[0].mxu0
    %6137 = vmatprep.mubr.bf16.mxu0 0
    %6138 = vmatmul.mubr.bf16.gmra.mrb[0].mxu0 %v6067
    %v6139 = vpop.f32.mrb[0].mxu0
    %v6140 = vadd.f32 0.0, %v6139
    %v6141 = vpop.f32.mrb[0].mxu0
    %v6142 = vpop.f32.mrb[0].mxu0
    %v6143 = vadd.f32 0.0, %v6142
    %v6144 = vpop.f32.mrb[0].mxu0
    %6145 = vmatprep.mubr.bf16.mxu0 0
    %6146 = vmatmul.mubr.bf16.gmra.mrb[0].mxu0 %v6070
    %v6147 = vpop.f32.mrb[0].mxu0
    %v6148 = vadd.f32 0.0, %v6147
    %v6149 = vpop.f32.mrb[0].mxu0
    %v6150 = vpop.f32.mrb[0].mxu0
    %v6151 = vadd.f32 0.0, %v6150
    %v6152 = vpop.f32.mrb[0].mxu0
    %6153 = vmatprep.mubr.bf16.mxu0 0
    %6154 = vmatmul.mubr.bf16.gmra.mrb[0].mxu0 %v6073
    %v6155 = vpop.f32.mrb[0].mxu0
    %v6156 = vadd.f32 0.0, %v6155
    %v6157 = vpop.f32.mrb[0].mxu0
    %v6158 = vpop.f32.mrb[0].mxu0
    %v6159 = vadd.f32 0.0, %v6158
    %v6160 = vpop.f32.mrb[0].mxu0
    %6161 = vmatprep.mubr.bf16.mxu0 0
    %6162 = vmatmul.mubr.bf16.gmra.mrb[0].mxu0 %v6076
    %v6163 = vpop.f32.mrb[0].mxu0
    %v6164 = vadd.f32 0.0, %v6163
    %v6165 = vpop.f32.mrb[0].mxu0
    %v6166 = vpop.f32.mrb[0].mxu0
    %v6167 = vadd.f32 0.0, %v6166
    %v6168 = vpop.f32.mrb[0].mxu0
    %6169 = vmatprep.mubr.bf16.mxu0 0
    %6170 = vmatmul.mubr.bf16.gmra.mrb[0].mxu0 %v6079
    %v6171 = vpop.f32.mrb[0].mxu0
    %v6172 = vadd.f32 0.0, %v6171
    %v6173 = vpop.f32.mrb[0].mxu0
    %v6174 = vpop.f32.mrb[0].mxu0
    %v6175 = vadd.f32 0.0, %v6174
    %v6176 = vpop.f32.mrb[0].mxu0
    %6177 = vdwg.mxu0
    %v6179 = vsel %vm521, %v6049, 0
    %v6182 = vsel %vm521, %v6050, 0
    %v6185 = vsel %vm521, %v6051, 0
    %v6188 = vsel %vm521, %v6052, 0
    %v6191 = vsel %vm521, %v6053, 0
    %v6194 = vsel %vm521, %v6054, 0
    %v6197 = vsel %vm521, %v6055, 0
    %v6200 = vsel %vm521, %v6056, 0
    %6202 = vmatprep.subr.bf16.mxu0 0
    %6203 = vmatpush1.bf16.msra.mxu0 %v1186
    %6204 = vmatprep.subr.bf16.mxu0 0
    %6205 = vmatpush1.bf16.msra.mxu0 0
    %6206 = vmatprep.subr.bf16.mxu0 0
    %6207 = vmatpush1.bf16.msra.mxu0 0
    %6208 = vmatprep.subr.bf16.mxu0 0
    %6209 = vmatpush1.bf16.msra.mxu0 0
    %6210 = vmatprep.subr.bf16.mxu0 0
    %6211 = vmatpush1.bf16.msra.mxu0 0
    %6212 = vmatprep.subr.bf16.mxu0 0
    %6213 = vmatpush1.bf16.msra.mxu0 0
    %6214 = vmatprep.subr.bf16.mxu0 0
    %6215 = vmatpush1.bf16.msra.mxu0 0
    %6216 = vmatprep.subr.bf16.mxu0 0
    %6217 = vmatpush1.bf16.msra.mxu0 0
    %6218 = vmatprep.subr.bf16.mxu0 0
    %6219 = vmatpush1.bf16.msra.mxu0 0
    %6220 = vmatprep.subr.bf16.mxu0 0
    %6221 = vmatpush1.bf16.msra.mxu0 0
    %6222 = vmatprep.subr.bf16.mxu0 0
    %6223 = vmatpush1.bf16.msra.mxu0 0
    %6224 = vmatprep.subr.bf16.mxu0 0
    %6225 = vmatpush1.bf16.msra.mxu0 0
    %6226 = vmatprep.subr.bf16.mxu0 0
    %6227 = vmatpush1.bf16.msra.mxu0 0
    %6228 = vmatprep.subr.bf16.mxu0 0
    %6229 = vmatpush1.bf16.msra.mxu0 0
    %6230 = vmatprep.subr.bf16.mxu0 0
    %6231 = vmatpush1.bf16.msra.mxu0 0
    %6232 = vmatprep.subr.bf16.mxu0 0
    %6233 = vmatpush1.bf16.msra.mxu0 0
    %6234 = vmatprep.mubr.bf16.mxu0 0
    %6235 = vmatmul.mubr.bf16.gmra.mrb[0].mxu0 %v6179
    %v6236 = vpop.f32.mrb[0].mxu0
    %v6237 = vadd.f32 0.0, %v6236
    %v6238 = vpop.f32.mrb[0].mxu0
    %v6239 = vpop.f32.mrb[0].mxu0
    %v6240 = vadd.f32 0.0, %v6239
    %v6241 = vpop.f32.mrb[0].mxu0
    %6242 = vmatprep.mubr.bf16.mxu0 0
    %6243 = vmatmul.mubr.bf16.gmra.mrb[0].mxu0 %v6182
    %v6244 = vpop.f32.mrb[0].mxu0
    %v6245 = vadd.f32 0.0, %v6244
    %v6246 = vpop.f32.mrb[0].mxu0
    %v6247 = vpop.f32.mrb[0].mxu0
    %v6248 = vadd.f32 0.0, %v6247
    %v6249 = vpop.f32.mrb[0].mxu0
    %6250 = vmatprep.mubr.bf16.mxu0 0
    %6251 = vmatmul.mubr.bf16.gmra.mrb[0].mxu0 %v6185
    %v6252 = vpop.f32.mrb[0].mxu0
    %v6253 = vadd.f32 0.0, %v6252
    %v6254 = vpop.f32.mrb[0].mxu0
    %v6255 = vpop.f32.mrb[0].mxu0
    %v6256 = vadd.f32 0.0, %v6255
    %v6257 = vpop.f32.mrb[0].mxu0
    %6258 = vmatprep.mubr.bf16.mxu0 0
    %6259 = vmatmul.mubr.bf16.gmra.mrb[0].mxu0 %v6188
    %v6260 = vpop.f32.mrb[0].mxu0
    %v6261 = vadd.f32 0.0, %v6260
    %v6262 = vpop.f32.mrb[0].mxu0
    %v6263 = vpop.f32.mrb[0].mxu0
    %v6264 = vadd.f32 0.0, %v6263
    %v6265 = vpop.f32.mrb[0].mxu0
    %6266 = vmatprep.mubr.bf16.mxu0 0
    %6267 = vmatmul.mubr.bf16.gmra.mrb[0].mxu0 %v6191
    %v6268 = vpop.f32.mrb[0].mxu0
    %v6269 = vadd.f32 0.0, %v6268
    %v6270 = vpop.f32.mrb[0].mxu0
    %v6271 = vpop.f32.mrb[0].mxu0
    %v6272 = vadd.f32 0.0, %v6271
    %v6273 = vpop.f32.mrb[0].mxu0
    %6274 = vmatprep.mubr.bf16.mxu0 0
    %6275 = vmatmul.mubr.bf16.gmra.mrb[0].mxu0 %v6194
    %v6276 = vpop.f32.mrb[0].mxu0
    %v6277 = vadd.f32 0.0, %v6276
    %v6278 = vpop.f32.mrb[0].mxu0
    %v6279 = vpop.f32.mrb[0].mxu0
    %v6280 = vadd.f32 0.0, %v6279
    %v6281 = vpop.f32.mrb[0].mxu0
    %6282 = vmatprep.mubr.bf16.mxu0 0
    %6283 = vmatmul.mubr.bf16.gmra.mrb[0].mxu0 %v6197
    %v6284 = vpop.f32.mrb[0].mxu0
    %v6285 = vadd.f32 0.0, %v6284
    %v6286 = vpop.f32.mrb[0].mxu0
    %v6287 = vpop.f32.mrb[0].mxu0
    %v6288 = vadd.f32 0.0, %v6287
    %v6289 = vpop.f32.mrb[0].mxu0
    %6290 = vmatprep.mubr.bf16.mxu0 0
    %6291 = vmatmul.mubr.bf16.gmra.mrb[0].mxu0 %v6200
    %v6292 = vpop.f32.mrb[0].mxu0
    %v6293 = vadd.f32 0.0, %v6292
    %v6294 = vpop.f32.mrb[0].mxu0
    %v6295 = vpop.f32.mrb[0].mxu0
    %v6296 = vadd.f32 0.0, %v6295
    %v6297 = vpop.f32.mrb[0].mxu0
    %6298 = vdwg.mxu0
    %v6299 = vsub.f32 %v6116, %v6237
    %v6300 = vsub.f32 %v6119, %v6240
    %v6301 = vsub.f32 %v6124, %v6245
    %v6302 = vsub.f32 %v6127, %v6248
    %v6303 = vsub.f32 %v6132, %v6253
    %v6304 = vsub.f32 %v6135, %v6256
    %v6305 = vsub.f32 %v6140, %v6261
    %v6306 = vsub.f32 %v6143, %v6264
    %v6307 = vsub.f32 %v6148, %v6269
    %v6308 = vsub.f32 %v6151, %v6272
    %v6309 = vsub.f32 %v6156, %v6277
    %v6310 = vsub.f32 %v6159, %v6280
    %v6311 = vsub.f32 %v6164, %v6285
    %v6312 = vsub.f32 %v6167, %v6288
    %v6313 = vsub.f32 %v6172, %v6293
    %v6314 = vsub.f32 %v6175, %v6296
    %v6315 = vmul.f32 %v5362, 255.0
    %v6316 = vmul.f32 %v5363, 255.0
    %v6317 = vmul.f32 %v5364, 255.0
    %v6318 = vmul.f32 %v5365, 255.0
    %v6319 = vmul.f32 %v5366, 255.0
    %v6320 = vmul.f32 %v5367, 255.0
    %v6321 = vmul.f32 %v5368, 255.0
    %v6322 = vmul.f32 %v5369, 255.0
    %v6323 = vmul.f32 %v5370, 255.0
    %v6324 = vmul.f32 %v5371, 255.0
    %v6325 = vmul.f32 %v5372, 255.0
    %v6326 = vmul.f32 %v5373, 255.0
    %v6327 = vmul.f32 %v5374, 255.0
    %v6328 = vmul.f32 %v5375, 255.0
    %v6329 = vmul.f32 %v5376, 255.0
    %v6330 = vmul.f32 %v5377, 255.0
    %v6331 = vsub.f32 %v6315, %v6299
    %v6332 = vsub.f32 %v6316, %v6300
    %v6333 = vsub.f32 %v6317, %v6301
    %v6334 = vsub.f32 %v6318, %v6302
    %v6335 = vsub.f32 %v6319, %v6303
    %v6336 = vsub.f32 %v6320, %v6304
    %v6337 = vsub.f32 %v6321, %v6305
    %v6338 = vsub.f32 %v6322, %v6306
    %v6339 = vsub.f32 %v6323, %v6307
    %v6340 = vsub.f32 %v6324, %v6308
    %v6341 = vsub.f32 %v6325, %v6309
    %v6342 = vsub.f32 %v6326, %v6310
    %v6343 = vsub.f32 %v6327, %v6311
    %v6344 = vsub.f32 %v6328, %v6312
    %v6345 = vsub.f32 %v6329, %v6313
    %v6346 = vsub.f32 %v6330, %v6314
    %s6347 = scalar_lea.vmem [#allocation5], 640
    %6348 = vst [vmem:[%s6347] sm:$0xff] %v6331
    %6349 = vst [vmem:[%s6347 + $0x8] sm:$0xff] %v6332
    %6350 = vst [vmem:[%s6347 + $0x10] sm:$0xff] %v6333
    %6351 = vst [vmem:[%s6347 + $0x18] sm:$0xff] %v6334
    %6352 = vst [vmem:[%s6347 + $0x20] sm:$0xff] %v6335
    %6353 = vst [vmem:[%s6347 + $0x28] sm:$0xff] %v6336
    %6354 = vst [vmem:[%s6347 + $0x30] sm:$0xff] %v6337
    %6355 = vst [vmem:[%s6347 + $0x38] sm:$0xff] %v6338
    %6356 = vst [vmem:[%s6347 + $0x40] sm:$0xff] %v6339
    %6357 = vst [vmem:[%s6347 + $0x48] sm:$0xff] %v6340
    %6358 = vst [vmem:[%s6347 + $0x50] sm:$0xff] %v6341
    %6359 = vst [vmem:[%s6347 + $0x58] sm:$0xff] %v6342
    %6360 = vst [vmem:[%s6347 + $0x60] sm:$0xff] %v6343
    %6361 = vst [vmem:[%s6347 + $0x68] sm:$0xff] %v6344
    %6362 = vst [vmem:[%s6347 + $0x70] sm:$0xff] %v6345
    %6363 = vst [vmem:[%s6347 + $0x78] sm:$0xff] %v6346
    // Predicated region
    $region42: #{tpu_custom_call.1} parent=1 // pred_check
      _
    $region43: #{tpu_custom_call.1} parent=1 // pred_check_branch
      %6365 = sbr.rel (0) target = $region45
    $region44: #{tpu_custom_call.1} parent=1 // pred_region
      %s6367 = ssub.s32 12288, 12288
      %6368 = vsyncadd [#allocation4], %s6367
      %s6369 = sshll.u32 [#allocation5], 4
      %s6370 = int_to_ptr.vmem [resolvable:$true] %s6369
      %6375 = dma.vmem_to_hbm [thread:$0]  %s6370, 12288, %s9, [#allocation4], 128, 128, 8
    $region45: #{tpu_custom_call.1} parent=1 // pred_fallthru
      _
    // Predicated region
    $region46: #{tpu_custom_call.1} parent=1 // pred_check
      _
    $region47: #{tpu_custom_call.1} parent=1 // pred_check_branch
      %6377 = sbr.rel (0) target = $region49
    $region48: #{tpu_custom_call.1} parent=1 // pred_region
      %6378 = dma.done [#allocation4], 12288
    $region49: #{tpu_custom_call.1} parent=1 // pred_fallthru
      _
    %6379 = vsyncpa [#allocation3], 1
    %6380 = vsyncpa [#allocation4], 1

</llo_original>
